<compile_context>
chip_gen: v7x
topology: tpu7x:2x2x1
jax: 0.10.0
libtpu: 0.0.40
codegen_flags: <defaults>
</compile_context>

<pallas_src>
import functools
import math

import jax
import jax.numpy as jnp
from jax import lax
from jax.experimental import pallas as pl
from jax.experimental.pallas import tpu as pltpu

N_TARGET_FRAMES = 128


def _mha_kernel(qkv_ref, w1t_ref, w2t_ref, o_ref, *,
                scale, n_heads, head_dim, nb, seq, d_model):
    """Fused MHA for `nb` batch elements held in one block.

    qkv_ref : (nb*3*seq, depth)  rows = [q_0; k_0; v_0; q_1; k_1; v_1; ...]
    w1t_ref : (depth, depth)     fc1.weight^T (shared by Q/K/V)
    w2t_ref : (depth, d_model)   fc2.weight^T
    o_ref   : (seq, nb*d_model)  batch j occupies columns [j*d_model, (j+1)*d_model)
    """
    w1t = w1t_ref[...]                                        # (depth, depth)

    for j in range(nb):                                       # static (nb in {1, 2})
        base = j * 3 * seq
        # One fused fc1 matmul for this batch element's sublane-stacked q/k/v:
        # (3*seq, depth) @ (depth, depth) -> (3*seq, depth).
        proj = jnp.dot(qkv_ref[base:base + 3 * seq, :], w1t,
                       preferred_element_type=jnp.float32)

        out_acc = None                                        # (seq, d_model) running fc2 sum
        for h in range(n_heads):                              # static unrolled head loop
            lo = h * head_dim
            # Scale folded into the small Q operand (commutes through QK^T):
            # (seq, head_dim) multiplies instead of scaling the (seq, seq) scores.
            q_h = proj[0:seq, lo:lo + head_dim] * scale
            k_h = proj[seq:2 * seq, lo:lo + head_dim]
            v_h = proj[2 * seq:3 * seq, lo:lo + head_dim]

            # Q @ K^T with the transpose folded into the dot_general contracting dims.
            s = lax.dot_general(q_h, k_h, (((1,), (1,)), ((), ())),
                                preferred_element_type=jnp.float32)   # (seq, seq)

            # TODO(synk): attention_mask path not implemented — the PyTorch module
            # passes `mask=` to nn.Softmax, which vanilla PyTorch does not support;
            # only the mask=None path is reproduced here.
            s = s - jnp.max(s, axis=-1, keepdims=True)
            p = jnp.exp(s)
            denom = jnp.sum(p, axis=-1, keepdims=True)
            p = p * pl.reciprocal(denom, approx=True)                 # EUP slot

            ctx_h = jnp.dot(p, v_h, preferred_element_type=jnp.float32)  # (seq, head_dim)

            # fc2 accumulated per head against a sublane slice of w2^T — no
            # lane-axis head concat; s / p / ctx_h die each iteration.
            contrib = jnp.dot(ctx_h, w2t_ref[lo:lo + head_dim, :],
                              preferred_element_type=jnp.float32)     # (seq, d_model)
            out_acc = contrib if out_acc is None else out_acc + contrib

        o_ref[:, j * d_model:(j + 1) * d_model] = out_acc
        # NOTE: dropout is identity in the forward (eval) pass.


def _tensorcores_per_device() -> int:
    """Best-effort TensorCore count per addressable device (2 on v7x, else 1)."""
    try:
        kind = jax.devices()[0].device_kind.lower()
    except Exception:
        return 1
    return 2 if "v7" in kind else 1


def multi_head_attention(q, k, v, w1, w2, *, n_heads):
    """q, k, v: (B, N, depth); w1: (depth, depth) = fc1.weight; w2: (d_model, depth) = fc2.weight."""
    B, N, depth = q.shape
    d_model = w2.shape[0]
    assert depth == d_model // 2
    assert depth % n_heads == 0
    hd = depth // n_heads
    scale = 1.0 / math.sqrt(float(depth))   # module scale: 1/sqrt(depth), not 1/sqrt(head_dim)

    # Wrapper-side layout plumbing (not compute): pre-transpose weights so the
    # kernel never transposes, and stack q/k/v along the sublane axis so fc1 is
    # a single matmul per batch element inside the kernel.
    w1t = jnp.transpose(w1)                                    # (depth, depth)
    w2t = jnp.transpose(w2)                                    # (depth, d_model)
    qkv = jnp.concatenate([q, k, v], axis=1).reshape(B * 3 * N, depth)

    weight_specs = [
        pl.BlockSpec((depth, depth), lambda b: (0, 0)),        # fc1.weight^T (full)
        pl.BlockSpec((depth, d_model), lambda b: (0, 0)),      # fc2.weight^T (full)
    ]

    multi_tc = _tensorcores_per_device() > 1 and B > 1

    if multi_tc:
        # v7x: two TensorCores -> keep one batch element per grid step so the
        # "parallel" axis can be sharded across TCs.
        # TODO(synk): verify in the lowering/trace that both TCs are actually
        # busy; if not, switch to pltpu.CORE_PARALLEL / an explicit TC mesh.
        kernel = functools.partial(_mha_kernel, scale=scale, n_heads=n_heads,
                                   head_dim=hd, nb=1, seq=N, d_model=d_model)
        return pl.pallas_call(
            kernel,
            out_shape=jax.ShapeDtypeStruct((B, N, d_model), jnp.float32),
            grid_spec=pltpu.PrefetchScalarGridSpec(
                num_scalar_prefetch=0,
                grid=(B,),
                in_specs=[pl.BlockSpec((3 * N, depth), lambda b: (b, 0))] + weight_specs,
                out_specs=pl.BlockSpec((None, N, d_model), lambda b: (b, 0, 0)),
            ),
            compiler_params=pltpu.CompilerParams(
                dimension_semantics=("parallel",)),
        )(qkv, w1t, w2t)

    # v5e / v6e (single TensorCore): one grid step processes the whole batch
    # (no per-step pipeline overhead) and writes a lane-dense (N, B*d_model)
    # output slab; the reshape/transpose back is wrapper-side plumbing.
    kernel = functools.partial(_mha_kernel, scale=scale, n_heads=n_heads,
                               head_dim=hd, nb=B, seq=N, d_model=d_model)
    out2d = pl.pallas_call(
        kernel,
        out_shape=jax.ShapeDtypeStruct((N, B * d_model), jnp.float32),
        grid_spec=pltpu.PrefetchScalarGridSpec(
            num_scalar_prefetch=0,
            grid=(1,),
            in_specs=[pl.BlockSpec((B * 3 * N, depth), lambda b: (0, 0))] + weight_specs,
            out_specs=pl.BlockSpec((N, B * d_model), lambda b: (0, 0)),
        ),
        compiler_params=pltpu.CompilerParams(
            dimension_semantics=("arbitrary",)),
    )(qkv, w1t, w2t)
    return jnp.transpose(out2d.reshape(N, B, d_model), (1, 0, 2))


def _reference(q, k, v, w1, w2, *, n_heads):
    """Plain-JAX reference of the intended forward pass."""
    B, N, depth = q.shape
    d_model = w2.shape[0]
    hd = depth // n_heads
    scale = 1.0 / math.sqrt(float(depth))

    def reshape_heads(x):  # (B, N, depth) -> (B, H, N, hd)
        return jnp.transpose(x.reshape(B, N, n_heads, hd), (0, 2, 1, 3))

    Q = reshape_heads(q @ w1.T)
    K = reshape_heads(k @ w1.T)
    V = reshape_heads(v @ w1.T)
    s = jnp.einsum("bhqd,bhkd->bhqk", Q, K) * scale
    p = jax.nn.softmax(s, axis=-1)
    ctx = jnp.einsum("bhqk,bhkd->bhqd", p, V)
    merged = jnp.transpose(ctx, (0, 2, 1, 3)).reshape(B, N, depth)
    return merged @ w2.T


if __name__ == "__main__":
    # Shapes consistent with the module: d_model=64 -> depth=32, n_heads=4, N=128.
    B = 2
    d_model = 64
    n_heads = 4
    depth = d_model // 2

    key = jax.random.PRNGKey(0)
    kq, kk, kv, kw1, kw2 = jax.random.split(key, 5)

    q = jax.random.normal(kq, (B, N_TARGET_FRAMES, depth), dtype=jnp.float32)
    k = jax.random.normal(kk, (B, N_TARGET_FRAMES, depth), dtype=jnp.float32)
    v = jax.random.normal(kv, (B, N_TARGET_FRAMES, depth), dtype=jnp.float32)

    # Deterministic "nn.Linear(bias=False)"-style weights: U(-1/sqrt(fan_in), 1/sqrt(fan_in)).
    lim1 = 1.0 / math.sqrt(depth)
    w1 = jax.random.uniform(kw1, (depth, depth), jnp.float32, -lim1, lim1)     # fc1.weight
    w2 = jax.random.uniform(kw2, (d_model, depth), jnp.float32, -lim1, lim1)   # fc2.weight

    out = multi_head_attention(q, k, v, w1, w2, n_heads=n_heads)
    out = jax.block_until_ready(out)

    ref = _reference(q, k, v, w1, w2, n_heads=n_heads)
    assert out.shape == (B, N_TARGET_FRAMES, d_model)
    # Tolerance loosened slightly to accommodate the EUP approximate reciprocal
    # in the softmax denominator (otherwise the kernel is full f32).
    assert jnp.allclose(out, ref, rtol=5e-3, atol=5e-3), "Pallas output mismatch vs reference"

    print("KERNEL_OK")
</pallas_src>

<mosaic_0001>
module attributes {stable_mosaic.version = 11 : i64} {
  func.func @_mha_kernel(%arg0: i32, %arg1: memref<768x32xf32, #tpu.memory_space<vmem>>, %arg2: memref<32x32xf32, #tpu.memory_space<vmem>>, %arg3: memref<32x64xf32, #tpu.memory_space<vmem>>, %arg4: memref<128x128xf32, #tpu.memory_space<vmem>>) attributes {dimension_semantics = [#tpu.dimension_semantics<arbitrary>], iteration_bounds = array<i64: 1>, scalar_prefetch = 0 : i64, scratch_operands = 0 : i64, tpu.core_type = #tpu.core_type<tc>, window_params = [{pipeline_mode = #tpu.pipeline_mode<synchronous>, transform_indices = @transform_0, window_bounds = array<i64: 768, 32>}, {pipeline_mode = #tpu.pipeline_mode<synchronous>, transform_indices = @transform_1, window_bounds = array<i64: 32, 32>}, {pipeline_mode = #tpu.pipeline_mode<synchronous>, transform_indices = @transform_2, window_bounds = array<i64: 32, 64>}, {pipeline_mode = #tpu.pipeline_mode<synchronous>, transform_indices = @transform_3, window_bounds = array<i64: 128, 128>}]} {
    %c0 = arith.constant 0 : index
    %c0_0 = arith.constant 0 : index
    %0 = vector.load %arg2[%c0, %c0_0] : memref<32x32xf32, #tpu.memory_space<vmem>>, vector<32x32xf32>
    %c0_1 = arith.constant 0 : index
    %c0_2 = arith.constant 0 : index
    %1 = vector.load %arg1[%c0_1, %c0_2] : memref<768x32xf32, #tpu.memory_space<vmem>>, vector<384x32xf32>
    %cst = arith.constant dense<0.000000e+00> : vector<384x32xf32>
    %2 = tpu.matmul %1, %0, %cst {dimension_numbers = #tpu.dot_dimension_numbers<[1], [0], [0], [1], [0, 0, 1, 1], [], []>} : vector<384x32xf32>, vector<32x32xf32>, vector<384x32xf32> -> vector<384x32xf32>
    %3 = vector.extract_strided_slice %2 {offsets = [0, 0], sizes = [128, 8], strides = [1, 1]} : vector<384x32xf32> to vector<128x8xf32>
    %cst_3 = arith.constant 0.176776692 : f32
    %4 = vector.broadcast %cst_3 : f32 to vector<128x8xf32>
    %5 = arith.mulf %3, %4 : vector<128x8xf32>
    %6 = vector.extract_strided_slice %2 {offsets = [128, 0], sizes = [128, 8], strides = [1, 1]} : vector<384x32xf32> to vector<128x8xf32>
    %7 = vector.extract_strided_slice %2 {offsets = [256, 0], sizes = [128, 8], strides = [1, 1]} : vector<384x32xf32> to vector<128x8xf32>
    %cst_4 = arith.constant dense<0.000000e+00> : vector<128x128xf32>
    %8 = tpu.matmul %5, %6, %cst_4 {dimension_numbers = #tpu.dot_dimension_numbers<[1], [1], [0], [0], [0, 0, 1, 0], [], []>} : vector<128x8xf32>, vector<128x8xf32>, vector<128x128xf32> -> vector<128x128xf32>
    %cst_5 = arith.constant dense<0xFF800000> : vector<128xf32>
    %9 = vector.multi_reduction <maximumf>, %8, %cst_5 [1] : vector<128x128xf32> to vector<128xf32>
    %10 = vector.shape_cast %9 : vector<128xf32> to vector<128x1xf32>
    %11 = vector.broadcast %10 : vector<128x1xf32> to vector<128x128xf32>
    %12 = arith.subf %8, %11 : vector<128x128xf32>
    %13 = math.exp %12 : vector<128x128xf32>
    %cst_6 = arith.constant dense<0.000000e+00> : vector<128xf32>
    %14 = vector.multi_reduction <add>, %13, %cst_6 [1] : vector<128x128xf32> to vector<128xf32>
    %15 = vector.shape_cast %14 : vector<128xf32> to vector<128x1xf32>
    %16 = tpu.reciprocal %15 {approx = true} : vector<128x1xf32> -> vector<128x1xf32>
    %17 = vector.broadcast %16 : vector<128x1xf32> to vector<128x128xf32>
    %18 = arith.mulf %13, %17 : vector<128x128xf32>
    %cst_7 = arith.constant dense<0.000000e+00> : vector<128x8xf32>
    %19 = tpu.matmul %18, %7, %cst_7 {dimension_numbers = #tpu.dot_dimension_numbers<[1], [0], [0], [1], [0, 0, 1, 1], [], []>} : vector<128x128xf32>, vector<128x8xf32>, vector<128x8xf32> -> vector<128x8xf32>
    %c0_8 = arith.constant 0 : index
    %c0_9 = arith.constant 0 : index
    %20 = vector.load %arg3[%c0_8, %c0_9] : memref<32x64xf32, #tpu.memory_space<vmem>>, vector<8x64xf32>
    %cst_10 = arith.constant dense<0.000000e+00> : vector<128x64xf32>
    %21 = tpu.matmul %19, %20, %cst_10 {dimension_numbers = #tpu.dot_dimension_numbers<[1], [0], [0], [1], [0, 0, 1, 1], [], []>} : vector<128x8xf32>, vector<8x64xf32>, vector<128x64xf32> -> vector<128x64xf32>
    %22 = vector.extract_strided_slice %2 {offsets = [0, 8], sizes = [128, 8], strides = [1, 1]} : vector<384x32xf32> to vector<128x8xf32>
    %cst_11 = arith.constant 0.176776692 : f32
    %23 = vector.broadcast %cst_11 : f32 to vector<128x8xf32>
    %24 = arith.mulf %22, %23 : vector<128x8xf32>
    %25 = vector.extract_strided_slice %2 {offsets = [128, 8], sizes = [128, 8], strides = [1, 1]} : vector<384x32xf32> to vector<128x8xf32>
    %26 = vector.extract_strided_slice %2 {offsets = [256, 8], sizes = [128, 8], strides = [1, 1]} : vector<384x32xf32> to vector<128x8xf32>
    %cst_12 = arith.constant dense<0.000000e+00> : vector<128x128xf32>
    %27 = tpu.matmul %24, %25, %cst_12 {dimension_numbers = #tpu.dot_dimension_numbers<[1], [1], [0], [0], [0, 0, 1, 0], [], []>} : vector<128x8xf32>, vector<128x8xf32>, vector<128x128xf32> -> vector<128x128xf32>
    %cst_13 = arith.constant dense<0xFF800000> : vector<128xf32>
    %28 = vector.multi_reduction <maximumf>, %27, %cst_13 [1] : vector<128x128xf32> to vector<128xf32>
    %29 = vector.shape_cast %28 : vector<128xf32> to vector<128x1xf32>
    %30 = vector.broadcast %29 : vector<128x1xf32> to vector<128x128xf32>
    %31 = arith.subf %27, %30 : vector<128x128xf32>
    %32 = math.exp %31 : vector<128x128xf32>
    %cst_14 = arith.constant dense<0.000000e+00> : vector<128xf32>
    %33 = vector.multi_reduction <add>, %32, %cst_14 [1] : vector<128x128xf32> to vector<128xf32>
    %34 = vector.shape_cast %33 : vector<128xf32> to vector<128x1xf32>
    %35 = tpu.reciprocal %34 {approx = true} : vector<128x1xf32> -> vector<128x1xf32>
    %36 = vector.broadcast %35 : vector<128x1xf32> to vector<128x128xf32>
    %37 = arith.mulf %32, %36 : vector<128x128xf32>
    %cst_15 = arith.constant dense<0.000000e+00> : vector<128x8xf32>
    %38 = tpu.matmul %37, %26, %cst_15 {dimension_numbers = #tpu.dot_dimension_numbers<[1], [0], [0], [1], [0, 0, 1, 1], [], []>} : vector<128x128xf32>, vector<128x8xf32>, vector<128x8xf32> -> vector<128x8xf32>
    %c8 = arith.constant 8 : index
    %c0_16 = arith.constant 0 : index
    %39 = vector.load %arg3[%c8, %c0_16] : memref<32x64xf32, #tpu.memory_space<vmem>>, vector<8x64xf32>
    %cst_17 = arith.constant dense<0.000000e+00> : vector<128x64xf32>
    %40 = tpu.matmul %38, %39, %cst_17 {dimension_numbers = #tpu.dot_dimension_numbers<[1], [0], [0], [1], [0, 0, 1, 1], [], []>} : vector<128x8xf32>, vector<8x64xf32>, vector<128x64xf32> -> vector<128x64xf32>
    %41 = arith.addf %21, %40 : vector<128x64xf32>
    %42 = vector.extract_strided_slice %2 {offsets = [0, 16], sizes = [128, 8], strides = [1, 1]} : vector<384x32xf32> to vector<128x8xf32>
    %cst_18 = arith.constant 0.176776692 : f32
    %43 = vector.broadcast %cst_18 : f32 to vector<128x8xf32>
    %44 = arith.mulf %42, %43 : vector<128x8xf32>
    %45 = vector.extract_strided_slice %2 {offsets = [128, 16], sizes = [128, 8], strides = [1, 1]} : vector<384x32xf32> to vector<128x8xf32>
    %46 = vector.extract_strided_slice %2 {offsets = [256, 16], sizes = [128, 8], strides = [1, 1]} : vector<384x32xf32> to vector<128x8xf32>
    %cst_19 = arith.constant dense<0.000000e+00> : vector<128x128xf32>
    %47 = tpu.matmul %44, %45, %cst_19 {dimension_numbers = #tpu.dot_dimension_numbers<[1], [1], [0], [0], [0, 0, 1, 0], [], []>} : vector<128x8xf32>, vector<128x8xf32>, vector<128x128xf32> -> vector<128x128xf32>
    %cst_20 = arith.constant dense<0xFF800000> : vector<128xf32>
    %48 = vector.multi_reduction <maximumf>, %47, %cst_20 [1] : vector<128x128xf32> to vector<128xf32>
    %49 = vector.shape_cast %48 : vector<128xf32> to vector<128x1xf32>
    %50 = vector.broadcast %49 : vector<128x1xf32> to vector<128x128xf32>
    %51 = arith.subf %47, %50 : vector<128x128xf32>
    %52 = math.exp %51 : vector<128x128xf32>
    %cst_21 = arith.constant dense<0.000000e+00> : vector<128xf32>
    %53 = vector.multi_reduction <add>, %52, %cst_21 [1] : vector<128x128xf32> to vector<128xf32>
    %54 = vector.shape_cast %53 : vector<128xf32> to vector<128x1xf32>
    %55 = tpu.reciprocal %54 {approx = true} : vector<128x1xf32> -> vector<128x1xf32>
    %56 = vector.broadcast %55 : vector<128x1xf32> to vector<128x128xf32>
    %57 = arith.mulf %52, %56 : vector<128x128xf32>
    %cst_22 = arith.constant dense<0.000000e+00> : vector<128x8xf32>
    %58 = tpu.matmul %57, %46, %cst_22 {dimension_numbers = #tpu.dot_dimension_numbers<[1], [0], [0], [1], [0, 0, 1, 1], [], []>} : vector<128x128xf32>, vector<128x8xf32>, vector<128x8xf32> -> vector<128x8xf32>
    %c16 = arith.constant 16 : index
    %c0_23 = arith.constant 0 : index
    %59 = vector.load %arg3[%c16, %c0_23] : memref<32x64xf32, #tpu.memory_space<vmem>>, vector<8x64xf32>
    %cst_24 = arith.constant dense<0.000000e+00> : vector<128x64xf32>
    %60 = tpu.matmul %58, %59, %cst_24 {dimension_numbers = #tpu.dot_dimension_numbers<[1], [0], [0], [1], [0, 0, 1, 1], [], []>} : vector<128x8xf32>, vector<8x64xf32>, vector<128x64xf32> -> vector<128x64xf32>
    %61 = arith.addf %41, %60 : vector<128x64xf32>
    %62 = vector.extract_strided_slice %2 {offsets = [0, 24], sizes = [128, 8], strides = [1, 1]} : vector<384x32xf32> to vector<128x8xf32>
    %cst_25 = arith.constant 0.176776692 : f32
    %63 = vector.broadcast %cst_25 : f32 to vector<128x8xf32>
    %64 = arith.mulf %62, %63 : vector<128x8xf32>
    %65 = vector.extract_strided_slice %2 {offsets = [128, 24], sizes = [128, 8], strides = [1, 1]} : vector<384x32xf32> to vector<128x8xf32>
    %66 = vector.extract_strided_slice %2 {offsets = [256, 24], sizes = [128, 8], strides = [1, 1]} : vector<384x32xf32> to vector<128x8xf32>
    %cst_26 = arith.constant dense<0.000000e+00> : vector<128x128xf32>
    %67 = tpu.matmul %64, %65, %cst_26 {dimension_numbers = #tpu.dot_dimension_numbers<[1], [1], [0], [0], [0, 0, 1, 0], [], []>} : vector<128x8xf32>, vector<128x8xf32>, vector<128x128xf32> -> vector<128x128xf32>
    %cst_27 = arith.constant dense<0xFF800000> : vector<128xf32>
    %68 = vector.multi_reduction <maximumf>, %67, %cst_27 [1] : vector<128x128xf32> to vector<128xf32>
    %69 = vector.shape_cast %68 : vector<128xf32> to vector<128x1xf32>
    %70 = vector.broadcast %69 : vector<128x1xf32> to vector<128x128xf32>
    %71 = arith.subf %67, %70 : vector<128x128xf32>
    %72 = math.exp %71 : vector<128x128xf32>
    %cst_28 = arith.constant dense<0.000000e+00> : vector<128xf32>
    %73 = vector.multi_reduction <add>, %72, %cst_28 [1] : vector<128x128xf32> to vector<128xf32>
    %74 = vector.shape_cast %73 : vector<128xf32> to vector<128x1xf32>
    %75 = tpu.reciprocal %74 {approx = true} : vector<128x1xf32> -> vector<128x1xf32>
    %76 = vector.broadcast %75 : vector<128x1xf32> to vector<128x128xf32>
    %77 = arith.mulf %72, %76 : vector<128x128xf32>
    %cst_29 = arith.constant dense<0.000000e+00> : vector<128x8xf32>
    %78 = tpu.matmul %77, %66, %cst_29 {dimension_numbers = #tpu.dot_dimension_numbers<[1], [0], [0], [1], [0, 0, 1, 1], [], []>} : vector<128x128xf32>, vector<128x8xf32>, vector<128x8xf32> -> vector<128x8xf32>
    %c24 = arith.constant 24 : index
    %c0_30 = arith.constant 0 : index
    %79 = vector.load %arg3[%c24, %c0_30] : memref<32x64xf32, #tpu.memory_space<vmem>>, vector<8x64xf32>
    %cst_31 = arith.constant dense<0.000000e+00> : vector<128x64xf32>
    %80 = tpu.matmul %78, %79, %cst_31 {dimension_numbers = #tpu.dot_dimension_numbers<[1], [0], [0], [1], [0, 0, 1, 1], [], []>} : vector<128x8xf32>, vector<8x64xf32>, vector<128x64xf32> -> vector<128x64xf32>
    %81 = arith.addf %61, %80 : vector<128x64xf32>
    %c0_32 = arith.constant 0 : index
    %c0_33 = arith.constant 0 : index
    %82 = vector.load %arg4[%c0_32, %c0_33] : memref<128x128xf32, #tpu.memory_space<vmem>>, vector<128x64xf32>
    tpu.vector_store %arg4[%c0_32, %c0_33], %81 {strides = array<i32>} : memref<128x128xf32, #tpu.memory_space<vmem>>, vector<128x64xf32>,
    %c384 = arith.constant 384 : index
    %c0_34 = arith.constant 0 : index
    %83 = vector.load %arg1[%c384, %c0_34] : memref<768x32xf32, #tpu.memory_space<vmem>>, vector<384x32xf32>
    %cst_35 = arith.constant dense<0.000000e+00> : vector<384x32xf32>
    %84 = tpu.matmul %83, %0, %cst_35 {dimension_numbers = #tpu.dot_dimension_numbers<[1], [0], [0], [1], [0, 0, 1, 1], [], []>} : vector<384x32xf32>, vector<32x32xf32>, vector<384x32xf32> -> vector<384x32xf32>
    %85 = vector.extract_strided_slice %84 {offsets = [0, 0], sizes = [128, 8], strides = [1, 1]} : vector<384x32xf32> to vector<128x8xf32>
    %cst_36 = arith.constant 0.176776692 : f32
    %86 = vector.broadcast %cst_36 : f32 to vector<128x8xf32>
    %87 = arith.mulf %85, %86 : vector<128x8xf32>
    %88 = vector.extract_strided_slice %84 {offsets = [128, 0], sizes = [128, 8], strides = [1, 1]} : vector<384x32xf32> to vector<128x8xf32>
    %89 = vector.extract_strided_slice %84 {offsets = [256, 0], sizes = [128, 8], strides = [1, 1]} : vector<384x32xf32> to vector<128x8xf32>
    %cst_37 = arith.constant dense<0.000000e+00> : vector<128x128xf32>
    %90 = tpu.matmul %87, %88, %cst_37 {dimension_numbers = #tpu.dot_dimension_numbers<[1], [1], [0], [0], [0, 0, 1, 0], [], []>} : vector<128x8xf32>, vector<128x8xf32>, vector<128x128xf32> -> vector<128x128xf32>
    %cst_38 = arith.constant dense<0xFF800000> : vector<128xf32>
    %91 = vector.multi_reduction <maximumf>, %90, %cst_38 [1] : vector<128x128xf32> to vector<128xf32>
    %92 = vector.shape_cast %91 : vector<128xf32> to vector<128x1xf32>
    %93 = vector.broadcast %92 : vector<128x1xf32> to vector<128x128xf32>
    %94 = arith.subf %90, %93 : vector<128x128xf32>
    %95 = math.exp %94 : vector<128x128xf32>
    %cst_39 = arith.constant dense<0.000000e+00> : vector<128xf32>
    %96 = vector.multi_reduction <add>, %95, %cst_39 [1] : vector<128x128xf32> to vector<128xf32>
    %97 = vector.shape_cast %96 : vector<128xf32> to vector<128x1xf32>
    %98 = tpu.reciprocal %97 {approx = true} : vector<128x1xf32> -> vector<128x1xf32>
    %99 = vector.broadcast %98 : vector<128x1xf32> to vector<128x128xf32>
    %100 = arith.mulf %95, %99 : vector<128x128xf32>
    %cst_40 = arith.constant dense<0.000000e+00> : vector<128x8xf32>
    %101 = tpu.matmul %100, %89, %cst_40 {dimension_numbers = #tpu.dot_dimension_numbers<[1], [0], [0], [1], [0, 0, 1, 1], [], []>} : vector<128x128xf32>, vector<128x8xf32>, vector<128x8xf32> -> vector<128x8xf32>
    %c0_41 = arith.constant 0 : index
    %c0_42 = arith.constant 0 : index
    %102 = vector.load %arg3[%c0_41, %c0_42] : memref<32x64xf32, #tpu.memory_space<vmem>>, vector<8x64xf32>
    %cst_43 = arith.constant dense<0.000000e+00> : vector<128x64xf32>
    %103 = tpu.matmul %101, %102, %cst_43 {dimension_numbers = #tpu.dot_dimension_numbers<[1], [0], [0], [1], [0, 0, 1, 1], [], []>} : vector<128x8xf32>, vector<8x64xf32>, vector<128x64xf32> -> vector<128x64xf32>
    %104 = vector.extract_strided_slice %84 {offsets = [0, 8], sizes = [128, 8], strides = [1, 1]} : vector<384x32xf32> to vector<128x8xf32>
    %cst_44 = arith.constant 0.176776692 : f32
    %105 = vector.broadcast %cst_44 : f32 to vector<128x8xf32>
    %106 = arith.mulf %104, %105 : vector<128x8xf32>
    %107 = vector.extract_strided_slice %84 {offsets = [128, 8], sizes = [128, 8], strides = [1, 1]} : vector<384x32xf32> to vector<128x8xf32>
    %108 = vector.extract_strided_slice %84 {offsets = [256, 8], sizes = [128, 8], strides = [1, 1]} : vector<384x32xf32> to vector<128x8xf32>
    %cst_45 = arith.constant dense<0.000000e+00> : vector<128x128xf32>
    %109 = tpu.matmul %106, %107, %cst_45 {dimension_numbers = #tpu.dot_dimension_numbers<[1], [1], [0], [0], [0, 0, 1, 0], [], []>} : vector<128x8xf32>, vector<128x8xf32>, vector<128x128xf32> -> vector<128x128xf32>
    %cst_46 = arith.constant dense<0xFF800000> : vector<128xf32>
    %110 = vector.multi_reduction <maximumf>, %109, %cst_46 [1] : vector<128x128xf32> to vector<128xf32>
    %111 = vector.shape_cast %110 : vector<128xf32> to vector<128x1xf32>
    %112 = vector.broadcast %111 : vector<128x1xf32> to vector<128x128xf32>
    %113 = arith.subf %109, %112 : vector<128x128xf32>
    %114 = math.exp %113 : vector<128x128xf32>
    %cst_47 = arith.constant dense<0.000000e+00> : vector<128xf32>
    %115 = vector.multi_reduction <add>, %114, %cst_47 [1] : vector<128x128xf32> to vector<128xf32>
    %116 = vector.shape_cast %115 : vector<128xf32> to vector<128x1xf32>
    %117 = tpu.reciprocal %116 {approx = true} : vector<128x1xf32> -> vector<128x1xf32>
    %118 = vector.broadcast %117 : vector<128x1xf32> to vector<128x128xf32>
    %119 = arith.mulf %114, %118 : vector<128x128xf32>
    %cst_48 = arith.constant dense<0.000000e+00> : vector<128x8xf32>
    %120 = tpu.matmul %119, %108, %cst_48 {dimension_numbers = #tpu.dot_dimension_numbers<[1], [0], [0], [1], [0, 0, 1, 1], [], []>} : vector<128x128xf32>, vector<128x8xf32>, vector<128x8xf32> -> vector<128x8xf32>
    %c8_49 = arith.constant 8 : index
    %c0_50 = arith.constant 0 : index
    %121 = vector.load %arg3[%c8_49, %c0_50] : memref<32x64xf32, #tpu.memory_space<vmem>>, vector<8x64xf32>
    %cst_51 = arith.constant dense<0.000000e+00> : vector<128x64xf32>
    %122 = tpu.matmul %120, %121, %cst_51 {dimension_numbers = #tpu.dot_dimension_numbers<[1], [0], [0], [1], [0, 0, 1, 1], [], []>} : vector<128x8xf32>, vector<8x64xf32>, vector<128x64xf32> -> vector<128x64xf32>
    %123 = arith.addf %103, %122 : vector<128x64xf32>
    %124 = vector.extract_strided_slice %84 {offsets = [0, 16], sizes = [128, 8], strides = [1, 1]} : vector<384x32xf32> to vector<128x8xf32>
    %cst_52 = arith.constant 0.176776692 : f32
    %125 = vector.broadcast %cst_52 : f32 to vector<128x8xf32>
    %126 = arith.mulf %124, %125 : vector<128x8xf32>
    %127 = vector.extract_strided_slice %84 {offsets = [128, 16], sizes = [128, 8], strides = [1, 1]} : vector<384x32xf32> to vector<128x8xf32>
    %128 = vector.extract_strided_slice %84 {offsets = [256, 16], sizes = [128, 8], strides = [1, 1]} : vector<384x32xf32> to vector<128x8xf32>
    %cst_53 = arith.constant dense<0.000000e+00> : vector<128x128xf32>
    %129 = tpu.matmul %126, %127, %cst_53 {dimension_numbers = #tpu.dot_dimension_numbers<[1], [1], [0], [0], [0, 0, 1, 0], [], []>} : vector<128x8xf32>, vector<128x8xf32>, vector<128x128xf32> -> vector<128x128xf32>
    %cst_54 = arith.constant dense<0xFF800000> : vector<128xf32>
    %130 = vector.multi_reduction <maximumf>, %129, %cst_54 [1] : vector<128x128xf32> to vector<128xf32>
    %131 = vector.shape_cast %130 : vector<128xf32> to vector<128x1xf32>
    %132 = vector.broadcast %131 : vector<128x1xf32> to vector<128x128xf32>
    %133 = arith.subf %129, %132 : vector<128x128xf32>
    %134 = math.exp %133 : vector<128x128xf32>
    %cst_55 = arith.constant dense<0.000000e+00> : vector<128xf32>
    %135 = vector.multi_reduction <add>, %134, %cst_55 [1] : vector<128x128xf32> to vector<128xf32>
    %136 = vector.shape_cast %135 : vector<128xf32> to vector<128x1xf32>
    %137 = tpu.reciprocal %136 {approx = true} : vector<128x1xf32> -> vector<128x1xf32>
    %138 = vector.broadcast %137 : vector<128x1xf32> to vector<128x128xf32>
    %139 = arith.mulf %134, %138 : vector<128x128xf32>
    %cst_56 = arith.constant dense<0.000000e+00> : vector<128x8xf32>
    %140 = tpu.matmul %139, %128, %cst_56 {dimension_numbers = #tpu.dot_dimension_numbers<[1], [0], [0], [1], [0, 0, 1, 1], [], []>} : vector<128x128xf32>, vector<128x8xf32>, vector<128x8xf32> -> vector<128x8xf32>
    %c16_57 = arith.constant 16 : index
    %c0_58 = arith.constant 0 : index
    %141 = vector.load %arg3[%c16_57, %c0_58] : memref<32x64xf32, #tpu.memory_space<vmem>>, vector<8x64xf32>
    %cst_59 = arith.constant dense<0.000000e+00> : vector<128x64xf32>
    %142 = tpu.matmul %140, %141, %cst_59 {dimension_numbers = #tpu.dot_dimension_numbers<[1], [0], [0], [1], [0, 0, 1, 1], [], []>} : vector<128x8xf32>, vector<8x64xf32>, vector<128x64xf32> -> vector<128x64xf32>
    %143 = arith.addf %123, %142 : vector<128x64xf32>
    %144 = vector.extract_strided_slice %84 {offsets = [0, 24], sizes = [128, 8], strides = [1, 1]} : vector<384x32xf32> to vector<128x8xf32>
    %cst_60 = arith.constant 0.176776692 : f32
    %145 = vector.broadcast %cst_60 : f32 to vector<128x8xf32>
    %146 = arith.mulf %144, %145 : vector<128x8xf32>
    %147 = vector.extract_strided_slice %84 {offsets = [128, 24], sizes = [128, 8], strides = [1, 1]} : vector<384x32xf32> to vector<128x8xf32>
    %148 = vector.extract_strided_slice %84 {offsets = [256, 24], sizes = [128, 8], strides = [1, 1]} : vector<384x32xf32> to vector<128x8xf32>
    %cst_61 = arith.constant dense<0.000000e+00> : vector<128x128xf32>
    %149 = tpu.matmul %146, %147, %cst_61 {dimension_numbers = #tpu.dot_dimension_numbers<[1], [1], [0], [0], [0, 0, 1, 0], [], []>} : vector<128x8xf32>, vector<128x8xf32>, vector<128x128xf32> -> vector<128x128xf32>
    %cst_62 = arith.constant dense<0xFF800000> : vector<128xf32>
    %150 = vector.multi_reduction <maximumf>, %149, %cst_62 [1] : vector<128x128xf32> to vector<128xf32>
    %151 = vector.shape_cast %150 : vector<128xf32> to vector<128x1xf32>
    %152 = vector.broadcast %151 : vector<128x1xf32> to vector<128x128xf32>
    %153 = arith.subf %149, %152 : vector<128x128xf32>
    %154 = math.exp %153 : vector<128x128xf32>
    %cst_63 = arith.constant dense<0.000000e+00> : vector<128xf32>
    %155 = vector.multi_reduction <add>, %154, %cst_63 [1] : vector<128x128xf32> to vector<128xf32>
    %156 = vector.shape_cast %155 : vector<128xf32> to vector<128x1xf32>
    %157 = tpu.reciprocal %156 {approx = true} : vector<128x1xf32> -> vector<128x1xf32>
    %158 = vector.broadcast %157 : vector<128x1xf32> to vector<128x128xf32>
    %159 = arith.mulf %154, %158 : vector<128x128xf32>
    %cst_64 = arith.constant dense<0.000000e+00> : vector<128x8xf32>
    %160 = tpu.matmul %159, %148, %cst_64 {dimension_numbers = #tpu.dot_dimension_numbers<[1], [0], [0], [1], [0, 0, 1, 1], [], []>} : vector<128x128xf32>, vector<128x8xf32>, vector<128x8xf32> -> vector<128x8xf32>
    %c24_65 = arith.constant 24 : index
    %c0_66 = arith.constant 0 : index
    %161 = vector.load %arg3[%c24_65, %c0_66] : memref<32x64xf32, #tpu.memory_space<vmem>>, vector<8x64xf32>
    %cst_67 = arith.constant dense<0.000000e+00> : vector<128x64xf32>
    %162 = tpu.matmul %160, %161, %cst_67 {dimension_numbers = #tpu.dot_dimension_numbers<[1], [0], [0], [1], [0, 0, 1, 1], [], []>} : vector<128x8xf32>, vector<8x64xf32>, vector<128x64xf32> -> vector<128x64xf32>
    %163 = arith.addf %143, %162 : vector<128x64xf32>
    %c0_68 = arith.constant 0 : index
    %c64 = arith.constant 64 : index
    %164 = vector.load %arg4[%c0_68, %c64] : memref<128x128xf32, #tpu.memory_space<vmem>>, vector<128x64xf32>
    tpu.vector_store %arg4[%c0_68, %c64], %163 {strides = array<i32>} : memref<128x128xf32, #tpu.memory_space<vmem>>, vector<128x64xf32>,
    return
  }
  func.func @transform_0(%arg0: i32) -> (i32, i32) {
    %c0_i32 = arith.constant 0 : i32
    %c0_i32_0 = arith.constant 0 : i32
    %c0_i32_1 = arith.constant 0 : i32
    return %c0_i32, %c0_i32_0 : i32, i32
  }
  func.func @transform_1(%arg0: i32) -> (i32, i32) {
    %c0_i32 = arith.constant 0 : i32
    %c0_i32_0 = arith.constant 0 : i32
    %c0_i32_1 = arith.constant 0 : i32
    return %c0_i32, %c0_i32_0 : i32, i32
  }
  func.func @transform_2(%arg0: i32) -> (i32, i32) {
    %c0_i32 = arith.constant 0 : i32
    %c0_i32_0 = arith.constant 0 : i32
    %c0_i32_1 = arith.constant 0 : i32
    return %c0_i32, %c0_i32_0 : i32, i32
  }
  func.func @transform_3(%arg0: i32) -> (i32, i32) {
    %c0_i32 = arith.constant 0 : i32
    %c0_i32_0 = arith.constant 0 : i32
    %c0_i32_1 = arith.constant 0 : i32
    return %c0_i32, %c0_i32_0 : i32, i32
  }
}

</mosaic_0001>

<llo_original>
// kernel: tpu_custom_call.1
$region0: #{tpu_custom_call.1}
  #allocation0 [shape = 'u32[]', space=smem, size = 0x4, offset = 0x4, fixed_abs, tag = 'smem constant byte address 0x4 - core index']
  #allocation1 [shape = 'u32[144,128]{1,0:T(1,128)}', space=vmem, size = 0x12000, scoped, tag = 'internal scratch']
  %s0 = inlined_call_operand.vmem [shape: f32[768,32], index: 0, kind: input, shape index: {}]
  %s1 = inlined_call_operand.vmem [shape: f32[32,32], index: 1, kind: input, shape index: {}]
  %s2 = inlined_call_operand.vmem [shape: f32[32,64], index: 2, kind: input, shape index: {}]
  %s3 = inlined_call_operand.hbm [shape: f32[128,128], index: 3, kind: output, shape index: {}]
  %s4 = sld [smem:[#allocation0]]
  $region22: #{tpu_custom_call.1} parent=0
    _
  %s6 = ssub.s32 1, %s4
  %s7 = scalar_select 0, %s6, %s4
  $region1: #{tpu_custom_call.1} parent=0
    #allocation2 [shape = 'u8[65536]{0}', space=vmem, size = 0x10000, scoped, tag = 'output window, operand 0, single buffered']
    #allocation3 [shape = 's32[1]{0}', space=sflag, size = 0x4, scoped, tag = 'scoped memory for tpu_custom_call.1']
    %8 = vsyncpa [#allocation3], 0
    // Predicated region
    $region2: #{tpu_custom_call.1} parent=1 // pred_check
      _
    $region3: #{tpu_custom_call.1} parent=1 // pred_check_branch
      %10 = sbr.rel (0) target = $region5
    $region4: #{tpu_custom_call.1} parent=1 // pred_region
      _
    $region5: #{tpu_custom_call.1} parent=1 // pred_fallthru
      _
    // Predicated region
    $region6: #{tpu_custom_call.1} parent=1 // pred_check
      _
    $region7: #{tpu_custom_call.1} parent=1 // pred_check_branch
      %12 = sbr.rel (0) target = $region9
    $region8: #{tpu_custom_call.1} parent=1 // pred_region
      _
    $region9: #{tpu_custom_call.1} parent=1 // pred_fallthru
      _
    // Predicated region
    $region10: #{tpu_custom_call.1} parent=1 // pred_check
      _
    $region11: #{tpu_custom_call.1} parent=1 // pred_check_branch
      %14 = sbr.rel (0) target = $region13
    $region12: #{tpu_custom_call.1} parent=1 // pred_region
      _
    $region13: #{tpu_custom_call.1} parent=1 // pred_fallthru
      _
    %v15 = vld [vmem:[%s1] sm:$0xff]
    %v16 = vld [vmem:[%s1 + $0x8] sm:$0xff]
    %v17 = vld [vmem:[%s1 + $0x10] sm:$0xff]
    %v18 = vld [vmem:[%s1 + $0x18] sm:$0xff]
    %v19 = vld [vmem:[%s0] sm:$0xff]
    %v20 = vld [vmem:[%s0 + $0x8] sm:$0xff]
    %v21 = vld [vmem:[%s0 + $0x10] sm:$0xff]
    %v22 = vld [vmem:[%s0 + $0x18] sm:$0xff]
    %v23 = vld [vmem:[%s0 + $0x20] sm:$0xff]
    %v24 = vld [vmem:[%s0 + $0x28] sm:$0xff]
    %v25 = vld [vmem:[%s0 + $0x30] sm:$0xff]
    %v26 = vld [vmem:[%s0 + $0x38] sm:$0xff]
    %v27 = vld [vmem:[%s0 + $0x40] sm:$0xff]
    %v28 = vld [vmem:[%s0 + $0x48] sm:$0xff]
    %v29 = vld [vmem:[%s0 + $0x50] sm:$0xff]
    %v30 = vld [vmem:[%s0 + $0x58] sm:$0xff]
    %v31 = vld [vmem:[%s0 + $0x60] sm:$0xff]
    %v32 = vld [vmem:[%s0 + $0x68] sm:$0xff]
    %v33 = vld [vmem:[%s0 + $0x70] sm:$0xff]
    %v34 = vld [vmem:[%s0 + $0x78] sm:$0xff]
    %v35 = vld [vmem:[%s0 + $0x80] sm:$0xff]
    %v36 = vld [vmem:[%s0 + $0x88] sm:$0xff]
    %v37 = vld [vmem:[%s0 + $0x90] sm:$0xff]
    %v38 = vld [vmem:[%s0 + $0x98] sm:$0xff]
    %v39 = vld [vmem:[%s0 + $0xa0] sm:$0xff]
    %v40 = vld [vmem:[%s0 + $0xa8] sm:$0xff]
    %v41 = vld [vmem:[%s0 + $0xb0] sm:$0xff]
    %v42 = vld [vmem:[%s0 + $0xb8] sm:$0xff]
    %v43 = vld [vmem:[%s0 + $0xc0] sm:$0xff]
    %v44 = vld [vmem:[%s0 + $0xc8] sm:$0xff]
    %v45 = vld [vmem:[%s0 + $0xd0] sm:$0xff]
    %v46 = vld [vmem:[%s0 + $0xd8] sm:$0xff]
    %v47 = vld [vmem:[%s0 + $0xe0] sm:$0xff]
    %v48 = vld [vmem:[%s0 + $0xe8] sm:$0xff]
    %v49 = vld [vmem:[%s0 + $0xf0] sm:$0xff]
    %v50 = vld [vmem:[%s0 + $0xf8] sm:$0xff]
    %v51 = vld [vmem:[%s0 + $0x100] sm:$0xff]
    %v52 = vld [vmem:[%s0 + $0x108] sm:$0xff]
    %v53 = vld [vmem:[%s0 + $0x110] sm:$0xff]
    %v54 = vld [vmem:[%s0 + $0x118] sm:$0xff]
    %v55 = vld [vmem:[%s0 + $0x120] sm:$0xff]
    %v56 = vld [vmem:[%s0 + $0x128] sm:$0xff]
    %v57 = vld [vmem:[%s0 + $0x130] sm:$0xff]
    %v58 = vld [vmem:[%s0 + $0x138] sm:$0xff]
    %v59 = vld [vmem:[%s0 + $0x140] sm:$0xff]
    %v60 = vld [vmem:[%s0 + $0x148] sm:$0xff]
    %v61 = vld [vmem:[%s0 + $0x150] sm:$0xff]
    %v62 = vld [vmem:[%s0 + $0x158] sm:$0xff]
    %v63 = vld [vmem:[%s0 + $0x160] sm:$0xff]
    %v64 = vld [vmem:[%s0 + $0x168] sm:$0xff]
    %v65 = vld [vmem:[%s0 + $0x170] sm:$0xff]
    %v66 = vld [vmem:[%s0 + $0x178] sm:$0xff]
    %vm67 = vcmask 261120
    %v69 = vsel %vm67, %v19, 0
    %v72 = vsel %vm67, %v20, 0
    %v75 = vsel %vm67, %v21, 0
    %v78 = vsel %vm67, %v22, 0
    %v81 = vsel %vm67, %v23, 0
    %v84 = vsel %vm67, %v24, 0
    %v87 = vsel %vm67, %v25, 0
    %v90 = vsel %vm67, %v26, 0
    %v93 = vsel %vm67, %v27, 0
    %v96 = vsel %vm67, %v28, 0
    %v99 = vsel %vm67, %v29, 0
    %v102 = vsel %vm67, %v30, 0
    %v105 = vsel %vm67, %v31, 0
    %v108 = vsel %vm67, %v32, 0
    %v111 = vsel %vm67, %v33, 0
    %v114 = vsel %vm67, %v34, 0
    %v117 = vsel %vm67, %v35, 0
    %v120 = vsel %vm67, %v36, 0
    %v123 = vsel %vm67, %v37, 0
    %v126 = vsel %vm67, %v38, 0
    %v129 = vsel %vm67, %v39, 0
    %v132 = vsel %vm67, %v40, 0
    %v135 = vsel %vm67, %v41, 0
    %v138 = vsel %vm67, %v42, 0
    %v141 = vsel %vm67, %v43, 0
    %v144 = vsel %vm67, %v44, 0
    %v147 = vsel %vm67, %v45, 0
    %v150 = vsel %vm67, %v46, 0
    %v153 = vsel %vm67, %v47, 0
    %v156 = vsel %vm67, %v48, 0
    %v159 = vsel %vm67, %v49, 0
    %v162 = vsel %vm67, %v50, 0
    %v165 = vsel %vm67, %v51, 0
    %v168 = vsel %vm67, %v52, 0
    %v171 = vsel %vm67, %v53, 0
    %v174 = vsel %vm67, %v54, 0
    %v177 = vsel %vm67, %v55, 0
    %v180 = vsel %vm67, %v56, 0
    %v183 = vsel %vm67, %v57, 0
    %v186 = vsel %vm67, %v58, 0
    %v189 = vsel %vm67, %v59, 0
    %v192 = vsel %vm67, %v60, 0
    %v195 = vsel %vm67, %v61, 0
    %v198 = vsel %vm67, %v62, 0
    %v201 = vsel %vm67, %v63, 0
    %v204 = vsel %vm67, %v64, 0
    %v207 = vsel %vm67, %v65, 0
    %v210 = vsel %vm67, %v66, 0
    %212 = vmatprep.subr.mxu0 0.0
    %213 = vmatpush1.msra.mxu0 %v15
    %214 = vmatprep.subr.mxu0 0.0
    %215 = vmatpush1.msra.mxu0 %v16
    %216 = vmatprep.subr.mxu0 0.0
    %217 = vmatpush1.msra.mxu0 %v17
    %218 = vmatprep.subr.mxu0 0.0
    %219 = vmatpush1.msra.mxu0 %v18
    %220 = vmatprep.subr.mxu0 0.0
    %221 = vmatpush1.msra.mxu0 0.0
    %222 = vmatprep.subr.mxu0 0.0
    %223 = vmatpush1.msra.mxu0 0.0
    %224 = vmatprep.subr.mxu0 0.0
    %225 = vmatpush1.msra.mxu0 0.0
    %226 = vmatprep.subr.mxu0 0.0
    %227 = vmatpush1.msra.mxu0 0.0
    %228 = vmatprep.subr.mxu0 0.0
    %229 = vmatpush1.msra.mxu0 0.0
    %230 = vmatprep.subr.mxu0 0.0
    %231 = vmatpush1.msra.mxu0 0.0
    %232 = vmatprep.subr.mxu0 0.0
    %233 = vmatpush1.msra.mxu0 0.0
    %234 = vmatprep.subr.mxu0 0.0
    %235 = vmatpush1.msra.mxu0 0.0
    %236 = vmatprep.subr.mxu0 0.0
    %237 = vmatpush1.msra.mxu0 0.0
    %238 = vmatprep.subr.mxu0 0.0
    %239 = vmatpush1.msra.mxu0 0.0
    %240 = vmatprep.subr.mxu0 0.0
    %241 = vmatpush1.msra.mxu0 0.0
    %242 = vmatprep.subr.mxu0 0.0
    %243 = vmatpush1.msra.mxu0 0.0
    %244 = vmatprep.subr.mxu0 0.0
    %245 = vmatpush1.msra.mxu0 0.0
    %246 = vmatprep.subr.mxu0 0.0
    %247 = vmatpush1.msra.mxu0 0.0
    %248 = vmatprep.subr.mxu0 0.0
    %249 = vmatpush1.msra.mxu0 0.0
    %250 = vmatprep.subr.mxu0 0.0
    %251 = vmatpush1.msra.mxu0 0.0
    %252 = vmatprep.subr.mxu0 0.0
    %253 = vmatpush1.msra.mxu0 0.0
    %254 = vmatprep.subr.mxu0 0.0
    %255 = vmatpush1.msra.mxu0 0.0
    %256 = vmatprep.subr.mxu0 0.0
    %257 = vmatpush1.msra.mxu0 0.0
    %258 = vmatprep.subr.mxu0 0.0
    %259 = vmatpush1.msra.mxu0 0.0
    %260 = vmatprep.subr.mxu0 0.0
    %261 = vmatpush1.msra.mxu0 0.0
    %262 = vmatprep.subr.mxu0 0.0
    %263 = vmatpush1.msra.mxu0 0.0
    %264 = vmatprep.subr.mxu0 0.0
    %265 = vmatpush1.msra.mxu0 0.0
    %266 = vmatprep.subr.mxu0 0.0
    %267 = vmatpush1.msra.mxu0 0.0
    %268 = vmatprep.subr.mxu0 0.0
    %269 = vmatpush1.msra.mxu0 0.0
    %270 = vmatprep.subr.mxu0 0.0
    %271 = vmatpush1.msra.mxu0 0.0
    %272 = vmatprep.subr.mxu0 0.0
    %273 = vmatpush1.msra.mxu0 0.0
    %274 = vmatprep.subr.mxu0 0.0
    %275 = vmatpush1.msra.mxu0 0.0
    %276 = vmatprep.mubr.f32.mxu0 0.0
    %277 = vmatmul.mubr.f32.gmra.mrb[0].mxu0 %v69
    %v278 = vpop.f32.mrb[0].mxu0
    %v279 = vadd.f32 0.0, %v278
    %v280 = vpop.f32.mrb[0].mxu0
    %281 = vmatprep.mubr.f32.mxu0 0.0
    %282 = vmatmul.mubr.f32.gmra.mrb[0].mxu0 %v72
    %v283 = vpop.f32.mrb[0].mxu0
    %v284 = vadd.f32 0.0, %v283
    %v285 = vpop.f32.mrb[0].mxu0
    %286 = vmatprep.mubr.f32.mxu0 0.0
    %287 = vmatmul.mubr.f32.gmra.mrb[0].mxu0 %v75
    %v288 = vpop.f32.mrb[0].mxu0
    %v289 = vadd.f32 0.0, %v288
    %v290 = vpop.f32.mrb[0].mxu0
    %291 = vmatprep.mubr.f32.mxu0 0.0
    %292 = vmatmul.mubr.f32.gmra.mrb[0].mxu0 %v78
    %v293 = vpop.f32.mrb[0].mxu0
    %v294 = vadd.f32 0.0, %v293
    %v295 = vpop.f32.mrb[0].mxu0
    %296 = vmatprep.mubr.f32.mxu0 0.0
    %297 = vmatmul.mubr.f32.gmra.mrb[0].mxu0 %v81
    %v298 = vpop.f32.mrb[0].mxu0
    %v299 = vadd.f32 0.0, %v298
    %v300 = vpop.f32.mrb[0].mxu0
    %301 = vmatprep.mubr.f32.mxu0 0.0
    %302 = vmatmul.mubr.f32.gmra.mrb[0].mxu0 %v84
    %v303 = vpop.f32.mrb[0].mxu0
    %v304 = vadd.f32 0.0, %v303
    %v305 = vpop.f32.mrb[0].mxu0
    %306 = vmatprep.mubr.f32.mxu0 0.0
    %307 = vmatmul.mubr.f32.gmra.mrb[0].mxu0 %v87
    %v308 = vpop.f32.mrb[0].mxu0
    %v309 = vadd.f32 0.0, %v308
    %v310 = vpop.f32.mrb[0].mxu0
    %311 = vmatprep.mubr.f32.mxu0 0.0
    %312 = vmatmul.mubr.f32.gmra.mrb[0].mxu0 %v90
    %v313 = vpop.f32.mrb[0].mxu0
    %v314 = vadd.f32 0.0, %v313
    %v315 = vpop.f32.mrb[0].mxu0
    %316 = vmatprep.mubr.f32.mxu0 0.0
    %317 = vmatmul.mubr.f32.gmra.mrb[0].mxu0 %v93
    %v318 = vpop.f32.mrb[0].mxu0
    %v319 = vadd.f32 0.0, %v318
    %v320 = vpop.f32.mrb[0].mxu0
    %321 = vmatprep.mubr.f32.mxu0 0.0
    %322 = vmatmul.mubr.f32.gmra.mrb[0].mxu0 %v96
    %v323 = vpop.f32.mrb[0].mxu0
    %v324 = vadd.f32 0.0, %v323
    %v325 = vpop.f32.mrb[0].mxu0
    %326 = vmatprep.mubr.f32.mxu0 0.0
    %327 = vmatmul.mubr.f32.gmra.mrb[0].mxu0 %v99
    %v328 = vpop.f32.mrb[0].mxu0
    %v329 = vadd.f32 0.0, %v328
    %v330 = vpop.f32.mrb[0].mxu0
    %331 = vmatprep.mubr.f32.mxu0 0.0
    %332 = vmatmul.mubr.f32.gmra.mrb[0].mxu0 %v102
    %v333 = vpop.f32.mrb[0].mxu0
    %v334 = vadd.f32 0.0, %v333
    %v335 = vpop.f32.mrb[0].mxu0
    %336 = vmatprep.mubr.f32.mxu0 0.0
    %337 = vmatmul.mubr.f32.gmra.mrb[0].mxu0 %v105
    %v338 = vpop.f32.mrb[0].mxu0
    %v339 = vadd.f32 0.0, %v338
    %v340 = vpop.f32.mrb[0].mxu0
    %341 = vmatprep.mubr.f32.mxu0 0.0
    %342 = vmatmul.mubr.f32.gmra.mrb[0].mxu0 %v108
    %v343 = vpop.f32.mrb[0].mxu0
    %v344 = vadd.f32 0.0, %v343
    %v345 = vpop.f32.mrb[0].mxu0
    %346 = vmatprep.mubr.f32.mxu0 0.0
    %347 = vmatmul.mubr.f32.gmra.mrb[0].mxu0 %v111
    %v348 = vpop.f32.mrb[0].mxu0
    %v349 = vadd.f32 0.0, %v348
    %v350 = vpop.f32.mrb[0].mxu0
    %351 = vmatprep.mubr.f32.mxu0 0.0
    %352 = vmatmul.mubr.f32.gmra.mrb[0].mxu0 %v114
    %v353 = vpop.f32.mrb[0].mxu0
    %v354 = vadd.f32 0.0, %v353
    %v355 = vpop.f32.mrb[0].mxu0
    %356 = vmatprep.mubr.f32.mxu0 0.0
    %357 = vmatmul.mubr.f32.gmra.mrb[0].mxu0 %v117
    %v358 = vpop.f32.mrb[0].mxu0
    %v359 = vadd.f32 0.0, %v358
    %v360 = vpop.f32.mrb[0].mxu0
    %361 = vmatprep.mubr.f32.mxu0 0.0
    %362 = vmatmul.mubr.f32.gmra.mrb[0].mxu0 %v120
    %v363 = vpop.f32.mrb[0].mxu0
    %v364 = vadd.f32 0.0, %v363
    %v365 = vpop.f32.mrb[0].mxu0
    %366 = vmatprep.mubr.f32.mxu0 0.0
    %367 = vmatmul.mubr.f32.gmra.mrb[0].mxu0 %v123
    %v368 = vpop.f32.mrb[0].mxu0
    %v369 = vadd.f32 0.0, %v368
    %v370 = vpop.f32.mrb[0].mxu0
    %371 = vmatprep.mubr.f32.mxu0 0.0
    %372 = vmatmul.mubr.f32.gmra.mrb[0].mxu0 %v126
    %v373 = vpop.f32.mrb[0].mxu0
    %v374 = vadd.f32 0.0, %v373
    %v375 = vpop.f32.mrb[0].mxu0
    %376 = vmatprep.mubr.f32.mxu0 0.0
    %377 = vmatmul.mubr.f32.gmra.mrb[0].mxu0 %v129
    %v378 = vpop.f32.mrb[0].mxu0
    %v379 = vadd.f32 0.0, %v378
    %v380 = vpop.f32.mrb[0].mxu0
    %381 = vmatprep.mubr.f32.mxu0 0.0
    %382 = vmatmul.mubr.f32.gmra.mrb[0].mxu0 %v132
    %v383 = vpop.f32.mrb[0].mxu0
    %v384 = vadd.f32 0.0, %v383
    %v385 = vpop.f32.mrb[0].mxu0
    %386 = vmatprep.mubr.f32.mxu0 0.0
    %387 = vmatmul.mubr.f32.gmra.mrb[0].mxu0 %v135
    %v388 = vpop.f32.mrb[0].mxu0
    %v389 = vadd.f32 0.0, %v388
    %v390 = vpop.f32.mrb[0].mxu0
    %391 = vmatprep.mubr.f32.mxu0 0.0
    %392 = vmatmul.mubr.f32.gmra.mrb[0].mxu0 %v138
    %v393 = vpop.f32.mrb[0].mxu0
    %v394 = vadd.f32 0.0, %v393
    %v395 = vpop.f32.mrb[0].mxu0
    %396 = vmatprep.mubr.f32.mxu0 0.0
    %397 = vmatmul.mubr.f32.gmra.mrb[0].mxu0 %v141
    %v398 = vpop.f32.mrb[0].mxu0
    %v399 = vadd.f32 0.0, %v398
    %v400 = vpop.f32.mrb[0].mxu0
    %401 = vmatprep.mubr.f32.mxu0 0.0
    %402 = vmatmul.mubr.f32.gmra.mrb[0].mxu0 %v144
    %v403 = vpop.f32.mrb[0].mxu0
    %v404 = vadd.f32 0.0, %v403
    %v405 = vpop.f32.mrb[0].mxu0
    %406 = vmatprep.mubr.f32.mxu0 0.0
    %407 = vmatmul.mubr.f32.gmra.mrb[0].mxu0 %v147
    %v408 = vpop.f32.mrb[0].mxu0
    %v409 = vadd.f32 0.0, %v408
    %v410 = vpop.f32.mrb[0].mxu0
    %411 = vmatprep.mubr.f32.mxu0 0.0
    %412 = vmatmul.mubr.f32.gmra.mrb[0].mxu0 %v150
    %v413 = vpop.f32.mrb[0].mxu0
    %v414 = vadd.f32 0.0, %v413
    %v415 = vpop.f32.mrb[0].mxu0
    %416 = vmatprep.mubr.f32.mxu0 0.0
    %417 = vmatmul.mubr.f32.gmra.mrb[0].mxu0 %v153
    %v418 = vpop.f32.mrb[0].mxu0
    %v419 = vadd.f32 0.0, %v418
    %v420 = vpop.f32.mrb[0].mxu0
    %421 = vmatprep.mubr.f32.mxu0 0.0
    %422 = vmatmul.mubr.f32.gmra.mrb[0].mxu0 %v156
    %v423 = vpop.f32.mrb[0].mxu0
    %v424 = vadd.f32 0.0, %v423
    %v425 = vpop.f32.mrb[0].mxu0
    %426 = vmatprep.mubr.f32.mxu0 0.0
    %427 = vmatmul.mubr.f32.gmra.mrb[0].mxu0 %v159
    %v428 = vpop.f32.mrb[0].mxu0
    %v429 = vadd.f32 0.0, %v428
    %v430 = vpop.f32.mrb[0].mxu0
    %431 = vmatprep.mubr.f32.mxu0 0.0
    %432 = vmatmul.mubr.f32.gmra.mrb[0].mxu0 %v162
    %v433 = vpop.f32.mrb[0].mxu0
    %v434 = vadd.f32 0.0, %v433
    %v435 = vpop.f32.mrb[0].mxu0
    %436 = vmatprep.mubr.f32.mxu0 0.0
    %437 = vmatmul.mubr.f32.gmra.mrb[0].mxu0 %v165
    %v438 = vpop.f32.mrb[0].mxu0
    %v439 = vadd.f32 0.0, %v438
    %v440 = vpop.f32.mrb[0].mxu0
    %441 = vmatprep.mubr.f32.mxu0 0.0
    %442 = vmatmul.mubr.f32.gmra.mrb[0].mxu0 %v168
    %v443 = vpop.f32.mrb[0].mxu0
    %v444 = vadd.f32 0.0, %v443
    %v445 = vpop.f32.mrb[0].mxu0
    %446 = vmatprep.mubr.f32.mxu0 0.0
    %447 = vmatmul.mubr.f32.gmra.mrb[0].mxu0 %v171
    %v448 = vpop.f32.mrb[0].mxu0
    %v449 = vadd.f32 0.0, %v448
    %v450 = vpop.f32.mrb[0].mxu0
    %451 = vmatprep.mubr.f32.mxu0 0.0
    %452 = vmatmul.mubr.f32.gmra.mrb[0].mxu0 %v174
    %v453 = vpop.f32.mrb[0].mxu0
    %v454 = vadd.f32 0.0, %v453
    %v455 = vpop.f32.mrb[0].mxu0
    %456 = vmatprep.mubr.f32.mxu0 0.0
    %457 = vmatmul.mubr.f32.gmra.mrb[0].mxu0 %v177
    %v458 = vpop.f32.mrb[0].mxu0
    %v459 = vadd.f32 0.0, %v458
    %v460 = vpop.f32.mrb[0].mxu0
    %461 = vmatprep.mubr.f32.mxu0 0.0
    %462 = vmatmul.mubr.f32.gmra.mrb[0].mxu0 %v180
    %v463 = vpop.f32.mrb[0].mxu0
    %v464 = vadd.f32 0.0, %v463
    %v465 = vpop.f32.mrb[0].mxu0
    %466 = vmatprep.mubr.f32.mxu0 0.0
    %467 = vmatmul.mubr.f32.gmra.mrb[0].mxu0 %v183
    %v468 = vpop.f32.mrb[0].mxu0
    %v469 = vadd.f32 0.0, %v468
    %v470 = vpop.f32.mrb[0].mxu0
    %471 = vmatprep.mubr.f32.mxu0 0.0
    %472 = vmatmul.mubr.f32.gmra.mrb[0].mxu0 %v186
    %v473 = vpop.f32.mrb[0].mxu0
    %v474 = vadd.f32 0.0, %v473
    %v475 = vpop.f32.mrb[0].mxu0
    %476 = vmatprep.mubr.f32.mxu0 0.0
    %477 = vmatmul.mubr.f32.gmra.mrb[0].mxu0 %v189
    %v478 = vpop.f32.mrb[0].mxu0
    %v479 = vadd.f32 0.0, %v478
    %v480 = vpop.f32.mrb[0].mxu0
    %481 = vmatprep.mubr.f32.mxu0 0.0
    %482 = vmatmul.mubr.f32.gmra.mrb[0].mxu0 %v192
    %v483 = vpop.f32.mrb[0].mxu0
    %v484 = vadd.f32 0.0, %v483
    %v485 = vpop.f32.mrb[0].mxu0
    %486 = vmatprep.mubr.f32.mxu0 0.0
    %487 = vmatmul.mubr.f32.gmra.mrb[0].mxu0 %v195
    %v488 = vpop.f32.mrb[0].mxu0
    %v489 = vadd.f32 0.0, %v488
    %v490 = vpop.f32.mrb[0].mxu0
    %491 = vmatprep.mubr.f32.mxu0 0.0
    %492 = vmatmul.mubr.f32.gmra.mrb[0].mxu0 %v198
    %v493 = vpop.f32.mrb[0].mxu0
    %v494 = vadd.f32 0.0, %v493
    %v495 = vpop.f32.mrb[0].mxu0
    %496 = vmatprep.mubr.f32.mxu0 0.0
    %497 = vmatmul.mubr.f32.gmra.mrb[0].mxu0 %v201
    %v498 = vpop.f32.mrb[0].mxu0
    %v499 = vadd.f32 0.0, %v498
    %v500 = vpop.f32.mrb[0].mxu0
    %501 = vmatprep.mubr.f32.mxu0 0.0
    %502 = vmatmul.mubr.f32.gmra.mrb[0].mxu0 %v204
    %v503 = vpop.f32.mrb[0].mxu0
    %v504 = vadd.f32 0.0, %v503
    %v505 = vpop.f32.mrb[0].mxu0
    %506 = vmatprep.mubr.f32.mxu0 0.0
    %507 = vmatmul.mubr.f32.gmra.mrb[0].mxu0 %v207
    %v508 = vpop.f32.mrb[0].mxu0
    %v509 = vadd.f32 0.0, %v508
    %v510 = vpop.f32.mrb[0].mxu0
    %511 = vmatprep.mubr.f32.mxu0 0.0
    %512 = vmatmul.mubr.f32.gmra.mrb[0].mxu0 %v210
    %v513 = vpop.f32.mrb[0].mxu0
    %v514 = vadd.f32 0.0, %v513
    %v515 = vpop.f32.mrb[0].mxu0
    %516 = vdwg.mxu0
    %v517 = vmul.f32 %v279, 0.17677669
    %v518 = vmul.f32 %v284, 0.17677669
    %v519 = vmul.f32 %v289, 0.17677669
    %v520 = vmul.f32 %v294, 0.17677669
    %v521 = vmul.f32 %v299, 0.17677669
    %v522 = vmul.f32 %v304, 0.17677669
    %v523 = vmul.f32 %v309, 0.17677669
    %v524 = vmul.f32 %v314, 0.17677669
    %v525 = vmul.f32 %v319, 0.17677669
    %v526 = vmul.f32 %v324, 0.17677669
    %v527 = vmul.f32 %v329, 0.17677669
    %v528 = vmul.f32 %v334, 0.17677669
    %v529 = vmul.f32 %v339, 0.17677669
    %v530 = vmul.f32 %v344, 0.17677669
    %v531 = vmul.f32 %v349, 0.17677669
    %v532 = vmul.f32 %v354, 0.17677669
    %vm533 = vcmask 64512
    %v535 = vsel %vm533, %v517, 0
    %v538 = vsel %vm533, %v518, 0
    %v541 = vsel %vm533, %v519, 0
    %v544 = vsel %vm533, %v520, 0
    %v547 = vsel %vm533, %v521, 0
    %v550 = vsel %vm533, %v522, 0
    %v553 = vsel %vm533, %v523, 0
    %v556 = vsel %vm533, %v524, 0
    %v559 = vsel %vm533, %v525, 0
    %v562 = vsel %vm533, %v526, 0
    %v565 = vsel %vm533, %v527, 0
    %v568 = vsel %vm533, %v528, 0
    %v571 = vsel %vm533, %v529, 0
    %v574 = vsel %vm533, %v530, 0
    %v577 = vsel %vm533, %v531, 0
    %v580 = vsel %vm533, %v532, 0
    %v583 = vsel %vm533, %v359, 0
    %v586 = vsel %vm533, %v364, 0
    %v589 = vsel %vm533, %v369, 0
    %v592 = vsel %vm533, %v374, 0
    %v595 = vsel %vm533, %v379, 0
    %v598 = vsel %vm533, %v384, 0
    %v601 = vsel %vm533, %v389, 0
    %v604 = vsel %vm533, %v394, 0
    %v607 = vsel %vm533, %v399, 0
    %v610 = vsel %vm533, %v404, 0
    %v613 = vsel %vm533, %v409, 0
    %v616 = vsel %vm533, %v414, 0
    %v619 = vsel %vm533, %v419, 0
    %v622 = vsel %vm533, %v424, 0
    %v625 = vsel %vm533, %v429, 0
    %v628 = vsel %vm533, %v434, 0
    %630 = vmatprep.subr.mxu0 0.0
    %631 = vmatpush1.xpose.msra.mxu0 %v583
    %632 = vmatprep.subr.mxu0 0.0
    %633 = vmatpush1.xpose.msra.mxu0 %v586
    %634 = vmatprep.subr.mxu0 0.0
    %635 = vmatpush1.xpose.msra.mxu0 %v589
    %636 = vmatprep.subr.mxu0 0.0
    %637 = vmatpush1.xpose.msra.mxu0 %v592
    %638 = vmatprep.subr.mxu0 0.0
    %639 = vmatpush1.xpose.msra.mxu0 %v595
    %640 = vmatprep.subr.mxu0 0.0
    %641 = vmatpush1.xpose.msra.mxu0 %v598
    %642 = vmatprep.subr.mxu0 0.0
    %643 = vmatpush1.xpose.msra.mxu0 %v601
    %644 = vmatprep.subr.mxu0 0.0
    %645 = vmatpush1.xpose.msra.mxu0 %v604
    %646 = vmatprep.subr.mxu0 0.0
    %647 = vmatpush1.xpose.msra.mxu0 %v607
    %648 = vmatprep.subr.mxu0 0.0
    %649 = vmatpush1.xpose.msra.mxu0 %v610
    %650 = vmatprep.subr.mxu0 0.0
    %651 = vmatpush1.xpose.msra.mxu0 %v613
    %652 = vmatprep.subr.mxu0 0.0
    %653 = vmatpush1.xpose.msra.mxu0 %v616
    %654 = vmatprep.subr.mxu0 0.0
    %655 = vmatpush1.xpose.msra.mxu0 %v619
    %656 = vmatprep.subr.mxu0 0.0
    %657 = vmatpush1.xpose.msra.mxu0 %v622
    %658 = vmatprep.subr.mxu0 0.0
    %659 = vmatpush1.xpose.msra.mxu0 %v625
    %660 = vmatprep.subr.mxu0 0.0
    %661 = vmatpush1.xpose.msra.mxu0 %v628
    %662 = vmatprep.subr.mxu0 0.0
    %663 = vmatpush1.xpose.msra.mxu0 0.0
    %664 = vmatprep.subr.mxu0 0.0
    %665 = vmatpush1.xpose.msra.mxu0 0.0
    %666 = vmatprep.subr.mxu0 0.0
    %667 = vmatpush1.xpose.msra.mxu0 0.0
    %668 = vmatprep.subr.mxu0 0.0
    %669 = vmatpush1.xpose.msra.mxu0 0.0
    %670 = vmatprep.subr.mxu0 0.0
    %671 = vmatpush1.xpose.msra.mxu0 0.0
    %672 = vmatprep.subr.mxu0 0.0
    %673 = vmatpush1.xpose.msra.mxu0 0.0
    %674 = vmatprep.subr.mxu0 0.0
    %675 = vmatpush1.xpose.msra.mxu0 0.0
    %676 = vmatprep.subr.mxu0 0.0
    %677 = vmatpush1.xpose.msra.mxu0 0.0
    %678 = vmatprep.subr.mxu0 0.0
    %679 = vmatpush1.xpose.msra.mxu0 0.0
    %680 = vmatprep.subr.mxu0 0.0
    %681 = vmatpush1.xpose.msra.mxu0 0.0
    %682 = vmatprep.subr.mxu0 0.0
    %683 = vmatpush1.xpose.msra.mxu0 0.0
    %684 = vmatprep.subr.mxu0 0.0
    %685 = vmatpush1.xpose.msra.mxu0 0.0
    %686 = vmatprep.subr.mxu0 0.0
    %687 = vmatpush1.xpose.msra.mxu0 0.0
    %688 = vmatprep.subr.mxu0 0.0
    %689 = vmatpush1.xpose.msra.mxu0 0.0
    %690 = vmatprep.subr.mxu0 0.0
    %691 = vmatpush1.xpose.msra.mxu0 0.0
    %692 = vmatprep.subr.mxu0 0.0
    %693 = vmatpush1.xpose.msra.mxu0 0.0
    %694 = vmatprep.mubr.f32.mxu0 0.0
    %695 = vmatmul.mubr.f32.gmra.mrb[0].mxu0 %v535
    %v696 = vpop.f32.mrb[0].mxu0
    %v697 = vadd.f32 0.0, %v696
    %v698 = vpop.f32.mrb[0].mxu0
    %699 = vmatprep.mubr.f32.mxu0 0.0
    %700 = vmatmul.mubr.f32.gmra.mrb[0].mxu0 %v538
    %v701 = vpop.f32.mrb[0].mxu0
    %v702 = vadd.f32 0.0, %v701
    %v703 = vpop.f32.mrb[0].mxu0
    %704 = vmatprep.mubr.f32.mxu0 0.0
    %705 = vmatmul.mubr.f32.gmra.mrb[0].mxu0 %v541
    %v706 = vpop.f32.mrb[0].mxu0
    %v707 = vadd.f32 0.0, %v706
    %v708 = vpop.f32.mrb[0].mxu0
    %709 = vmatprep.mubr.f32.mxu0 0.0
    %710 = vmatmul.mubr.f32.gmra.mrb[0].mxu0 %v544
    %v711 = vpop.f32.mrb[0].mxu0
    %v712 = vadd.f32 0.0, %v711
    %v713 = vpop.f32.mrb[0].mxu0
    %714 = vmatprep.mubr.f32.mxu0 0.0
    %715 = vmatmul.mubr.f32.gmra.mrb[0].mxu0 %v547
    %v716 = vpop.f32.mrb[0].mxu0
    %v717 = vadd.f32 0.0, %v716
    %v718 = vpop.f32.mrb[0].mxu0
    %719 = vmatprep.mubr.f32.mxu0 0.0
    %720 = vmatmul.mubr.f32.gmra.mrb[0].mxu0 %v550
    %v721 = vpop.f32.mrb[0].mxu0
    %v722 = vadd.f32 0.0, %v721
    %v723 = vpop.f32.mrb[0].mxu0
    %724 = vmatprep.mubr.f32.mxu0 0.0
    %725 = vmatmul.mubr.f32.gmra.mrb[0].mxu0 %v553
    %v726 = vpop.f32.mrb[0].mxu0
    %v727 = vadd.f32 0.0, %v726
    %v728 = vpop.f32.mrb[0].mxu0
    %729 = vmatprep.mubr.f32.mxu0 0.0
    %730 = vmatmul.mubr.f32.gmra.mrb[0].mxu0 %v556
    %v731 = vpop.f32.mrb[0].mxu0
    %v732 = vadd.f32 0.0, %v731
    %v733 = vpop.f32.mrb[0].mxu0
    %734 = vmatprep.mubr.f32.mxu0 0.0
    %735 = vmatmul.mubr.f32.gmra.mrb[0].mxu0 %v559
    %v736 = vpop.f32.mrb[0].mxu0
    %v737 = vadd.f32 0.0, %v736
    %v738 = vpop.f32.mrb[0].mxu0
    %739 = vmatprep.mubr.f32.mxu0 0.0
    %740 = vmatmul.mubr.f32.gmra.mrb[0].mxu0 %v562
    %v741 = vpop.f32.mrb[0].mxu0
    %v742 = vadd.f32 0.0, %v741
    %v743 = vpop.f32.mrb[0].mxu0
    %744 = vmatprep.mubr.f32.mxu0 0.0
    %745 = vmatmul.mubr.f32.gmra.mrb[0].mxu0 %v565
    %v746 = vpop.f32.mrb[0].mxu0
    %v747 = vadd.f32 0.0, %v746
    %v748 = vpop.f32.mrb[0].mxu0
    %749 = vmatprep.mubr.f32.mxu0 0.0
    %750 = vmatmul.mubr.f32.gmra.mrb[0].mxu0 %v568
    %v751 = vpop.f32.mrb[0].mxu0
    %v752 = vadd.f32 0.0, %v751
    %v753 = vpop.f32.mrb[0].mxu0
    %754 = vmatprep.mubr.f32.mxu0 0.0
    %755 = vmatmul.mubr.f32.gmra.mrb[0].mxu0 %v571
    %v756 = vpop.f32.mrb[0].mxu0
    %v757 = vadd.f32 0.0, %v756
    %v758 = vpop.f32.mrb[0].mxu0
    %759 = vmatprep.mubr.f32.mxu0 0.0
    %760 = vmatmul.mubr.f32.gmra.mrb[0].mxu0 %v574
    %v761 = vpop.f32.mrb[0].mxu0
    %v762 = vadd.f32 0.0, %v761
    %v763 = vpop.f32.mrb[0].mxu0
    %764 = vmatprep.mubr.f32.mxu0 0.0
    %765 = vmatmul.mubr.f32.gmra.mrb[0].mxu0 %v577
    %v766 = vpop.f32.mrb[0].mxu0
    %v767 = vadd.f32 0.0, %v766
    %v768 = vpop.f32.mrb[0].mxu0
    %769 = vmatprep.mubr.f32.mxu0 0.0
    %770 = vmatmul.mubr.f32.gmra.mrb[0].mxu0 %v580
    %v771 = vpop.f32.mrb[0].mxu0
    %v772 = vadd.f32 0.0, %v771
    %v773 = vpop.f32.mrb[0].mxu0
    %774 = vdwg.mxu0
    %775 = vmax.xlane.f32.xlu0 %v697
    %v776 = vpop.xlane.xlu0 %775
    %777 = vmax.xlane.f32.xlu0 %v702
    %v778 = vpop.xlane.xlu0 %777
    %779 = vmax.xlane.f32.xlu0 %v707
    %v780 = vpop.xlane.xlu0 %779
    %781 = vmax.xlane.f32.xlu0 %v712
    %v782 = vpop.xlane.xlu0 %781
    %783 = vmax.xlane.f32.xlu0 %v717
    %v784 = vpop.xlane.xlu0 %783
    %785 = vmax.xlane.f32.xlu0 %v722
    %v786 = vpop.xlane.xlu0 %785
    %787 = vmax.xlane.f32.xlu0 %v727
    %v788 = vpop.xlane.xlu0 %787
    %789 = vmax.xlane.f32.xlu0 %v732
    %v790 = vpop.xlane.xlu0 %789
    %791 = vmax.xlane.f32.xlu0 %v737
    %v792 = vpop.xlane.xlu0 %791
    %793 = vmax.xlane.f32.xlu0 %v742
    %v794 = vpop.xlane.xlu0 %793
    %795 = vmax.xlane.f32.xlu0 %v747
    %v796 = vpop.xlane.xlu0 %795
    %797 = vmax.xlane.f32.xlu0 %v752
    %v798 = vpop.xlane.xlu0 %797
    %799 = vmax.xlane.f32.xlu0 %v757
    %v800 = vpop.xlane.xlu0 %799
    %801 = vmax.xlane.f32.xlu0 %v762
    %v802 = vpop.xlane.xlu0 %801
    %803 = vmax.xlane.f32.xlu0 %v767
    %v804 = vpop.xlane.xlu0 %803
    %805 = vmax.xlane.f32.xlu0 %v772
    %v806 = vpop.xlane.xlu0 %805
    %v807 = vsub.f32 %v697, %v776
    %v808 = vsub.f32 %v702, %v778
    %v809 = vsub.f32 %v707, %v780
    %v810 = vsub.f32 %v712, %v782
    %v811 = vsub.f32 %v717, %v784
    %v812 = vsub.f32 %v722, %v786
    %v813 = vsub.f32 %v727, %v788
    %v814 = vsub.f32 %v732, %v790
    %v815 = vsub.f32 %v737, %v792
    %v816 = vsub.f32 %v742, %v794
    %v817 = vsub.f32 %v747, %v796
    %v818 = vsub.f32 %v752, %v798
    %v819 = vsub.f32 %v757, %v800
    %v820 = vsub.f32 %v762, %v802
    %v821 = vsub.f32 %v767, %v804
    %v822 = vsub.f32 %v772, %v806
    %v823 = vmul.f32 %v807, 1.442695
    %v824 = vpow.pop %v823
    %v825 = vmul.f32 %v808, 1.442695
    %v826 = vpow.pop %v825
    %v827 = vmul.f32 %v809, 1.442695
    %v828 = vpow.pop %v827
    %v829 = vmul.f32 %v810, 1.442695
    %v830 = vpow.pop %v829
    %v831 = vmul.f32 %v811, 1.442695
    %v832 = vpow.pop %v831
    %v833 = vmul.f32 %v812, 1.442695
    %v834 = vpow.pop %v833
    %v835 = vmul.f32 %v813, 1.442695
    %v836 = vpow.pop %v835
    %v837 = vmul.f32 %v814, 1.442695
    %v838 = vpow.pop %v837
    %v839 = vmul.f32 %v815, 1.442695
    %v840 = vpow.pop %v839
    %v841 = vmul.f32 %v816, 1.442695
    %v842 = vpow.pop %v841
    %v843 = vmul.f32 %v817, 1.442695
    %v844 = vpow.pop %v843
    %v845 = vmul.f32 %v818, 1.442695
    %v846 = vpow.pop %v845
    %v847 = vmul.f32 %v819, 1.442695
    %v848 = vpow.pop %v847
    %v849 = vmul.f32 %v820, 1.442695
    %v850 = vpow.pop %v849
    %v851 = vmul.f32 %v821, 1.442695
    %v852 = vpow.pop %v851
    %v853 = vmul.f32 %v822, 1.442695
    %v854 = vpow.pop %v853
    %855 = vadd.xlane.f32.xlu0 %v824
    %v856 = vpop.xlane.xlu0 %855
    %857 = vadd.xlane.f32.xlu0 %v826
    %v858 = vpop.xlane.xlu0 %857
    %859 = vadd.xlane.f32.xlu0 %v828
    %v860 = vpop.xlane.xlu0 %859
    %861 = vadd.xlane.f32.xlu0 %v830
    %v862 = vpop.xlane.xlu0 %861
    %863 = vadd.xlane.f32.xlu0 %v832
    %v864 = vpop.xlane.xlu0 %863
    %865 = vadd.xlane.f32.xlu0 %v834
    %v866 = vpop.xlane.xlu0 %865
    %867 = vadd.xlane.f32.xlu0 %v836
    %v868 = vpop.xlane.xlu0 %867
    %869 = vadd.xlane.f32.xlu0 %v838
    %v870 = vpop.xlane.xlu0 %869
    %871 = vadd.xlane.f32.xlu0 %v840
    %v872 = vpop.xlane.xlu0 %871
    %873 = vadd.xlane.f32.xlu0 %v842
    %v874 = vpop.xlane.xlu0 %873
    %875 = vadd.xlane.f32.xlu0 %v844
    %v876 = vpop.xlane.xlu0 %875
    %877 = vadd.xlane.f32.xlu0 %v846
    %v878 = vpop.xlane.xlu0 %877
    %879 = vadd.xlane.f32.xlu0 %v848
    %v880 = vpop.xlane.xlu0 %879
    %881 = vadd.xlane.f32.xlu0 %v850
    %v882 = vpop.xlane.xlu0 %881
    %883 = vadd.xlane.f32.xlu0 %v852
    %v884 = vpop.xlane.xlu0 %883
    %885 = vadd.xlane.f32.xlu0 %v854
    %v886 = vpop.xlane.xlu0 %885
    %v887 = vrcp.pop %v856
    %v888 = vrcp.pop %v858
    %v889 = vrcp.pop %v860
    %v890 = vrcp.pop %v862
    %v891 = vrcp.pop %v864
    %v892 = vrcp.pop %v866
    %v893 = vrcp.pop %v868
    %v894 = vrcp.pop %v870
    %v895 = vrcp.pop %v872
    %v896 = vrcp.pop %v874
    %v897 = vrcp.pop %v876
    %v898 = vrcp.pop %v878
    %v899 = vrcp.pop %v880
    %v900 = vrcp.pop %v882
    %v901 = vrcp.pop %v884
    %v902 = vrcp.pop %v886
    %v903 = vmul.f32 %v824, %v887
    %v904 = vmul.f32 %v826, %v888
    %v905 = vmul.f32 %v828, %v889
    %v906 = vmul.f32 %v830, %v890
    %v907 = vmul.f32 %v832, %v891
    %v908 = vmul.f32 %v834, %v892
    %v909 = vmul.f32 %v836, %v893
    %v910 = vmul.f32 %v838, %v894
    %v911 = vmul.f32 %v840, %v895
    %v912 = vmul.f32 %v842, %v896
    %v913 = vmul.f32 %v844, %v897
    %v914 = vmul.f32 %v846, %v898
    %v915 = vmul.f32 %v848, %v899
    %v916 = vmul.f32 %v850, %v900
    %v917 = vmul.f32 %v852, %v901
    %v918 = vmul.f32 %v854, %v902
    %919 = vmatprep.subr.mxu0 0.0
    %920 = vmatpush1.msra.mxu0 %v439
    %921 = vmatprep.subr.mxu0 0.0
    %922 = vmatpush1.msra.mxu0 %v444
    %923 = vmatprep.subr.mxu0 0.0
    %924 = vmatpush1.msra.mxu0 %v449
    %925 = vmatprep.subr.mxu0 0.0
    %926 = vmatpush1.msra.mxu0 %v454
    %927 = vmatprep.subr.mxu0 0.0
    %928 = vmatpush1.msra.mxu0 %v459
    %929 = vmatprep.subr.mxu0 0.0
    %930 = vmatpush1.msra.mxu0 %v464
    %931 = vmatprep.subr.mxu0 0.0
    %932 = vmatpush1.msra.mxu0 %v469
    %933 = vmatprep.subr.mxu0 0.0
    %934 = vmatpush1.msra.mxu0 %v474
    %935 = vmatprep.subr.mxu0 0.0
    %936 = vmatpush1.msra.mxu0 %v479
    %937 = vmatprep.subr.mxu0 0.0
    %938 = vmatpush1.msra.mxu0 %v484
    %939 = vmatprep.subr.mxu0 0.0
    %940 = vmatpush1.msra.mxu0 %v489
    %941 = vmatprep.subr.mxu0 0.0
    %942 = vmatpush1.msra.mxu0 %v494
    %943 = vmatprep.subr.mxu0 0.0
    %944 = vmatpush1.msra.mxu0 %v499
    %945 = vmatprep.subr.mxu0 0.0
    %946 = vmatpush1.msra.mxu0 %v504
    %947 = vmatprep.subr.mxu0 0.0
    %948 = vmatpush1.msra.mxu0 %v509
    %949 = vmatprep.subr.mxu0 0.0
    %950 = vmatpush1.msra.mxu0 %v514
    %951 = vmatprep.subr.mxu0 0.0
    %952 = vmatpush1.msra.mxu0 0.0
    %953 = vmatprep.subr.mxu0 0.0
    %954 = vmatpush1.msra.mxu0 0.0
    %955 = vmatprep.subr.mxu0 0.0
    %956 = vmatpush1.msra.mxu0 0.0
    %957 = vmatprep.subr.mxu0 0.0
    %958 = vmatpush1.msra.mxu0 0.0
    %959 = vmatprep.subr.mxu0 0.0
    %960 = vmatpush1.msra.mxu0 0.0
    %961 = vmatprep.subr.mxu0 0.0
    %962 = vmatpush1.msra.mxu0 0.0
    %963 = vmatprep.subr.mxu0 0.0
    %964 = vmatpush1.msra.mxu0 0.0
    %965 = vmatprep.subr.mxu0 0.0
    %966 = vmatpush1.msra.mxu0 0.0
    %967 = vmatprep.subr.mxu0 0.0
    %968 = vmatpush1.msra.mxu0 0.0
    %969 = vmatprep.subr.mxu0 0.0
    %970 = vmatpush1.msra.mxu0 0.0
    %971 = vmatprep.subr.mxu0 0.0
    %972 = vmatpush1.msra.mxu0 0.0
    %973 = vmatprep.subr.mxu0 0.0
    %974 = vmatpush1.msra.mxu0 0.0
    %975 = vmatprep.subr.mxu0 0.0
    %976 = vmatpush1.msra.mxu0 0.0
    %977 = vmatprep.subr.mxu0 0.0
    %978 = vmatpush1.msra.mxu0 0.0
    %979 = vmatprep.subr.mxu0 0.0
    %980 = vmatpush1.msra.mxu0 0.0
    %981 = vmatprep.subr.mxu0 0.0
    %982 = vmatpush1.msra.mxu0 0.0
    %983 = vmatprep.mubr.f32.mxu0 0.0
    %984 = vmatmul.mubr.f32.gmra.mrb[0].mxu0 %v903
    %v985 = vpop.f32.mrb[0].mxu0
    %v986 = vadd.f32 0.0, %v985
    %v987 = vpop.f32.mrb[0].mxu0
    %988 = vmatprep.mubr.f32.mxu0 0.0
    %989 = vmatmul.mubr.f32.gmra.mrb[0].mxu0 %v904
    %v990 = vpop.f32.mrb[0].mxu0
    %v991 = vadd.f32 0.0, %v990
    %v992 = vpop.f32.mrb[0].mxu0
    %993 = vmatprep.mubr.f32.mxu0 0.0
    %994 = vmatmul.mubr.f32.gmra.mrb[0].mxu0 %v905
    %v995 = vpop.f32.mrb[0].mxu0
    %v996 = vadd.f32 0.0, %v995
    %v997 = vpop.f32.mrb[0].mxu0
    %998 = vmatprep.mubr.f32.mxu0 0.0
    %999 = vmatmul.mubr.f32.gmra.mrb[0].mxu0 %v906
    %v1000 = vpop.f32.mrb[0].mxu0
    %v1001 = vadd.f32 0.0, %v1000
    %v1002 = vpop.f32.mrb[0].mxu0
    %1003 = vmatprep.mubr.f32.mxu0 0.0
    %1004 = vmatmul.mubr.f32.gmra.mrb[0].mxu0 %v907
    %v1005 = vpop.f32.mrb[0].mxu0
    %v1006 = vadd.f32 0.0, %v1005
    %v1007 = vpop.f32.mrb[0].mxu0
    %1008 = vmatprep.mubr.f32.mxu0 0.0
    %1009 = vmatmul.mubr.f32.gmra.mrb[0].mxu0 %v908
    %v1010 = vpop.f32.mrb[0].mxu0
    %v1011 = vadd.f32 0.0, %v1010
    %v1012 = vpop.f32.mrb[0].mxu0
    %1013 = vmatprep.mubr.f32.mxu0 0.0
    %1014 = vmatmul.mubr.f32.gmra.mrb[0].mxu0 %v909
    %v1015 = vpop.f32.mrb[0].mxu0
    %v1016 = vadd.f32 0.0, %v1015
    %v1017 = vpop.f32.mrb[0].mxu0
    %1018 = vmatprep.mubr.f32.mxu0 0.0
    %1019 = vmatmul.mubr.f32.gmra.mrb[0].mxu0 %v910
    %v1020 = vpop.f32.mrb[0].mxu0
    %v1021 = vadd.f32 0.0, %v1020
    %v1022 = vpop.f32.mrb[0].mxu0
    %1023 = vmatprep.mubr.f32.mxu0 0.0
    %1024 = vmatmul.mubr.f32.gmra.mrb[0].mxu0 %v911
    %v1025 = vpop.f32.mrb[0].mxu0
    %v1026 = vadd.f32 0.0, %v1025
    %v1027 = vpop.f32.mrb[0].mxu0
    %1028 = vmatprep.mubr.f32.mxu0 0.0
    %1029 = vmatmul.mubr.f32.gmra.mrb[0].mxu0 %v912
    %v1030 = vpop.f32.mrb[0].mxu0
    %v1031 = vadd.f32 0.0, %v1030
    %v1032 = vpop.f32.mrb[0].mxu0
    %1033 = vmatprep.mubr.f32.mxu0 0.0
    %1034 = vmatmul.mubr.f32.gmra.mrb[0].mxu0 %v913
    %v1035 = vpop.f32.mrb[0].mxu0
    %v1036 = vadd.f32 0.0, %v1035
    %v1037 = vpop.f32.mrb[0].mxu0
    %1038 = vmatprep.mubr.f32.mxu0 0.0
    %1039 = vmatmul.mubr.f32.gmra.mrb[0].mxu0 %v914
    %v1040 = vpop.f32.mrb[0].mxu0
    %v1041 = vadd.f32 0.0, %v1040
    %v1042 = vpop.f32.mrb[0].mxu0
    %1043 = vmatprep.mubr.f32.mxu0 0.0
    %1044 = vmatmul.mubr.f32.gmra.mrb[0].mxu0 %v915
    %v1045 = vpop.f32.mrb[0].mxu0
    %v1046 = vadd.f32 0.0, %v1045
    %v1047 = vpop.f32.mrb[0].mxu0
    %1048 = vmatprep.mubr.f32.mxu0 0.0
    %1049 = vmatmul.mubr.f32.gmra.mrb[0].mxu0 %v916
    %v1050 = vpop.f32.mrb[0].mxu0
    %v1051 = vadd.f32 0.0, %v1050
    %v1052 = vpop.f32.mrb[0].mxu0
    %1053 = vmatprep.mubr.f32.mxu0 0.0
    %1054 = vmatmul.mubr.f32.gmra.mrb[0].mxu0 %v917
    %v1055 = vpop.f32.mrb[0].mxu0
    %v1056 = vadd.f32 0.0, %v1055
    %v1057 = vpop.f32.mrb[0].mxu0
    %1058 = vmatprep.mubr.f32.mxu0 0.0
    %1059 = vmatmul.mubr.f32.gmra.mrb[0].mxu0 %v918
    %v1060 = vpop.f32.mrb[0].mxu0
    %v1061 = vadd.f32 0.0, %v1060
    %v1062 = vpop.f32.mrb[0].mxu0
    %1063 = vdwg.mxu0
    %v1064 = vld [vmem:[%s2] sm:$0xff]
    %1065 = vrot.lane.b32.xlu0 %v517, 120
    %v1066 = vpop.permute.xlu0 %1065
    %1067 = vrot.lane.b32.xlu0 %v518, 120
    %v1068 = vpop.permute.xlu0 %1067
    %1069 = vrot.lane.b32.xlu0 %v519, 120
    %v1070 = vpop.permute.xlu0 %1069
    %1071 = vrot.lane.b32.xlu0 %v520, 120
    %v1072 = vpop.permute.xlu0 %1071
    %1073 = vrot.lane.b32.xlu0 %v521, 120
    %v1074 = vpop.permute.xlu0 %1073
    %1075 = vrot.lane.b32.xlu0 %v522, 120
    %v1076 = vpop.permute.xlu0 %1075
    %1077 = vrot.lane.b32.xlu0 %v523, 120
    %v1078 = vpop.permute.xlu0 %1077
    %1079 = vrot.lane.b32.xlu0 %v524, 120
    %v1080 = vpop.permute.xlu0 %1079
    %1081 = vrot.lane.b32.xlu0 %v525, 120
    %v1082 = vpop.permute.xlu0 %1081
    %1083 = vrot.lane.b32.xlu0 %v526, 120
    %v1084 = vpop.permute.xlu0 %1083
    %1085 = vrot.lane.b32.xlu0 %v527, 120
    %v1086 = vpop.permute.xlu0 %1085
    %1087 = vrot.lane.b32.xlu0 %v528, 120
    %v1088 = vpop.permute.xlu0 %1087
    %1089 = vrot.lane.b32.xlu0 %v529, 120
    %v1090 = vpop.permute.xlu0 %1089
    %1091 = vrot.lane.b32.xlu0 %v530, 120
    %v1092 = vpop.permute.xlu0 %1091
    %1093 = vrot.lane.b32.xlu0 %v531, 120
    %v1094 = vpop.permute.xlu0 %1093
    %1095 = vrot.lane.b32.xlu0 %v532, 120
    %v1096 = vpop.permute.xlu0 %1095
    %1097 = vrot.lane.b32.xlu0 %v359, 120
    %v1098 = vpop.permute.xlu0 %1097
    %1099 = vrot.lane.b32.xlu0 %v364, 120
    %v1100 = vpop.permute.xlu0 %1099
    %1101 = vrot.lane.b32.xlu0 %v369, 120
    %v1102 = vpop.permute.xlu0 %1101
    %1103 = vrot.lane.b32.xlu0 %v374, 120
    %v1104 = vpop.permute.xlu0 %1103
    %1105 = vrot.lane.b32.xlu0 %v379, 120
    %v1106 = vpop.permute.xlu0 %1105
    %1107 = vrot.lane.b32.xlu0 %v384, 120
    %v1108 = vpop.permute.xlu0 %1107
    %1109 = vrot.lane.b32.xlu0 %v389, 120
    %v1110 = vpop.permute.xlu0 %1109
    %1111 = vrot.lane.b32.xlu0 %v394, 120
    %v1112 = vpop.permute.xlu0 %1111
    %1113 = vrot.lane.b32.xlu0 %v399, 120
    %v1114 = vpop.permute.xlu0 %1113
    %1115 = vrot.lane.b32.xlu0 %v404, 120
    %v1116 = vpop.permute.xlu0 %1115
    %1117 = vrot.lane.b32.xlu0 %v409, 120
    %v1118 = vpop.permute.xlu0 %1117
    %1119 = vrot.lane.b32.xlu0 %v414, 120
    %v1120 = vpop.permute.xlu0 %1119
    %1121 = vrot.lane.b32.xlu0 %v419, 120
    %v1122 = vpop.permute.xlu0 %1121
    %1123 = vrot.lane.b32.xlu0 %v424, 120
    %v1124 = vpop.permute.xlu0 %1123
    %1125 = vrot.lane.b32.xlu0 %v429, 120
    %v1126 = vpop.permute.xlu0 %1125
    %1127 = vrot.lane.b32.xlu0 %v434, 120
    %v1128 = vpop.permute.xlu0 %1127
    %v1129 = vsel %vm533, %v1066, 0
    %v1131 = vsel %vm533, %v1068, 0
    %v1133 = vsel %vm533, %v1070, 0
    %v1135 = vsel %vm533, %v1072, 0
    %v1137 = vsel %vm533, %v1074, 0
    %v1139 = vsel %vm533, %v1076, 0
    %v1141 = vsel %vm533, %v1078, 0
    %v1143 = vsel %vm533, %v1080, 0
    %v1145 = vsel %vm533, %v1082, 0
    %v1147 = vsel %vm533, %v1084, 0
    %v1149 = vsel %vm533, %v1086, 0
    %v1151 = vsel %vm533, %v1088, 0
    %v1153 = vsel %vm533, %v1090, 0
    %v1155 = vsel %vm533, %v1092, 0
    %v1157 = vsel %vm533, %v1094, 0
    %v1159 = vsel %vm533, %v1096, 0
    %v1161 = vsel %vm533, %v1098, 0
    %v1163 = vsel %vm533, %v1100, 0
    %v1165 = vsel %vm533, %v1102, 0
    %v1167 = vsel %vm533, %v1104, 0
    %v1169 = vsel %vm533, %v1106, 0
    %v1171 = vsel %vm533, %v1108, 0
    %v1173 = vsel %vm533, %v1110, 0
    %v1175 = vsel %vm533, %v1112, 0
    %v1177 = vsel %vm533, %v1114, 0
    %v1179 = vsel %vm533, %v1116, 0
    %v1181 = vsel %vm533, %v1118, 0
    %v1183 = vsel %vm533, %v1120, 0
    %v1185 = vsel %vm533, %v1122, 0
    %v1187 = vsel %vm533, %v1124, 0
    %v1189 = vsel %vm533, %v1126, 0
    %v1191 = vsel %vm533, %v1128, 0
    %1193 = vmatprep.subr.mxu0 0.0
    %1194 = vmatpush1.xpose.msra.mxu0 %v1161
    %1195 = vmatprep.subr.mxu0 0.0
    %1196 = vmatpush1.xpose.msra.mxu0 %v1163
    %1197 = vmatprep.subr.mxu0 0.0
    %1198 = vmatpush1.xpose.msra.mxu0 %v1165
    %1199 = vmatprep.subr.mxu0 0.0
    %1200 = vmatpush1.xpose.msra.mxu0 %v1167
    %1201 = vmatprep.subr.mxu0 0.0
    %1202 = vmatpush1.xpose.msra.mxu0 %v1169
    %1203 = vmatprep.subr.mxu0 0.0
    %1204 = vmatpush1.xpose.msra.mxu0 %v1171
    %1205 = vmatprep.subr.mxu0 0.0
    %1206 = vmatpush1.xpose.msra.mxu0 %v1173
    %1207 = vmatprep.subr.mxu0 0.0
    %1208 = vmatpush1.xpose.msra.mxu0 %v1175
    %1209 = vmatprep.subr.mxu0 0.0
    %1210 = vmatpush1.xpose.msra.mxu0 %v1177
    %1211 = vmatprep.subr.mxu0 0.0
    %1212 = vmatpush1.xpose.msra.mxu0 %v1179
    %1213 = vmatprep.subr.mxu0 0.0
    %1214 = vmatpush1.xpose.msra.mxu0 %v1181
    %1215 = vmatprep.subr.mxu0 0.0
    %1216 = vmatpush1.xpose.msra.mxu0 %v1183
    %1217 = vmatprep.subr.mxu0 0.0
    %1218 = vmatpush1.xpose.msra.mxu0 %v1185
    %1219 = vmatprep.subr.mxu0 0.0
    %1220 = vmatpush1.xpose.msra.mxu0 %v1187
    %1221 = vmatprep.subr.mxu0 0.0
    %1222 = vmatpush1.xpose.msra.mxu0 %v1189
    %1223 = vmatprep.subr.mxu0 0.0
    %1224 = vmatpush1.xpose.msra.mxu0 %v1191
    %1225 = vmatprep.subr.mxu0 0.0
    %1226 = vmatpush1.xpose.msra.mxu0 0.0
    %1227 = vmatprep.subr.mxu0 0.0
    %1228 = vmatpush1.xpose.msra.mxu0 0.0
    %1229 = vmatprep.subr.mxu0 0.0
    %1230 = vmatpush1.xpose.msra.mxu0 0.0
    %1231 = vmatprep.subr.mxu0 0.0
    %1232 = vmatpush1.xpose.msra.mxu0 0.0
    %1233 = vmatprep.subr.mxu0 0.0
    %1234 = vmatpush1.xpose.msra.mxu0 0.0
    %1235 = vmatprep.subr.mxu0 0.0
    %1236 = vmatpush1.xpose.msra.mxu0 0.0
    %1237 = vmatprep.subr.mxu0 0.0
    %1238 = vmatpush1.xpose.msra.mxu0 0.0
    %1239 = vmatprep.subr.mxu0 0.0
    %1240 = vmatpush1.xpose.msra.mxu0 0.0
    %1241 = vmatprep.subr.mxu0 0.0
    %1242 = vmatpush1.xpose.msra.mxu0 0.0
    %1243 = vmatprep.subr.mxu0 0.0
    %1244 = vmatpush1.xpose.msra.mxu0 0.0
    %1245 = vmatprep.subr.mxu0 0.0
    %1246 = vmatpush1.xpose.msra.mxu0 0.0
    %1247 = vmatprep.subr.mxu0 0.0
    %1248 = vmatpush1.xpose.msra.mxu0 0.0
    %1249 = vmatprep.subr.mxu0 0.0
    %1250 = vmatpush1.xpose.msra.mxu0 0.0
    %1251 = vmatprep.subr.mxu0 0.0
    %1252 = vmatpush1.xpose.msra.mxu0 0.0
    %1253 = vmatprep.subr.mxu0 0.0
    %1254 = vmatpush1.xpose.msra.mxu0 0.0
    %1255 = vmatprep.subr.mxu0 0.0
    %1256 = vmatpush1.xpose.msra.mxu0 0.0
    %1257 = vmatprep.mubr.f32.mxu0 0.0
    %1258 = vmatmul.mubr.f32.gmra.mrb[0].mxu0 %v1129
    %v1259 = vpop.f32.mrb[0].mxu0
    %v1260 = vadd.f32 0.0, %v1259
    %v1261 = vpop.f32.mrb[0].mxu0
    %1262 = vmatprep.mubr.f32.mxu0 0.0
    %1263 = vmatmul.mubr.f32.gmra.mrb[0].mxu0 %v1131
    %v1264 = vpop.f32.mrb[0].mxu0
    %v1265 = vadd.f32 0.0, %v1264
    %v1266 = vpop.f32.mrb[0].mxu0
    %1267 = vmatprep.mubr.f32.mxu0 0.0
    %1268 = vmatmul.mubr.f32.gmra.mrb[0].mxu0 %v1133
    %v1269 = vpop.f32.mrb[0].mxu0
    %v1270 = vadd.f32 0.0, %v1269
    %v1271 = vpop.f32.mrb[0].mxu0
    %1272 = vmatprep.mubr.f32.mxu0 0.0
    %1273 = vmatmul.mubr.f32.gmra.mrb[0].mxu0 %v1135
    %v1274 = vpop.f32.mrb[0].mxu0
    %v1275 = vadd.f32 0.0, %v1274
    %v1276 = vpop.f32.mrb[0].mxu0
    %1277 = vmatprep.mubr.f32.mxu0 0.0
    %1278 = vmatmul.mubr.f32.gmra.mrb[0].mxu0 %v1137
    %v1279 = vpop.f32.mrb[0].mxu0
    %v1280 = vadd.f32 0.0, %v1279
    %v1281 = vpop.f32.mrb[0].mxu0
    %1282 = vmatprep.mubr.f32.mxu0 0.0
    %1283 = vmatmul.mubr.f32.gmra.mrb[0].mxu0 %v1139
    %v1284 = vpop.f32.mrb[0].mxu0
    %v1285 = vadd.f32 0.0, %v1284
    %v1286 = vpop.f32.mrb[0].mxu0
    %1287 = vmatprep.mubr.f32.mxu0 0.0
    %1288 = vmatmul.mubr.f32.gmra.mrb[0].mxu0 %v1141
    %v1289 = vpop.f32.mrb[0].mxu0
    %v1290 = vadd.f32 0.0, %v1289
    %v1291 = vpop.f32.mrb[0].mxu0
    %1292 = vmatprep.mubr.f32.mxu0 0.0
    %1293 = vmatmul.mubr.f32.gmra.mrb[0].mxu0 %v1143
    %v1294 = vpop.f32.mrb[0].mxu0
    %v1295 = vadd.f32 0.0, %v1294
    %v1296 = vpop.f32.mrb[0].mxu0
    %1297 = vmatprep.mubr.f32.mxu0 0.0
    %1298 = vmatmul.mubr.f32.gmra.mrb[0].mxu0 %v1145
    %v1299 = vpop.f32.mrb[0].mxu0
    %v1300 = vadd.f32 0.0, %v1299
    %v1301 = vpop.f32.mrb[0].mxu0
    %1302 = vmatprep.mubr.f32.mxu0 0.0
    %1303 = vmatmul.mubr.f32.gmra.mrb[0].mxu0 %v1147
    %v1304 = vpop.f32.mrb[0].mxu0
    %v1305 = vadd.f32 0.0, %v1304
    %v1306 = vpop.f32.mrb[0].mxu0
    %1307 = vmatprep.mubr.f32.mxu0 0.0
    %1308 = vmatmul.mubr.f32.gmra.mrb[0].mxu0 %v1149
    %v1309 = vpop.f32.mrb[0].mxu0
    %v1310 = vadd.f32 0.0, %v1309
    %v1311 = vpop.f32.mrb[0].mxu0
    %1312 = vmatprep.mubr.f32.mxu0 0.0
    %1313 = vmatmul.mubr.f32.gmra.mrb[0].mxu0 %v1151
    %v1314 = vpop.f32.mrb[0].mxu0
    %v1315 = vadd.f32 0.0, %v1314
    %v1316 = vpop.f32.mrb[0].mxu0
    %1317 = vmatprep.mubr.f32.mxu0 0.0
    %1318 = vmatmul.mubr.f32.gmra.mrb[0].mxu0 %v1153
    %v1319 = vpop.f32.mrb[0].mxu0
    %v1320 = vadd.f32 0.0, %v1319
    %v1321 = vpop.f32.mrb[0].mxu0
    %1322 = vmatprep.mubr.f32.mxu0 0.0
    %1323 = vmatmul.mubr.f32.gmra.mrb[0].mxu0 %v1155
    %v1324 = vpop.f32.mrb[0].mxu0
    %v1325 = vadd.f32 0.0, %v1324
    %v1326 = vpop.f32.mrb[0].mxu0
    %1327 = vmatprep.mubr.f32.mxu0 0.0
    %1328 = vmatmul.mubr.f32.gmra.mrb[0].mxu0 %v1157
    %v1329 = vpop.f32.mrb[0].mxu0
    %v1330 = vadd.f32 0.0, %v1329
    %v1331 = vpop.f32.mrb[0].mxu0
    %1332 = vmatprep.mubr.f32.mxu0 0.0
    %1333 = vmatmul.mubr.f32.gmra.mrb[0].mxu0 %v1159
    %v1334 = vpop.f32.mrb[0].mxu0
    %v1335 = vadd.f32 0.0, %v1334
    %v1336 = vpop.f32.mrb[0].mxu0
    %1337 = vdwg.mxu0
    %1338 = vmax.xlane.f32.xlu0 %v1260
    %v1339 = vpop.xlane.xlu0 %1338
    %1340 = vmax.xlane.f32.xlu0 %v1265
    %v1341 = vpop.xlane.xlu0 %1340
    %1342 = vmax.xlane.f32.xlu0 %v1270
    %v1343 = vpop.xlane.xlu0 %1342
    %1344 = vmax.xlane.f32.xlu0 %v1275
    %v1345 = vpop.xlane.xlu0 %1344
    %1346 = vmax.xlane.f32.xlu0 %v1280
    %v1347 = vpop.xlane.xlu0 %1346
    %1348 = vmax.xlane.f32.xlu0 %v1285
    %v1349 = vpop.xlane.xlu0 %1348
    %1350 = vmax.xlane.f32.xlu0 %v1290
    %v1351 = vpop.xlane.xlu0 %1350
    %1352 = vmax.xlane.f32.xlu0 %v1295
    %v1353 = vpop.xlane.xlu0 %1352
    %1354 = vmax.xlane.f32.xlu0 %v1300
    %v1355 = vpop.xlane.xlu0 %1354
    %1356 = vmax.xlane.f32.xlu0 %v1305
    %v1357 = vpop.xlane.xlu0 %1356
    %1358 = vmax.xlane.f32.xlu0 %v1310
    %v1359 = vpop.xlane.xlu0 %1358
    %1360 = vmax.xlane.f32.xlu0 %v1315
    %v1361 = vpop.xlane.xlu0 %1360
    %1362 = vmax.xlane.f32.xlu0 %v1320
    %v1363 = vpop.xlane.xlu0 %1362
    %1364 = vmax.xlane.f32.xlu0 %v1325
    %v1365 = vpop.xlane.xlu0 %1364
    %1366 = vmax.xlane.f32.xlu0 %v1330
    %v1367 = vpop.xlane.xlu0 %1366
    %1368 = vmax.xlane.f32.xlu0 %v1335
    %v1369 = vpop.xlane.xlu0 %1368
    %v1370 = vsub.f32 %v1260, %v1339
    %v1371 = vsub.f32 %v1265, %v1341
    %v1372 = vsub.f32 %v1270, %v1343
    %v1373 = vsub.f32 %v1275, %v1345
    %v1374 = vsub.f32 %v1280, %v1347
    %v1375 = vsub.f32 %v1285, %v1349
    %v1376 = vsub.f32 %v1290, %v1351
    %v1377 = vsub.f32 %v1295, %v1353
    %v1378 = vsub.f32 %v1300, %v1355
    %v1379 = vsub.f32 %v1305, %v1357
    %v1380 = vsub.f32 %v1310, %v1359
    %v1381 = vsub.f32 %v1315, %v1361
    %v1382 = vsub.f32 %v1320, %v1363
    %v1383 = vsub.f32 %v1325, %v1365
    %v1384 = vsub.f32 %v1330, %v1367
    %v1385 = vsub.f32 %v1335, %v1369
    %v1386 = vmul.f32 %v1370, 1.442695
    %v1387 = vpow.pop %v1386
    %v1388 = vmul.f32 %v1371, 1.442695
    %v1389 = vpow.pop %v1388
    %v1390 = vmul.f32 %v1372, 1.442695
    %v1391 = vpow.pop %v1390
    %v1392 = vmul.f32 %v1373, 1.442695
    %v1393 = vpow.pop %v1392
    %v1394 = vmul.f32 %v1374, 1.442695
    %v1395 = vpow.pop %v1394
    %v1396 = vmul.f32 %v1375, 1.442695
    %v1397 = vpow.pop %v1396
    %v1398 = vmul.f32 %v1376, 1.442695
    %v1399 = vpow.pop %v1398
    %v1400 = vmul.f32 %v1377, 1.442695
    %v1401 = vpow.pop %v1400
    %v1402 = vmul.f32 %v1378, 1.442695
    %v1403 = vpow.pop %v1402
    %v1404 = vmul.f32 %v1379, 1.442695
    %v1405 = vpow.pop %v1404
    %v1406 = vmul.f32 %v1380, 1.442695
    %v1407 = vpow.pop %v1406
    %v1408 = vmul.f32 %v1381, 1.442695
    %v1409 = vpow.pop %v1408
    %v1410 = vmul.f32 %v1382, 1.442695
    %v1411 = vpow.pop %v1410
    %v1412 = vmul.f32 %v1383, 1.442695
    %v1413 = vpow.pop %v1412
    %v1414 = vmul.f32 %v1384, 1.442695
    %v1415 = vpow.pop %v1414
    %v1416 = vmul.f32 %v1385, 1.442695
    %v1417 = vpow.pop %v1416
    %1418 = vadd.xlane.f32.xlu0 %v1387
    %v1419 = vpop.xlane.xlu0 %1418
    %1420 = vadd.xlane.f32.xlu0 %v1389
    %v1421 = vpop.xlane.xlu0 %1420
    %1422 = vadd.xlane.f32.xlu0 %v1391
    %v1423 = vpop.xlane.xlu0 %1422
    %1424 = vadd.xlane.f32.xlu0 %v1393
    %v1425 = vpop.xlane.xlu0 %1424
    %1426 = vadd.xlane.f32.xlu0 %v1395
    %v1427 = vpop.xlane.xlu0 %1426
    %1428 = vadd.xlane.f32.xlu0 %v1397
    %v1429 = vpop.xlane.xlu0 %1428
    %1430 = vadd.xlane.f32.xlu0 %v1399
    %v1431 = vpop.xlane.xlu0 %1430
    %1432 = vadd.xlane.f32.xlu0 %v1401
    %v1433 = vpop.xlane.xlu0 %1432
    %1434 = vadd.xlane.f32.xlu0 %v1403
    %v1435 = vpop.xlane.xlu0 %1434
    %1436 = vadd.xlane.f32.xlu0 %v1405
    %v1437 = vpop.xlane.xlu0 %1436
    %1438 = vadd.xlane.f32.xlu0 %v1407
    %v1439 = vpop.xlane.xlu0 %1438
    %1440 = vadd.xlane.f32.xlu0 %v1409
    %v1441 = vpop.xlane.xlu0 %1440
    %1442 = vadd.xlane.f32.xlu0 %v1411
    %v1443 = vpop.xlane.xlu0 %1442
    %1444 = vadd.xlane.f32.xlu0 %v1413
    %v1445 = vpop.xlane.xlu0 %1444
    %1446 = vadd.xlane.f32.xlu0 %v1415
    %v1447 = vpop.xlane.xlu0 %1446
    %1448 = vadd.xlane.f32.xlu0 %v1417
    %v1449 = vpop.xlane.xlu0 %1448
    %v1450 = vrcp.pop %v1419
    %v1451 = vrcp.pop %v1421
    %v1452 = vrcp.pop %v1423
    %v1453 = vrcp.pop %v1425
    %v1454 = vrcp.pop %v1427
    %v1455 = vrcp.pop %v1429
    %v1456 = vrcp.pop %v1431
    %v1457 = vrcp.pop %v1433
    %v1458 = vrcp.pop %v1435
    %v1459 = vrcp.pop %v1437
    %v1460 = vrcp.pop %v1439
    %v1461 = vrcp.pop %v1441
    %v1462 = vrcp.pop %v1443
    %v1463 = vrcp.pop %v1445
    %v1464 = vrcp.pop %v1447
    %v1465 = vrcp.pop %v1449
    %v1466 = vmul.f32 %v1387, %v1450
    %v1467 = vmul.f32 %v1389, %v1451
    %v1468 = vmul.f32 %v1391, %v1452
    %v1469 = vmul.f32 %v1393, %v1453
    %v1470 = vmul.f32 %v1395, %v1454
    %v1471 = vmul.f32 %v1397, %v1455
    %v1472 = vmul.f32 %v1399, %v1456
    %v1473 = vmul.f32 %v1401, %v1457
    %v1474 = vmul.f32 %v1403, %v1458
    %v1475 = vmul.f32 %v1405, %v1459
    %v1476 = vmul.f32 %v1407, %v1460
    %v1477 = vmul.f32 %v1409, %v1461
    %v1478 = vmul.f32 %v1411, %v1462
    %v1479 = vmul.f32 %v1413, %v1463
    %v1480 = vmul.f32 %v1415, %v1464
    %v1481 = vmul.f32 %v1417, %v1465
    %1498 = vrot.lane.b32.xlu0 %v439, 120
    %v1499 = vpop.permute.xlu0 %1498
    %1500 = vrot.lane.b32.xlu0 %v444, 120
    %v1501 = vpop.permute.xlu0 %1500
    %1502 = vrot.lane.b32.xlu0 %v449, 120
    %v1503 = vpop.permute.xlu0 %1502
    %1504 = vrot.lane.b32.xlu0 %v454, 120
    %v1505 = vpop.permute.xlu0 %1504
    %1506 = vrot.lane.b32.xlu0 %v459, 120
    %v1507 = vpop.permute.xlu0 %1506
    %1508 = vrot.lane.b32.xlu0 %v464, 120
    %v1509 = vpop.permute.xlu0 %1508
    %1510 = vrot.lane.b32.xlu0 %v469, 120
    %v1511 = vpop.permute.xlu0 %1510
    %1512 = vrot.lane.b32.xlu0 %v474, 120
    %v1513 = vpop.permute.xlu0 %1512
    %1514 = vrot.lane.b32.xlu0 %v479, 120
    %v1515 = vpop.permute.xlu0 %1514
    %1516 = vrot.lane.b32.xlu0 %v484, 120
    %v1517 = vpop.permute.xlu0 %1516
    %1518 = vrot.lane.b32.xlu0 %v489, 120
    %v1519 = vpop.permute.xlu0 %1518
    %1520 = vrot.lane.b32.xlu0 %v494, 120
    %v1521 = vpop.permute.xlu0 %1520
    %1522 = vrot.lane.b32.xlu0 %v499, 120
    %v1523 = vpop.permute.xlu0 %1522
    %1524 = vrot.lane.b32.xlu0 %v504, 120
    %v1525 = vpop.permute.xlu0 %1524
    %1526 = vrot.lane.b32.xlu0 %v509, 120
    %v1527 = vpop.permute.xlu0 %1526
    %1528 = vrot.lane.b32.xlu0 %v514, 120
    %v1529 = vpop.permute.xlu0 %1528
    %1546 = vmatprep.subr.mxu0 0.0
    %1547 = vmatpush1.msra.mxu0 %v1499
    %1548 = vmatprep.subr.mxu0 0.0
    %1549 = vmatpush1.msra.mxu0 %v1501
    %1550 = vmatprep.subr.mxu0 0.0
    %1551 = vmatpush1.msra.mxu0 %v1503
    %1552 = vmatprep.subr.mxu0 0.0
    %1553 = vmatpush1.msra.mxu0 %v1505
    %1554 = vmatprep.subr.mxu0 0.0
    %1555 = vmatpush1.msra.mxu0 %v1507
    %1556 = vmatprep.subr.mxu0 0.0
    %1557 = vmatpush1.msra.mxu0 %v1509
    %1558 = vmatprep.subr.mxu0 0.0
    %1559 = vmatpush1.msra.mxu0 %v1511
    %1560 = vmatprep.subr.mxu0 0.0
    %1561 = vmatpush1.msra.mxu0 %v1513
    %1562 = vmatprep.subr.mxu0 0.0
    %1563 = vmatpush1.msra.mxu0 %v1515
    %1564 = vmatprep.subr.mxu0 0.0
    %1565 = vmatpush1.msra.mxu0 %v1517
    %1566 = vmatprep.subr.mxu0 0.0
    %1567 = vmatpush1.msra.mxu0 %v1519
    %1568 = vmatprep.subr.mxu0 0.0
    %1569 = vmatpush1.msra.mxu0 %v1521
    %1570 = vmatprep.subr.mxu0 0.0
    %1571 = vmatpush1.msra.mxu0 %v1523
    %1572 = vmatprep.subr.mxu0 0.0
    %1573 = vmatpush1.msra.mxu0 %v1525
    %1574 = vmatprep.subr.mxu0 0.0
    %1575 = vmatpush1.msra.mxu0 %v1527
    %1576 = vmatprep.subr.mxu0 0.0
    %1577 = vmatpush1.msra.mxu0 %v1529
    %1578 = vmatprep.subr.mxu0 0.0
    %1579 = vmatpush1.msra.mxu0 0.0
    %1580 = vmatprep.subr.mxu0 0.0
    %1581 = vmatpush1.msra.mxu0 0.0
    %1582 = vmatprep.subr.mxu0 0.0
    %1583 = vmatpush1.msra.mxu0 0.0
    %1584 = vmatprep.subr.mxu0 0.0
    %1585 = vmatpush1.msra.mxu0 0.0
    %1586 = vmatprep.subr.mxu0 0.0
    %1587 = vmatpush1.msra.mxu0 0.0
    %1588 = vmatprep.subr.mxu0 0.0
    %1589 = vmatpush1.msra.mxu0 0.0
    %1590 = vmatprep.subr.mxu0 0.0
    %1591 = vmatpush1.msra.mxu0 0.0
    %1592 = vmatprep.subr.mxu0 0.0
    %1593 = vmatpush1.msra.mxu0 0.0
    %1594 = vmatprep.subr.mxu0 0.0
    %1595 = vmatpush1.msra.mxu0 0.0
    %1596 = vmatprep.subr.mxu0 0.0
    %1597 = vmatpush1.msra.mxu0 0.0
    %1598 = vmatprep.subr.mxu0 0.0
    %1599 = vmatpush1.msra.mxu0 0.0
    %1600 = vmatprep.subr.mxu0 0.0
    %1601 = vmatpush1.msra.mxu0 0.0
    %1602 = vmatprep.subr.mxu0 0.0
    %1603 = vmatpush1.msra.mxu0 0.0
    %1604 = vmatprep.subr.mxu0 0.0
    %1605 = vmatpush1.msra.mxu0 0.0
    %1606 = vmatprep.subr.mxu0 0.0
    %1607 = vmatpush1.msra.mxu0 0.0
    %1608 = vmatprep.subr.mxu0 0.0
    %1609 = vmatpush1.msra.mxu0 0.0
    %1610 = vmatprep.mubr.f32.mxu0 0.0
    %1611 = vmatmul.mubr.f32.gmra.mrb[0].mxu0 %v1466
    %v1612 = vpop.f32.mrb[0].mxu0
    %v1613 = vadd.f32 0.0, %v1612
    %v1614 = vpop.f32.mrb[0].mxu0
    %1615 = vmatprep.mubr.f32.mxu0 0.0
    %1616 = vmatmul.mubr.f32.gmra.mrb[0].mxu0 %v1467
    %v1617 = vpop.f32.mrb[0].mxu0
    %v1618 = vadd.f32 0.0, %v1617
    %v1619 = vpop.f32.mrb[0].mxu0
    %1620 = vmatprep.mubr.f32.mxu0 0.0
    %1621 = vmatmul.mubr.f32.gmra.mrb[0].mxu0 %v1468
    %v1622 = vpop.f32.mrb[0].mxu0
    %v1623 = vadd.f32 0.0, %v1622
    %v1624 = vpop.f32.mrb[0].mxu0
    %1625 = vmatprep.mubr.f32.mxu0 0.0
    %1626 = vmatmul.mubr.f32.gmra.mrb[0].mxu0 %v1469
    %v1627 = vpop.f32.mrb[0].mxu0
    %v1628 = vadd.f32 0.0, %v1627
    %v1629 = vpop.f32.mrb[0].mxu0
    %1630 = vmatprep.mubr.f32.mxu0 0.0
    %1631 = vmatmul.mubr.f32.gmra.mrb[0].mxu0 %v1470
    %v1632 = vpop.f32.mrb[0].mxu0
    %v1633 = vadd.f32 0.0, %v1632
    %v1634 = vpop.f32.mrb[0].mxu0
    %1635 = vmatprep.mubr.f32.mxu0 0.0
    %1636 = vmatmul.mubr.f32.gmra.mrb[0].mxu0 %v1471
    %v1637 = vpop.f32.mrb[0].mxu0
    %v1638 = vadd.f32 0.0, %v1637
    %v1639 = vpop.f32.mrb[0].mxu0
    %1640 = vmatprep.mubr.f32.mxu0 0.0
    %1641 = vmatmul.mubr.f32.gmra.mrb[0].mxu0 %v1472
    %v1642 = vpop.f32.mrb[0].mxu0
    %v1643 = vadd.f32 0.0, %v1642
    %v1644 = vpop.f32.mrb[0].mxu0
    %1645 = vmatprep.mubr.f32.mxu0 0.0
    %1646 = vmatmul.mubr.f32.gmra.mrb[0].mxu0 %v1473
    %v1647 = vpop.f32.mrb[0].mxu0
    %v1648 = vadd.f32 0.0, %v1647
    %v1649 = vpop.f32.mrb[0].mxu0
    %1650 = vmatprep.mubr.f32.mxu0 0.0
    %1651 = vmatmul.mubr.f32.gmra.mrb[0].mxu0 %v1474
    %v1652 = vpop.f32.mrb[0].mxu0
    %v1653 = vadd.f32 0.0, %v1652
    %v1654 = vpop.f32.mrb[0].mxu0
    %1655 = vmatprep.mubr.f32.mxu0 0.0
    %1656 = vmatmul.mubr.f32.gmra.mrb[0].mxu0 %v1475
    %v1657 = vpop.f32.mrb[0].mxu0
    %v1658 = vadd.f32 0.0, %v1657
    %v1659 = vpop.f32.mrb[0].mxu0
    %1660 = vmatprep.mubr.f32.mxu0 0.0
    %1661 = vmatmul.mubr.f32.gmra.mrb[0].mxu0 %v1476
    %v1662 = vpop.f32.mrb[0].mxu0
    %v1663 = vadd.f32 0.0, %v1662
    %v1664 = vpop.f32.mrb[0].mxu0
    %1665 = vmatprep.mubr.f32.mxu0 0.0
    %1666 = vmatmul.mubr.f32.gmra.mrb[0].mxu0 %v1477
    %v1667 = vpop.f32.mrb[0].mxu0
    %v1668 = vadd.f32 0.0, %v1667
    %v1669 = vpop.f32.mrb[0].mxu0
    %1670 = vmatprep.mubr.f32.mxu0 0.0
    %1671 = vmatmul.mubr.f32.gmra.mrb[0].mxu0 %v1478
    %v1672 = vpop.f32.mrb[0].mxu0
    %v1673 = vadd.f32 0.0, %v1672
    %v1674 = vpop.f32.mrb[0].mxu0
    %1675 = vmatprep.mubr.f32.mxu0 0.0
    %1676 = vmatmul.mubr.f32.gmra.mrb[0].mxu0 %v1479
    %v1677 = vpop.f32.mrb[0].mxu0
    %v1678 = vadd.f32 0.0, %v1677
    %v1679 = vpop.f32.mrb[0].mxu0
    %1680 = vmatprep.mubr.f32.mxu0 0.0
    %1681 = vmatmul.mubr.f32.gmra.mrb[0].mxu0 %v1480
    %v1682 = vpop.f32.mrb[0].mxu0
    %v1683 = vadd.f32 0.0, %v1682
    %v1684 = vpop.f32.mrb[0].mxu0
    %1685 = vmatprep.mubr.f32.mxu0 0.0
    %1686 = vmatmul.mubr.f32.gmra.mrb[0].mxu0 %v1481
    %v1687 = vpop.f32.mrb[0].mxu0
    %v1688 = vadd.f32 0.0, %v1687
    %v1689 = vpop.f32.mrb[0].mxu0
    %1690 = vdwg.mxu0
    %v1691 = vld [vmem:[%s2 + $0x8] sm:$0xff]
    %v1693 = vsel %vm533, %v1613, 0
    %v1696 = vsel %vm533, %v1618, 0
    %v1699 = vsel %vm533, %v1623, 0
    %v1702 = vsel %vm533, %v1628, 0
    %v1705 = vsel %vm533, %v1633, 0
    %v1708 = vsel %vm533, %v1638, 0
    %v1711 = vsel %vm533, %v1643, 0
    %v1714 = vsel %vm533, %v1648, 0
    %v1717 = vsel %vm533, %v1653, 0
    %v1720 = vsel %vm533, %v1658, 0
    %v1723 = vsel %vm533, %v1663, 0
    %v1726 = vsel %vm533, %v1668, 0
    %v1729 = vsel %vm533, %v1673, 0
    %v1732 = vsel %vm533, %v1678, 0
    %v1735 = vsel %vm533, %v1683, 0
    %v1738 = vsel %vm533, %v1688, 0
    %1740 = vmatprep.subr.mxu0 0.0
    %1741 = vmatpush1.msra.mxu0 %v1691
    %1742 = vmatprep.subr.mxu0 0.0
    %1743 = vmatpush1.msra.mxu0 0.0
    %1744 = vmatprep.subr.mxu0 0.0
    %1745 = vmatpush1.msra.mxu0 0.0
    %1746 = vmatprep.subr.mxu0 0.0
    %1747 = vmatpush1.msra.mxu0 0.0
    %1748 = vmatprep.subr.mxu0 0.0
    %1749 = vmatpush1.msra.mxu0 0.0
    %1750 = vmatprep.subr.mxu0 0.0
    %1751 = vmatpush1.msra.mxu0 0.0
    %1752 = vmatprep.subr.mxu0 0.0
    %1753 = vmatpush1.msra.mxu0 0.0
    %1754 = vmatprep.subr.mxu0 0.0
    %1755 = vmatpush1.msra.mxu0 0.0
    %1756 = vmatprep.subr.mxu0 0.0
    %1757 = vmatpush1.msra.mxu0 0.0
    %1758 = vmatprep.subr.mxu0 0.0
    %1759 = vmatpush1.msra.mxu0 0.0
    %1760 = vmatprep.subr.mxu0 0.0
    %1761 = vmatpush1.msra.mxu0 0.0
    %1762 = vmatprep.subr.mxu0 0.0
    %1763 = vmatpush1.msra.mxu0 0.0
    %1764 = vmatprep.subr.mxu0 0.0
    %1765 = vmatpush1.msra.mxu0 0.0
    %1766 = vmatprep.subr.mxu0 0.0
    %1767 = vmatpush1.msra.mxu0 0.0
    %1768 = vmatprep.subr.mxu0 0.0
    %1769 = vmatpush1.msra.mxu0 0.0
    %1770 = vmatprep.subr.mxu0 0.0
    %1771 = vmatpush1.msra.mxu0 0.0
    %1772 = vmatprep.subr.mxu0 0.0
    %1773 = vmatpush1.msra.mxu0 0.0
    %1774 = vmatprep.subr.mxu0 0.0
    %1775 = vmatpush1.msra.mxu0 0.0
    %1776 = vmatprep.subr.mxu0 0.0
    %1777 = vmatpush1.msra.mxu0 0.0
    %1778 = vmatprep.subr.mxu0 0.0
    %1779 = vmatpush1.msra.mxu0 0.0
    %1780 = vmatprep.subr.mxu0 0.0
    %1781 = vmatpush1.msra.mxu0 0.0
    %1782 = vmatprep.subr.mxu0 0.0
    %1783 = vmatpush1.msra.mxu0 0.0
    %1784 = vmatprep.subr.mxu0 0.0
    %1785 = vmatpush1.msra.mxu0 0.0
    %1786 = vmatprep.subr.mxu0 0.0
    %1787 = vmatpush1.msra.mxu0 0.0
    %1788 = vmatprep.subr.mxu0 0.0
    %1789 = vmatpush1.msra.mxu0 0.0
    %1790 = vmatprep.subr.mxu0 0.0
    %1791 = vmatpush1.msra.mxu0 0.0
    %1792 = vmatprep.subr.mxu0 0.0
    %1793 = vmatpush1.msra.mxu0 0.0
    %1794 = vmatprep.subr.mxu0 0.0
    %1795 = vmatpush1.msra.mxu0 0.0
    %1796 = vmatprep.subr.mxu0 0.0
    %1797 = vmatpush1.msra.mxu0 0.0
    %1798 = vmatprep.subr.mxu0 0.0
    %1799 = vmatpush1.msra.mxu0 0.0
    %1800 = vmatprep.subr.mxu0 0.0
    %1801 = vmatpush1.msra.mxu0 0.0
    %1802 = vmatprep.subr.mxu0 0.0
    %1803 = vmatpush1.msra.mxu0 0.0
    %1804 = vmatprep.mubr.f32.mxu0 0.0
    %1805 = vmatmul.mubr.f32.gmra.mrb[0].mxu0 %v1693
    %v1806 = vpop.f32.mrb[0].mxu0
    %v1807 = vadd.f32 0.0, %v1806
    %v1808 = vpop.f32.mrb[0].mxu0
    %1809 = vmatprep.mubr.f32.mxu0 0.0
    %1810 = vmatmul.mubr.f32.gmra.mrb[0].mxu0 %v1696
    %v1811 = vpop.f32.mrb[0].mxu0
    %v1812 = vadd.f32 0.0, %v1811
    %v1813 = vpop.f32.mrb[0].mxu0
    %1814 = vmatprep.mubr.f32.mxu0 0.0
    %1815 = vmatmul.mubr.f32.gmra.mrb[0].mxu0 %v1699
    %v1816 = vpop.f32.mrb[0].mxu0
    %v1817 = vadd.f32 0.0, %v1816
    %v1818 = vpop.f32.mrb[0].mxu0
    %1819 = vmatprep.mubr.f32.mxu0 0.0
    %1820 = vmatmul.mubr.f32.gmra.mrb[0].mxu0 %v1702
    %v1821 = vpop.f32.mrb[0].mxu0
    %v1822 = vadd.f32 0.0, %v1821
    %v1823 = vpop.f32.mrb[0].mxu0
    %1824 = vmatprep.mubr.f32.mxu0 0.0
    %1825 = vmatmul.mubr.f32.gmra.mrb[0].mxu0 %v1705
    %v1826 = vpop.f32.mrb[0].mxu0
    %v1827 = vadd.f32 0.0, %v1826
    %v1828 = vpop.f32.mrb[0].mxu0
    %1829 = vmatprep.mubr.f32.mxu0 0.0
    %1830 = vmatmul.mubr.f32.gmra.mrb[0].mxu0 %v1708
    %v1831 = vpop.f32.mrb[0].mxu0
    %v1832 = vadd.f32 0.0, %v1831
    %v1833 = vpop.f32.mrb[0].mxu0
    %1834 = vmatprep.mubr.f32.mxu0 0.0
    %1835 = vmatmul.mubr.f32.gmra.mrb[0].mxu0 %v1711
    %v1836 = vpop.f32.mrb[0].mxu0
    %v1837 = vadd.f32 0.0, %v1836
    %v1838 = vpop.f32.mrb[0].mxu0
    %1839 = vmatprep.mubr.f32.mxu0 0.0
    %1840 = vmatmul.mubr.f32.gmra.mrb[0].mxu0 %v1714
    %v1841 = vpop.f32.mrb[0].mxu0
    %v1842 = vadd.f32 0.0, %v1841
    %v1843 = vpop.f32.mrb[0].mxu0
    %1844 = vmatprep.mubr.f32.mxu0 0.0
    %1845 = vmatmul.mubr.f32.gmra.mrb[0].mxu0 %v1717
    %v1846 = vpop.f32.mrb[0].mxu0
    %v1847 = vadd.f32 0.0, %v1846
    %v1848 = vpop.f32.mrb[0].mxu0
    %1849 = vmatprep.mubr.f32.mxu0 0.0
    %1850 = vmatmul.mubr.f32.gmra.mrb[0].mxu0 %v1720
    %v1851 = vpop.f32.mrb[0].mxu0
    %v1852 = vadd.f32 0.0, %v1851
    %v1853 = vpop.f32.mrb[0].mxu0
    %1854 = vmatprep.mubr.f32.mxu0 0.0
    %1855 = vmatmul.mubr.f32.gmra.mrb[0].mxu0 %v1723
    %v1856 = vpop.f32.mrb[0].mxu0
    %v1857 = vadd.f32 0.0, %v1856
    %v1858 = vpop.f32.mrb[0].mxu0
    %1859 = vmatprep.mubr.f32.mxu0 0.0
    %1860 = vmatmul.mubr.f32.gmra.mrb[0].mxu0 %v1726
    %v1861 = vpop.f32.mrb[0].mxu0
    %v1862 = vadd.f32 0.0, %v1861
    %v1863 = vpop.f32.mrb[0].mxu0
    %1864 = vmatprep.mubr.f32.mxu0 0.0
    %1865 = vmatmul.mubr.f32.gmra.mrb[0].mxu0 %v1729
    %v1866 = vpop.f32.mrb[0].mxu0
    %v1867 = vadd.f32 0.0, %v1866
    %v1868 = vpop.f32.mrb[0].mxu0
    %1869 = vmatprep.mubr.f32.mxu0 0.0
    %1870 = vmatmul.mubr.f32.gmra.mrb[0].mxu0 %v1732
    %v1871 = vpop.f32.mrb[0].mxu0
    %v1872 = vadd.f32 0.0, %v1871
    %v1873 = vpop.f32.mrb[0].mxu0
    %1874 = vmatprep.mubr.f32.mxu0 0.0
    %1875 = vmatmul.mubr.f32.gmra.mrb[0].mxu0 %v1735
    %v1876 = vpop.f32.mrb[0].mxu0
    %v1877 = vadd.f32 0.0, %v1876
    %v1878 = vpop.f32.mrb[0].mxu0
    %1879 = vmatprep.mubr.f32.mxu0 0.0
    %1880 = vmatmul.mubr.f32.gmra.mrb[0].mxu0 %v1738
    %v1881 = vpop.f32.mrb[0].mxu0
    %v1882 = vadd.f32 0.0, %v1881
    %v1883 = vpop.f32.mrb[0].mxu0
    %1884 = vdwg.mxu0
    %v1886 = vsel %vm533, %v986, 0
    %v1889 = vsel %vm533, %v991, 0
    %v1892 = vsel %vm533, %v996, 0
    %v1895 = vsel %vm533, %v1001, 0
    %v1898 = vsel %vm533, %v1006, 0
    %v1901 = vsel %vm533, %v1011, 0
    %v1904 = vsel %vm533, %v1016, 0
    %v1907 = vsel %vm533, %v1021, 0
    %v1910 = vsel %vm533, %v1026, 0
    %v1913 = vsel %vm533, %v1031, 0
    %v1916 = vsel %vm533, %v1036, 0
    %v1919 = vsel %vm533, %v1041, 0
    %v1922 = vsel %vm533, %v1046, 0
    %v1925 = vsel %vm533, %v1051, 0
    %v1928 = vsel %vm533, %v1056, 0
    %v1931 = vsel %vm533, %v1061, 0
    %1933 = vmatprep.subr.mxu0 0.0
    %1934 = vmatpush1.msra.mxu0 %v1064
    %1935 = vmatprep.subr.mxu0 0.0
    %1936 = vmatpush1.msra.mxu0 0.0
    %1937 = vmatprep.subr.mxu0 0.0
    %1938 = vmatpush1.msra.mxu0 0.0
    %1939 = vmatprep.subr.mxu0 0.0
    %1940 = vmatpush1.msra.mxu0 0.0
    %1941 = vmatprep.subr.mxu0 0.0
    %1942 = vmatpush1.msra.mxu0 0.0
    %1943 = vmatprep.subr.mxu0 0.0
    %1944 = vmatpush1.msra.mxu0 0.0
    %1945 = vmatprep.subr.mxu0 0.0
    %1946 = vmatpush1.msra.mxu0 0.0
    %1947 = vmatprep.subr.mxu0 0.0
    %1948 = vmatpush1.msra.mxu0 0.0
    %1949 = vmatprep.subr.mxu0 0.0
    %1950 = vmatpush1.msra.mxu0 0.0
    %1951 = vmatprep.subr.mxu0 0.0
    %1952 = vmatpush1.msra.mxu0 0.0
    %1953 = vmatprep.subr.mxu0 0.0
    %1954 = vmatpush1.msra.mxu0 0.0
    %1955 = vmatprep.subr.mxu0 0.0
    %1956 = vmatpush1.msra.mxu0 0.0
    %1957 = vmatprep.subr.mxu0 0.0
    %1958 = vmatpush1.msra.mxu0 0.0
    %1959 = vmatprep.subr.mxu0 0.0
    %1960 = vmatpush1.msra.mxu0 0.0
    %1961 = vmatprep.subr.mxu0 0.0
    %1962 = vmatpush1.msra.mxu0 0.0
    %1963 = vmatprep.subr.mxu0 0.0
    %1964 = vmatpush1.msra.mxu0 0.0
    %1965 = vmatprep.subr.mxu0 0.0
    %1966 = vmatpush1.msra.mxu0 0.0
    %1967 = vmatprep.subr.mxu0 0.0
    %1968 = vmatpush1.msra.mxu0 0.0
    %1969 = vmatprep.subr.mxu0 0.0
    %1970 = vmatpush1.msra.mxu0 0.0
    %1971 = vmatprep.subr.mxu0 0.0
    %1972 = vmatpush1.msra.mxu0 0.0
    %1973 = vmatprep.subr.mxu0 0.0
    %1974 = vmatpush1.msra.mxu0 0.0
    %1975 = vmatprep.subr.mxu0 0.0
    %1976 = vmatpush1.msra.mxu0 0.0
    %1977 = vmatprep.subr.mxu0 0.0
    %1978 = vmatpush1.msra.mxu0 0.0
    %1979 = vmatprep.subr.mxu0 0.0
    %1980 = vmatpush1.msra.mxu0 0.0
    %1981 = vmatprep.subr.mxu0 0.0
    %1982 = vmatpush1.msra.mxu0 0.0
    %1983 = vmatprep.subr.mxu0 0.0
    %1984 = vmatpush1.msra.mxu0 0.0
    %1985 = vmatprep.subr.mxu0 0.0
    %1986 = vmatpush1.msra.mxu0 0.0
    %1987 = vmatprep.subr.mxu0 0.0
    %1988 = vmatpush1.msra.mxu0 0.0
    %1989 = vmatprep.subr.mxu0 0.0
    %1990 = vmatpush1.msra.mxu0 0.0
    %1991 = vmatprep.subr.mxu0 0.0
    %1992 = vmatpush1.msra.mxu0 0.0
    %1993 = vmatprep.subr.mxu0 0.0
    %1994 = vmatpush1.msra.mxu0 0.0
    %1995 = vmatprep.subr.mxu0 0.0
    %1996 = vmatpush1.msra.mxu0 0.0
    %1997 = vmatprep.mubr.f32.mxu0 0.0
    %1998 = vmatmul.mubr.f32.gmra.mrb[0].mxu0 %v1886
    %v1999 = vpop.f32.mrb[0].mxu0
    %v2000 = vadd.f32 %v1807, %v1999
    %v2001 = vpop.f32.mrb[0].mxu0
    %2002 = vmatprep.mubr.f32.mxu0 0.0
    %2003 = vmatmul.mubr.f32.gmra.mrb[0].mxu0 %v1889
    %v2004 = vpop.f32.mrb[0].mxu0
    %v2005 = vadd.f32 %v1812, %v2004
    %v2006 = vpop.f32.mrb[0].mxu0
    %2007 = vmatprep.mubr.f32.mxu0 0.0
    %2008 = vmatmul.mubr.f32.gmra.mrb[0].mxu0 %v1892
    %v2009 = vpop.f32.mrb[0].mxu0
    %v2010 = vadd.f32 %v1817, %v2009
    %v2011 = vpop.f32.mrb[0].mxu0
    %2012 = vmatprep.mubr.f32.mxu0 0.0
    %2013 = vmatmul.mubr.f32.gmra.mrb[0].mxu0 %v1895
    %v2014 = vpop.f32.mrb[0].mxu0
    %v2015 = vadd.f32 %v1822, %v2014
    %v2016 = vpop.f32.mrb[0].mxu0
    %2017 = vmatprep.mubr.f32.mxu0 0.0
    %2018 = vmatmul.mubr.f32.gmra.mrb[0].mxu0 %v1898
    %v2019 = vpop.f32.mrb[0].mxu0
    %v2020 = vadd.f32 %v1827, %v2019
    %v2021 = vpop.f32.mrb[0].mxu0
    %2022 = vmatprep.mubr.f32.mxu0 0.0
    %2023 = vmatmul.mubr.f32.gmra.mrb[0].mxu0 %v1901
    %v2024 = vpop.f32.mrb[0].mxu0
    %v2025 = vadd.f32 %v1832, %v2024
    %v2026 = vpop.f32.mrb[0].mxu0
    %2027 = vmatprep.mubr.f32.mxu0 0.0
    %2028 = vmatmul.mubr.f32.gmra.mrb[0].mxu0 %v1904
    %v2029 = vpop.f32.mrb[0].mxu0
    %v2030 = vadd.f32 %v1837, %v2029
    %v2031 = vpop.f32.mrb[0].mxu0
    %2032 = vmatprep.mubr.f32.mxu0 0.0
    %2033 = vmatmul.mubr.f32.gmra.mrb[0].mxu0 %v1907
    %v2034 = vpop.f32.mrb[0].mxu0
    %v2035 = vadd.f32 %v1842, %v2034
    %v2036 = vpop.f32.mrb[0].mxu0
    %2037 = vmatprep.mubr.f32.mxu0 0.0
    %2038 = vmatmul.mubr.f32.gmra.mrb[0].mxu0 %v1910
    %v2039 = vpop.f32.mrb[0].mxu0
    %v2040 = vadd.f32 %v1847, %v2039
    %v2041 = vpop.f32.mrb[0].mxu0
    %2042 = vmatprep.mubr.f32.mxu0 0.0
    %2043 = vmatmul.mubr.f32.gmra.mrb[0].mxu0 %v1913
    %v2044 = vpop.f32.mrb[0].mxu0
    %v2045 = vadd.f32 %v1852, %v2044
    %v2046 = vpop.f32.mrb[0].mxu0
    %2047 = vmatprep.mubr.f32.mxu0 0.0
    %2048 = vmatmul.mubr.f32.gmra.mrb[0].mxu0 %v1916
    %v2049 = vpop.f32.mrb[0].mxu0
    %v2050 = vadd.f32 %v1857, %v2049
    %v2051 = vpop.f32.mrb[0].mxu0
    %2052 = vmatprep.mubr.f32.mxu0 0.0
    %2053 = vmatmul.mubr.f32.gmra.mrb[0].mxu0 %v1919
    %v2054 = vpop.f32.mrb[0].mxu0
    %v2055 = vadd.f32 %v1862, %v2054
    %v2056 = vpop.f32.mrb[0].mxu0
    %2057 = vmatprep.mubr.f32.mxu0 0.0
    %2058 = vmatmul.mubr.f32.gmra.mrb[0].mxu0 %v1922
    %v2059 = vpop.f32.mrb[0].mxu0
    %v2060 = vadd.f32 %v1867, %v2059
    %v2061 = vpop.f32.mrb[0].mxu0
    %2062 = vmatprep.mubr.f32.mxu0 0.0
    %2063 = vmatmul.mubr.f32.gmra.mrb[0].mxu0 %v1925
    %v2064 = vpop.f32.mrb[0].mxu0
    %v2065 = vadd.f32 %v1872, %v2064
    %v2066 = vpop.f32.mrb[0].mxu0
    %2067 = vmatprep.mubr.f32.mxu0 0.0
    %2068 = vmatmul.mubr.f32.gmra.mrb[0].mxu0 %v1928
    %v2069 = vpop.f32.mrb[0].mxu0
    %v2070 = vadd.f32 %v1877, %v2069
    %v2071 = vpop.f32.mrb[0].mxu0
    %2072 = vmatprep.mubr.f32.mxu0 0.0
    %2073 = vmatmul.mubr.f32.gmra.mrb[0].mxu0 %v1931
    %v2074 = vpop.f32.mrb[0].mxu0
    %v2075 = vadd.f32 %v1882, %v2074
    %v2076 = vpop.f32.mrb[0].mxu0
    %2077 = vdwg.mxu0
    %2078 = vrot.lane.b32.xlu0 %v517, 112
    %v2079 = vpop.permute.xlu0 %2078
    %2080 = vrot.lane.b32.xlu0 %v518, 112
    %v2081 = vpop.permute.xlu0 %2080
    %2082 = vrot.lane.b32.xlu0 %v519, 112
    %v2083 = vpop.permute.xlu0 %2082
    %2084 = vrot.lane.b32.xlu0 %v520, 112
    %v2085 = vpop.permute.xlu0 %2084
    %2086 = vrot.lane.b32.xlu0 %v521, 112
    %v2087 = vpop.permute.xlu0 %2086
    %2088 = vrot.lane.b32.xlu0 %v522, 112
    %v2089 = vpop.permute.xlu0 %2088
    %2090 = vrot.lane.b32.xlu0 %v523, 112
    %v2091 = vpop.permute.xlu0 %2090
    %2092 = vrot.lane.b32.xlu0 %v524, 112
    %v2093 = vpop.permute.xlu0 %2092
    %2094 = vrot.lane.b32.xlu0 %v525, 112
    %v2095 = vpop.permute.xlu0 %2094
    %2096 = vrot.lane.b32.xlu0 %v526, 112
    %v2097 = vpop.permute.xlu0 %2096
    %2098 = vrot.lane.b32.xlu0 %v527, 112
    %v2099 = vpop.permute.xlu0 %2098
    %2100 = vrot.lane.b32.xlu0 %v528, 112
    %v2101 = vpop.permute.xlu0 %2100
    %2102 = vrot.lane.b32.xlu0 %v529, 112
    %v2103 = vpop.permute.xlu0 %2102
    %2104 = vrot.lane.b32.xlu0 %v530, 112
    %v2105 = vpop.permute.xlu0 %2104
    %2106 = vrot.lane.b32.xlu0 %v531, 112
    %v2107 = vpop.permute.xlu0 %2106
    %2108 = vrot.lane.b32.xlu0 %v532, 112
    %v2109 = vpop.permute.xlu0 %2108
    %2110 = vrot.lane.b32.xlu0 %v359, 112
    %v2111 = vpop.permute.xlu0 %2110
    %2112 = vrot.lane.b32.xlu0 %v364, 112
    %v2113 = vpop.permute.xlu0 %2112
    %2114 = vrot.lane.b32.xlu0 %v369, 112
    %v2115 = vpop.permute.xlu0 %2114
    %2116 = vrot.lane.b32.xlu0 %v374, 112
    %v2117 = vpop.permute.xlu0 %2116
    %2118 = vrot.lane.b32.xlu0 %v379, 112
    %v2119 = vpop.permute.xlu0 %2118
    %2120 = vrot.lane.b32.xlu0 %v384, 112
    %v2121 = vpop.permute.xlu0 %2120
    %2122 = vrot.lane.b32.xlu0 %v389, 112
    %v2123 = vpop.permute.xlu0 %2122
    %2124 = vrot.lane.b32.xlu0 %v394, 112
    %v2125 = vpop.permute.xlu0 %2124
    %2126 = vrot.lane.b32.xlu0 %v399, 112
    %v2127 = vpop.permute.xlu0 %2126
    %2128 = vrot.lane.b32.xlu0 %v404, 112
    %v2129 = vpop.permute.xlu0 %2128
    %2130 = vrot.lane.b32.xlu0 %v409, 112
    %v2131 = vpop.permute.xlu0 %2130
    %2132 = vrot.lane.b32.xlu0 %v414, 112
    %v2133 = vpop.permute.xlu0 %2132
    %2134 = vrot.lane.b32.xlu0 %v419, 112
    %v2135 = vpop.permute.xlu0 %2134
    %2136 = vrot.lane.b32.xlu0 %v424, 112
    %v2137 = vpop.permute.xlu0 %2136
    %2138 = vrot.lane.b32.xlu0 %v429, 112
    %v2139 = vpop.permute.xlu0 %2138
    %2140 = vrot.lane.b32.xlu0 %v434, 112
    %v2141 = vpop.permute.xlu0 %2140
    %v2142 = vsel %vm533, %v2079, 0
    %v2144 = vsel %vm533, %v2081, 0
    %v2146 = vsel %vm533, %v2083, 0
    %v2148 = vsel %vm533, %v2085, 0
    %v2150 = vsel %vm533, %v2087, 0
    %v2152 = vsel %vm533, %v2089, 0
    %v2154 = vsel %vm533, %v2091, 0
    %v2156 = vsel %vm533, %v2093, 0
    %v2158 = vsel %vm533, %v2095, 0
    %v2160 = vsel %vm533, %v2097, 0
    %v2162 = vsel %vm533, %v2099, 0
    %v2164 = vsel %vm533, %v2101, 0
    %v2166 = vsel %vm533, %v2103, 0
    %v2168 = vsel %vm533, %v2105, 0
    %v2170 = vsel %vm533, %v2107, 0
    %v2172 = vsel %vm533, %v2109, 0
    %v2174 = vsel %vm533, %v2111, 0
    %v2176 = vsel %vm533, %v2113, 0
    %v2178 = vsel %vm533, %v2115, 0
    %v2180 = vsel %vm533, %v2117, 0
    %v2182 = vsel %vm533, %v2119, 0
    %v2184 = vsel %vm533, %v2121, 0
    %v2186 = vsel %vm533, %v2123, 0
    %v2188 = vsel %vm533, %v2125, 0
    %v2190 = vsel %vm533, %v2127, 0
    %v2192 = vsel %vm533, %v2129, 0
    %v2194 = vsel %vm533, %v2131, 0
    %v2196 = vsel %vm533, %v2133, 0
    %v2198 = vsel %vm533, %v2135, 0
    %v2200 = vsel %vm533, %v2137, 0
    %v2202 = vsel %vm533, %v2139, 0
    %v2204 = vsel %vm533, %v2141, 0
    %2206 = vmatprep.subr.mxu0 0.0
    %2207 = vmatpush1.xpose.msra.mxu0 %v2174
    %2208 = vmatprep.subr.mxu0 0.0
    %2209 = vmatpush1.xpose.msra.mxu0 %v2176
    %2210 = vmatprep.subr.mxu0 0.0
    %2211 = vmatpush1.xpose.msra.mxu0 %v2178
    %2212 = vmatprep.subr.mxu0 0.0
    %2213 = vmatpush1.xpose.msra.mxu0 %v2180
    %2214 = vmatprep.subr.mxu0 0.0
    %2215 = vmatpush1.xpose.msra.mxu0 %v2182
    %2216 = vmatprep.subr.mxu0 0.0
    %2217 = vmatpush1.xpose.msra.mxu0 %v2184
    %2218 = vmatprep.subr.mxu0 0.0
    %2219 = vmatpush1.xpose.msra.mxu0 %v2186
    %2220 = vmatprep.subr.mxu0 0.0
    %2221 = vmatpush1.xpose.msra.mxu0 %v2188
    %2222 = vmatprep.subr.mxu0 0.0
    %2223 = vmatpush1.xpose.msra.mxu0 %v2190
    %2224 = vmatprep.subr.mxu0 0.0
    %2225 = vmatpush1.xpose.msra.mxu0 %v2192
    %2226 = vmatprep.subr.mxu0 0.0
    %2227 = vmatpush1.xpose.msra.mxu0 %v2194
    %2228 = vmatprep.subr.mxu0 0.0
    %2229 = vmatpush1.xpose.msra.mxu0 %v2196
    %2230 = vmatprep.subr.mxu0 0.0
    %2231 = vmatpush1.xpose.msra.mxu0 %v2198
    %2232 = vmatprep.subr.mxu0 0.0
    %2233 = vmatpush1.xpose.msra.mxu0 %v2200
    %2234 = vmatprep.subr.mxu0 0.0
    %2235 = vmatpush1.xpose.msra.mxu0 %v2202
    %2236 = vmatprep.subr.mxu0 0.0
    %2237 = vmatpush1.xpose.msra.mxu0 %v2204
    %2238 = vmatprep.subr.mxu0 0.0
    %2239 = vmatpush1.xpose.msra.mxu0 0.0
    %2240 = vmatprep.subr.mxu0 0.0
    %2241 = vmatpush1.xpose.msra.mxu0 0.0
    %2242 = vmatprep.subr.mxu0 0.0
    %2243 = vmatpush1.xpose.msra.mxu0 0.0
    %2244 = vmatprep.subr.mxu0 0.0
    %2245 = vmatpush1.xpose.msra.mxu0 0.0
    %2246 = vmatprep.subr.mxu0 0.0
    %2247 = vmatpush1.xpose.msra.mxu0 0.0
    %2248 = vmatprep.subr.mxu0 0.0
    %2249 = vmatpush1.xpose.msra.mxu0 0.0
    %2250 = vmatprep.subr.mxu0 0.0
    %2251 = vmatpush1.xpose.msra.mxu0 0.0
    %2252 = vmatprep.subr.mxu0 0.0
    %2253 = vmatpush1.xpose.msra.mxu0 0.0
    %2254 = vmatprep.subr.mxu0 0.0
    %2255 = vmatpush1.xpose.msra.mxu0 0.0
    %2256 = vmatprep.subr.mxu0 0.0
    %2257 = vmatpush1.xpose.msra.mxu0 0.0
    %2258 = vmatprep.subr.mxu0 0.0
    %2259 = vmatpush1.xpose.msra.mxu0 0.0
    %2260 = vmatprep.subr.mxu0 0.0
    %2261 = vmatpush1.xpose.msra.mxu0 0.0
    %2262 = vmatprep.subr.mxu0 0.0
    %2263 = vmatpush1.xpose.msra.mxu0 0.0
    %2264 = vmatprep.subr.mxu0 0.0
    %2265 = vmatpush1.xpose.msra.mxu0 0.0
    %2266 = vmatprep.subr.mxu0 0.0
    %2267 = vmatpush1.xpose.msra.mxu0 0.0
    %2268 = vmatprep.subr.mxu0 0.0
    %2269 = vmatpush1.xpose.msra.mxu0 0.0
    %2270 = vmatprep.mubr.f32.mxu0 0.0
    %2271 = vmatmul.mubr.f32.gmra.mrb[0].mxu0 %v2142
    %v2272 = vpop.f32.mrb[0].mxu0
    %v2273 = vadd.f32 0.0, %v2272
    %v2274 = vpop.f32.mrb[0].mxu0
    %2275 = vmatprep.mubr.f32.mxu0 0.0
    %2276 = vmatmul.mubr.f32.gmra.mrb[0].mxu0 %v2144
    %v2277 = vpop.f32.mrb[0].mxu0
    %v2278 = vadd.f32 0.0, %v2277
    %v2279 = vpop.f32.mrb[0].mxu0
    %2280 = vmatprep.mubr.f32.mxu0 0.0
    %2281 = vmatmul.mubr.f32.gmra.mrb[0].mxu0 %v2146
    %v2282 = vpop.f32.mrb[0].mxu0
    %v2283 = vadd.f32 0.0, %v2282
    %v2284 = vpop.f32.mrb[0].mxu0
    %2285 = vmatprep.mubr.f32.mxu0 0.0
    %2286 = vmatmul.mubr.f32.gmra.mrb[0].mxu0 %v2148
    %v2287 = vpop.f32.mrb[0].mxu0
    %v2288 = vadd.f32 0.0, %v2287
    %v2289 = vpop.f32.mrb[0].mxu0
    %2290 = vmatprep.mubr.f32.mxu0 0.0
    %2291 = vmatmul.mubr.f32.gmra.mrb[0].mxu0 %v2150
    %v2292 = vpop.f32.mrb[0].mxu0
    %v2293 = vadd.f32 0.0, %v2292
    %v2294 = vpop.f32.mrb[0].mxu0
    %2295 = vmatprep.mubr.f32.mxu0 0.0
    %2296 = vmatmul.mubr.f32.gmra.mrb[0].mxu0 %v2152
    %v2297 = vpop.f32.mrb[0].mxu0
    %v2298 = vadd.f32 0.0, %v2297
    %v2299 = vpop.f32.mrb[0].mxu0
    %2300 = vmatprep.mubr.f32.mxu0 0.0
    %2301 = vmatmul.mubr.f32.gmra.mrb[0].mxu0 %v2154
    %v2302 = vpop.f32.mrb[0].mxu0
    %v2303 = vadd.f32 0.0, %v2302
    %v2304 = vpop.f32.mrb[0].mxu0
    %2305 = vmatprep.mubr.f32.mxu0 0.0
    %2306 = vmatmul.mubr.f32.gmra.mrb[0].mxu0 %v2156
    %v2307 = vpop.f32.mrb[0].mxu0
    %v2308 = vadd.f32 0.0, %v2307
    %v2309 = vpop.f32.mrb[0].mxu0
    %2310 = vmatprep.mubr.f32.mxu0 0.0
    %2311 = vmatmul.mubr.f32.gmra.mrb[0].mxu0 %v2158
    %v2312 = vpop.f32.mrb[0].mxu0
    %v2313 = vadd.f32 0.0, %v2312
    %v2314 = vpop.f32.mrb[0].mxu0
    %2315 = vmatprep.mubr.f32.mxu0 0.0
    %2316 = vmatmul.mubr.f32.gmra.mrb[0].mxu0 %v2160
    %v2317 = vpop.f32.mrb[0].mxu0
    %v2318 = vadd.f32 0.0, %v2317
    %v2319 = vpop.f32.mrb[0].mxu0
    %2320 = vmatprep.mubr.f32.mxu0 0.0
    %2321 = vmatmul.mubr.f32.gmra.mrb[0].mxu0 %v2162
    %v2322 = vpop.f32.mrb[0].mxu0
    %v2323 = vadd.f32 0.0, %v2322
    %v2324 = vpop.f32.mrb[0].mxu0
    %2325 = vmatprep.mubr.f32.mxu0 0.0
    %2326 = vmatmul.mubr.f32.gmra.mrb[0].mxu0 %v2164
    %v2327 = vpop.f32.mrb[0].mxu0
    %v2328 = vadd.f32 0.0, %v2327
    %v2329 = vpop.f32.mrb[0].mxu0
    %2330 = vmatprep.mubr.f32.mxu0 0.0
    %2331 = vmatmul.mubr.f32.gmra.mrb[0].mxu0 %v2166
    %v2332 = vpop.f32.mrb[0].mxu0
    %v2333 = vadd.f32 0.0, %v2332
    %v2334 = vpop.f32.mrb[0].mxu0
    %2335 = vmatprep.mubr.f32.mxu0 0.0
    %2336 = vmatmul.mubr.f32.gmra.mrb[0].mxu0 %v2168
    %v2337 = vpop.f32.mrb[0].mxu0
    %v2338 = vadd.f32 0.0, %v2337
    %v2339 = vpop.f32.mrb[0].mxu0
    %2340 = vmatprep.mubr.f32.mxu0 0.0
    %2341 = vmatmul.mubr.f32.gmra.mrb[0].mxu0 %v2170
    %v2342 = vpop.f32.mrb[0].mxu0
    %v2343 = vadd.f32 0.0, %v2342
    %v2344 = vpop.f32.mrb[0].mxu0
    %2345 = vmatprep.mubr.f32.mxu0 0.0
    %2346 = vmatmul.mubr.f32.gmra.mrb[0].mxu0 %v2172
    %v2347 = vpop.f32.mrb[0].mxu0
    %v2348 = vadd.f32 0.0, %v2347
    %v2349 = vpop.f32.mrb[0].mxu0
    %2350 = vdwg.mxu0
    %2351 = vmax.xlane.f32.xlu0 %v2273
    %v2352 = vpop.xlane.xlu0 %2351
    %2353 = vmax.xlane.f32.xlu0 %v2278
    %v2354 = vpop.xlane.xlu0 %2353
    %2355 = vmax.xlane.f32.xlu0 %v2283
    %v2356 = vpop.xlane.xlu0 %2355
    %2357 = vmax.xlane.f32.xlu0 %v2288
    %v2358 = vpop.xlane.xlu0 %2357
    %2359 = vmax.xlane.f32.xlu0 %v2293
    %v2360 = vpop.xlane.xlu0 %2359
    %2361 = vmax.xlane.f32.xlu0 %v2298
    %v2362 = vpop.xlane.xlu0 %2361
    %2363 = vmax.xlane.f32.xlu0 %v2303
    %v2364 = vpop.xlane.xlu0 %2363
    %2365 = vmax.xlane.f32.xlu0 %v2308
    %v2366 = vpop.xlane.xlu0 %2365
    %2367 = vmax.xlane.f32.xlu0 %v2313
    %v2368 = vpop.xlane.xlu0 %2367
    %2369 = vmax.xlane.f32.xlu0 %v2318
    %v2370 = vpop.xlane.xlu0 %2369
    %2371 = vmax.xlane.f32.xlu0 %v2323
    %v2372 = vpop.xlane.xlu0 %2371
    %2373 = vmax.xlane.f32.xlu0 %v2328
    %v2374 = vpop.xlane.xlu0 %2373
    %2375 = vmax.xlane.f32.xlu0 %v2333
    %v2376 = vpop.xlane.xlu0 %2375
    %2377 = vmax.xlane.f32.xlu0 %v2338
    %v2378 = vpop.xlane.xlu0 %2377
    %2379 = vmax.xlane.f32.xlu0 %v2343
    %v2380 = vpop.xlane.xlu0 %2379
    %2381 = vmax.xlane.f32.xlu0 %v2348
    %v2382 = vpop.xlane.xlu0 %2381
    %v2383 = vsub.f32 %v2273, %v2352
    %v2384 = vsub.f32 %v2278, %v2354
    %v2385 = vsub.f32 %v2283, %v2356
    %v2386 = vsub.f32 %v2288, %v2358
    %v2387 = vsub.f32 %v2293, %v2360
    %v2388 = vsub.f32 %v2298, %v2362
    %v2389 = vsub.f32 %v2303, %v2364
    %v2390 = vsub.f32 %v2308, %v2366
    %v2391 = vsub.f32 %v2313, %v2368
    %v2392 = vsub.f32 %v2318, %v2370
    %v2393 = vsub.f32 %v2323, %v2372
    %v2394 = vsub.f32 %v2328, %v2374
    %v2395 = vsub.f32 %v2333, %v2376
    %v2396 = vsub.f32 %v2338, %v2378
    %v2397 = vsub.f32 %v2343, %v2380
    %v2398 = vsub.f32 %v2348, %v2382
    %v2399 = vmul.f32 %v2383, 1.442695
    %v2400 = vpow.pop %v2399
    %v2401 = vmul.f32 %v2384, 1.442695
    %v2402 = vpow.pop %v2401
    %v2403 = vmul.f32 %v2385, 1.442695
    %v2404 = vpow.pop %v2403
    %v2405 = vmul.f32 %v2386, 1.442695
    %v2406 = vpow.pop %v2405
    %v2407 = vmul.f32 %v2387, 1.442695
    %v2408 = vpow.pop %v2407
    %v2409 = vmul.f32 %v2388, 1.442695
    %v2410 = vpow.pop %v2409
    %v2411 = vmul.f32 %v2389, 1.442695
    %v2412 = vpow.pop %v2411
    %v2413 = vmul.f32 %v2390, 1.442695
    %v2414 = vpow.pop %v2413
    %v2415 = vmul.f32 %v2391, 1.442695
    %v2416 = vpow.pop %v2415
    %v2417 = vmul.f32 %v2392, 1.442695
    %v2418 = vpow.pop %v2417
    %v2419 = vmul.f32 %v2393, 1.442695
    %v2420 = vpow.pop %v2419
    %v2421 = vmul.f32 %v2394, 1.442695
    %v2422 = vpow.pop %v2421
    %v2423 = vmul.f32 %v2395, 1.442695
    %v2424 = vpow.pop %v2423
    %v2425 = vmul.f32 %v2396, 1.442695
    %v2426 = vpow.pop %v2425
    %v2427 = vmul.f32 %v2397, 1.442695
    %v2428 = vpow.pop %v2427
    %v2429 = vmul.f32 %v2398, 1.442695
    %v2430 = vpow.pop %v2429
    %2431 = vadd.xlane.f32.xlu0 %v2400
    %v2432 = vpop.xlane.xlu0 %2431
    %2433 = vadd.xlane.f32.xlu0 %v2402
    %v2434 = vpop.xlane.xlu0 %2433
    %2435 = vadd.xlane.f32.xlu0 %v2404
    %v2436 = vpop.xlane.xlu0 %2435
    %2437 = vadd.xlane.f32.xlu0 %v2406
    %v2438 = vpop.xlane.xlu0 %2437
    %2439 = vadd.xlane.f32.xlu0 %v2408
    %v2440 = vpop.xlane.xlu0 %2439
    %2441 = vadd.xlane.f32.xlu0 %v2410
    %v2442 = vpop.xlane.xlu0 %2441
    %2443 = vadd.xlane.f32.xlu0 %v2412
    %v2444 = vpop.xlane.xlu0 %2443
    %2445 = vadd.xlane.f32.xlu0 %v2414
    %v2446 = vpop.xlane.xlu0 %2445
    %2447 = vadd.xlane.f32.xlu0 %v2416
    %v2448 = vpop.xlane.xlu0 %2447
    %2449 = vadd.xlane.f32.xlu0 %v2418
    %v2450 = vpop.xlane.xlu0 %2449
    %2451 = vadd.xlane.f32.xlu0 %v2420
    %v2452 = vpop.xlane.xlu0 %2451
    %2453 = vadd.xlane.f32.xlu0 %v2422
    %v2454 = vpop.xlane.xlu0 %2453
    %2455 = vadd.xlane.f32.xlu0 %v2424
    %v2456 = vpop.xlane.xlu0 %2455
    %2457 = vadd.xlane.f32.xlu0 %v2426
    %v2458 = vpop.xlane.xlu0 %2457
    %2459 = vadd.xlane.f32.xlu0 %v2428
    %v2460 = vpop.xlane.xlu0 %2459
    %2461 = vadd.xlane.f32.xlu0 %v2430
    %v2462 = vpop.xlane.xlu0 %2461
    %v2463 = vrcp.pop %v2432
    %v2464 = vrcp.pop %v2434
    %v2465 = vrcp.pop %v2436
    %v2466 = vrcp.pop %v2438
    %v2467 = vrcp.pop %v2440
    %v2468 = vrcp.pop %v2442
    %v2469 = vrcp.pop %v2444
    %v2470 = vrcp.pop %v2446
    %v2471 = vrcp.pop %v2448
    %v2472 = vrcp.pop %v2450
    %v2473 = vrcp.pop %v2452
    %v2474 = vrcp.pop %v2454
    %v2475 = vrcp.pop %v2456
    %v2476 = vrcp.pop %v2458
    %v2477 = vrcp.pop %v2460
    %v2478 = vrcp.pop %v2462
    %v2479 = vmul.f32 %v2400, %v2463
    %v2480 = vmul.f32 %v2402, %v2464
    %v2481 = vmul.f32 %v2404, %v2465
    %v2482 = vmul.f32 %v2406, %v2466
    %v2483 = vmul.f32 %v2408, %v2467
    %v2484 = vmul.f32 %v2410, %v2468
    %v2485 = vmul.f32 %v2412, %v2469
    %v2486 = vmul.f32 %v2414, %v2470
    %v2487 = vmul.f32 %v2416, %v2471
    %v2488 = vmul.f32 %v2418, %v2472
    %v2489 = vmul.f32 %v2420, %v2473
    %v2490 = vmul.f32 %v2422, %v2474
    %v2491 = vmul.f32 %v2424, %v2475
    %v2492 = vmul.f32 %v2426, %v2476
    %v2493 = vmul.f32 %v2428, %v2477
    %v2494 = vmul.f32 %v2430, %v2478
    %2495 = vrot.lane.b32.xlu0 %v439, 112
    %v2496 = vpop.permute.xlu0 %2495
    %2497 = vrot.lane.b32.xlu0 %v444, 112
    %v2498 = vpop.permute.xlu0 %2497
    %2499 = vrot.lane.b32.xlu0 %v449, 112
    %v2500 = vpop.permute.xlu0 %2499
    %2501 = vrot.lane.b32.xlu0 %v454, 112
    %v2502 = vpop.permute.xlu0 %2501
    %2503 = vrot.lane.b32.xlu0 %v459, 112
    %v2504 = vpop.permute.xlu0 %2503
    %2505 = vrot.lane.b32.xlu0 %v464, 112
    %v2506 = vpop.permute.xlu0 %2505
    %2507 = vrot.lane.b32.xlu0 %v469, 112
    %v2508 = vpop.permute.xlu0 %2507
    %2509 = vrot.lane.b32.xlu0 %v474, 112
    %v2510 = vpop.permute.xlu0 %2509
    %2511 = vrot.lane.b32.xlu0 %v479, 112
    %v2512 = vpop.permute.xlu0 %2511
    %2513 = vrot.lane.b32.xlu0 %v484, 112
    %v2514 = vpop.permute.xlu0 %2513
    %2515 = vrot.lane.b32.xlu0 %v489, 112
    %v2516 = vpop.permute.xlu0 %2515
    %2517 = vrot.lane.b32.xlu0 %v494, 112
    %v2518 = vpop.permute.xlu0 %2517
    %2519 = vrot.lane.b32.xlu0 %v499, 112
    %v2520 = vpop.permute.xlu0 %2519
    %2521 = vrot.lane.b32.xlu0 %v504, 112
    %v2522 = vpop.permute.xlu0 %2521
    %2523 = vrot.lane.b32.xlu0 %v509, 112
    %v2524 = vpop.permute.xlu0 %2523
    %2525 = vrot.lane.b32.xlu0 %v514, 112
    %v2526 = vpop.permute.xlu0 %2525
    %2543 = vmatprep.subr.mxu0 0.0
    %2544 = vmatpush1.msra.mxu0 %v2496
    %2545 = vmatprep.subr.mxu0 0.0
    %2546 = vmatpush1.msra.mxu0 %v2498
    %2547 = vmatprep.subr.mxu0 0.0
    %2548 = vmatpush1.msra.mxu0 %v2500
    %2549 = vmatprep.subr.mxu0 0.0
    %2550 = vmatpush1.msra.mxu0 %v2502
    %2551 = vmatprep.subr.mxu0 0.0
    %2552 = vmatpush1.msra.mxu0 %v2504
    %2553 = vmatprep.subr.mxu0 0.0
    %2554 = vmatpush1.msra.mxu0 %v2506
    %2555 = vmatprep.subr.mxu0 0.0
    %2556 = vmatpush1.msra.mxu0 %v2508
    %2557 = vmatprep.subr.mxu0 0.0
    %2558 = vmatpush1.msra.mxu0 %v2510
    %2559 = vmatprep.subr.mxu0 0.0
    %2560 = vmatpush1.msra.mxu0 %v2512
    %2561 = vmatprep.subr.mxu0 0.0
    %2562 = vmatpush1.msra.mxu0 %v2514
    %2563 = vmatprep.subr.mxu0 0.0
    %2564 = vmatpush1.msra.mxu0 %v2516
    %2565 = vmatprep.subr.mxu0 0.0
    %2566 = vmatpush1.msra.mxu0 %v2518
    %2567 = vmatprep.subr.mxu0 0.0
    %2568 = vmatpush1.msra.mxu0 %v2520
    %2569 = vmatprep.subr.mxu0 0.0
    %2570 = vmatpush1.msra.mxu0 %v2522
    %2571 = vmatprep.subr.mxu0 0.0
    %2572 = vmatpush1.msra.mxu0 %v2524
    %2573 = vmatprep.subr.mxu0 0.0
    %2574 = vmatpush1.msra.mxu0 %v2526
    %2575 = vmatprep.subr.mxu0 0.0
    %2576 = vmatpush1.msra.mxu0 0.0
    %2577 = vmatprep.subr.mxu0 0.0
    %2578 = vmatpush1.msra.mxu0 0.0
    %2579 = vmatprep.subr.mxu0 0.0
    %2580 = vmatpush1.msra.mxu0 0.0
    %2581 = vmatprep.subr.mxu0 0.0
    %2582 = vmatpush1.msra.mxu0 0.0
    %2583 = vmatprep.subr.mxu0 0.0
    %2584 = vmatpush1.msra.mxu0 0.0
    %2585 = vmatprep.subr.mxu0 0.0
    %2586 = vmatpush1.msra.mxu0 0.0
    %2587 = vmatprep.subr.mxu0 0.0
    %2588 = vmatpush1.msra.mxu0 0.0
    %2589 = vmatprep.subr.mxu0 0.0
    %2590 = vmatpush1.msra.mxu0 0.0
    %2591 = vmatprep.subr.mxu0 0.0
    %2592 = vmatpush1.msra.mxu0 0.0
    %2593 = vmatprep.subr.mxu0 0.0
    %2594 = vmatpush1.msra.mxu0 0.0
    %2595 = vmatprep.subr.mxu0 0.0
    %2596 = vmatpush1.msra.mxu0 0.0
    %2597 = vmatprep.subr.mxu0 0.0
    %2598 = vmatpush1.msra.mxu0 0.0
    %2599 = vmatprep.subr.mxu0 0.0
    %2600 = vmatpush1.msra.mxu0 0.0
    %2601 = vmatprep.subr.mxu0 0.0
    %2602 = vmatpush1.msra.mxu0 0.0
    %2603 = vmatprep.subr.mxu0 0.0
    %2604 = vmatpush1.msra.mxu0 0.0
    %2605 = vmatprep.subr.mxu0 0.0
    %2606 = vmatpush1.msra.mxu0 0.0
    %2607 = vmatprep.mubr.f32.mxu0 0.0
    %2608 = vmatmul.mubr.f32.gmra.mrb[0].mxu0 %v2479
    %v2609 = vpop.f32.mrb[0].mxu0
    %v2610 = vadd.f32 0.0, %v2609
    %v2611 = vpop.f32.mrb[0].mxu0
    %2612 = vmatprep.mubr.f32.mxu0 0.0
    %2613 = vmatmul.mubr.f32.gmra.mrb[0].mxu0 %v2480
    %v2614 = vpop.f32.mrb[0].mxu0
    %v2615 = vadd.f32 0.0, %v2614
    %v2616 = vpop.f32.mrb[0].mxu0
    %2617 = vmatprep.mubr.f32.mxu0 0.0
    %2618 = vmatmul.mubr.f32.gmra.mrb[0].mxu0 %v2481
    %v2619 = vpop.f32.mrb[0].mxu0
    %v2620 = vadd.f32 0.0, %v2619
    %v2621 = vpop.f32.mrb[0].mxu0
    %2622 = vmatprep.mubr.f32.mxu0 0.0
    %2623 = vmatmul.mubr.f32.gmra.mrb[0].mxu0 %v2482
    %v2624 = vpop.f32.mrb[0].mxu0
    %v2625 = vadd.f32 0.0, %v2624
    %v2626 = vpop.f32.mrb[0].mxu0
    %2627 = vmatprep.mubr.f32.mxu0 0.0
    %2628 = vmatmul.mubr.f32.gmra.mrb[0].mxu0 %v2483
    %v2629 = vpop.f32.mrb[0].mxu0
    %v2630 = vadd.f32 0.0, %v2629
    %v2631 = vpop.f32.mrb[0].mxu0
    %2632 = vmatprep.mubr.f32.mxu0 0.0
    %2633 = vmatmul.mubr.f32.gmra.mrb[0].mxu0 %v2484
    %v2634 = vpop.f32.mrb[0].mxu0
    %v2635 = vadd.f32 0.0, %v2634
    %v2636 = vpop.f32.mrb[0].mxu0
    %2637 = vmatprep.mubr.f32.mxu0 0.0
    %2638 = vmatmul.mubr.f32.gmra.mrb[0].mxu0 %v2485
    %v2639 = vpop.f32.mrb[0].mxu0
    %v2640 = vadd.f32 0.0, %v2639
    %v2641 = vpop.f32.mrb[0].mxu0
    %2642 = vmatprep.mubr.f32.mxu0 0.0
    %2643 = vmatmul.mubr.f32.gmra.mrb[0].mxu0 %v2486
    %v2644 = vpop.f32.mrb[0].mxu0
    %v2645 = vadd.f32 0.0, %v2644
    %v2646 = vpop.f32.mrb[0].mxu0
    %2647 = vmatprep.mubr.f32.mxu0 0.0
    %2648 = vmatmul.mubr.f32.gmra.mrb[0].mxu0 %v2487
    %v2649 = vpop.f32.mrb[0].mxu0
    %v2650 = vadd.f32 0.0, %v2649
    %v2651 = vpop.f32.mrb[0].mxu0
    %2652 = vmatprep.mubr.f32.mxu0 0.0
    %2653 = vmatmul.mubr.f32.gmra.mrb[0].mxu0 %v2488
    %v2654 = vpop.f32.mrb[0].mxu0
    %v2655 = vadd.f32 0.0, %v2654
    %v2656 = vpop.f32.mrb[0].mxu0
    %2657 = vmatprep.mubr.f32.mxu0 0.0
    %2658 = vmatmul.mubr.f32.gmra.mrb[0].mxu0 %v2489
    %v2659 = vpop.f32.mrb[0].mxu0
    %v2660 = vadd.f32 0.0, %v2659
    %v2661 = vpop.f32.mrb[0].mxu0
    %2662 = vmatprep.mubr.f32.mxu0 0.0
    %2663 = vmatmul.mubr.f32.gmra.mrb[0].mxu0 %v2490
    %v2664 = vpop.f32.mrb[0].mxu0
    %v2665 = vadd.f32 0.0, %v2664
    %v2666 = vpop.f32.mrb[0].mxu0
    %2667 = vmatprep.mubr.f32.mxu0 0.0
    %2668 = vmatmul.mubr.f32.gmra.mrb[0].mxu0 %v2491
    %v2669 = vpop.f32.mrb[0].mxu0
    %v2670 = vadd.f32 0.0, %v2669
    %v2671 = vpop.f32.mrb[0].mxu0
    %2672 = vmatprep.mubr.f32.mxu0 0.0
    %2673 = vmatmul.mubr.f32.gmra.mrb[0].mxu0 %v2492
    %v2674 = vpop.f32.mrb[0].mxu0
    %v2675 = vadd.f32 0.0, %v2674
    %v2676 = vpop.f32.mrb[0].mxu0
    %2677 = vmatprep.mubr.f32.mxu0 0.0
    %2678 = vmatmul.mubr.f32.gmra.mrb[0].mxu0 %v2493
    %v2679 = vpop.f32.mrb[0].mxu0
    %v2680 = vadd.f32 0.0, %v2679
    %v2681 = vpop.f32.mrb[0].mxu0
    %2682 = vmatprep.mubr.f32.mxu0 0.0
    %2683 = vmatmul.mubr.f32.gmra.mrb[0].mxu0 %v2494
    %v2684 = vpop.f32.mrb[0].mxu0
    %v2685 = vadd.f32 0.0, %v2684
    %v2686 = vpop.f32.mrb[0].mxu0
    %2687 = vdwg.mxu0
    %v2688 = vld [vmem:[%s2 + $0x10] sm:$0xff]
    %v2690 = vsel %vm533, %v2610, 0
    %v2693 = vsel %vm533, %v2615, 0
    %v2696 = vsel %vm533, %v2620, 0
    %v2699 = vsel %vm533, %v2625, 0
    %v2702 = vsel %vm533, %v2630, 0
    %v2705 = vsel %vm533, %v2635, 0
    %v2708 = vsel %vm533, %v2640, 0
    %v2711 = vsel %vm533, %v2645, 0
    %v2714 = vsel %vm533, %v2650, 0
    %v2717 = vsel %vm533, %v2655, 0
    %v2720 = vsel %vm533, %v2660, 0
    %v2723 = vsel %vm533, %v2665, 0
    %v2726 = vsel %vm533, %v2670, 0
    %v2729 = vsel %vm533, %v2675, 0
    %v2732 = vsel %vm533, %v2680, 0
    %v2735 = vsel %vm533, %v2685, 0
    %2737 = vmatprep.subr.mxu0 0.0
    %2738 = vmatpush1.msra.mxu0 %v2688
    %2739 = vmatprep.subr.mxu0 0.0
    %2740 = vmatpush1.msra.mxu0 0.0
    %2741 = vmatprep.subr.mxu0 0.0
    %2742 = vmatpush1.msra.mxu0 0.0
    %2743 = vmatprep.subr.mxu0 0.0
    %2744 = vmatpush1.msra.mxu0 0.0
    %2745 = vmatprep.subr.mxu0 0.0
    %2746 = vmatpush1.msra.mxu0 0.0
    %2747 = vmatprep.subr.mxu0 0.0
    %2748 = vmatpush1.msra.mxu0 0.0
    %2749 = vmatprep.subr.mxu0 0.0
    %2750 = vmatpush1.msra.mxu0 0.0
    %2751 = vmatprep.subr.mxu0 0.0
    %2752 = vmatpush1.msra.mxu0 0.0
    %2753 = vmatprep.subr.mxu0 0.0
    %2754 = vmatpush1.msra.mxu0 0.0
    %2755 = vmatprep.subr.mxu0 0.0
    %2756 = vmatpush1.msra.mxu0 0.0
    %2757 = vmatprep.subr.mxu0 0.0
    %2758 = vmatpush1.msra.mxu0 0.0
    %2759 = vmatprep.subr.mxu0 0.0
    %2760 = vmatpush1.msra.mxu0 0.0
    %2761 = vmatprep.subr.mxu0 0.0
    %2762 = vmatpush1.msra.mxu0 0.0
    %2763 = vmatprep.subr.mxu0 0.0
    %2764 = vmatpush1.msra.mxu0 0.0
    %2765 = vmatprep.subr.mxu0 0.0
    %2766 = vmatpush1.msra.mxu0 0.0
    %2767 = vmatprep.subr.mxu0 0.0
    %2768 = vmatpush1.msra.mxu0 0.0
    %2769 = vmatprep.subr.mxu0 0.0
    %2770 = vmatpush1.msra.mxu0 0.0
    %2771 = vmatprep.subr.mxu0 0.0
    %2772 = vmatpush1.msra.mxu0 0.0
    %2773 = vmatprep.subr.mxu0 0.0
    %2774 = vmatpush1.msra.mxu0 0.0
    %2775 = vmatprep.subr.mxu0 0.0
    %2776 = vmatpush1.msra.mxu0 0.0
    %2777 = vmatprep.subr.mxu0 0.0
    %2778 = vmatpush1.msra.mxu0 0.0
    %2779 = vmatprep.subr.mxu0 0.0
    %2780 = vmatpush1.msra.mxu0 0.0
    %2781 = vmatprep.subr.mxu0 0.0
    %2782 = vmatpush1.msra.mxu0 0.0
    %2783 = vmatprep.subr.mxu0 0.0
    %2784 = vmatpush1.msra.mxu0 0.0
    %2785 = vmatprep.subr.mxu0 0.0
    %2786 = vmatpush1.msra.mxu0 0.0
    %2787 = vmatprep.subr.mxu0 0.0
    %2788 = vmatpush1.msra.mxu0 0.0
    %2789 = vmatprep.subr.mxu0 0.0
    %2790 = vmatpush1.msra.mxu0 0.0
    %2791 = vmatprep.subr.mxu0 0.0
    %2792 = vmatpush1.msra.mxu0 0.0
    %2793 = vmatprep.subr.mxu0 0.0
    %2794 = vmatpush1.msra.mxu0 0.0
    %2795 = vmatprep.subr.mxu0 0.0
    %2796 = vmatpush1.msra.mxu0 0.0
    %2797 = vmatprep.subr.mxu0 0.0
    %2798 = vmatpush1.msra.mxu0 0.0
    %2799 = vmatprep.subr.mxu0 0.0
    %2800 = vmatpush1.msra.mxu0 0.0
    %2801 = vmatprep.mubr.f32.mxu0 0.0
    %2802 = vmatmul.mubr.f32.gmra.mrb[0].mxu0 %v2690
    %v2803 = vpop.f32.mrb[0].mxu0
    %v2804 = vadd.f32 0.0, %v2803
    %v2805 = vpop.f32.mrb[0].mxu0
    %2806 = vmatprep.mubr.f32.mxu0 0.0
    %2807 = vmatmul.mubr.f32.gmra.mrb[0].mxu0 %v2693
    %v2808 = vpop.f32.mrb[0].mxu0
    %v2809 = vadd.f32 0.0, %v2808
    %v2810 = vpop.f32.mrb[0].mxu0
    %2811 = vmatprep.mubr.f32.mxu0 0.0
    %2812 = vmatmul.mubr.f32.gmra.mrb[0].mxu0 %v2696
    %v2813 = vpop.f32.mrb[0].mxu0
    %v2814 = vadd.f32 0.0, %v2813
    %v2815 = vpop.f32.mrb[0].mxu0
    %2816 = vmatprep.mubr.f32.mxu0 0.0
    %2817 = vmatmul.mubr.f32.gmra.mrb[0].mxu0 %v2699
    %v2818 = vpop.f32.mrb[0].mxu0
    %v2819 = vadd.f32 0.0, %v2818
    %v2820 = vpop.f32.mrb[0].mxu0
    %2821 = vmatprep.mubr.f32.mxu0 0.0
    %2822 = vmatmul.mubr.f32.gmra.mrb[0].mxu0 %v2702
    %v2823 = vpop.f32.mrb[0].mxu0
    %v2824 = vadd.f32 0.0, %v2823
    %v2825 = vpop.f32.mrb[0].mxu0
    %2826 = vmatprep.mubr.f32.mxu0 0.0
    %2827 = vmatmul.mubr.f32.gmra.mrb[0].mxu0 %v2705
    %v2828 = vpop.f32.mrb[0].mxu0
    %v2829 = vadd.f32 0.0, %v2828
    %v2830 = vpop.f32.mrb[0].mxu0
    %2831 = vmatprep.mubr.f32.mxu0 0.0
    %2832 = vmatmul.mubr.f32.gmra.mrb[0].mxu0 %v2708
    %v2833 = vpop.f32.mrb[0].mxu0
    %v2834 = vadd.f32 0.0, %v2833
    %v2835 = vpop.f32.mrb[0].mxu0
    %2836 = vmatprep.mubr.f32.mxu0 0.0
    %2837 = vmatmul.mubr.f32.gmra.mrb[0].mxu0 %v2711
    %v2838 = vpop.f32.mrb[0].mxu0
    %v2839 = vadd.f32 0.0, %v2838
    %v2840 = vpop.f32.mrb[0].mxu0
    %2841 = vmatprep.mubr.f32.mxu0 0.0
    %2842 = vmatmul.mubr.f32.gmra.mrb[0].mxu0 %v2714
    %v2843 = vpop.f32.mrb[0].mxu0
    %v2844 = vadd.f32 0.0, %v2843
    %v2845 = vpop.f32.mrb[0].mxu0
    %2846 = vmatprep.mubr.f32.mxu0 0.0
    %2847 = vmatmul.mubr.f32.gmra.mrb[0].mxu0 %v2717
    %v2848 = vpop.f32.mrb[0].mxu0
    %v2849 = vadd.f32 0.0, %v2848
    %v2850 = vpop.f32.mrb[0].mxu0
    %2851 = vmatprep.mubr.f32.mxu0 0.0
    %2852 = vmatmul.mubr.f32.gmra.mrb[0].mxu0 %v2720
    %v2853 = vpop.f32.mrb[0].mxu0
    %v2854 = vadd.f32 0.0, %v2853
    %v2855 = vpop.f32.mrb[0].mxu0
    %2856 = vmatprep.mubr.f32.mxu0 0.0
    %2857 = vmatmul.mubr.f32.gmra.mrb[0].mxu0 %v2723
    %v2858 = vpop.f32.mrb[0].mxu0
    %v2859 = vadd.f32 0.0, %v2858
    %v2860 = vpop.f32.mrb[0].mxu0
    %2861 = vmatprep.mubr.f32.mxu0 0.0
    %2862 = vmatmul.mubr.f32.gmra.mrb[0].mxu0 %v2726
    %v2863 = vpop.f32.mrb[0].mxu0
    %v2864 = vadd.f32 0.0, %v2863
    %v2865 = vpop.f32.mrb[0].mxu0
    %2866 = vmatprep.mubr.f32.mxu0 0.0
    %2867 = vmatmul.mubr.f32.gmra.mrb[0].mxu0 %v2729
    %v2868 = vpop.f32.mrb[0].mxu0
    %v2869 = vadd.f32 0.0, %v2868
    %v2870 = vpop.f32.mrb[0].mxu0
    %2871 = vmatprep.mubr.f32.mxu0 0.0
    %2872 = vmatmul.mubr.f32.gmra.mrb[0].mxu0 %v2732
    %v2873 = vpop.f32.mrb[0].mxu0
    %v2874 = vadd.f32 0.0, %v2873
    %v2875 = vpop.f32.mrb[0].mxu0
    %2876 = vmatprep.mubr.f32.mxu0 0.0
    %2877 = vmatmul.mubr.f32.gmra.mrb[0].mxu0 %v2735
    %v2878 = vpop.f32.mrb[0].mxu0
    %v2879 = vadd.f32 0.0, %v2878
    %v2880 = vpop.f32.mrb[0].mxu0
    %2881 = vdwg.mxu0
    %v2882 = vadd.f32 %v2000, %v2804
    %v2883 = vadd.f32 %v2005, %v2809
    %v2884 = vadd.f32 %v2010, %v2814
    %v2885 = vadd.f32 %v2015, %v2819
    %v2886 = vadd.f32 %v2020, %v2824
    %v2887 = vadd.f32 %v2025, %v2829
    %v2888 = vadd.f32 %v2030, %v2834
    %v2889 = vadd.f32 %v2035, %v2839
    %v2890 = vadd.f32 %v2040, %v2844
    %v2891 = vadd.f32 %v2045, %v2849
    %v2892 = vadd.f32 %v2050, %v2854
    %v2893 = vadd.f32 %v2055, %v2859
    %v2894 = vadd.f32 %v2060, %v2864
    %v2895 = vadd.f32 %v2065, %v2869
    %v2896 = vadd.f32 %v2070, %v2874
    %v2897 = vadd.f32 %v2075, %v2879
    %2898 = vrot.lane.b32.xlu0 %v517, 104
    %v2899 = vpop.permute.xlu0 %2898
    %2900 = vrot.lane.b32.xlu0 %v518, 104
    %v2901 = vpop.permute.xlu0 %2900
    %2902 = vrot.lane.b32.xlu0 %v519, 104
    %v2903 = vpop.permute.xlu0 %2902
    %2904 = vrot.lane.b32.xlu0 %v520, 104
    %v2905 = vpop.permute.xlu0 %2904
    %2906 = vrot.lane.b32.xlu0 %v521, 104
    %v2907 = vpop.permute.xlu0 %2906
    %2908 = vrot.lane.b32.xlu0 %v522, 104
    %v2909 = vpop.permute.xlu0 %2908
    %2910 = vrot.lane.b32.xlu0 %v523, 104
    %v2911 = vpop.permute.xlu0 %2910
    %2912 = vrot.lane.b32.xlu0 %v524, 104
    %v2913 = vpop.permute.xlu0 %2912
    %2914 = vrot.lane.b32.xlu0 %v525, 104
    %v2915 = vpop.permute.xlu0 %2914
    %2916 = vrot.lane.b32.xlu0 %v526, 104
    %v2917 = vpop.permute.xlu0 %2916
    %2918 = vrot.lane.b32.xlu0 %v527, 104
    %v2919 = vpop.permute.xlu0 %2918
    %2920 = vrot.lane.b32.xlu0 %v528, 104
    %v2921 = vpop.permute.xlu0 %2920
    %2922 = vrot.lane.b32.xlu0 %v529, 104
    %v2923 = vpop.permute.xlu0 %2922
    %2924 = vrot.lane.b32.xlu0 %v530, 104
    %v2925 = vpop.permute.xlu0 %2924
    %2926 = vrot.lane.b32.xlu0 %v531, 104
    %v2927 = vpop.permute.xlu0 %2926
    %2928 = vrot.lane.b32.xlu0 %v532, 104
    %v2929 = vpop.permute.xlu0 %2928
    %2930 = vrot.lane.b32.xlu0 %v359, 104
    %v2931 = vpop.permute.xlu0 %2930
    %2932 = vrot.lane.b32.xlu0 %v364, 104
    %v2933 = vpop.permute.xlu0 %2932
    %2934 = vrot.lane.b32.xlu0 %v369, 104
    %v2935 = vpop.permute.xlu0 %2934
    %2936 = vrot.lane.b32.xlu0 %v374, 104
    %v2937 = vpop.permute.xlu0 %2936
    %2938 = vrot.lane.b32.xlu0 %v379, 104
    %v2939 = vpop.permute.xlu0 %2938
    %2940 = vrot.lane.b32.xlu0 %v384, 104
    %v2941 = vpop.permute.xlu0 %2940
    %2942 = vrot.lane.b32.xlu0 %v389, 104
    %v2943 = vpop.permute.xlu0 %2942
    %2944 = vrot.lane.b32.xlu0 %v394, 104
    %v2945 = vpop.permute.xlu0 %2944
    %2946 = vrot.lane.b32.xlu0 %v399, 104
    %v2947 = vpop.permute.xlu0 %2946
    %2948 = vrot.lane.b32.xlu0 %v404, 104
    %v2949 = vpop.permute.xlu0 %2948
    %2950 = vrot.lane.b32.xlu0 %v409, 104
    %v2951 = vpop.permute.xlu0 %2950
    %2952 = vrot.lane.b32.xlu0 %v414, 104
    %v2953 = vpop.permute.xlu0 %2952
    %2954 = vrot.lane.b32.xlu0 %v419, 104
    %v2955 = vpop.permute.xlu0 %2954
    %2956 = vrot.lane.b32.xlu0 %v424, 104
    %v2957 = vpop.permute.xlu0 %2956
    %2958 = vrot.lane.b32.xlu0 %v429, 104
    %v2959 = vpop.permute.xlu0 %2958
    %2960 = vrot.lane.b32.xlu0 %v434, 104
    %v2961 = vpop.permute.xlu0 %2960
    %v2962 = vsel %vm533, %v2899, 0
    %v2964 = vsel %vm533, %v2901, 0
    %v2966 = vsel %vm533, %v2903, 0
    %v2968 = vsel %vm533, %v2905, 0
    %v2970 = vsel %vm533, %v2907, 0
    %v2972 = vsel %vm533, %v2909, 0
    %v2974 = vsel %vm533, %v2911, 0
    %v2976 = vsel %vm533, %v2913, 0
    %v2978 = vsel %vm533, %v2915, 0
    %v2980 = vsel %vm533, %v2917, 0
    %v2982 = vsel %vm533, %v2919, 0
    %v2984 = vsel %vm533, %v2921, 0
    %v2986 = vsel %vm533, %v2923, 0
    %v2988 = vsel %vm533, %v2925, 0
    %v2990 = vsel %vm533, %v2927, 0
    %v2992 = vsel %vm533, %v2929, 0
    %v2994 = vsel %vm533, %v2931, 0
    %v2996 = vsel %vm533, %v2933, 0
    %v2998 = vsel %vm533, %v2935, 0
    %v3000 = vsel %vm533, %v2937, 0
    %v3002 = vsel %vm533, %v2939, 0
    %v3004 = vsel %vm533, %v2941, 0
    %v3006 = vsel %vm533, %v2943, 0
    %v3008 = vsel %vm533, %v2945, 0
    %v3010 = vsel %vm533, %v2947, 0
    %v3012 = vsel %vm533, %v2949, 0
    %v3014 = vsel %vm533, %v2951, 0
    %v3016 = vsel %vm533, %v2953, 0
    %v3018 = vsel %vm533, %v2955, 0
    %v3020 = vsel %vm533, %v2957, 0
    %v3022 = vsel %vm533, %v2959, 0
    %v3024 = vsel %vm533, %v2961, 0
    %3026 = vmatprep.subr.mxu0 0.0
    %3027 = vmatpush1.xpose.msra.mxu0 %v2994
    %3028 = vmatprep.subr.mxu0 0.0
    %3029 = vmatpush1.xpose.msra.mxu0 %v2996
    %3030 = vmatprep.subr.mxu0 0.0
    %3031 = vmatpush1.xpose.msra.mxu0 %v2998
    %3032 = vmatprep.subr.mxu0 0.0
    %3033 = vmatpush1.xpose.msra.mxu0 %v3000
    %3034 = vmatprep.subr.mxu0 0.0
    %3035 = vmatpush1.xpose.msra.mxu0 %v3002
    %3036 = vmatprep.subr.mxu0 0.0
    %3037 = vmatpush1.xpose.msra.mxu0 %v3004
    %3038 = vmatprep.subr.mxu0 0.0
    %3039 = vmatpush1.xpose.msra.mxu0 %v3006
    %3040 = vmatprep.subr.mxu0 0.0
    %3041 = vmatpush1.xpose.msra.mxu0 %v3008
    %3042 = vmatprep.subr.mxu0 0.0
    %3043 = vmatpush1.xpose.msra.mxu0 %v3010
    %3044 = vmatprep.subr.mxu0 0.0
    %3045 = vmatpush1.xpose.msra.mxu0 %v3012
    %3046 = vmatprep.subr.mxu0 0.0
    %3047 = vmatpush1.xpose.msra.mxu0 %v3014
    %3048 = vmatprep.subr.mxu0 0.0
    %3049 = vmatpush1.xpose.msra.mxu0 %v3016
    %3050 = vmatprep.subr.mxu0 0.0
    %3051 = vmatpush1.xpose.msra.mxu0 %v3018
    %3052 = vmatprep.subr.mxu0 0.0
    %3053 = vmatpush1.xpose.msra.mxu0 %v3020
    %3054 = vmatprep.subr.mxu0 0.0
    %3055 = vmatpush1.xpose.msra.mxu0 %v3022
    %3056 = vmatprep.subr.mxu0 0.0
    %3057 = vmatpush1.xpose.msra.mxu0 %v3024
    %3058 = vmatprep.subr.mxu0 0.0
    %3059 = vmatpush1.xpose.msra.mxu0 0.0
    %3060 = vmatprep.subr.mxu0 0.0
    %3061 = vmatpush1.xpose.msra.mxu0 0.0
    %3062 = vmatprep.subr.mxu0 0.0
    %3063 = vmatpush1.xpose.msra.mxu0 0.0
    %3064 = vmatprep.subr.mxu0 0.0
    %3065 = vmatpush1.xpose.msra.mxu0 0.0
    %3066 = vmatprep.subr.mxu0 0.0
    %3067 = vmatpush1.xpose.msra.mxu0 0.0
    %3068 = vmatprep.subr.mxu0 0.0
    %3069 = vmatpush1.xpose.msra.mxu0 0.0
    %3070 = vmatprep.subr.mxu0 0.0
    %3071 = vmatpush1.xpose.msra.mxu0 0.0
    %3072 = vmatprep.subr.mxu0 0.0
    %3073 = vmatpush1.xpose.msra.mxu0 0.0
    %3074 = vmatprep.subr.mxu0 0.0
    %3075 = vmatpush1.xpose.msra.mxu0 0.0
    %3076 = vmatprep.subr.mxu0 0.0
    %3077 = vmatpush1.xpose.msra.mxu0 0.0
    %3078 = vmatprep.subr.mxu0 0.0
    %3079 = vmatpush1.xpose.msra.mxu0 0.0
    %3080 = vmatprep.subr.mxu0 0.0
    %3081 = vmatpush1.xpose.msra.mxu0 0.0
    %3082 = vmatprep.subr.mxu0 0.0
    %3083 = vmatpush1.xpose.msra.mxu0 0.0
    %3084 = vmatprep.subr.mxu0 0.0
    %3085 = vmatpush1.xpose.msra.mxu0 0.0
    %3086 = vmatprep.subr.mxu0 0.0
    %3087 = vmatpush1.xpose.msra.mxu0 0.0
    %3088 = vmatprep.subr.mxu0 0.0
    %3089 = vmatpush1.xpose.msra.mxu0 0.0
    %3090 = vmatprep.mubr.f32.mxu0 0.0
    %3091 = vmatmul.mubr.f32.gmra.mrb[0].mxu0 %v2962
    %v3092 = vpop.f32.mrb[0].mxu0
    %v3093 = vadd.f32 0.0, %v3092
    %v3094 = vpop.f32.mrb[0].mxu0
    %3095 = vmatprep.mubr.f32.mxu0 0.0
    %3096 = vmatmul.mubr.f32.gmra.mrb[0].mxu0 %v2964
    %v3097 = vpop.f32.mrb[0].mxu0
    %v3098 = vadd.f32 0.0, %v3097
    %v3099 = vpop.f32.mrb[0].mxu0
    %3100 = vmatprep.mubr.f32.mxu0 0.0
    %3101 = vmatmul.mubr.f32.gmra.mrb[0].mxu0 %v2966
    %v3102 = vpop.f32.mrb[0].mxu0
    %v3103 = vadd.f32 0.0, %v3102
    %v3104 = vpop.f32.mrb[0].mxu0
    %3105 = vmatprep.mubr.f32.mxu0 0.0
    %3106 = vmatmul.mubr.f32.gmra.mrb[0].mxu0 %v2968
    %v3107 = vpop.f32.mrb[0].mxu0
    %v3108 = vadd.f32 0.0, %v3107
    %v3109 = vpop.f32.mrb[0].mxu0
    %3110 = vmatprep.mubr.f32.mxu0 0.0
    %3111 = vmatmul.mubr.f32.gmra.mrb[0].mxu0 %v2970
    %v3112 = vpop.f32.mrb[0].mxu0
    %v3113 = vadd.f32 0.0, %v3112
    %v3114 = vpop.f32.mrb[0].mxu0
    %3115 = vmatprep.mubr.f32.mxu0 0.0
    %3116 = vmatmul.mubr.f32.gmra.mrb[0].mxu0 %v2972
    %v3117 = vpop.f32.mrb[0].mxu0
    %v3118 = vadd.f32 0.0, %v3117
    %v3119 = vpop.f32.mrb[0].mxu0
    %3120 = vmatprep.mubr.f32.mxu0 0.0
    %3121 = vmatmul.mubr.f32.gmra.mrb[0].mxu0 %v2974
    %v3122 = vpop.f32.mrb[0].mxu0
    %v3123 = vadd.f32 0.0, %v3122
    %v3124 = vpop.f32.mrb[0].mxu0
    %3125 = vmatprep.mubr.f32.mxu0 0.0
    %3126 = vmatmul.mubr.f32.gmra.mrb[0].mxu0 %v2976
    %v3127 = vpop.f32.mrb[0].mxu0
    %v3128 = vadd.f32 0.0, %v3127
    %v3129 = vpop.f32.mrb[0].mxu0
    %3130 = vmatprep.mubr.f32.mxu0 0.0
    %3131 = vmatmul.mubr.f32.gmra.mrb[0].mxu0 %v2978
    %v3132 = vpop.f32.mrb[0].mxu0
    %v3133 = vadd.f32 0.0, %v3132
    %v3134 = vpop.f32.mrb[0].mxu0
    %3135 = vmatprep.mubr.f32.mxu0 0.0
    %3136 = vmatmul.mubr.f32.gmra.mrb[0].mxu0 %v2980
    %v3137 = vpop.f32.mrb[0].mxu0
    %v3138 = vadd.f32 0.0, %v3137
    %v3139 = vpop.f32.mrb[0].mxu0
    %3140 = vmatprep.mubr.f32.mxu0 0.0
    %3141 = vmatmul.mubr.f32.gmra.mrb[0].mxu0 %v2982
    %v3142 = vpop.f32.mrb[0].mxu0
    %v3143 = vadd.f32 0.0, %v3142
    %v3144 = vpop.f32.mrb[0].mxu0
    %3145 = vmatprep.mubr.f32.mxu0 0.0
    %3146 = vmatmul.mubr.f32.gmra.mrb[0].mxu0 %v2984
    %v3147 = vpop.f32.mrb[0].mxu0
    %v3148 = vadd.f32 0.0, %v3147
    %v3149 = vpop.f32.mrb[0].mxu0
    %3150 = vmatprep.mubr.f32.mxu0 0.0
    %3151 = vmatmul.mubr.f32.gmra.mrb[0].mxu0 %v2986
    %v3152 = vpop.f32.mrb[0].mxu0
    %v3153 = vadd.f32 0.0, %v3152
    %v3154 = vpop.f32.mrb[0].mxu0
    %3155 = vmatprep.mubr.f32.mxu0 0.0
    %3156 = vmatmul.mubr.f32.gmra.mrb[0].mxu0 %v2988
    %v3157 = vpop.f32.mrb[0].mxu0
    %v3158 = vadd.f32 0.0, %v3157
    %v3159 = vpop.f32.mrb[0].mxu0
    %3160 = vmatprep.mubr.f32.mxu0 0.0
    %3161 = vmatmul.mubr.f32.gmra.mrb[0].mxu0 %v2990
    %v3162 = vpop.f32.mrb[0].mxu0
    %v3163 = vadd.f32 0.0, %v3162
    %v3164 = vpop.f32.mrb[0].mxu0
    %3165 = vmatprep.mubr.f32.mxu0 0.0
    %3166 = vmatmul.mubr.f32.gmra.mrb[0].mxu0 %v2992
    %v3167 = vpop.f32.mrb[0].mxu0
    %v3168 = vadd.f32 0.0, %v3167
    %v3169 = vpop.f32.mrb[0].mxu0
    %3170 = vdwg.mxu0
    %3171 = vmax.xlane.f32.xlu0 %v3093
    %v3172 = vpop.xlane.xlu0 %3171
    %3173 = vmax.xlane.f32.xlu0 %v3098
    %v3174 = vpop.xlane.xlu0 %3173
    %3175 = vmax.xlane.f32.xlu0 %v3103
    %v3176 = vpop.xlane.xlu0 %3175
    %3177 = vmax.xlane.f32.xlu0 %v3108
    %v3178 = vpop.xlane.xlu0 %3177
    %3179 = vmax.xlane.f32.xlu0 %v3113
    %v3180 = vpop.xlane.xlu0 %3179
    %3181 = vmax.xlane.f32.xlu0 %v3118
    %v3182 = vpop.xlane.xlu0 %3181
    %3183 = vmax.xlane.f32.xlu0 %v3123
    %v3184 = vpop.xlane.xlu0 %3183
    %3185 = vmax.xlane.f32.xlu0 %v3128
    %v3186 = vpop.xlane.xlu0 %3185
    %3187 = vmax.xlane.f32.xlu0 %v3133
    %v3188 = vpop.xlane.xlu0 %3187
    %3189 = vmax.xlane.f32.xlu0 %v3138
    %v3190 = vpop.xlane.xlu0 %3189
    %3191 = vmax.xlane.f32.xlu0 %v3143
    %v3192 = vpop.xlane.xlu0 %3191
    %3193 = vmax.xlane.f32.xlu0 %v3148
    %v3194 = vpop.xlane.xlu0 %3193
    %3195 = vmax.xlane.f32.xlu0 %v3153
    %v3196 = vpop.xlane.xlu0 %3195
    %3197 = vmax.xlane.f32.xlu0 %v3158
    %v3198 = vpop.xlane.xlu0 %3197
    %3199 = vmax.xlane.f32.xlu0 %v3163
    %v3200 = vpop.xlane.xlu0 %3199
    %3201 = vmax.xlane.f32.xlu0 %v3168
    %v3202 = vpop.xlane.xlu0 %3201
    %v3203 = vsub.f32 %v3093, %v3172
    %v3204 = vsub.f32 %v3098, %v3174
    %v3205 = vsub.f32 %v3103, %v3176
    %v3206 = vsub.f32 %v3108, %v3178
    %v3207 = vsub.f32 %v3113, %v3180
    %v3208 = vsub.f32 %v3118, %v3182
    %v3209 = vsub.f32 %v3123, %v3184
    %v3210 = vsub.f32 %v3128, %v3186
    %v3211 = vsub.f32 %v3133, %v3188
    %v3212 = vsub.f32 %v3138, %v3190
    %v3213 = vsub.f32 %v3143, %v3192
    %v3214 = vsub.f32 %v3148, %v3194
    %v3215 = vsub.f32 %v3153, %v3196
    %v3216 = vsub.f32 %v3158, %v3198
    %v3217 = vsub.f32 %v3163, %v3200
    %v3218 = vsub.f32 %v3168, %v3202
    %v3219 = vmul.f32 %v3203, 1.442695
    %v3220 = vpow.pop %v3219
    %v3221 = vmul.f32 %v3204, 1.442695
    %v3222 = vpow.pop %v3221
    %v3223 = vmul.f32 %v3205, 1.442695
    %v3224 = vpow.pop %v3223
    %v3225 = vmul.f32 %v3206, 1.442695
    %v3226 = vpow.pop %v3225
    %v3227 = vmul.f32 %v3207, 1.442695
    %v3228 = vpow.pop %v3227
    %v3229 = vmul.f32 %v3208, 1.442695
    %v3230 = vpow.pop %v3229
    %v3231 = vmul.f32 %v3209, 1.442695
    %v3232 = vpow.pop %v3231
    %v3233 = vmul.f32 %v3210, 1.442695
    %v3234 = vpow.pop %v3233
    %v3235 = vmul.f32 %v3211, 1.442695
    %v3236 = vpow.pop %v3235
    %v3237 = vmul.f32 %v3212, 1.442695
    %v3238 = vpow.pop %v3237
    %v3239 = vmul.f32 %v3213, 1.442695
    %v3240 = vpow.pop %v3239
    %v3241 = vmul.f32 %v3214, 1.442695
    %v3242 = vpow.pop %v3241
    %v3243 = vmul.f32 %v3215, 1.442695
    %v3244 = vpow.pop %v3243
    %v3245 = vmul.f32 %v3216, 1.442695
    %v3246 = vpow.pop %v3245
    %v3247 = vmul.f32 %v3217, 1.442695
    %v3248 = vpow.pop %v3247
    %v3249 = vmul.f32 %v3218, 1.442695
    %v3250 = vpow.pop %v3249
    %3251 = vadd.xlane.f32.xlu0 %v3220
    %v3252 = vpop.xlane.xlu0 %3251
    %3253 = vadd.xlane.f32.xlu0 %v3222
    %v3254 = vpop.xlane.xlu0 %3253
    %3255 = vadd.xlane.f32.xlu0 %v3224
    %v3256 = vpop.xlane.xlu0 %3255
    %3257 = vadd.xlane.f32.xlu0 %v3226
    %v3258 = vpop.xlane.xlu0 %3257
    %3259 = vadd.xlane.f32.xlu0 %v3228
    %v3260 = vpop.xlane.xlu0 %3259
    %3261 = vadd.xlane.f32.xlu0 %v3230
    %v3262 = vpop.xlane.xlu0 %3261
    %3263 = vadd.xlane.f32.xlu0 %v3232
    %v3264 = vpop.xlane.xlu0 %3263
    %3265 = vadd.xlane.f32.xlu0 %v3234
    %v3266 = vpop.xlane.xlu0 %3265
    %3267 = vadd.xlane.f32.xlu0 %v3236
    %v3268 = vpop.xlane.xlu0 %3267
    %3269 = vadd.xlane.f32.xlu0 %v3238
    %v3270 = vpop.xlane.xlu0 %3269
    %3271 = vadd.xlane.f32.xlu0 %v3240
    %v3272 = vpop.xlane.xlu0 %3271
    %3273 = vadd.xlane.f32.xlu0 %v3242
    %v3274 = vpop.xlane.xlu0 %3273
    %3275 = vadd.xlane.f32.xlu0 %v3244
    %v3276 = vpop.xlane.xlu0 %3275
    %3277 = vadd.xlane.f32.xlu0 %v3246
    %v3278 = vpop.xlane.xlu0 %3277
    %3279 = vadd.xlane.f32.xlu0 %v3248
    %v3280 = vpop.xlane.xlu0 %3279
    %3281 = vadd.xlane.f32.xlu0 %v3250
    %v3282 = vpop.xlane.xlu0 %3281
    %v3283 = vrcp.pop %v3252
    %v3284 = vrcp.pop %v3254
    %v3285 = vrcp.pop %v3256
    %v3286 = vrcp.pop %v3258
    %v3287 = vrcp.pop %v3260
    %v3288 = vrcp.pop %v3262
    %v3289 = vrcp.pop %v3264
    %v3290 = vrcp.pop %v3266
    %v3291 = vrcp.pop %v3268
    %v3292 = vrcp.pop %v3270
    %v3293 = vrcp.pop %v3272
    %v3294 = vrcp.pop %v3274
    %v3295 = vrcp.pop %v3276
    %v3296 = vrcp.pop %v3278
    %v3297 = vrcp.pop %v3280
    %v3298 = vrcp.pop %v3282
    %v3299 = vmul.f32 %v3220, %v3283
    %v3300 = vmul.f32 %v3222, %v3284
    %v3301 = vmul.f32 %v3224, %v3285
    %v3302 = vmul.f32 %v3226, %v3286
    %v3303 = vmul.f32 %v3228, %v3287
    %v3304 = vmul.f32 %v3230, %v3288
    %v3305 = vmul.f32 %v3232, %v3289
    %v3306 = vmul.f32 %v3234, %v3290
    %v3307 = vmul.f32 %v3236, %v3291
    %v3308 = vmul.f32 %v3238, %v3292
    %v3309 = vmul.f32 %v3240, %v3293
    %v3310 = vmul.f32 %v3242, %v3294
    %v3311 = vmul.f32 %v3244, %v3295
    %v3312 = vmul.f32 %v3246, %v3296
    %v3313 = vmul.f32 %v3248, %v3297
    %v3314 = vmul.f32 %v3250, %v3298
    %3315 = vrot.lane.b32.xlu0 %v439, 104
    %v3316 = vpop.permute.xlu0 %3315
    %3317 = vrot.lane.b32.xlu0 %v444, 104
    %v3318 = vpop.permute.xlu0 %3317
    %3319 = vrot.lane.b32.xlu0 %v449, 104
    %v3320 = vpop.permute.xlu0 %3319
    %3321 = vrot.lane.b32.xlu0 %v454, 104
    %v3322 = vpop.permute.xlu0 %3321
    %3323 = vrot.lane.b32.xlu0 %v459, 104
    %v3324 = vpop.permute.xlu0 %3323
    %3325 = vrot.lane.b32.xlu0 %v464, 104
    %v3326 = vpop.permute.xlu0 %3325
    %3327 = vrot.lane.b32.xlu0 %v469, 104
    %v3328 = vpop.permute.xlu0 %3327
    %3329 = vrot.lane.b32.xlu0 %v474, 104
    %v3330 = vpop.permute.xlu0 %3329
    %3331 = vrot.lane.b32.xlu0 %v479, 104
    %v3332 = vpop.permute.xlu0 %3331
    %3333 = vrot.lane.b32.xlu0 %v484, 104
    %v3334 = vpop.permute.xlu0 %3333
    %3335 = vrot.lane.b32.xlu0 %v489, 104
    %v3336 = vpop.permute.xlu0 %3335
    %3337 = vrot.lane.b32.xlu0 %v494, 104
    %v3338 = vpop.permute.xlu0 %3337
    %3339 = vrot.lane.b32.xlu0 %v499, 104
    %v3340 = vpop.permute.xlu0 %3339
    %3341 = vrot.lane.b32.xlu0 %v504, 104
    %v3342 = vpop.permute.xlu0 %3341
    %3343 = vrot.lane.b32.xlu0 %v509, 104
    %v3344 = vpop.permute.xlu0 %3343
    %3345 = vrot.lane.b32.xlu0 %v514, 104
    %v3346 = vpop.permute.xlu0 %3345
    %3363 = vmatprep.subr.mxu0 0.0
    %3364 = vmatpush1.msra.mxu0 %v3316
    %3365 = vmatprep.subr.mxu0 0.0
    %3366 = vmatpush1.msra.mxu0 %v3318
    %3367 = vmatprep.subr.mxu0 0.0
    %3368 = vmatpush1.msra.mxu0 %v3320
    %3369 = vmatprep.subr.mxu0 0.0
    %3370 = vmatpush1.msra.mxu0 %v3322
    %3371 = vmatprep.subr.mxu0 0.0
    %3372 = vmatpush1.msra.mxu0 %v3324
    %3373 = vmatprep.subr.mxu0 0.0
    %3374 = vmatpush1.msra.mxu0 %v3326
    %3375 = vmatprep.subr.mxu0 0.0
    %3376 = vmatpush1.msra.mxu0 %v3328
    %3377 = vmatprep.subr.mxu0 0.0
    %3378 = vmatpush1.msra.mxu0 %v3330
    %3379 = vmatprep.subr.mxu0 0.0
    %3380 = vmatpush1.msra.mxu0 %v3332
    %3381 = vmatprep.subr.mxu0 0.0
    %3382 = vmatpush1.msra.mxu0 %v3334
    %3383 = vmatprep.subr.mxu0 0.0
    %3384 = vmatpush1.msra.mxu0 %v3336
    %3385 = vmatprep.subr.mxu0 0.0
    %3386 = vmatpush1.msra.mxu0 %v3338
    %3387 = vmatprep.subr.mxu0 0.0
    %3388 = vmatpush1.msra.mxu0 %v3340
    %3389 = vmatprep.subr.mxu0 0.0
    %3390 = vmatpush1.msra.mxu0 %v3342
    %3391 = vmatprep.subr.mxu0 0.0
    %3392 = vmatpush1.msra.mxu0 %v3344
    %3393 = vmatprep.subr.mxu0 0.0
    %3394 = vmatpush1.msra.mxu0 %v3346
    %3395 = vmatprep.subr.mxu0 0.0
    %3396 = vmatpush1.msra.mxu0 0.0
    %3397 = vmatprep.subr.mxu0 0.0
    %3398 = vmatpush1.msra.mxu0 0.0
    %3399 = vmatprep.subr.mxu0 0.0
    %3400 = vmatpush1.msra.mxu0 0.0
    %3401 = vmatprep.subr.mxu0 0.0
    %3402 = vmatpush1.msra.mxu0 0.0
    %3403 = vmatprep.subr.mxu0 0.0
    %3404 = vmatpush1.msra.mxu0 0.0
    %3405 = vmatprep.subr.mxu0 0.0
    %3406 = vmatpush1.msra.mxu0 0.0
    %3407 = vmatprep.subr.mxu0 0.0
    %3408 = vmatpush1.msra.mxu0 0.0
    %3409 = vmatprep.subr.mxu0 0.0
    %3410 = vmatpush1.msra.mxu0 0.0
    %3411 = vmatprep.subr.mxu0 0.0
    %3412 = vmatpush1.msra.mxu0 0.0
    %3413 = vmatprep.subr.mxu0 0.0
    %3414 = vmatpush1.msra.mxu0 0.0
    %3415 = vmatprep.subr.mxu0 0.0
    %3416 = vmatpush1.msra.mxu0 0.0
    %3417 = vmatprep.subr.mxu0 0.0
    %3418 = vmatpush1.msra.mxu0 0.0
    %3419 = vmatprep.subr.mxu0 0.0
    %3420 = vmatpush1.msra.mxu0 0.0
    %3421 = vmatprep.subr.mxu0 0.0
    %3422 = vmatpush1.msra.mxu0 0.0
    %3423 = vmatprep.subr.mxu0 0.0
    %3424 = vmatpush1.msra.mxu0 0.0
    %3425 = vmatprep.subr.mxu0 0.0
    %3426 = vmatpush1.msra.mxu0 0.0
    %3427 = vmatprep.mubr.f32.mxu0 0.0
    %3428 = vmatmul.mubr.f32.gmra.mrb[0].mxu0 %v3299
    %v3429 = vpop.f32.mrb[0].mxu0
    %v3430 = vadd.f32 0.0, %v3429
    %v3431 = vpop.f32.mrb[0].mxu0
    %3432 = vmatprep.mubr.f32.mxu0 0.0
    %3433 = vmatmul.mubr.f32.gmra.mrb[0].mxu0 %v3300
    %v3434 = vpop.f32.mrb[0].mxu0
    %v3435 = vadd.f32 0.0, %v3434
    %v3436 = vpop.f32.mrb[0].mxu0
    %3437 = vmatprep.mubr.f32.mxu0 0.0
    %3438 = vmatmul.mubr.f32.gmra.mrb[0].mxu0 %v3301
    %v3439 = vpop.f32.mrb[0].mxu0
    %v3440 = vadd.f32 0.0, %v3439
    %v3441 = vpop.f32.mrb[0].mxu0
    %3442 = vmatprep.mubr.f32.mxu0 0.0
    %3443 = vmatmul.mubr.f32.gmra.mrb[0].mxu0 %v3302
    %v3444 = vpop.f32.mrb[0].mxu0
    %v3445 = vadd.f32 0.0, %v3444
    %v3446 = vpop.f32.mrb[0].mxu0
    %3447 = vmatprep.mubr.f32.mxu0 0.0
    %3448 = vmatmul.mubr.f32.gmra.mrb[0].mxu0 %v3303
    %v3449 = vpop.f32.mrb[0].mxu0
    %v3450 = vadd.f32 0.0, %v3449
    %v3451 = vpop.f32.mrb[0].mxu0
    %3452 = vmatprep.mubr.f32.mxu0 0.0
    %3453 = vmatmul.mubr.f32.gmra.mrb[0].mxu0 %v3304
    %v3454 = vpop.f32.mrb[0].mxu0
    %v3455 = vadd.f32 0.0, %v3454
    %v3456 = vpop.f32.mrb[0].mxu0
    %3457 = vmatprep.mubr.f32.mxu0 0.0
    %3458 = vmatmul.mubr.f32.gmra.mrb[0].mxu0 %v3305
    %v3459 = vpop.f32.mrb[0].mxu0
    %v3460 = vadd.f32 0.0, %v3459
    %v3461 = vpop.f32.mrb[0].mxu0
    %3462 = vmatprep.mubr.f32.mxu0 0.0
    %3463 = vmatmul.mubr.f32.gmra.mrb[0].mxu0 %v3306
    %v3464 = vpop.f32.mrb[0].mxu0
    %v3465 = vadd.f32 0.0, %v3464
    %v3466 = vpop.f32.mrb[0].mxu0
    %3467 = vmatprep.mubr.f32.mxu0 0.0
    %3468 = vmatmul.mubr.f32.gmra.mrb[0].mxu0 %v3307
    %v3469 = vpop.f32.mrb[0].mxu0
    %v3470 = vadd.f32 0.0, %v3469
    %v3471 = vpop.f32.mrb[0].mxu0
    %3472 = vmatprep.mubr.f32.mxu0 0.0
    %3473 = vmatmul.mubr.f32.gmra.mrb[0].mxu0 %v3308
    %v3474 = vpop.f32.mrb[0].mxu0
    %v3475 = vadd.f32 0.0, %v3474
    %v3476 = vpop.f32.mrb[0].mxu0
    %3477 = vmatprep.mubr.f32.mxu0 0.0
    %3478 = vmatmul.mubr.f32.gmra.mrb[0].mxu0 %v3309
    %v3479 = vpop.f32.mrb[0].mxu0
    %v3480 = vadd.f32 0.0, %v3479
    %v3481 = vpop.f32.mrb[0].mxu0
    %3482 = vmatprep.mubr.f32.mxu0 0.0
    %3483 = vmatmul.mubr.f32.gmra.mrb[0].mxu0 %v3310
    %v3484 = vpop.f32.mrb[0].mxu0
    %v3485 = vadd.f32 0.0, %v3484
    %v3486 = vpop.f32.mrb[0].mxu0
    %3487 = vmatprep.mubr.f32.mxu0 0.0
    %3488 = vmatmul.mubr.f32.gmra.mrb[0].mxu0 %v3311
    %v3489 = vpop.f32.mrb[0].mxu0
    %v3490 = vadd.f32 0.0, %v3489
    %v3491 = vpop.f32.mrb[0].mxu0
    %3492 = vmatprep.mubr.f32.mxu0 0.0
    %3493 = vmatmul.mubr.f32.gmra.mrb[0].mxu0 %v3312
    %v3494 = vpop.f32.mrb[0].mxu0
    %v3495 = vadd.f32 0.0, %v3494
    %v3496 = vpop.f32.mrb[0].mxu0
    %3497 = vmatprep.mubr.f32.mxu0 0.0
    %3498 = vmatmul.mubr.f32.gmra.mrb[0].mxu0 %v3313
    %v3499 = vpop.f32.mrb[0].mxu0
    %v3500 = vadd.f32 0.0, %v3499
    %v3501 = vpop.f32.mrb[0].mxu0
    %3502 = vmatprep.mubr.f32.mxu0 0.0
    %3503 = vmatmul.mubr.f32.gmra.mrb[0].mxu0 %v3314
    %v3504 = vpop.f32.mrb[0].mxu0
    %v3505 = vadd.f32 0.0, %v3504
    %v3506 = vpop.f32.mrb[0].mxu0
    %3507 = vdwg.mxu0
    %v3508 = vld [vmem:[%s2 + $0x18] sm:$0xff]
    %v3510 = vsel %vm533, %v3430, 0
    %v3513 = vsel %vm533, %v3435, 0
    %v3516 = vsel %vm533, %v3440, 0
    %v3519 = vsel %vm533, %v3445, 0
    %v3522 = vsel %vm533, %v3450, 0
    %v3525 = vsel %vm533, %v3455, 0
    %v3528 = vsel %vm533, %v3460, 0
    %v3531 = vsel %vm533, %v3465, 0
    %v3534 = vsel %vm533, %v3470, 0
    %v3537 = vsel %vm533, %v3475, 0
    %v3540 = vsel %vm533, %v3480, 0
    %v3543 = vsel %vm533, %v3485, 0
    %v3546 = vsel %vm533, %v3490, 0
    %v3549 = vsel %vm533, %v3495, 0
    %v3552 = vsel %vm533, %v3500, 0
    %v3555 = vsel %vm533, %v3505, 0
    %3557 = vmatprep.subr.mxu0 0.0
    %3558 = vmatpush1.msra.mxu0 %v3508
    %3559 = vmatprep.subr.mxu0 0.0
    %3560 = vmatpush1.msra.mxu0 0.0
    %3561 = vmatprep.subr.mxu0 0.0
    %3562 = vmatpush1.msra.mxu0 0.0
    %3563 = vmatprep.subr.mxu0 0.0
    %3564 = vmatpush1.msra.mxu0 0.0
    %3565 = vmatprep.subr.mxu0 0.0
    %3566 = vmatpush1.msra.mxu0 0.0
    %3567 = vmatprep.subr.mxu0 0.0
    %3568 = vmatpush1.msra.mxu0 0.0
    %3569 = vmatprep.subr.mxu0 0.0
    %3570 = vmatpush1.msra.mxu0 0.0
    %3571 = vmatprep.subr.mxu0 0.0
    %3572 = vmatpush1.msra.mxu0 0.0
    %3573 = vmatprep.subr.mxu0 0.0
    %3574 = vmatpush1.msra.mxu0 0.0
    %3575 = vmatprep.subr.mxu0 0.0
    %3576 = vmatpush1.msra.mxu0 0.0
    %3577 = vmatprep.subr.mxu0 0.0
    %3578 = vmatpush1.msra.mxu0 0.0
    %3579 = vmatprep.subr.mxu0 0.0
    %3580 = vmatpush1.msra.mxu0 0.0
    %3581 = vmatprep.subr.mxu0 0.0
    %3582 = vmatpush1.msra.mxu0 0.0
    %3583 = vmatprep.subr.mxu0 0.0
    %3584 = vmatpush1.msra.mxu0 0.0
    %3585 = vmatprep.subr.mxu0 0.0
    %3586 = vmatpush1.msra.mxu0 0.0
    %3587 = vmatprep.subr.mxu0 0.0
    %3588 = vmatpush1.msra.mxu0 0.0
    %3589 = vmatprep.subr.mxu0 0.0
    %3590 = vmatpush1.msra.mxu0 0.0
    %3591 = vmatprep.subr.mxu0 0.0
    %3592 = vmatpush1.msra.mxu0 0.0
    %3593 = vmatprep.subr.mxu0 0.0
    %3594 = vmatpush1.msra.mxu0 0.0
    %3595 = vmatprep.subr.mxu0 0.0
    %3596 = vmatpush1.msra.mxu0 0.0
    %3597 = vmatprep.subr.mxu0 0.0
    %3598 = vmatpush1.msra.mxu0 0.0
    %3599 = vmatprep.subr.mxu0 0.0
    %3600 = vmatpush1.msra.mxu0 0.0
    %3601 = vmatprep.subr.mxu0 0.0
    %3602 = vmatpush1.msra.mxu0 0.0
    %3603 = vmatprep.subr.mxu0 0.0
    %3604 = vmatpush1.msra.mxu0 0.0
    %3605 = vmatprep.subr.mxu0 0.0
    %3606 = vmatpush1.msra.mxu0 0.0
    %3607 = vmatprep.subr.mxu0 0.0
    %3608 = vmatpush1.msra.mxu0 0.0
    %3609 = vmatprep.subr.mxu0 0.0
    %3610 = vmatpush1.msra.mxu0 0.0
    %3611 = vmatprep.subr.mxu0 0.0
    %3612 = vmatpush1.msra.mxu0 0.0
    %3613 = vmatprep.subr.mxu0 0.0
    %3614 = vmatpush1.msra.mxu0 0.0
    %3615 = vmatprep.subr.mxu0 0.0
    %3616 = vmatpush1.msra.mxu0 0.0
    %3617 = vmatprep.subr.mxu0 0.0
    %3618 = vmatpush1.msra.mxu0 0.0
    %3619 = vmatprep.subr.mxu0 0.0
    %3620 = vmatpush1.msra.mxu0 0.0
    %3621 = vmatprep.mubr.f32.mxu0 0.0
    %3622 = vmatmul.mubr.f32.gmra.mrb[0].mxu0 %v3510
    %v3623 = vpop.f32.mrb[0].mxu0
    %v3624 = vadd.f32 0.0, %v3623
    %v3625 = vpop.f32.mrb[0].mxu0
    %3626 = vmatprep.mubr.f32.mxu0 0.0
    %3627 = vmatmul.mubr.f32.gmra.mrb[0].mxu0 %v3513
    %v3628 = vpop.f32.mrb[0].mxu0
    %v3629 = vadd.f32 0.0, %v3628
    %v3630 = vpop.f32.mrb[0].mxu0
    %3631 = vmatprep.mubr.f32.mxu0 0.0
    %3632 = vmatmul.mubr.f32.gmra.mrb[0].mxu0 %v3516
    %v3633 = vpop.f32.mrb[0].mxu0
    %v3634 = vadd.f32 0.0, %v3633
    %v3635 = vpop.f32.mrb[0].mxu0
    %3636 = vmatprep.mubr.f32.mxu0 0.0
    %3637 = vmatmul.mubr.f32.gmra.mrb[0].mxu0 %v3519
    %v3638 = vpop.f32.mrb[0].mxu0
    %v3639 = vadd.f32 0.0, %v3638
    %v3640 = vpop.f32.mrb[0].mxu0
    %3641 = vmatprep.mubr.f32.mxu0 0.0
    %3642 = vmatmul.mubr.f32.gmra.mrb[0].mxu0 %v3522
    %v3643 = vpop.f32.mrb[0].mxu0
    %v3644 = vadd.f32 0.0, %v3643
    %v3645 = vpop.f32.mrb[0].mxu0
    %3646 = vmatprep.mubr.f32.mxu0 0.0
    %3647 = vmatmul.mubr.f32.gmra.mrb[0].mxu0 %v3525
    %v3648 = vpop.f32.mrb[0].mxu0
    %v3649 = vadd.f32 0.0, %v3648
    %v3650 = vpop.f32.mrb[0].mxu0
    %3651 = vmatprep.mubr.f32.mxu0 0.0
    %3652 = vmatmul.mubr.f32.gmra.mrb[0].mxu0 %v3528
    %v3653 = vpop.f32.mrb[0].mxu0
    %v3654 = vadd.f32 0.0, %v3653
    %v3655 = vpop.f32.mrb[0].mxu0
    %3656 = vmatprep.mubr.f32.mxu0 0.0
    %3657 = vmatmul.mubr.f32.gmra.mrb[0].mxu0 %v3531
    %v3658 = vpop.f32.mrb[0].mxu0
    %v3659 = vadd.f32 0.0, %v3658
    %v3660 = vpop.f32.mrb[0].mxu0
    %3661 = vmatprep.mubr.f32.mxu0 0.0
    %3662 = vmatmul.mubr.f32.gmra.mrb[0].mxu0 %v3534
    %v3663 = vpop.f32.mrb[0].mxu0
    %v3664 = vadd.f32 0.0, %v3663
    %v3665 = vpop.f32.mrb[0].mxu0
    %3666 = vmatprep.mubr.f32.mxu0 0.0
    %3667 = vmatmul.mubr.f32.gmra.mrb[0].mxu0 %v3537
    %v3668 = vpop.f32.mrb[0].mxu0
    %v3669 = vadd.f32 0.0, %v3668
    %v3670 = vpop.f32.mrb[0].mxu0
    %3671 = vmatprep.mubr.f32.mxu0 0.0
    %3672 = vmatmul.mubr.f32.gmra.mrb[0].mxu0 %v3540
    %v3673 = vpop.f32.mrb[0].mxu0
    %v3674 = vadd.f32 0.0, %v3673
    %v3675 = vpop.f32.mrb[0].mxu0
    %3676 = vmatprep.mubr.f32.mxu0 0.0
    %3677 = vmatmul.mubr.f32.gmra.mrb[0].mxu0 %v3543
    %v3678 = vpop.f32.mrb[0].mxu0
    %v3679 = vadd.f32 0.0, %v3678
    %v3680 = vpop.f32.mrb[0].mxu0
    %3681 = vmatprep.mubr.f32.mxu0 0.0
    %3682 = vmatmul.mubr.f32.gmra.mrb[0].mxu0 %v3546
    %v3683 = vpop.f32.mrb[0].mxu0
    %v3684 = vadd.f32 0.0, %v3683
    %v3685 = vpop.f32.mrb[0].mxu0
    %3686 = vmatprep.mubr.f32.mxu0 0.0
    %3687 = vmatmul.mubr.f32.gmra.mrb[0].mxu0 %v3549
    %v3688 = vpop.f32.mrb[0].mxu0
    %v3689 = vadd.f32 0.0, %v3688
    %v3690 = vpop.f32.mrb[0].mxu0
    %3691 = vmatprep.mubr.f32.mxu0 0.0
    %3692 = vmatmul.mubr.f32.gmra.mrb[0].mxu0 %v3552
    %v3693 = vpop.f32.mrb[0].mxu0
    %v3694 = vadd.f32 0.0, %v3693
    %v3695 = vpop.f32.mrb[0].mxu0
    %3696 = vmatprep.mubr.f32.mxu0 0.0
    %3697 = vmatmul.mubr.f32.gmra.mrb[0].mxu0 %v3555
    %v3698 = vpop.f32.mrb[0].mxu0
    %v3699 = vadd.f32 0.0, %v3698
    %v3700 = vpop.f32.mrb[0].mxu0
    %3701 = vdwg.mxu0
    %v3702 = vadd.f32 %v2882, %v3624
    %v3703 = vadd.f32 %v2883, %v3629
    %v3704 = vadd.f32 %v2884, %v3634
    %v3705 = vadd.f32 %v2885, %v3639
    %v3706 = vadd.f32 %v2886, %v3644
    %v3707 = vadd.f32 %v2887, %v3649
    %v3708 = vadd.f32 %v2888, %v3654
    %v3709 = vadd.f32 %v2889, %v3659
    %v3710 = vadd.f32 %v2890, %v3664
    %v3711 = vadd.f32 %v2891, %v3669
    %v3712 = vadd.f32 %v2892, %v3674
    %v3713 = vadd.f32 %v2893, %v3679
    %v3714 = vadd.f32 %v2894, %v3684
    %v3715 = vadd.f32 %v2895, %v3689
    %v3716 = vadd.f32 %v2896, %v3694
    %v3717 = vadd.f32 %v2897, %v3699
    %vm3718 = vcmask 523264
    %3719 = vst.msk [vmem:[#allocation2] sm:$0xff] %vm3718, %v3702
    %3720 = vst.msk [vmem:[#allocation2 + $0x8] sm:$0xff] %vm3718, %v3703
    %3721 = vst.msk [vmem:[#allocation2 + $0x10] sm:$0xff] %vm3718, %v3704
    %3722 = vst.msk [vmem:[#allocation2 + $0x18] sm:$0xff] %vm3718, %v3705
    %3723 = vst.msk [vmem:[#allocation2 + $0x20] sm:$0xff] %vm3718, %v3706
    %3724 = vst.msk [vmem:[#allocation2 + $0x28] sm:$0xff] %vm3718, %v3707
    %3725 = vst.msk [vmem:[#allocation2 + $0x30] sm:$0xff] %vm3718, %v3708
    %3726 = vst.msk [vmem:[#allocation2 + $0x38] sm:$0xff] %vm3718, %v3709
    %3727 = vst.msk [vmem:[#allocation2 + $0x40] sm:$0xff] %vm3718, %v3710
    %3728 = vst.msk [vmem:[#allocation2 + $0x48] sm:$0xff] %vm3718, %v3711
    %3729 = vst.msk [vmem:[#allocation2 + $0x50] sm:$0xff] %vm3718, %v3712
    %3730 = vst.msk [vmem:[#allocation2 + $0x58] sm:$0xff] %vm3718, %v3713
    %3731 = vst.msk [vmem:[#allocation2 + $0x60] sm:$0xff] %vm3718, %v3714
    %3732 = vst.msk [vmem:[#allocation2 + $0x68] sm:$0xff] %vm3718, %v3715
    %3733 = vst.msk [vmem:[#allocation2 + $0x70] sm:$0xff] %vm3718, %v3716
    %3734 = vst.msk [vmem:[#allocation2 + $0x78] sm:$0xff] %vm3718, %v3717
    %v3735 = vld [vmem:[%s0 + $0x180] sm:$0xff]
    %v3736 = vld [vmem:[%s0 + $0x188] sm:$0xff]
    %v3737 = vld [vmem:[%s0 + $0x190] sm:$0xff]
    %v3738 = vld [vmem:[%s0 + $0x198] sm:$0xff]
    %v3739 = vld [vmem:[%s0 + $0x1a0] sm:$0xff]
    %v3740 = vld [vmem:[%s0 + $0x1a8] sm:$0xff]
    %v3741 = vld [vmem:[%s0 + $0x1b0] sm:$0xff]
    %v3742 = vld [vmem:[%s0 + $0x1b8] sm:$0xff]
    %v3743 = vld [vmem:[%s0 + $0x1c0] sm:$0xff]
    %v3744 = vld [vmem:[%s0 + $0x1c8] sm:$0xff]
    %v3745 = vld [vmem:[%s0 + $0x1d0] sm:$0xff]
    %v3746 = vld [vmem:[%s0 + $0x1d8] sm:$0xff]
    %v3747 = vld [vmem:[%s0 + $0x1e0] sm:$0xff]
    %v3748 = vld [vmem:[%s0 + $0x1e8] sm:$0xff]
    %v3749 = vld [vmem:[%s0 + $0x1f0] sm:$0xff]
    %v3750 = vld [vmem:[%s0 + $0x1f8] sm:$0xff]
    %v3751 = vld [vmem:[%s0 + $0x200] sm:$0xff]
    %v3752 = vld [vmem:[%s0 + $0x208] sm:$0xff]
    %v3753 = vld [vmem:[%s0 + $0x210] sm:$0xff]
    %v3754 = vld [vmem:[%s0 + $0x218] sm:$0xff]
    %v3755 = vld [vmem:[%s0 + $0x220] sm:$0xff]
    %v3756 = vld [vmem:[%s0 + $0x228] sm:$0xff]
    %v3757 = vld [vmem:[%s0 + $0x230] sm:$0xff]
    %v3758 = vld [vmem:[%s0 + $0x238] sm:$0xff]
    %v3759 = vld [vmem:[%s0 + $0x240] sm:$0xff]
    %v3760 = vld [vmem:[%s0 + $0x248] sm:$0xff]
    %v3761 = vld [vmem:[%s0 + $0x250] sm:$0xff]
    %v3762 = vld [vmem:[%s0 + $0x258] sm:$0xff]
    %v3763 = vld [vmem:[%s0 + $0x260] sm:$0xff]
    %v3764 = vld [vmem:[%s0 + $0x268] sm:$0xff]
    %v3765 = vld [vmem:[%s0 + $0x270] sm:$0xff]
    %v3766 = vld [vmem:[%s0 + $0x278] sm:$0xff]
    %v3767 = vld [vmem:[%s0 + $0x280] sm:$0xff]
    %v3768 = vld [vmem:[%s0 + $0x288] sm:$0xff]
    %v3769 = vld [vmem:[%s0 + $0x290] sm:$0xff]
    %v3770 = vld [vmem:[%s0 + $0x298] sm:$0xff]
    %v3771 = vld [vmem:[%s0 + $0x2a0] sm:$0xff]
    %v3772 = vld [vmem:[%s0 + $0x2a8] sm:$0xff]
    %v3773 = vld [vmem:[%s0 + $0x2b0] sm:$0xff]
    %v3774 = vld [vmem:[%s0 + $0x2b8] sm:$0xff]
    %v3775 = vld [vmem:[%s0 + $0x2c0] sm:$0xff]
    %v3776 = vld [vmem:[%s0 + $0x2c8] sm:$0xff]
    %v3777 = vld [vmem:[%s0 + $0x2d0] sm:$0xff]
    %v3778 = vld [vmem:[%s0 + $0x2d8] sm:$0xff]
    %v3779 = vld [vmem:[%s0 + $0x2e0] sm:$0xff]
    %v3780 = vld [vmem:[%s0 + $0x2e8] sm:$0xff]
    %v3781 = vld [vmem:[%s0 + $0x2f0] sm:$0xff]
    %v3782 = vld [vmem:[%s0 + $0x2f8] sm:$0xff]
    %v3784 = vsel %vm67, %v3735, 0
    %v3787 = vsel %vm67, %v3736, 0
    %v3790 = vsel %vm67, %v3737, 0
    %v3793 = vsel %vm67, %v3738, 0
    %v3796 = vsel %vm67, %v3739, 0
    %v3799 = vsel %vm67, %v3740, 0
    %v3802 = vsel %vm67, %v3741, 0
    %v3805 = vsel %vm67, %v3742, 0
    %v3808 = vsel %vm67, %v3743, 0
    %v3811 = vsel %vm67, %v3744, 0
    %v3814 = vsel %vm67, %v3745, 0
    %v3817 = vsel %vm67, %v3746, 0
    %v3820 = vsel %vm67, %v3747, 0
    %v3823 = vsel %vm67, %v3748, 0
    %v3826 = vsel %vm67, %v3749, 0
    %v3829 = vsel %vm67, %v3750, 0
    %v3832 = vsel %vm67, %v3751, 0
    %v3835 = vsel %vm67, %v3752, 0
    %v3838 = vsel %vm67, %v3753, 0
    %v3841 = vsel %vm67, %v3754, 0
    %v3844 = vsel %vm67, %v3755, 0
    %v3847 = vsel %vm67, %v3756, 0
    %v3850 = vsel %vm67, %v3757, 0
    %v3853 = vsel %vm67, %v3758, 0
    %v3856 = vsel %vm67, %v3759, 0
    %v3859 = vsel %vm67, %v3760, 0
    %v3862 = vsel %vm67, %v3761, 0
    %v3865 = vsel %vm67, %v3762, 0
    %v3868 = vsel %vm67, %v3763, 0
    %v3871 = vsel %vm67, %v3764, 0
    %v3874 = vsel %vm67, %v3765, 0
    %v3877 = vsel %vm67, %v3766, 0
    %v3880 = vsel %vm67, %v3767, 0
    %v3883 = vsel %vm67, %v3768, 0
    %v3886 = vsel %vm67, %v3769, 0
    %v3889 = vsel %vm67, %v3770, 0
    %v3892 = vsel %vm67, %v3771, 0
    %v3895 = vsel %vm67, %v3772, 0
    %v3898 = vsel %vm67, %v3773, 0
    %v3901 = vsel %vm67, %v3774, 0
    %v3904 = vsel %vm67, %v3775, 0
    %v3907 = vsel %vm67, %v3776, 0
    %v3910 = vsel %vm67, %v3777, 0
    %v3913 = vsel %vm67, %v3778, 0
    %v3916 = vsel %vm67, %v3779, 0
    %v3919 = vsel %vm67, %v3780, 0
    %v3922 = vsel %vm67, %v3781, 0
    %v3925 = vsel %vm67, %v3782, 0
    %3927 = vmatprep.subr.mxu0 0.0
    %3928 = vmatpush1.msra.mxu0 %v15
    %3929 = vmatprep.subr.mxu0 0.0
    %3930 = vmatpush1.msra.mxu0 %v16
    %3931 = vmatprep.subr.mxu0 0.0
    %3932 = vmatpush1.msra.mxu0 %v17
    %3933 = vmatprep.subr.mxu0 0.0
    %3934 = vmatpush1.msra.mxu0 %v18
    %3935 = vmatprep.subr.mxu0 0.0
    %3936 = vmatpush1.msra.mxu0 0.0
    %3937 = vmatprep.subr.mxu0 0.0
    %3938 = vmatpush1.msra.mxu0 0.0
    %3939 = vmatprep.subr.mxu0 0.0
    %3940 = vmatpush1.msra.mxu0 0.0
    %3941 = vmatprep.subr.mxu0 0.0
    %3942 = vmatpush1.msra.mxu0 0.0
    %3943 = vmatprep.subr.mxu0 0.0
    %3944 = vmatpush1.msra.mxu0 0.0
    %3945 = vmatprep.subr.mxu0 0.0
    %3946 = vmatpush1.msra.mxu0 0.0
    %3947 = vmatprep.subr.mxu0 0.0
    %3948 = vmatpush1.msra.mxu0 0.0
    %3949 = vmatprep.subr.mxu0 0.0
    %3950 = vmatpush1.msra.mxu0 0.0
    %3951 = vmatprep.subr.mxu0 0.0
    %3952 = vmatpush1.msra.mxu0 0.0
    %3953 = vmatprep.subr.mxu0 0.0
    %3954 = vmatpush1.msra.mxu0 0.0
    %3955 = vmatprep.subr.mxu0 0.0
    %3956 = vmatpush1.msra.mxu0 0.0
    %3957 = vmatprep.subr.mxu0 0.0
    %3958 = vmatpush1.msra.mxu0 0.0
    %3959 = vmatprep.subr.mxu0 0.0
    %3960 = vmatpush1.msra.mxu0 0.0
    %3961 = vmatprep.subr.mxu0 0.0
    %3962 = vmatpush1.msra.mxu0 0.0
    %3963 = vmatprep.subr.mxu0 0.0
    %3964 = vmatpush1.msra.mxu0 0.0
    %3965 = vmatprep.subr.mxu0 0.0
    %3966 = vmatpush1.msra.mxu0 0.0
    %3967 = vmatprep.subr.mxu0 0.0
    %3968 = vmatpush1.msra.mxu0 0.0
    %3969 = vmatprep.subr.mxu0 0.0
    %3970 = vmatpush1.msra.mxu0 0.0
    %3971 = vmatprep.subr.mxu0 0.0
    %3972 = vmatpush1.msra.mxu0 0.0
    %3973 = vmatprep.subr.mxu0 0.0
    %3974 = vmatpush1.msra.mxu0 0.0
    %3975 = vmatprep.subr.mxu0 0.0
    %3976 = vmatpush1.msra.mxu0 0.0
    %3977 = vmatprep.subr.mxu0 0.0
    %3978 = vmatpush1.msra.mxu0 0.0
    %3979 = vmatprep.subr.mxu0 0.0
    %3980 = vmatpush1.msra.mxu0 0.0
    %3981 = vmatprep.subr.mxu0 0.0
    %3982 = vmatpush1.msra.mxu0 0.0
    %3983 = vmatprep.subr.mxu0 0.0
    %3984 = vmatpush1.msra.mxu0 0.0
    %3985 = vmatprep.subr.mxu0 0.0
    %3986 = vmatpush1.msra.mxu0 0.0
    %3987 = vmatprep.subr.mxu0 0.0
    %3988 = vmatpush1.msra.mxu0 0.0
    %3989 = vmatprep.subr.mxu0 0.0
    %3990 = vmatpush1.msra.mxu0 0.0
    %3991 = vmatprep.mubr.f32.mxu0 0.0
    %3992 = vmatmul.mubr.f32.gmra.mrb[0].mxu0 %v3784
    %v3993 = vpop.f32.mrb[0].mxu0
    %v3994 = vadd.f32 0.0, %v3993
    %v3995 = vpop.f32.mrb[0].mxu0
    %3996 = vmatprep.mubr.f32.mxu0 0.0
    %3997 = vmatmul.mubr.f32.gmra.mrb[0].mxu0 %v3787
    %v3998 = vpop.f32.mrb[0].mxu0
    %v3999 = vadd.f32 0.0, %v3998
    %v4000 = vpop.f32.mrb[0].mxu0
    %4001 = vmatprep.mubr.f32.mxu0 0.0
    %4002 = vmatmul.mubr.f32.gmra.mrb[0].mxu0 %v3790
    %v4003 = vpop.f32.mrb[0].mxu0
    %v4004 = vadd.f32 0.0, %v4003
    %v4005 = vpop.f32.mrb[0].mxu0
    %4006 = vmatprep.mubr.f32.mxu0 0.0
    %4007 = vmatmul.mubr.f32.gmra.mrb[0].mxu0 %v3793
    %v4008 = vpop.f32.mrb[0].mxu0
    %v4009 = vadd.f32 0.0, %v4008
    %v4010 = vpop.f32.mrb[0].mxu0
    %4011 = vmatprep.mubr.f32.mxu0 0.0
    %4012 = vmatmul.mubr.f32.gmra.mrb[0].mxu0 %v3796
    %v4013 = vpop.f32.mrb[0].mxu0
    %v4014 = vadd.f32 0.0, %v4013
    %v4015 = vpop.f32.mrb[0].mxu0
    %4016 = vmatprep.mubr.f32.mxu0 0.0
    %4017 = vmatmul.mubr.f32.gmra.mrb[0].mxu0 %v3799
    %v4018 = vpop.f32.mrb[0].mxu0
    %v4019 = vadd.f32 0.0, %v4018
    %v4020 = vpop.f32.mrb[0].mxu0
    %4021 = vmatprep.mubr.f32.mxu0 0.0
    %4022 = vmatmul.mubr.f32.gmra.mrb[0].mxu0 %v3802
    %v4023 = vpop.f32.mrb[0].mxu0
    %v4024 = vadd.f32 0.0, %v4023
    %v4025 = vpop.f32.mrb[0].mxu0
    %4026 = vmatprep.mubr.f32.mxu0 0.0
    %4027 = vmatmul.mubr.f32.gmra.mrb[0].mxu0 %v3805
    %v4028 = vpop.f32.mrb[0].mxu0
    %v4029 = vadd.f32 0.0, %v4028
    %v4030 = vpop.f32.mrb[0].mxu0
    %4031 = vmatprep.mubr.f32.mxu0 0.0
    %4032 = vmatmul.mubr.f32.gmra.mrb[0].mxu0 %v3808
    %v4033 = vpop.f32.mrb[0].mxu0
    %v4034 = vadd.f32 0.0, %v4033
    %v4035 = vpop.f32.mrb[0].mxu0
    %4036 = vmatprep.mubr.f32.mxu0 0.0
    %4037 = vmatmul.mubr.f32.gmra.mrb[0].mxu0 %v3811
    %v4038 = vpop.f32.mrb[0].mxu0
    %v4039 = vadd.f32 0.0, %v4038
    %v4040 = vpop.f32.mrb[0].mxu0
    %4041 = vmatprep.mubr.f32.mxu0 0.0
    %4042 = vmatmul.mubr.f32.gmra.mrb[0].mxu0 %v3814
    %v4043 = vpop.f32.mrb[0].mxu0
    %v4044 = vadd.f32 0.0, %v4043
    %v4045 = vpop.f32.mrb[0].mxu0
    %4046 = vmatprep.mubr.f32.mxu0 0.0
    %4047 = vmatmul.mubr.f32.gmra.mrb[0].mxu0 %v3817
    %v4048 = vpop.f32.mrb[0].mxu0
    %v4049 = vadd.f32 0.0, %v4048
    %v4050 = vpop.f32.mrb[0].mxu0
    %4051 = vmatprep.mubr.f32.mxu0 0.0
    %4052 = vmatmul.mubr.f32.gmra.mrb[0].mxu0 %v3820
    %v4053 = vpop.f32.mrb[0].mxu0
    %v4054 = vadd.f32 0.0, %v4053
    %v4055 = vpop.f32.mrb[0].mxu0
    %4056 = vmatprep.mubr.f32.mxu0 0.0
    %4057 = vmatmul.mubr.f32.gmra.mrb[0].mxu0 %v3823
    %v4058 = vpop.f32.mrb[0].mxu0
    %v4059 = vadd.f32 0.0, %v4058
    %v4060 = vpop.f32.mrb[0].mxu0
    %4061 = vmatprep.mubr.f32.mxu0 0.0
    %4062 = vmatmul.mubr.f32.gmra.mrb[0].mxu0 %v3826
    %v4063 = vpop.f32.mrb[0].mxu0
    %v4064 = vadd.f32 0.0, %v4063
    %v4065 = vpop.f32.mrb[0].mxu0
    %4066 = vmatprep.mubr.f32.mxu0 0.0
    %4067 = vmatmul.mubr.f32.gmra.mrb[0].mxu0 %v3829
    %v4068 = vpop.f32.mrb[0].mxu0
    %v4069 = vadd.f32 0.0, %v4068
    %v4070 = vpop.f32.mrb[0].mxu0
    %4071 = vmatprep.mubr.f32.mxu0 0.0
    %4072 = vmatmul.mubr.f32.gmra.mrb[0].mxu0 %v3832
    %v4073 = vpop.f32.mrb[0].mxu0
    %v4074 = vadd.f32 0.0, %v4073
    %v4075 = vpop.f32.mrb[0].mxu0
    %4076 = vmatprep.mubr.f32.mxu0 0.0
    %4077 = vmatmul.mubr.f32.gmra.mrb[0].mxu0 %v3835
    %v4078 = vpop.f32.mrb[0].mxu0
    %v4079 = vadd.f32 0.0, %v4078
    %v4080 = vpop.f32.mrb[0].mxu0
    %4081 = vmatprep.mubr.f32.mxu0 0.0
    %4082 = vmatmul.mubr.f32.gmra.mrb[0].mxu0 %v3838
    %v4083 = vpop.f32.mrb[0].mxu0
    %v4084 = vadd.f32 0.0, %v4083
    %v4085 = vpop.f32.mrb[0].mxu0
    %4086 = vmatprep.mubr.f32.mxu0 0.0
    %4087 = vmatmul.mubr.f32.gmra.mrb[0].mxu0 %v3841
    %v4088 = vpop.f32.mrb[0].mxu0
    %v4089 = vadd.f32 0.0, %v4088
    %v4090 = vpop.f32.mrb[0].mxu0
    %4091 = vmatprep.mubr.f32.mxu0 0.0
    %4092 = vmatmul.mubr.f32.gmra.mrb[0].mxu0 %v3844
    %v4093 = vpop.f32.mrb[0].mxu0
    %v4094 = vadd.f32 0.0, %v4093
    %v4095 = vpop.f32.mrb[0].mxu0
    %4096 = vmatprep.mubr.f32.mxu0 0.0
    %4097 = vmatmul.mubr.f32.gmra.mrb[0].mxu0 %v3847
    %v4098 = vpop.f32.mrb[0].mxu0
    %v4099 = vadd.f32 0.0, %v4098
    %v4100 = vpop.f32.mrb[0].mxu0
    %4101 = vmatprep.mubr.f32.mxu0 0.0
    %4102 = vmatmul.mubr.f32.gmra.mrb[0].mxu0 %v3850
    %v4103 = vpop.f32.mrb[0].mxu0
    %v4104 = vadd.f32 0.0, %v4103
    %v4105 = vpop.f32.mrb[0].mxu0
    %4106 = vmatprep.mubr.f32.mxu0 0.0
    %4107 = vmatmul.mubr.f32.gmra.mrb[0].mxu0 %v3853
    %v4108 = vpop.f32.mrb[0].mxu0
    %v4109 = vadd.f32 0.0, %v4108
    %v4110 = vpop.f32.mrb[0].mxu0
    %4111 = vmatprep.mubr.f32.mxu0 0.0
    %4112 = vmatmul.mubr.f32.gmra.mrb[0].mxu0 %v3856
    %v4113 = vpop.f32.mrb[0].mxu0
    %v4114 = vadd.f32 0.0, %v4113
    %v4115 = vpop.f32.mrb[0].mxu0
    %4116 = vmatprep.mubr.f32.mxu0 0.0
    %4117 = vmatmul.mubr.f32.gmra.mrb[0].mxu0 %v3859
    %v4118 = vpop.f32.mrb[0].mxu0
    %v4119 = vadd.f32 0.0, %v4118
    %v4120 = vpop.f32.mrb[0].mxu0
    %4121 = vmatprep.mubr.f32.mxu0 0.0
    %4122 = vmatmul.mubr.f32.gmra.mrb[0].mxu0 %v3862
    %v4123 = vpop.f32.mrb[0].mxu0
    %v4124 = vadd.f32 0.0, %v4123
    %v4125 = vpop.f32.mrb[0].mxu0
    %4126 = vmatprep.mubr.f32.mxu0 0.0
    %4127 = vmatmul.mubr.f32.gmra.mrb[0].mxu0 %v3865
    %v4128 = vpop.f32.mrb[0].mxu0
    %v4129 = vadd.f32 0.0, %v4128
    %v4130 = vpop.f32.mrb[0].mxu0
    %4131 = vmatprep.mubr.f32.mxu0 0.0
    %4132 = vmatmul.mubr.f32.gmra.mrb[0].mxu0 %v3868
    %v4133 = vpop.f32.mrb[0].mxu0
    %v4134 = vadd.f32 0.0, %v4133
    %v4135 = vpop.f32.mrb[0].mxu0
    %4136 = vmatprep.mubr.f32.mxu0 0.0
    %4137 = vmatmul.mubr.f32.gmra.mrb[0].mxu0 %v3871
    %v4138 = vpop.f32.mrb[0].mxu0
    %v4139 = vadd.f32 0.0, %v4138
    %v4140 = vpop.f32.mrb[0].mxu0
    %4141 = vmatprep.mubr.f32.mxu0 0.0
    %4142 = vmatmul.mubr.f32.gmra.mrb[0].mxu0 %v3874
    %v4143 = vpop.f32.mrb[0].mxu0
    %v4144 = vadd.f32 0.0, %v4143
    %v4145 = vpop.f32.mrb[0].mxu0
    %4146 = vmatprep.mubr.f32.mxu0 0.0
    %4147 = vmatmul.mubr.f32.gmra.mrb[0].mxu0 %v3877
    %v4148 = vpop.f32.mrb[0].mxu0
    %v4149 = vadd.f32 0.0, %v4148
    %v4150 = vpop.f32.mrb[0].mxu0
    %4151 = vmatprep.mubr.f32.mxu0 0.0
    %4152 = vmatmul.mubr.f32.gmra.mrb[0].mxu0 %v3880
    %v4153 = vpop.f32.mrb[0].mxu0
    %v4154 = vadd.f32 0.0, %v4153
    %v4155 = vpop.f32.mrb[0].mxu0
    %4156 = vmatprep.mubr.f32.mxu0 0.0
    %4157 = vmatmul.mubr.f32.gmra.mrb[0].mxu0 %v3883
    %v4158 = vpop.f32.mrb[0].mxu0
    %v4159 = vadd.f32 0.0, %v4158
    %v4160 = vpop.f32.mrb[0].mxu0
    %4161 = vmatprep.mubr.f32.mxu0 0.0
    %4162 = vmatmul.mubr.f32.gmra.mrb[0].mxu0 %v3886
    %v4163 = vpop.f32.mrb[0].mxu0
    %v4164 = vadd.f32 0.0, %v4163
    %v4165 = vpop.f32.mrb[0].mxu0
    %4166 = vmatprep.mubr.f32.mxu0 0.0
    %4167 = vmatmul.mubr.f32.gmra.mrb[0].mxu0 %v3889
    %v4168 = vpop.f32.mrb[0].mxu0
    %v4169 = vadd.f32 0.0, %v4168
    %v4170 = vpop.f32.mrb[0].mxu0
    %4171 = vmatprep.mubr.f32.mxu0 0.0
    %4172 = vmatmul.mubr.f32.gmra.mrb[0].mxu0 %v3892
    %v4173 = vpop.f32.mrb[0].mxu0
    %v4174 = vadd.f32 0.0, %v4173
    %v4175 = vpop.f32.mrb[0].mxu0
    %4176 = vmatprep.mubr.f32.mxu0 0.0
    %4177 = vmatmul.mubr.f32.gmra.mrb[0].mxu0 %v3895
    %v4178 = vpop.f32.mrb[0].mxu0
    %v4179 = vadd.f32 0.0, %v4178
    %v4180 = vpop.f32.mrb[0].mxu0
    %4181 = vmatprep.mubr.f32.mxu0 0.0
    %4182 = vmatmul.mubr.f32.gmra.mrb[0].mxu0 %v3898
    %v4183 = vpop.f32.mrb[0].mxu0
    %v4184 = vadd.f32 0.0, %v4183
    %v4185 = vpop.f32.mrb[0].mxu0
    %4186 = vmatprep.mubr.f32.mxu0 0.0
    %4187 = vmatmul.mubr.f32.gmra.mrb[0].mxu0 %v3901
    %v4188 = vpop.f32.mrb[0].mxu0
    %v4189 = vadd.f32 0.0, %v4188
    %v4190 = vpop.f32.mrb[0].mxu0
    %4191 = vmatprep.mubr.f32.mxu0 0.0
    %4192 = vmatmul.mubr.f32.gmra.mrb[0].mxu0 %v3904
    %v4193 = vpop.f32.mrb[0].mxu0
    %v4194 = vadd.f32 0.0, %v4193
    %v4195 = vpop.f32.mrb[0].mxu0
    %4196 = vmatprep.mubr.f32.mxu0 0.0
    %4197 = vmatmul.mubr.f32.gmra.mrb[0].mxu0 %v3907
    %v4198 = vpop.f32.mrb[0].mxu0
    %v4199 = vadd.f32 0.0, %v4198
    %v4200 = vpop.f32.mrb[0].mxu0
    %4201 = vmatprep.mubr.f32.mxu0 0.0
    %4202 = vmatmul.mubr.f32.gmra.mrb[0].mxu0 %v3910
    %v4203 = vpop.f32.mrb[0].mxu0
    %v4204 = vadd.f32 0.0, %v4203
    %v4205 = vpop.f32.mrb[0].mxu0
    %4206 = vmatprep.mubr.f32.mxu0 0.0
    %4207 = vmatmul.mubr.f32.gmra.mrb[0].mxu0 %v3913
    %v4208 = vpop.f32.mrb[0].mxu0
    %v4209 = vadd.f32 0.0, %v4208
    %v4210 = vpop.f32.mrb[0].mxu0
    %4211 = vmatprep.mubr.f32.mxu0 0.0
    %4212 = vmatmul.mubr.f32.gmra.mrb[0].mxu0 %v3916
    %v4213 = vpop.f32.mrb[0].mxu0
    %v4214 = vadd.f32 0.0, %v4213
    %v4215 = vpop.f32.mrb[0].mxu0
    %4216 = vmatprep.mubr.f32.mxu0 0.0
    %4217 = vmatmul.mubr.f32.gmra.mrb[0].mxu0 %v3919
    %v4218 = vpop.f32.mrb[0].mxu0
    %v4219 = vadd.f32 0.0, %v4218
    %v4220 = vpop.f32.mrb[0].mxu0
    %4221 = vmatprep.mubr.f32.mxu0 0.0
    %4222 = vmatmul.mubr.f32.gmra.mrb[0].mxu0 %v3922
    %v4223 = vpop.f32.mrb[0].mxu0
    %v4224 = vadd.f32 0.0, %v4223
    %v4225 = vpop.f32.mrb[0].mxu0
    %4226 = vmatprep.mubr.f32.mxu0 0.0
    %4227 = vmatmul.mubr.f32.gmra.mrb[0].mxu0 %v3925
    %v4228 = vpop.f32.mrb[0].mxu0
    %v4229 = vadd.f32 0.0, %v4228
    %v4230 = vpop.f32.mrb[0].mxu0
    %4231 = vdwg.mxu0
    %v4232 = vmul.f32 %v3994, 0.17677669
    %v4233 = vmul.f32 %v3999, 0.17677669
    %v4234 = vmul.f32 %v4004, 0.17677669
    %v4235 = vmul.f32 %v4009, 0.17677669
    %v4236 = vmul.f32 %v4014, 0.17677669
    %v4237 = vmul.f32 %v4019, 0.17677669
    %v4238 = vmul.f32 %v4024, 0.17677669
    %v4239 = vmul.f32 %v4029, 0.17677669
    %v4240 = vmul.f32 %v4034, 0.17677669
    %v4241 = vmul.f32 %v4039, 0.17677669
    %v4242 = vmul.f32 %v4044, 0.17677669
    %v4243 = vmul.f32 %v4049, 0.17677669
    %v4244 = vmul.f32 %v4054, 0.17677669
    %v4245 = vmul.f32 %v4059, 0.17677669
    %v4246 = vmul.f32 %v4064, 0.17677669
    %v4247 = vmul.f32 %v4069, 0.17677669
    %v4249 = vsel %vm533, %v4232, 0
    %v4252 = vsel %vm533, %v4233, 0
    %v4255 = vsel %vm533, %v4234, 0
    %v4258 = vsel %vm533, %v4235, 0
    %v4261 = vsel %vm533, %v4236, 0
    %v4264 = vsel %vm533, %v4237, 0
    %v4267 = vsel %vm533, %v4238, 0
    %v4270 = vsel %vm533, %v4239, 0
    %v4273 = vsel %vm533, %v4240, 0
    %v4276 = vsel %vm533, %v4241, 0
    %v4279 = vsel %vm533, %v4242, 0
    %v4282 = vsel %vm533, %v4243, 0
    %v4285 = vsel %vm533, %v4244, 0
    %v4288 = vsel %vm533, %v4245, 0
    %v4291 = vsel %vm533, %v4246, 0
    %v4294 = vsel %vm533, %v4247, 0
    %v4297 = vsel %vm533, %v4074, 0
    %v4300 = vsel %vm533, %v4079, 0
    %v4303 = vsel %vm533, %v4084, 0
    %v4306 = vsel %vm533, %v4089, 0
    %v4309 = vsel %vm533, %v4094, 0
    %v4312 = vsel %vm533, %v4099, 0
    %v4315 = vsel %vm533, %v4104, 0
    %v4318 = vsel %vm533, %v4109, 0
    %v4321 = vsel %vm533, %v4114, 0
    %v4324 = vsel %vm533, %v4119, 0
    %v4327 = vsel %vm533, %v4124, 0
    %v4330 = vsel %vm533, %v4129, 0
    %v4333 = vsel %vm533, %v4134, 0
    %v4336 = vsel %vm533, %v4139, 0
    %v4339 = vsel %vm533, %v4144, 0
    %v4342 = vsel %vm533, %v4149, 0
    %4344 = vmatprep.subr.mxu0 0.0
    %4345 = vmatpush1.xpose.msra.mxu0 %v4297
    %4346 = vmatprep.subr.mxu0 0.0
    %4347 = vmatpush1.xpose.msra.mxu0 %v4300
    %4348 = vmatprep.subr.mxu0 0.0
    %4349 = vmatpush1.xpose.msra.mxu0 %v4303
    %4350 = vmatprep.subr.mxu0 0.0
    %4351 = vmatpush1.xpose.msra.mxu0 %v4306
    %4352 = vmatprep.subr.mxu0 0.0
    %4353 = vmatpush1.xpose.msra.mxu0 %v4309
    %4354 = vmatprep.subr.mxu0 0.0
    %4355 = vmatpush1.xpose.msra.mxu0 %v4312
    %4356 = vmatprep.subr.mxu0 0.0
    %4357 = vmatpush1.xpose.msra.mxu0 %v4315
    %4358 = vmatprep.subr.mxu0 0.0
    %4359 = vmatpush1.xpose.msra.mxu0 %v4318
    %4360 = vmatprep.subr.mxu0 0.0
    %4361 = vmatpush1.xpose.msra.mxu0 %v4321
    %4362 = vmatprep.subr.mxu0 0.0
    %4363 = vmatpush1.xpose.msra.mxu0 %v4324
    %4364 = vmatprep.subr.mxu0 0.0
    %4365 = vmatpush1.xpose.msra.mxu0 %v4327
    %4366 = vmatprep.subr.mxu0 0.0
    %4367 = vmatpush1.xpose.msra.mxu0 %v4330
    %4368 = vmatprep.subr.mxu0 0.0
    %4369 = vmatpush1.xpose.msra.mxu0 %v4333
    %4370 = vmatprep.subr.mxu0 0.0
    %4371 = vmatpush1.xpose.msra.mxu0 %v4336
    %4372 = vmatprep.subr.mxu0 0.0
    %4373 = vmatpush1.xpose.msra.mxu0 %v4339
    %4374 = vmatprep.subr.mxu0 0.0
    %4375 = vmatpush1.xpose.msra.mxu0 %v4342
    %4376 = vmatprep.subr.mxu0 0.0
    %4377 = vmatpush1.xpose.msra.mxu0 0.0
    %4378 = vmatprep.subr.mxu0 0.0
    %4379 = vmatpush1.xpose.msra.mxu0 0.0
    %4380 = vmatprep.subr.mxu0 0.0
    %4381 = vmatpush1.xpose.msra.mxu0 0.0
    %4382 = vmatprep.subr.mxu0 0.0
    %4383 = vmatpush1.xpose.msra.mxu0 0.0
    %4384 = vmatprep.subr.mxu0 0.0
    %4385 = vmatpush1.xpose.msra.mxu0 0.0
    %4386 = vmatprep.subr.mxu0 0.0
    %4387 = vmatpush1.xpose.msra.mxu0 0.0
    %4388 = vmatprep.subr.mxu0 0.0
    %4389 = vmatpush1.xpose.msra.mxu0 0.0
    %4390 = vmatprep.subr.mxu0 0.0
    %4391 = vmatpush1.xpose.msra.mxu0 0.0
    %4392 = vmatprep.subr.mxu0 0.0
    %4393 = vmatpush1.xpose.msra.mxu0 0.0
    %4394 = vmatprep.subr.mxu0 0.0
    %4395 = vmatpush1.xpose.msra.mxu0 0.0
    %4396 = vmatprep.subr.mxu0 0.0
    %4397 = vmatpush1.xpose.msra.mxu0 0.0
    %4398 = vmatprep.subr.mxu0 0.0
    %4399 = vmatpush1.xpose.msra.mxu0 0.0
    %4400 = vmatprep.subr.mxu0 0.0
    %4401 = vmatpush1.xpose.msra.mxu0 0.0
    %4402 = vmatprep.subr.mxu0 0.0
    %4403 = vmatpush1.xpose.msra.mxu0 0.0
    %4404 = vmatprep.subr.mxu0 0.0
    %4405 = vmatpush1.xpose.msra.mxu0 0.0
    %4406 = vmatprep.subr.mxu0 0.0
    %4407 = vmatpush1.xpose.msra.mxu0 0.0
    %4408 = vmatprep.mubr.f32.mxu0 0.0
    %4409 = vmatmul.mubr.f32.gmra.mrb[0].mxu0 %v4249
    %v4410 = vpop.f32.mrb[0].mxu0
    %v4411 = vadd.f32 0.0, %v4410
    %v4412 = vpop.f32.mrb[0].mxu0
    %4413 = vmatprep.mubr.f32.mxu0 0.0
    %4414 = vmatmul.mubr.f32.gmra.mrb[0].mxu0 %v4252
    %v4415 = vpop.f32.mrb[0].mxu0
    %v4416 = vadd.f32 0.0, %v4415
    %v4417 = vpop.f32.mrb[0].mxu0
    %4418 = vmatprep.mubr.f32.mxu0 0.0
    %4419 = vmatmul.mubr.f32.gmra.mrb[0].mxu0 %v4255
    %v4420 = vpop.f32.mrb[0].mxu0
    %v4421 = vadd.f32 0.0, %v4420
    %v4422 = vpop.f32.mrb[0].mxu0
    %4423 = vmatprep.mubr.f32.mxu0 0.0
    %4424 = vmatmul.mubr.f32.gmra.mrb[0].mxu0 %v4258
    %v4425 = vpop.f32.mrb[0].mxu0
    %v4426 = vadd.f32 0.0, %v4425
    %v4427 = vpop.f32.mrb[0].mxu0
    %4428 = vmatprep.mubr.f32.mxu0 0.0
    %4429 = vmatmul.mubr.f32.gmra.mrb[0].mxu0 %v4261
    %v4430 = vpop.f32.mrb[0].mxu0
    %v4431 = vadd.f32 0.0, %v4430
    %v4432 = vpop.f32.mrb[0].mxu0
    %4433 = vmatprep.mubr.f32.mxu0 0.0
    %4434 = vmatmul.mubr.f32.gmra.mrb[0].mxu0 %v4264
    %v4435 = vpop.f32.mrb[0].mxu0
    %v4436 = vadd.f32 0.0, %v4435
    %v4437 = vpop.f32.mrb[0].mxu0
    %4438 = vmatprep.mubr.f32.mxu0 0.0
    %4439 = vmatmul.mubr.f32.gmra.mrb[0].mxu0 %v4267
    %v4440 = vpop.f32.mrb[0].mxu0
    %v4441 = vadd.f32 0.0, %v4440
    %v4442 = vpop.f32.mrb[0].mxu0
    %4443 = vmatprep.mubr.f32.mxu0 0.0
    %4444 = vmatmul.mubr.f32.gmra.mrb[0].mxu0 %v4270
    %v4445 = vpop.f32.mrb[0].mxu0
    %v4446 = vadd.f32 0.0, %v4445
    %v4447 = vpop.f32.mrb[0].mxu0
    %4448 = vmatprep.mubr.f32.mxu0 0.0
    %4449 = vmatmul.mubr.f32.gmra.mrb[0].mxu0 %v4273
    %v4450 = vpop.f32.mrb[0].mxu0
    %v4451 = vadd.f32 0.0, %v4450
    %v4452 = vpop.f32.mrb[0].mxu0
    %4453 = vmatprep.mubr.f32.mxu0 0.0
    %4454 = vmatmul.mubr.f32.gmra.mrb[0].mxu0 %v4276
    %v4455 = vpop.f32.mrb[0].mxu0
    %v4456 = vadd.f32 0.0, %v4455
    %v4457 = vpop.f32.mrb[0].mxu0
    %4458 = vmatprep.mubr.f32.mxu0 0.0
    %4459 = vmatmul.mubr.f32.gmra.mrb[0].mxu0 %v4279
    %v4460 = vpop.f32.mrb[0].mxu0
    %v4461 = vadd.f32 0.0, %v4460
    %v4462 = vpop.f32.mrb[0].mxu0
    %4463 = vmatprep.mubr.f32.mxu0 0.0
    %4464 = vmatmul.mubr.f32.gmra.mrb[0].mxu0 %v4282
    %v4465 = vpop.f32.mrb[0].mxu0
    %v4466 = vadd.f32 0.0, %v4465
    %v4467 = vpop.f32.mrb[0].mxu0
    %4468 = vmatprep.mubr.f32.mxu0 0.0
    %4469 = vmatmul.mubr.f32.gmra.mrb[0].mxu0 %v4285
    %v4470 = vpop.f32.mrb[0].mxu0
    %v4471 = vadd.f32 0.0, %v4470
    %v4472 = vpop.f32.mrb[0].mxu0
    %4473 = vmatprep.mubr.f32.mxu0 0.0
    %4474 = vmatmul.mubr.f32.gmra.mrb[0].mxu0 %v4288
    %v4475 = vpop.f32.mrb[0].mxu0
    %v4476 = vadd.f32 0.0, %v4475
    %v4477 = vpop.f32.mrb[0].mxu0
    %4478 = vmatprep.mubr.f32.mxu0 0.0
    %4479 = vmatmul.mubr.f32.gmra.mrb[0].mxu0 %v4291
    %v4480 = vpop.f32.mrb[0].mxu0
    %v4481 = vadd.f32 0.0, %v4480
    %v4482 = vpop.f32.mrb[0].mxu0
    %4483 = vmatprep.mubr.f32.mxu0 0.0
    %4484 = vmatmul.mubr.f32.gmra.mrb[0].mxu0 %v4294
    %v4485 = vpop.f32.mrb[0].mxu0
    %v4486 = vadd.f32 0.0, %v4485
    %v4487 = vpop.f32.mrb[0].mxu0
    %4488 = vdwg.mxu0
    %4489 = vmax.xlane.f32.xlu0 %v4411
    %v4490 = vpop.xlane.xlu0 %4489
    %4491 = vmax.xlane.f32.xlu0 %v4416
    %v4492 = vpop.xlane.xlu0 %4491
    %4493 = vmax.xlane.f32.xlu0 %v4421
    %v4494 = vpop.xlane.xlu0 %4493
    %4495 = vmax.xlane.f32.xlu0 %v4426
    %v4496 = vpop.xlane.xlu0 %4495
    %4497 = vmax.xlane.f32.xlu0 %v4431
    %v4498 = vpop.xlane.xlu0 %4497
    %4499 = vmax.xlane.f32.xlu0 %v4436
    %v4500 = vpop.xlane.xlu0 %4499
    %4501 = vmax.xlane.f32.xlu0 %v4441
    %v4502 = vpop.xlane.xlu0 %4501
    %4503 = vmax.xlane.f32.xlu0 %v4446
    %v4504 = vpop.xlane.xlu0 %4503
    %4505 = vmax.xlane.f32.xlu0 %v4451
    %v4506 = vpop.xlane.xlu0 %4505
    %4507 = vmax.xlane.f32.xlu0 %v4456
    %v4508 = vpop.xlane.xlu0 %4507
    %4509 = vmax.xlane.f32.xlu0 %v4461
    %v4510 = vpop.xlane.xlu0 %4509
    %4511 = vmax.xlane.f32.xlu0 %v4466
    %v4512 = vpop.xlane.xlu0 %4511
    %4513 = vmax.xlane.f32.xlu0 %v4471
    %v4514 = vpop.xlane.xlu0 %4513
    %4515 = vmax.xlane.f32.xlu0 %v4476
    %v4516 = vpop.xlane.xlu0 %4515
    %4517 = vmax.xlane.f32.xlu0 %v4481
    %v4518 = vpop.xlane.xlu0 %4517
    %4519 = vmax.xlane.f32.xlu0 %v4486
    %v4520 = vpop.xlane.xlu0 %4519
    %v4521 = vsub.f32 %v4411, %v4490
    %v4522 = vsub.f32 %v4416, %v4492
    %v4523 = vsub.f32 %v4421, %v4494
    %v4524 = vsub.f32 %v4426, %v4496
    %v4525 = vsub.f32 %v4431, %v4498
    %v4526 = vsub.f32 %v4436, %v4500
    %v4527 = vsub.f32 %v4441, %v4502
    %v4528 = vsub.f32 %v4446, %v4504
    %v4529 = vsub.f32 %v4451, %v4506
    %v4530 = vsub.f32 %v4456, %v4508
    %v4531 = vsub.f32 %v4461, %v4510
    %v4532 = vsub.f32 %v4466, %v4512
    %v4533 = vsub.f32 %v4471, %v4514
    %v4534 = vsub.f32 %v4476, %v4516
    %v4535 = vsub.f32 %v4481, %v4518
    %v4536 = vsub.f32 %v4486, %v4520
    %v4537 = vmul.f32 %v4521, 1.442695
    %v4538 = vpow.pop %v4537
    %v4539 = vmul.f32 %v4522, 1.442695
    %v4540 = vpow.pop %v4539
    %v4541 = vmul.f32 %v4523, 1.442695
    %v4542 = vpow.pop %v4541
    %v4543 = vmul.f32 %v4524, 1.442695
    %v4544 = vpow.pop %v4543
    %v4545 = vmul.f32 %v4525, 1.442695
    %v4546 = vpow.pop %v4545
    %v4547 = vmul.f32 %v4526, 1.442695
    %v4548 = vpow.pop %v4547
    %v4549 = vmul.f32 %v4527, 1.442695
    %v4550 = vpow.pop %v4549
    %v4551 = vmul.f32 %v4528, 1.442695
    %v4552 = vpow.pop %v4551
    %v4553 = vmul.f32 %v4529, 1.442695
    %v4554 = vpow.pop %v4553
    %v4555 = vmul.f32 %v4530, 1.442695
    %v4556 = vpow.pop %v4555
    %v4557 = vmul.f32 %v4531, 1.442695
    %v4558 = vpow.pop %v4557
    %v4559 = vmul.f32 %v4532, 1.442695
    %v4560 = vpow.pop %v4559
    %v4561 = vmul.f32 %v4533, 1.442695
    %v4562 = vpow.pop %v4561
    %v4563 = vmul.f32 %v4534, 1.442695
    %v4564 = vpow.pop %v4563
    %v4565 = vmul.f32 %v4535, 1.442695
    %v4566 = vpow.pop %v4565
    %v4567 = vmul.f32 %v4536, 1.442695
    %v4568 = vpow.pop %v4567
    %4569 = vadd.xlane.f32.xlu0 %v4538
    %v4570 = vpop.xlane.xlu0 %4569
    %4571 = vadd.xlane.f32.xlu0 %v4540
    %v4572 = vpop.xlane.xlu0 %4571
    %4573 = vadd.xlane.f32.xlu0 %v4542
    %v4574 = vpop.xlane.xlu0 %4573
    %4575 = vadd.xlane.f32.xlu0 %v4544
    %v4576 = vpop.xlane.xlu0 %4575
    %4577 = vadd.xlane.f32.xlu0 %v4546
    %v4578 = vpop.xlane.xlu0 %4577
    %4579 = vadd.xlane.f32.xlu0 %v4548
    %v4580 = vpop.xlane.xlu0 %4579
    %4581 = vadd.xlane.f32.xlu0 %v4550
    %v4582 = vpop.xlane.xlu0 %4581
    %4583 = vadd.xlane.f32.xlu0 %v4552
    %v4584 = vpop.xlane.xlu0 %4583
    %4585 = vadd.xlane.f32.xlu0 %v4554
    %v4586 = vpop.xlane.xlu0 %4585
    %4587 = vadd.xlane.f32.xlu0 %v4556
    %v4588 = vpop.xlane.xlu0 %4587
    %4589 = vadd.xlane.f32.xlu0 %v4558
    %v4590 = vpop.xlane.xlu0 %4589
    %4591 = vadd.xlane.f32.xlu0 %v4560
    %v4592 = vpop.xlane.xlu0 %4591
    %4593 = vadd.xlane.f32.xlu0 %v4562
    %v4594 = vpop.xlane.xlu0 %4593
    %4595 = vadd.xlane.f32.xlu0 %v4564
    %v4596 = vpop.xlane.xlu0 %4595
    %4597 = vadd.xlane.f32.xlu0 %v4566
    %v4598 = vpop.xlane.xlu0 %4597
    %4599 = vadd.xlane.f32.xlu0 %v4568
    %v4600 = vpop.xlane.xlu0 %4599
    %v4601 = vrcp.pop %v4570
    %v4602 = vrcp.pop %v4572
    %v4603 = vrcp.pop %v4574
    %v4604 = vrcp.pop %v4576
    %v4605 = vrcp.pop %v4578
    %v4606 = vrcp.pop %v4580
    %v4607 = vrcp.pop %v4582
    %v4608 = vrcp.pop %v4584
    %v4609 = vrcp.pop %v4586
    %v4610 = vrcp.pop %v4588
    %v4611 = vrcp.pop %v4590
    %v4612 = vrcp.pop %v4592
    %v4613 = vrcp.pop %v4594
    %v4614 = vrcp.pop %v4596
    %v4615 = vrcp.pop %v4598
    %v4616 = vrcp.pop %v4600
    %v4617 = vmul.f32 %v4538, %v4601
    %v4618 = vmul.f32 %v4540, %v4602
    %v4619 = vmul.f32 %v4542, %v4603
    %v4620 = vmul.f32 %v4544, %v4604
    %v4621 = vmul.f32 %v4546, %v4605
    %v4622 = vmul.f32 %v4548, %v4606
    %v4623 = vmul.f32 %v4550, %v4607
    %v4624 = vmul.f32 %v4552, %v4608
    %v4625 = vmul.f32 %v4554, %v4609
    %v4626 = vmul.f32 %v4556, %v4610
    %v4627 = vmul.f32 %v4558, %v4611
    %v4628 = vmul.f32 %v4560, %v4612
    %v4629 = vmul.f32 %v4562, %v4613
    %v4630 = vmul.f32 %v4564, %v4614
    %v4631 = vmul.f32 %v4566, %v4615
    %v4632 = vmul.f32 %v4568, %v4616
    %4633 = vmatprep.subr.mxu0 0.0
    %4634 = vmatpush1.msra.mxu0 %v4154
    %4635 = vmatprep.subr.mxu0 0.0
    %4636 = vmatpush1.msra.mxu0 %v4159
    %4637 = vmatprep.subr.mxu0 0.0
    %4638 = vmatpush1.msra.mxu0 %v4164
    %4639 = vmatprep.subr.mxu0 0.0
    %4640 = vmatpush1.msra.mxu0 %v4169
    %4641 = vmatprep.subr.mxu0 0.0
    %4642 = vmatpush1.msra.mxu0 %v4174
    %4643 = vmatprep.subr.mxu0 0.0
    %4644 = vmatpush1.msra.mxu0 %v4179
    %4645 = vmatprep.subr.mxu0 0.0
    %4646 = vmatpush1.msra.mxu0 %v4184
    %4647 = vmatprep.subr.mxu0 0.0
    %4648 = vmatpush1.msra.mxu0 %v4189
    %4649 = vmatprep.subr.mxu0 0.0
    %4650 = vmatpush1.msra.mxu0 %v4194
    %4651 = vmatprep.subr.mxu0 0.0
    %4652 = vmatpush1.msra.mxu0 %v4199
    %4653 = vmatprep.subr.mxu0 0.0
    %4654 = vmatpush1.msra.mxu0 %v4204
    %4655 = vmatprep.subr.mxu0 0.0
    %4656 = vmatpush1.msra.mxu0 %v4209
    %4657 = vmatprep.subr.mxu0 0.0
    %4658 = vmatpush1.msra.mxu0 %v4214
    %4659 = vmatprep.subr.mxu0 0.0
    %4660 = vmatpush1.msra.mxu0 %v4219
    %4661 = vmatprep.subr.mxu0 0.0
    %4662 = vmatpush1.msra.mxu0 %v4224
    %4663 = vmatprep.subr.mxu0 0.0
    %4664 = vmatpush1.msra.mxu0 %v4229
    %4665 = vmatprep.subr.mxu0 0.0
    %4666 = vmatpush1.msra.mxu0 0.0
    %4667 = vmatprep.subr.mxu0 0.0
    %4668 = vmatpush1.msra.mxu0 0.0
    %4669 = vmatprep.subr.mxu0 0.0
    %4670 = vmatpush1.msra.mxu0 0.0
    %4671 = vmatprep.subr.mxu0 0.0
    %4672 = vmatpush1.msra.mxu0 0.0
    %4673 = vmatprep.subr.mxu0 0.0
    %4674 = vmatpush1.msra.mxu0 0.0
    %4675 = vmatprep.subr.mxu0 0.0
    %4676 = vmatpush1.msra.mxu0 0.0
    %4677 = vmatprep.subr.mxu0 0.0
    %4678 = vmatpush1.msra.mxu0 0.0
    %4679 = vmatprep.subr.mxu0 0.0
    %4680 = vmatpush1.msra.mxu0 0.0
    %4681 = vmatprep.subr.mxu0 0.0
    %4682 = vmatpush1.msra.mxu0 0.0
    %4683 = vmatprep.subr.mxu0 0.0
    %4684 = vmatpush1.msra.mxu0 0.0
    %4685 = vmatprep.subr.mxu0 0.0
    %4686 = vmatpush1.msra.mxu0 0.0
    %4687 = vmatprep.subr.mxu0 0.0
    %4688 = vmatpush1.msra.mxu0 0.0
    %4689 = vmatprep.subr.mxu0 0.0
    %4690 = vmatpush1.msra.mxu0 0.0
    %4691 = vmatprep.subr.mxu0 0.0
    %4692 = vmatpush1.msra.mxu0 0.0
    %4693 = vmatprep.subr.mxu0 0.0
    %4694 = vmatpush1.msra.mxu0 0.0
    %4695 = vmatprep.subr.mxu0 0.0
    %4696 = vmatpush1.msra.mxu0 0.0
    %4697 = vmatprep.mubr.f32.mxu0 0.0
    %4698 = vmatmul.mubr.f32.gmra.mrb[0].mxu0 %v4617
    %v4699 = vpop.f32.mrb[0].mxu0
    %v4700 = vadd.f32 0.0, %v4699
    %v4701 = vpop.f32.mrb[0].mxu0
    %4702 = vmatprep.mubr.f32.mxu0 0.0
    %4703 = vmatmul.mubr.f32.gmra.mrb[0].mxu0 %v4618
    %v4704 = vpop.f32.mrb[0].mxu0
    %v4705 = vadd.f32 0.0, %v4704
    %v4706 = vpop.f32.mrb[0].mxu0
    %4707 = vmatprep.mubr.f32.mxu0 0.0
    %4708 = vmatmul.mubr.f32.gmra.mrb[0].mxu0 %v4619
    %v4709 = vpop.f32.mrb[0].mxu0
    %v4710 = vadd.f32 0.0, %v4709
    %v4711 = vpop.f32.mrb[0].mxu0
    %4712 = vmatprep.mubr.f32.mxu0 0.0
    %4713 = vmatmul.mubr.f32.gmra.mrb[0].mxu0 %v4620
    %v4714 = vpop.f32.mrb[0].mxu0
    %v4715 = vadd.f32 0.0, %v4714
    %v4716 = vpop.f32.mrb[0].mxu0
    %4717 = vmatprep.mubr.f32.mxu0 0.0
    %4718 = vmatmul.mubr.f32.gmra.mrb[0].mxu0 %v4621
    %v4719 = vpop.f32.mrb[0].mxu0
    %v4720 = vadd.f32 0.0, %v4719
    %v4721 = vpop.f32.mrb[0].mxu0
    %4722 = vmatprep.mubr.f32.mxu0 0.0
    %4723 = vmatmul.mubr.f32.gmra.mrb[0].mxu0 %v4622
    %v4724 = vpop.f32.mrb[0].mxu0
    %v4725 = vadd.f32 0.0, %v4724
    %v4726 = vpop.f32.mrb[0].mxu0
    %4727 = vmatprep.mubr.f32.mxu0 0.0
    %4728 = vmatmul.mubr.f32.gmra.mrb[0].mxu0 %v4623
    %v4729 = vpop.f32.mrb[0].mxu0
    %v4730 = vadd.f32 0.0, %v4729
    %v4731 = vpop.f32.mrb[0].mxu0
    %4732 = vmatprep.mubr.f32.mxu0 0.0
    %4733 = vmatmul.mubr.f32.gmra.mrb[0].mxu0 %v4624
    %v4734 = vpop.f32.mrb[0].mxu0
    %v4735 = vadd.f32 0.0, %v4734
    %v4736 = vpop.f32.mrb[0].mxu0
    %4737 = vmatprep.mubr.f32.mxu0 0.0
    %4738 = vmatmul.mubr.f32.gmra.mrb[0].mxu0 %v4625
    %v4739 = vpop.f32.mrb[0].mxu0
    %v4740 = vadd.f32 0.0, %v4739
    %v4741 = vpop.f32.mrb[0].mxu0
    %4742 = vmatprep.mubr.f32.mxu0 0.0
    %4743 = vmatmul.mubr.f32.gmra.mrb[0].mxu0 %v4626
    %v4744 = vpop.f32.mrb[0].mxu0
    %v4745 = vadd.f32 0.0, %v4744
    %v4746 = vpop.f32.mrb[0].mxu0
    %4747 = vmatprep.mubr.f32.mxu0 0.0
    %4748 = vmatmul.mubr.f32.gmra.mrb[0].mxu0 %v4627
    %v4749 = vpop.f32.mrb[0].mxu0
    %v4750 = vadd.f32 0.0, %v4749
    %v4751 = vpop.f32.mrb[0].mxu0
    %4752 = vmatprep.mubr.f32.mxu0 0.0
    %4753 = vmatmul.mubr.f32.gmra.mrb[0].mxu0 %v4628
    %v4754 = vpop.f32.mrb[0].mxu0
    %v4755 = vadd.f32 0.0, %v4754
    %v4756 = vpop.f32.mrb[0].mxu0
    %4757 = vmatprep.mubr.f32.mxu0 0.0
    %4758 = vmatmul.mubr.f32.gmra.mrb[0].mxu0 %v4629
    %v4759 = vpop.f32.mrb[0].mxu0
    %v4760 = vadd.f32 0.0, %v4759
    %v4761 = vpop.f32.mrb[0].mxu0
    %4762 = vmatprep.mubr.f32.mxu0 0.0
    %4763 = vmatmul.mubr.f32.gmra.mrb[0].mxu0 %v4630
    %v4764 = vpop.f32.mrb[0].mxu0
    %v4765 = vadd.f32 0.0, %v4764
    %v4766 = vpop.f32.mrb[0].mxu0
    %4767 = vmatprep.mubr.f32.mxu0 0.0
    %4768 = vmatmul.mubr.f32.gmra.mrb[0].mxu0 %v4631
    %v4769 = vpop.f32.mrb[0].mxu0
    %v4770 = vadd.f32 0.0, %v4769
    %v4771 = vpop.f32.mrb[0].mxu0
    %4772 = vmatprep.mubr.f32.mxu0 0.0
    %4773 = vmatmul.mubr.f32.gmra.mrb[0].mxu0 %v4632
    %v4774 = vpop.f32.mrb[0].mxu0
    %v4775 = vadd.f32 0.0, %v4774
    %v4776 = vpop.f32.mrb[0].mxu0
    %4777 = vdwg.mxu0
    %v4778 = vld [vmem:[%s2] sm:$0xff]
    %4779 = vrot.lane.b32.xlu0 %v4232, 120
    %v4780 = vpop.permute.xlu0 %4779
    %4781 = vrot.lane.b32.xlu0 %v4233, 120
    %v4782 = vpop.permute.xlu0 %4781
    %4783 = vrot.lane.b32.xlu0 %v4234, 120
    %v4784 = vpop.permute.xlu0 %4783
    %4785 = vrot.lane.b32.xlu0 %v4235, 120
    %v4786 = vpop.permute.xlu0 %4785
    %4787 = vrot.lane.b32.xlu0 %v4236, 120
    %v4788 = vpop.permute.xlu0 %4787
    %4789 = vrot.lane.b32.xlu0 %v4237, 120
    %v4790 = vpop.permute.xlu0 %4789
    %4791 = vrot.lane.b32.xlu0 %v4238, 120
    %v4792 = vpop.permute.xlu0 %4791
    %4793 = vrot.lane.b32.xlu0 %v4239, 120
    %v4794 = vpop.permute.xlu0 %4793
    %4795 = vrot.lane.b32.xlu0 %v4240, 120
    %v4796 = vpop.permute.xlu0 %4795
    %4797 = vrot.lane.b32.xlu0 %v4241, 120
    %v4798 = vpop.permute.xlu0 %4797
    %4799 = vrot.lane.b32.xlu0 %v4242, 120
    %v4800 = vpop.permute.xlu0 %4799
    %4801 = vrot.lane.b32.xlu0 %v4243, 120
    %v4802 = vpop.permute.xlu0 %4801
    %4803 = vrot.lane.b32.xlu0 %v4244, 120
    %v4804 = vpop.permute.xlu0 %4803
    %4805 = vrot.lane.b32.xlu0 %v4245, 120
    %v4806 = vpop.permute.xlu0 %4805
    %4807 = vrot.lane.b32.xlu0 %v4246, 120
    %v4808 = vpop.permute.xlu0 %4807
    %4809 = vrot.lane.b32.xlu0 %v4247, 120
    %v4810 = vpop.permute.xlu0 %4809
    %4811 = vrot.lane.b32.xlu0 %v4074, 120
    %v4812 = vpop.permute.xlu0 %4811
    %4813 = vrot.lane.b32.xlu0 %v4079, 120
    %v4814 = vpop.permute.xlu0 %4813
    %4815 = vrot.lane.b32.xlu0 %v4084, 120
    %v4816 = vpop.permute.xlu0 %4815
    %4817 = vrot.lane.b32.xlu0 %v4089, 120
    %v4818 = vpop.permute.xlu0 %4817
    %4819 = vrot.lane.b32.xlu0 %v4094, 120
    %v4820 = vpop.permute.xlu0 %4819
    %4821 = vrot.lane.b32.xlu0 %v4099, 120
    %v4822 = vpop.permute.xlu0 %4821
    %4823 = vrot.lane.b32.xlu0 %v4104, 120
    %v4824 = vpop.permute.xlu0 %4823
    %4825 = vrot.lane.b32.xlu0 %v4109, 120
    %v4826 = vpop.permute.xlu0 %4825
    %4827 = vrot.lane.b32.xlu0 %v4114, 120
    %v4828 = vpop.permute.xlu0 %4827
    %4829 = vrot.lane.b32.xlu0 %v4119, 120
    %v4830 = vpop.permute.xlu0 %4829
    %4831 = vrot.lane.b32.xlu0 %v4124, 120
    %v4832 = vpop.permute.xlu0 %4831
    %4833 = vrot.lane.b32.xlu0 %v4129, 120
    %v4834 = vpop.permute.xlu0 %4833
    %4835 = vrot.lane.b32.xlu0 %v4134, 120
    %v4836 = vpop.permute.xlu0 %4835
    %4837 = vrot.lane.b32.xlu0 %v4139, 120
    %v4838 = vpop.permute.xlu0 %4837
    %4839 = vrot.lane.b32.xlu0 %v4144, 120
    %v4840 = vpop.permute.xlu0 %4839
    %4841 = vrot.lane.b32.xlu0 %v4149, 120
    %v4842 = vpop.permute.xlu0 %4841
    %v4843 = vsel %vm533, %v4780, 0
    %v4845 = vsel %vm533, %v4782, 0
    %v4847 = vsel %vm533, %v4784, 0
    %v4849 = vsel %vm533, %v4786, 0
    %v4851 = vsel %vm533, %v4788, 0
    %v4853 = vsel %vm533, %v4790, 0
    %v4855 = vsel %vm533, %v4792, 0
    %v4857 = vsel %vm533, %v4794, 0
    %v4859 = vsel %vm533, %v4796, 0
    %v4861 = vsel %vm533, %v4798, 0
    %v4863 = vsel %vm533, %v4800, 0
    %v4865 = vsel %vm533, %v4802, 0
    %v4867 = vsel %vm533, %v4804, 0
    %v4869 = vsel %vm533, %v4806, 0
    %v4871 = vsel %vm533, %v4808, 0
    %v4873 = vsel %vm533, %v4810, 0
    %v4875 = vsel %vm533, %v4812, 0
    %v4877 = vsel %vm533, %v4814, 0
    %v4879 = vsel %vm533, %v4816, 0
    %v4881 = vsel %vm533, %v4818, 0
    %v4883 = vsel %vm533, %v4820, 0
    %v4885 = vsel %vm533, %v4822, 0
    %v4887 = vsel %vm533, %v4824, 0
    %v4889 = vsel %vm533, %v4826, 0
    %v4891 = vsel %vm533, %v4828, 0
    %v4893 = vsel %vm533, %v4830, 0
    %v4895 = vsel %vm533, %v4832, 0
    %v4897 = vsel %vm533, %v4834, 0
    %v4899 = vsel %vm533, %v4836, 0
    %v4901 = vsel %vm533, %v4838, 0
    %v4903 = vsel %vm533, %v4840, 0
    %v4905 = vsel %vm533, %v4842, 0
    %4907 = vmatprep.subr.mxu0 0.0
    %4908 = vmatpush1.xpose.msra.mxu0 %v4875
    %4909 = vmatprep.subr.mxu0 0.0
    %4910 = vmatpush1.xpose.msra.mxu0 %v4877
    %4911 = vmatprep.subr.mxu0 0.0
    %4912 = vmatpush1.xpose.msra.mxu0 %v4879
    %4913 = vmatprep.subr.mxu0 0.0
    %4914 = vmatpush1.xpose.msra.mxu0 %v4881
    %4915 = vmatprep.subr.mxu0 0.0
    %4916 = vmatpush1.xpose.msra.mxu0 %v4883
    %4917 = vmatprep.subr.mxu0 0.0
    %4918 = vmatpush1.xpose.msra.mxu0 %v4885
    %4919 = vmatprep.subr.mxu0 0.0
    %4920 = vmatpush1.xpose.msra.mxu0 %v4887
    %4921 = vmatprep.subr.mxu0 0.0
    %4922 = vmatpush1.xpose.msra.mxu0 %v4889
    %4923 = vmatprep.subr.mxu0 0.0
    %4924 = vmatpush1.xpose.msra.mxu0 %v4891
    %4925 = vmatprep.subr.mxu0 0.0
    %4926 = vmatpush1.xpose.msra.mxu0 %v4893
    %4927 = vmatprep.subr.mxu0 0.0
    %4928 = vmatpush1.xpose.msra.mxu0 %v4895
    %4929 = vmatprep.subr.mxu0 0.0
    %4930 = vmatpush1.xpose.msra.mxu0 %v4897
    %4931 = vmatprep.subr.mxu0 0.0
    %4932 = vmatpush1.xpose.msra.mxu0 %v4899
    %4933 = vmatprep.subr.mxu0 0.0
    %4934 = vmatpush1.xpose.msra.mxu0 %v4901
    %4935 = vmatprep.subr.mxu0 0.0
    %4936 = vmatpush1.xpose.msra.mxu0 %v4903
    %4937 = vmatprep.subr.mxu0 0.0
    %4938 = vmatpush1.xpose.msra.mxu0 %v4905
    %4939 = vmatprep.subr.mxu0 0.0
    %4940 = vmatpush1.xpose.msra.mxu0 0.0
    %4941 = vmatprep.subr.mxu0 0.0
    %4942 = vmatpush1.xpose.msra.mxu0 0.0
    %4943 = vmatprep.subr.mxu0 0.0
    %4944 = vmatpush1.xpose.msra.mxu0 0.0
    %4945 = vmatprep.subr.mxu0 0.0
    %4946 = vmatpush1.xpose.msra.mxu0 0.0
    %4947 = vmatprep.subr.mxu0 0.0
    %4948 = vmatpush1.xpose.msra.mxu0 0.0
    %4949 = vmatprep.subr.mxu0 0.0
    %4950 = vmatpush1.xpose.msra.mxu0 0.0
    %4951 = vmatprep.subr.mxu0 0.0
    %4952 = vmatpush1.xpose.msra.mxu0 0.0
    %4953 = vmatprep.subr.mxu0 0.0
    %4954 = vmatpush1.xpose.msra.mxu0 0.0
    %4955 = vmatprep.subr.mxu0 0.0
    %4956 = vmatpush1.xpose.msra.mxu0 0.0
    %4957 = vmatprep.subr.mxu0 0.0
    %4958 = vmatpush1.xpose.msra.mxu0 0.0
    %4959 = vmatprep.subr.mxu0 0.0
    %4960 = vmatpush1.xpose.msra.mxu0 0.0
    %4961 = vmatprep.subr.mxu0 0.0
    %4962 = vmatpush1.xpose.msra.mxu0 0.0
    %4963 = vmatprep.subr.mxu0 0.0
    %4964 = vmatpush1.xpose.msra.mxu0 0.0
    %4965 = vmatprep.subr.mxu0 0.0
    %4966 = vmatpush1.xpose.msra.mxu0 0.0
    %4967 = vmatprep.subr.mxu0 0.0
    %4968 = vmatpush1.xpose.msra.mxu0 0.0
    %4969 = vmatprep.subr.mxu0 0.0
    %4970 = vmatpush1.xpose.msra.mxu0 0.0
    %4971 = vmatprep.mubr.f32.mxu0 0.0
    %4972 = vmatmul.mubr.f32.gmra.mrb[0].mxu0 %v4843
    %v4973 = vpop.f32.mrb[0].mxu0
    %v4974 = vadd.f32 0.0, %v4973
    %v4975 = vpop.f32.mrb[0].mxu0
    %4976 = vmatprep.mubr.f32.mxu0 0.0
    %4977 = vmatmul.mubr.f32.gmra.mrb[0].mxu0 %v4845
    %v4978 = vpop.f32.mrb[0].mxu0
    %v4979 = vadd.f32 0.0, %v4978
    %v4980 = vpop.f32.mrb[0].mxu0
    %4981 = vmatprep.mubr.f32.mxu0 0.0
    %4982 = vmatmul.mubr.f32.gmra.mrb[0].mxu0 %v4847
    %v4983 = vpop.f32.mrb[0].mxu0
    %v4984 = vadd.f32 0.0, %v4983
    %v4985 = vpop.f32.mrb[0].mxu0
    %4986 = vmatprep.mubr.f32.mxu0 0.0
    %4987 = vmatmul.mubr.f32.gmra.mrb[0].mxu0 %v4849
    %v4988 = vpop.f32.mrb[0].mxu0
    %v4989 = vadd.f32 0.0, %v4988
    %v4990 = vpop.f32.mrb[0].mxu0
    %4991 = vmatprep.mubr.f32.mxu0 0.0
    %4992 = vmatmul.mubr.f32.gmra.mrb[0].mxu0 %v4851
    %v4993 = vpop.f32.mrb[0].mxu0
    %v4994 = vadd.f32 0.0, %v4993
    %v4995 = vpop.f32.mrb[0].mxu0
    %4996 = vmatprep.mubr.f32.mxu0 0.0
    %4997 = vmatmul.mubr.f32.gmra.mrb[0].mxu0 %v4853
    %v4998 = vpop.f32.mrb[0].mxu0
    %v4999 = vadd.f32 0.0, %v4998
    %v5000 = vpop.f32.mrb[0].mxu0
    %5001 = vmatprep.mubr.f32.mxu0 0.0
    %5002 = vmatmul.mubr.f32.gmra.mrb[0].mxu0 %v4855
    %v5003 = vpop.f32.mrb[0].mxu0
    %v5004 = vadd.f32 0.0, %v5003
    %v5005 = vpop.f32.mrb[0].mxu0
    %5006 = vmatprep.mubr.f32.mxu0 0.0
    %5007 = vmatmul.mubr.f32.gmra.mrb[0].mxu0 %v4857
    %v5008 = vpop.f32.mrb[0].mxu0
    %v5009 = vadd.f32 0.0, %v5008
    %v5010 = vpop.f32.mrb[0].mxu0
    %5011 = vmatprep.mubr.f32.mxu0 0.0
    %5012 = vmatmul.mubr.f32.gmra.mrb[0].mxu0 %v4859
    %v5013 = vpop.f32.mrb[0].mxu0
    %v5014 = vadd.f32 0.0, %v5013
    %v5015 = vpop.f32.mrb[0].mxu0
    %5016 = vmatprep.mubr.f32.mxu0 0.0
    %5017 = vmatmul.mubr.f32.gmra.mrb[0].mxu0 %v4861
    %v5018 = vpop.f32.mrb[0].mxu0
    %v5019 = vadd.f32 0.0, %v5018
    %v5020 = vpop.f32.mrb[0].mxu0
    %5021 = vmatprep.mubr.f32.mxu0 0.0
    %5022 = vmatmul.mubr.f32.gmra.mrb[0].mxu0 %v4863
    %v5023 = vpop.f32.mrb[0].mxu0
    %v5024 = vadd.f32 0.0, %v5023
    %v5025 = vpop.f32.mrb[0].mxu0
    %5026 = vmatprep.mubr.f32.mxu0 0.0
    %5027 = vmatmul.mubr.f32.gmra.mrb[0].mxu0 %v4865
    %v5028 = vpop.f32.mrb[0].mxu0
    %v5029 = vadd.f32 0.0, %v5028
    %v5030 = vpop.f32.mrb[0].mxu0
    %5031 = vmatprep.mubr.f32.mxu0 0.0
    %5032 = vmatmul.mubr.f32.gmra.mrb[0].mxu0 %v4867
    %v5033 = vpop.f32.mrb[0].mxu0
    %v5034 = vadd.f32 0.0, %v5033
    %v5035 = vpop.f32.mrb[0].mxu0
    %5036 = vmatprep.mubr.f32.mxu0 0.0
    %5037 = vmatmul.mubr.f32.gmra.mrb[0].mxu0 %v4869
    %v5038 = vpop.f32.mrb[0].mxu0
    %v5039 = vadd.f32 0.0, %v5038
    %v5040 = vpop.f32.mrb[0].mxu0
    %5041 = vmatprep.mubr.f32.mxu0 0.0
    %5042 = vmatmul.mubr.f32.gmra.mrb[0].mxu0 %v4871
    %v5043 = vpop.f32.mrb[0].mxu0
    %v5044 = vadd.f32 0.0, %v5043
    %v5045 = vpop.f32.mrb[0].mxu0
    %5046 = vmatprep.mubr.f32.mxu0 0.0
    %5047 = vmatmul.mubr.f32.gmra.mrb[0].mxu0 %v4873
    %v5048 = vpop.f32.mrb[0].mxu0
    %v5049 = vadd.f32 0.0, %v5048
    %v5050 = vpop.f32.mrb[0].mxu0
    %5051 = vdwg.mxu0
    %5052 = vmax.xlane.f32.xlu0 %v4974
    %v5053 = vpop.xlane.xlu0 %5052
    %5054 = vmax.xlane.f32.xlu0 %v4979
    %v5055 = vpop.xlane.xlu0 %5054
    %5056 = vmax.xlane.f32.xlu0 %v4984
    %v5057 = vpop.xlane.xlu0 %5056
    %5058 = vmax.xlane.f32.xlu0 %v4989
    %v5059 = vpop.xlane.xlu0 %5058
    %5060 = vmax.xlane.f32.xlu0 %v4994
    %v5061 = vpop.xlane.xlu0 %5060
    %5062 = vmax.xlane.f32.xlu0 %v4999
    %v5063 = vpop.xlane.xlu0 %5062
    %5064 = vmax.xlane.f32.xlu0 %v5004
    %v5065 = vpop.xlane.xlu0 %5064
    %5066 = vmax.xlane.f32.xlu0 %v5009
    %v5067 = vpop.xlane.xlu0 %5066
    %5068 = vmax.xlane.f32.xlu0 %v5014
    %v5069 = vpop.xlane.xlu0 %5068
    %5070 = vmax.xlane.f32.xlu0 %v5019
    %v5071 = vpop.xlane.xlu0 %5070
    %5072 = vmax.xlane.f32.xlu0 %v5024
    %v5073 = vpop.xlane.xlu0 %5072
    %5074 = vmax.xlane.f32.xlu0 %v5029
    %v5075 = vpop.xlane.xlu0 %5074
    %5076 = vmax.xlane.f32.xlu0 %v5034
    %v5077 = vpop.xlane.xlu0 %5076
    %5078 = vmax.xlane.f32.xlu0 %v5039
    %v5079 = vpop.xlane.xlu0 %5078
    %5080 = vmax.xlane.f32.xlu0 %v5044
    %v5081 = vpop.xlane.xlu0 %5080
    %5082 = vmax.xlane.f32.xlu0 %v5049
    %v5083 = vpop.xlane.xlu0 %5082
    %v5084 = vsub.f32 %v4974, %v5053
    %v5085 = vsub.f32 %v4979, %v5055
    %v5086 = vsub.f32 %v4984, %v5057
    %v5087 = vsub.f32 %v4989, %v5059
    %v5088 = vsub.f32 %v4994, %v5061
    %v5089 = vsub.f32 %v4999, %v5063
    %v5090 = vsub.f32 %v5004, %v5065
    %v5091 = vsub.f32 %v5009, %v5067
    %v5092 = vsub.f32 %v5014, %v5069
    %v5093 = vsub.f32 %v5019, %v5071
    %v5094 = vsub.f32 %v5024, %v5073
    %v5095 = vsub.f32 %v5029, %v5075
    %v5096 = vsub.f32 %v5034, %v5077
    %v5097 = vsub.f32 %v5039, %v5079
    %v5098 = vsub.f32 %v5044, %v5081
    %v5099 = vsub.f32 %v5049, %v5083
    %v5100 = vmul.f32 %v5084, 1.442695
    %v5101 = vpow.pop %v5100
    %v5102 = vmul.f32 %v5085, 1.442695
    %v5103 = vpow.pop %v5102
    %v5104 = vmul.f32 %v5086, 1.442695
    %v5105 = vpow.pop %v5104
    %v5106 = vmul.f32 %v5087, 1.442695
    %v5107 = vpow.pop %v5106
    %v5108 = vmul.f32 %v5088, 1.442695
    %v5109 = vpow.pop %v5108
    %v5110 = vmul.f32 %v5089, 1.442695
    %v5111 = vpow.pop %v5110
    %v5112 = vmul.f32 %v5090, 1.442695
    %v5113 = vpow.pop %v5112
    %v5114 = vmul.f32 %v5091, 1.442695
    %v5115 = vpow.pop %v5114
    %v5116 = vmul.f32 %v5092, 1.442695
    %v5117 = vpow.pop %v5116
    %v5118 = vmul.f32 %v5093, 1.442695
    %v5119 = vpow.pop %v5118
    %v5120 = vmul.f32 %v5094, 1.442695
    %v5121 = vpow.pop %v5120
    %v5122 = vmul.f32 %v5095, 1.442695
    %v5123 = vpow.pop %v5122
    %v5124 = vmul.f32 %v5096, 1.442695
    %v5125 = vpow.pop %v5124
    %v5126 = vmul.f32 %v5097, 1.442695
    %v5127 = vpow.pop %v5126
    %v5128 = vmul.f32 %v5098, 1.442695
    %v5129 = vpow.pop %v5128
    %v5130 = vmul.f32 %v5099, 1.442695
    %v5131 = vpow.pop %v5130
    %5132 = vadd.xlane.f32.xlu0 %v5101
    %v5133 = vpop.xlane.xlu0 %5132
    %5134 = vadd.xlane.f32.xlu0 %v5103
    %v5135 = vpop.xlane.xlu0 %5134
    %5136 = vadd.xlane.f32.xlu0 %v5105
    %v5137 = vpop.xlane.xlu0 %5136
    %5138 = vadd.xlane.f32.xlu0 %v5107
    %v5139 = vpop.xlane.xlu0 %5138
    %5140 = vadd.xlane.f32.xlu0 %v5109
    %v5141 = vpop.xlane.xlu0 %5140
    %5142 = vadd.xlane.f32.xlu0 %v5111
    %v5143 = vpop.xlane.xlu0 %5142
    %5144 = vadd.xlane.f32.xlu0 %v5113
    %v5145 = vpop.xlane.xlu0 %5144
    %5146 = vadd.xlane.f32.xlu0 %v5115
    %v5147 = vpop.xlane.xlu0 %5146
    %5148 = vadd.xlane.f32.xlu0 %v5117
    %v5149 = vpop.xlane.xlu0 %5148
    %5150 = vadd.xlane.f32.xlu0 %v5119
    %v5151 = vpop.xlane.xlu0 %5150
    %5152 = vadd.xlane.f32.xlu0 %v5121
    %v5153 = vpop.xlane.xlu0 %5152
    %5154 = vadd.xlane.f32.xlu0 %v5123
    %v5155 = vpop.xlane.xlu0 %5154
    %5156 = vadd.xlane.f32.xlu0 %v5125
    %v5157 = vpop.xlane.xlu0 %5156
    %5158 = vadd.xlane.f32.xlu0 %v5127
    %v5159 = vpop.xlane.xlu0 %5158
    %5160 = vadd.xlane.f32.xlu0 %v5129
    %v5161 = vpop.xlane.xlu0 %5160
    %5162 = vadd.xlane.f32.xlu0 %v5131
    %v5163 = vpop.xlane.xlu0 %5162
    %v5164 = vrcp.pop %v5133
    %v5165 = vrcp.pop %v5135
    %v5166 = vrcp.pop %v5137
    %v5167 = vrcp.pop %v5139
    %v5168 = vrcp.pop %v5141
    %v5169 = vrcp.pop %v5143
    %v5170 = vrcp.pop %v5145
    %v5171 = vrcp.pop %v5147
    %v5172 = vrcp.pop %v5149
    %v5173 = vrcp.pop %v5151
    %v5174 = vrcp.pop %v5153
    %v5175 = vrcp.pop %v5155
    %v5176 = vrcp.pop %v5157
    %v5177 = vrcp.pop %v5159
    %v5178 = vrcp.pop %v5161
    %v5179 = vrcp.pop %v5163
    %v5180 = vmul.f32 %v5101, %v5164
    %v5181 = vmul.f32 %v5103, %v5165
    %v5182 = vmul.f32 %v5105, %v5166
    %v5183 = vmul.f32 %v5107, %v5167
    %v5184 = vmul.f32 %v5109, %v5168
    %v5185 = vmul.f32 %v5111, %v5169
    %v5186 = vmul.f32 %v5113, %v5170
    %v5187 = vmul.f32 %v5115, %v5171
    %v5188 = vmul.f32 %v5117, %v5172
    %v5189 = vmul.f32 %v5119, %v5173
    %v5190 = vmul.f32 %v5121, %v5174
    %v5191 = vmul.f32 %v5123, %v5175
    %v5192 = vmul.f32 %v5125, %v5176
    %v5193 = vmul.f32 %v5127, %v5177
    %v5194 = vmul.f32 %v5129, %v5178
    %v5195 = vmul.f32 %v5131, %v5179
    %5212 = vrot.lane.b32.xlu0 %v4154, 120
    %v5213 = vpop.permute.xlu0 %5212
    %5214 = vrot.lane.b32.xlu0 %v4159, 120
    %v5215 = vpop.permute.xlu0 %5214
    %5216 = vrot.lane.b32.xlu0 %v4164, 120
    %v5217 = vpop.permute.xlu0 %5216
    %5218 = vrot.lane.b32.xlu0 %v4169, 120
    %v5219 = vpop.permute.xlu0 %5218
    %5220 = vrot.lane.b32.xlu0 %v4174, 120
    %v5221 = vpop.permute.xlu0 %5220
    %5222 = vrot.lane.b32.xlu0 %v4179, 120
    %v5223 = vpop.permute.xlu0 %5222
    %5224 = vrot.lane.b32.xlu0 %v4184, 120
    %v5225 = vpop.permute.xlu0 %5224
    %5226 = vrot.lane.b32.xlu0 %v4189, 120
    %v5227 = vpop.permute.xlu0 %5226
    %5228 = vrot.lane.b32.xlu0 %v4194, 120
    %v5229 = vpop.permute.xlu0 %5228
    %5230 = vrot.lane.b32.xlu0 %v4199, 120
    %v5231 = vpop.permute.xlu0 %5230
    %5232 = vrot.lane.b32.xlu0 %v4204, 120
    %v5233 = vpop.permute.xlu0 %5232
    %5234 = vrot.lane.b32.xlu0 %v4209, 120
    %v5235 = vpop.permute.xlu0 %5234
    %5236 = vrot.lane.b32.xlu0 %v4214, 120
    %v5237 = vpop.permute.xlu0 %5236
    %5238 = vrot.lane.b32.xlu0 %v4219, 120
    %v5239 = vpop.permute.xlu0 %5238
    %5240 = vrot.lane.b32.xlu0 %v4224, 120
    %v5241 = vpop.permute.xlu0 %5240
    %5242 = vrot.lane.b32.xlu0 %v4229, 120
    %v5243 = vpop.permute.xlu0 %5242
    %5260 = vmatprep.subr.mxu0 0.0
    %5261 = vmatpush1.msra.mxu0 %v5213
    %5262 = vmatprep.subr.mxu0 0.0
    %5263 = vmatpush1.msra.mxu0 %v5215
    %5264 = vmatprep.subr.mxu0 0.0
    %5265 = vmatpush1.msra.mxu0 %v5217
    %5266 = vmatprep.subr.mxu0 0.0
    %5267 = vmatpush1.msra.mxu0 %v5219
    %5268 = vmatprep.subr.mxu0 0.0
    %5269 = vmatpush1.msra.mxu0 %v5221
    %5270 = vmatprep.subr.mxu0 0.0
    %5271 = vmatpush1.msra.mxu0 %v5223
    %5272 = vmatprep.subr.mxu0 0.0
    %5273 = vmatpush1.msra.mxu0 %v5225
    %5274 = vmatprep.subr.mxu0 0.0
    %5275 = vmatpush1.msra.mxu0 %v5227
    %5276 = vmatprep.subr.mxu0 0.0
    %5277 = vmatpush1.msra.mxu0 %v5229
    %5278 = vmatprep.subr.mxu0 0.0
    %5279 = vmatpush1.msra.mxu0 %v5231
    %5280 = vmatprep.subr.mxu0 0.0
    %5281 = vmatpush1.msra.mxu0 %v5233
    %5282 = vmatprep.subr.mxu0 0.0
    %5283 = vmatpush1.msra.mxu0 %v5235
    %5284 = vmatprep.subr.mxu0 0.0
    %5285 = vmatpush1.msra.mxu0 %v5237
    %5286 = vmatprep.subr.mxu0 0.0
    %5287 = vmatpush1.msra.mxu0 %v5239
    %5288 = vmatprep.subr.mxu0 0.0
    %5289 = vmatpush1.msra.mxu0 %v5241
    %5290 = vmatprep.subr.mxu0 0.0
    %5291 = vmatpush1.msra.mxu0 %v5243
    %5292 = vmatprep.subr.mxu0 0.0
    %5293 = vmatpush1.msra.mxu0 0.0
    %5294 = vmatprep.subr.mxu0 0.0
    %5295 = vmatpush1.msra.mxu0 0.0
    %5296 = vmatprep.subr.mxu0 0.0
    %5297 = vmatpush1.msra.mxu0 0.0
    %5298 = vmatprep.subr.mxu0 0.0
    %5299 = vmatpush1.msra.mxu0 0.0
    %5300 = vmatprep.subr.mxu0 0.0
    %5301 = vmatpush1.msra.mxu0 0.0
    %5302 = vmatprep.subr.mxu0 0.0
    %5303 = vmatpush1.msra.mxu0 0.0
    %5304 = vmatprep.subr.mxu0 0.0
    %5305 = vmatpush1.msra.mxu0 0.0
    %5306 = vmatprep.subr.mxu0 0.0
    %5307 = vmatpush1.msra.mxu0 0.0
    %5308 = vmatprep.subr.mxu0 0.0
    %5309 = vmatpush1.msra.mxu0 0.0
    %5310 = vmatprep.subr.mxu0 0.0
    %5311 = vmatpush1.msra.mxu0 0.0
    %5312 = vmatprep.subr.mxu0 0.0
    %5313 = vmatpush1.msra.mxu0 0.0
    %5314 = vmatprep.subr.mxu0 0.0
    %5315 = vmatpush1.msra.mxu0 0.0
    %5316 = vmatprep.subr.mxu0 0.0
    %5317 = vmatpush1.msra.mxu0 0.0
    %5318 = vmatprep.subr.mxu0 0.0
    %5319 = vmatpush1.msra.mxu0 0.0
    %5320 = vmatprep.subr.mxu0 0.0
    %5321 = vmatpush1.msra.mxu0 0.0
    %5322 = vmatprep.subr.mxu0 0.0
    %5323 = vmatpush1.msra.mxu0 0.0
    %5324 = vmatprep.mubr.f32.mxu0 0.0
    %5325 = vmatmul.mubr.f32.gmra.mrb[0].mxu0 %v5180
    %v5326 = vpop.f32.mrb[0].mxu0
    %v5327 = vadd.f32 0.0, %v5326
    %v5328 = vpop.f32.mrb[0].mxu0
    %5329 = vmatprep.mubr.f32.mxu0 0.0
    %5330 = vmatmul.mubr.f32.gmra.mrb[0].mxu0 %v5181
    %v5331 = vpop.f32.mrb[0].mxu0
    %v5332 = vadd.f32 0.0, %v5331
    %v5333 = vpop.f32.mrb[0].mxu0
    %5334 = vmatprep.mubr.f32.mxu0 0.0
    %5335 = vmatmul.mubr.f32.gmra.mrb[0].mxu0 %v5182
    %v5336 = vpop.f32.mrb[0].mxu0
    %v5337 = vadd.f32 0.0, %v5336
    %v5338 = vpop.f32.mrb[0].mxu0
    %5339 = vmatprep.mubr.f32.mxu0 0.0
    %5340 = vmatmul.mubr.f32.gmra.mrb[0].mxu0 %v5183
    %v5341 = vpop.f32.mrb[0].mxu0
    %v5342 = vadd.f32 0.0, %v5341
    %v5343 = vpop.f32.mrb[0].mxu0
    %5344 = vmatprep.mubr.f32.mxu0 0.0
    %5345 = vmatmul.mubr.f32.gmra.mrb[0].mxu0 %v5184
    %v5346 = vpop.f32.mrb[0].mxu0
    %v5347 = vadd.f32 0.0, %v5346
    %v5348 = vpop.f32.mrb[0].mxu0
    %5349 = vmatprep.mubr.f32.mxu0 0.0
    %5350 = vmatmul.mubr.f32.gmra.mrb[0].mxu0 %v5185
    %v5351 = vpop.f32.mrb[0].mxu0
    %v5352 = vadd.f32 0.0, %v5351
    %v5353 = vpop.f32.mrb[0].mxu0
    %5354 = vmatprep.mubr.f32.mxu0 0.0
    %5355 = vmatmul.mubr.f32.gmra.mrb[0].mxu0 %v5186
    %v5356 = vpop.f32.mrb[0].mxu0
    %v5357 = vadd.f32 0.0, %v5356
    %v5358 = vpop.f32.mrb[0].mxu0
    %5359 = vmatprep.mubr.f32.mxu0 0.0
    %5360 = vmatmul.mubr.f32.gmra.mrb[0].mxu0 %v5187
    %v5361 = vpop.f32.mrb[0].mxu0
    %v5362 = vadd.f32 0.0, %v5361
    %v5363 = vpop.f32.mrb[0].mxu0
    %5364 = vmatprep.mubr.f32.mxu0 0.0
    %5365 = vmatmul.mubr.f32.gmra.mrb[0].mxu0 %v5188
    %v5366 = vpop.f32.mrb[0].mxu0
    %v5367 = vadd.f32 0.0, %v5366
    %v5368 = vpop.f32.mrb[0].mxu0
    %5369 = vmatprep.mubr.f32.mxu0 0.0
    %5370 = vmatmul.mubr.f32.gmra.mrb[0].mxu0 %v5189
    %v5371 = vpop.f32.mrb[0].mxu0
    %v5372 = vadd.f32 0.0, %v5371
    %v5373 = vpop.f32.mrb[0].mxu0
    %5374 = vmatprep.mubr.f32.mxu0 0.0
    %5375 = vmatmul.mubr.f32.gmra.mrb[0].mxu0 %v5190
    %v5376 = vpop.f32.mrb[0].mxu0
    %v5377 = vadd.f32 0.0, %v5376
    %v5378 = vpop.f32.mrb[0].mxu0
    %5379 = vmatprep.mubr.f32.mxu0 0.0
    %5380 = vmatmul.mubr.f32.gmra.mrb[0].mxu0 %v5191
    %v5381 = vpop.f32.mrb[0].mxu0
    %v5382 = vadd.f32 0.0, %v5381
    %v5383 = vpop.f32.mrb[0].mxu0
    %5384 = vmatprep.mubr.f32.mxu0 0.0
    %5385 = vmatmul.mubr.f32.gmra.mrb[0].mxu0 %v5192
    %v5386 = vpop.f32.mrb[0].mxu0
    %v5387 = vadd.f32 0.0, %v5386
    %v5388 = vpop.f32.mrb[0].mxu0
    %5389 = vmatprep.mubr.f32.mxu0 0.0
    %5390 = vmatmul.mubr.f32.gmra.mrb[0].mxu0 %v5193
    %v5391 = vpop.f32.mrb[0].mxu0
    %v5392 = vadd.f32 0.0, %v5391
    %v5393 = vpop.f32.mrb[0].mxu0
    %5394 = vmatprep.mubr.f32.mxu0 0.0
    %5395 = vmatmul.mubr.f32.gmra.mrb[0].mxu0 %v5194
    %v5396 = vpop.f32.mrb[0].mxu0
    %v5397 = vadd.f32 0.0, %v5396
    %v5398 = vpop.f32.mrb[0].mxu0
    %5399 = vmatprep.mubr.f32.mxu0 0.0
    %5400 = vmatmul.mubr.f32.gmra.mrb[0].mxu0 %v5195
    %v5401 = vpop.f32.mrb[0].mxu0
    %v5402 = vadd.f32 0.0, %v5401
    %v5403 = vpop.f32.mrb[0].mxu0
    %5404 = vdwg.mxu0
    %v5405 = vld [vmem:[%s2 + $0x8] sm:$0xff]
    %v5407 = vsel %vm533, %v5327, 0
    %v5410 = vsel %vm533, %v5332, 0
    %v5413 = vsel %vm533, %v5337, 0
    %v5416 = vsel %vm533, %v5342, 0
    %v5419 = vsel %vm533, %v5347, 0
    %v5422 = vsel %vm533, %v5352, 0
    %v5425 = vsel %vm533, %v5357, 0
    %v5428 = vsel %vm533, %v5362, 0
    %v5431 = vsel %vm533, %v5367, 0
    %v5434 = vsel %vm533, %v5372, 0
    %v5437 = vsel %vm533, %v5377, 0
    %v5440 = vsel %vm533, %v5382, 0
    %v5443 = vsel %vm533, %v5387, 0
    %v5446 = vsel %vm533, %v5392, 0
    %v5449 = vsel %vm533, %v5397, 0
    %v5452 = vsel %vm533, %v5402, 0
    %5454 = vmatprep.subr.mxu0 0.0
    %5455 = vmatpush1.msra.mxu0 %v5405
    %5456 = vmatprep.subr.mxu0 0.0
    %5457 = vmatpush1.msra.mxu0 0.0
    %5458 = vmatprep.subr.mxu0 0.0
    %5459 = vmatpush1.msra.mxu0 0.0
    %5460 = vmatprep.subr.mxu0 0.0
    %5461 = vmatpush1.msra.mxu0 0.0
    %5462 = vmatprep.subr.mxu0 0.0
    %5463 = vmatpush1.msra.mxu0 0.0
    %5464 = vmatprep.subr.mxu0 0.0
    %5465 = vmatpush1.msra.mxu0 0.0
    %5466 = vmatprep.subr.mxu0 0.0
    %5467 = vmatpush1.msra.mxu0 0.0
    %5468 = vmatprep.subr.mxu0 0.0
    %5469 = vmatpush1.msra.mxu0 0.0
    %5470 = vmatprep.subr.mxu0 0.0
    %5471 = vmatpush1.msra.mxu0 0.0
    %5472 = vmatprep.subr.mxu0 0.0
    %5473 = vmatpush1.msra.mxu0 0.0
    %5474 = vmatprep.subr.mxu0 0.0
    %5475 = vmatpush1.msra.mxu0 0.0
    %5476 = vmatprep.subr.mxu0 0.0
    %5477 = vmatpush1.msra.mxu0 0.0
    %5478 = vmatprep.subr.mxu0 0.0
    %5479 = vmatpush1.msra.mxu0 0.0
    %5480 = vmatprep.subr.mxu0 0.0
    %5481 = vmatpush1.msra.mxu0 0.0
    %5482 = vmatprep.subr.mxu0 0.0
    %5483 = vmatpush1.msra.mxu0 0.0
    %5484 = vmatprep.subr.mxu0 0.0
    %5485 = vmatpush1.msra.mxu0 0.0
    %5486 = vmatprep.subr.mxu0 0.0
    %5487 = vmatpush1.msra.mxu0 0.0
    %5488 = vmatprep.subr.mxu0 0.0
    %5489 = vmatpush1.msra.mxu0 0.0
    %5490 = vmatprep.subr.mxu0 0.0
    %5491 = vmatpush1.msra.mxu0 0.0
    %5492 = vmatprep.subr.mxu0 0.0
    %5493 = vmatpush1.msra.mxu0 0.0
    %5494 = vmatprep.subr.mxu0 0.0
    %5495 = vmatpush1.msra.mxu0 0.0
    %5496 = vmatprep.subr.mxu0 0.0
    %5497 = vmatpush1.msra.mxu0 0.0
    %5498 = vmatprep.subr.mxu0 0.0
    %5499 = vmatpush1.msra.mxu0 0.0
    %5500 = vmatprep.subr.mxu0 0.0
    %5501 = vmatpush1.msra.mxu0 0.0
    %5502 = vmatprep.subr.mxu0 0.0
    %5503 = vmatpush1.msra.mxu0 0.0
    %5504 = vmatprep.subr.mxu0 0.0
    %5505 = vmatpush1.msra.mxu0 0.0
    %5506 = vmatprep.subr.mxu0 0.0
    %5507 = vmatpush1.msra.mxu0 0.0
    %5508 = vmatprep.subr.mxu0 0.0
    %5509 = vmatpush1.msra.mxu0 0.0
    %5510 = vmatprep.subr.mxu0 0.0
    %5511 = vmatpush1.msra.mxu0 0.0
    %5512 = vmatprep.subr.mxu0 0.0
    %5513 = vmatpush1.msra.mxu0 0.0
    %5514 = vmatprep.subr.mxu0 0.0
    %5515 = vmatpush1.msra.mxu0 0.0
    %5516 = vmatprep.subr.mxu0 0.0
    %5517 = vmatpush1.msra.mxu0 0.0
    %5518 = vmatprep.mubr.f32.mxu0 0.0
    %5519 = vmatmul.mubr.f32.gmra.mrb[0].mxu0 %v5407
    %v5520 = vpop.f32.mrb[0].mxu0
    %v5521 = vadd.f32 0.0, %v5520
    %v5522 = vpop.f32.mrb[0].mxu0
    %5523 = vmatprep.mubr.f32.mxu0 0.0
    %5524 = vmatmul.mubr.f32.gmra.mrb[0].mxu0 %v5410
    %v5525 = vpop.f32.mrb[0].mxu0
    %v5526 = vadd.f32 0.0, %v5525
    %v5527 = vpop.f32.mrb[0].mxu0
    %5528 = vmatprep.mubr.f32.mxu0 0.0
    %5529 = vmatmul.mubr.f32.gmra.mrb[0].mxu0 %v5413
    %v5530 = vpop.f32.mrb[0].mxu0
    %v5531 = vadd.f32 0.0, %v5530
    %v5532 = vpop.f32.mrb[0].mxu0
    %5533 = vmatprep.mubr.f32.mxu0 0.0
    %5534 = vmatmul.mubr.f32.gmra.mrb[0].mxu0 %v5416
    %v5535 = vpop.f32.mrb[0].mxu0
    %v5536 = vadd.f32 0.0, %v5535
    %v5537 = vpop.f32.mrb[0].mxu0
    %5538 = vmatprep.mubr.f32.mxu0 0.0
    %5539 = vmatmul.mubr.f32.gmra.mrb[0].mxu0 %v5419
    %v5540 = vpop.f32.mrb[0].mxu0
    %v5541 = vadd.f32 0.0, %v5540
    %v5542 = vpop.f32.mrb[0].mxu0
    %5543 = vmatprep.mubr.f32.mxu0 0.0
    %5544 = vmatmul.mubr.f32.gmra.mrb[0].mxu0 %v5422
    %v5545 = vpop.f32.mrb[0].mxu0
    %v5546 = vadd.f32 0.0, %v5545
    %v5547 = vpop.f32.mrb[0].mxu0
    %5548 = vmatprep.mubr.f32.mxu0 0.0
    %5549 = vmatmul.mubr.f32.gmra.mrb[0].mxu0 %v5425
    %v5550 = vpop.f32.mrb[0].mxu0
    %v5551 = vadd.f32 0.0, %v5550
    %v5552 = vpop.f32.mrb[0].mxu0
    %5553 = vmatprep.mubr.f32.mxu0 0.0
    %5554 = vmatmul.mubr.f32.gmra.mrb[0].mxu0 %v5428
    %v5555 = vpop.f32.mrb[0].mxu0
    %v5556 = vadd.f32 0.0, %v5555
    %v5557 = vpop.f32.mrb[0].mxu0
    %5558 = vmatprep.mubr.f32.mxu0 0.0
    %5559 = vmatmul.mubr.f32.gmra.mrb[0].mxu0 %v5431
    %v5560 = vpop.f32.mrb[0].mxu0
    %v5561 = vadd.f32 0.0, %v5560
    %v5562 = vpop.f32.mrb[0].mxu0
    %5563 = vmatprep.mubr.f32.mxu0 0.0
    %5564 = vmatmul.mubr.f32.gmra.mrb[0].mxu0 %v5434
    %v5565 = vpop.f32.mrb[0].mxu0
    %v5566 = vadd.f32 0.0, %v5565
    %v5567 = vpop.f32.mrb[0].mxu0
    %5568 = vmatprep.mubr.f32.mxu0 0.0
    %5569 = vmatmul.mubr.f32.gmra.mrb[0].mxu0 %v5437
    %v5570 = vpop.f32.mrb[0].mxu0
    %v5571 = vadd.f32 0.0, %v5570
    %v5572 = vpop.f32.mrb[0].mxu0
    %5573 = vmatprep.mubr.f32.mxu0 0.0
    %5574 = vmatmul.mubr.f32.gmra.mrb[0].mxu0 %v5440
    %v5575 = vpop.f32.mrb[0].mxu0
    %v5576 = vadd.f32 0.0, %v5575
    %v5577 = vpop.f32.mrb[0].mxu0
    %5578 = vmatprep.mubr.f32.mxu0 0.0
    %5579 = vmatmul.mubr.f32.gmra.mrb[0].mxu0 %v5443
    %v5580 = vpop.f32.mrb[0].mxu0
    %v5581 = vadd.f32 0.0, %v5580
    %v5582 = vpop.f32.mrb[0].mxu0
    %5583 = vmatprep.mubr.f32.mxu0 0.0
    %5584 = vmatmul.mubr.f32.gmra.mrb[0].mxu0 %v5446
    %v5585 = vpop.f32.mrb[0].mxu0
    %v5586 = vadd.f32 0.0, %v5585
    %v5587 = vpop.f32.mrb[0].mxu0
    %5588 = vmatprep.mubr.f32.mxu0 0.0
    %5589 = vmatmul.mubr.f32.gmra.mrb[0].mxu0 %v5449
    %v5590 = vpop.f32.mrb[0].mxu0
    %v5591 = vadd.f32 0.0, %v5590
    %v5592 = vpop.f32.mrb[0].mxu0
    %5593 = vmatprep.mubr.f32.mxu0 0.0
    %5594 = vmatmul.mubr.f32.gmra.mrb[0].mxu0 %v5452
    %v5595 = vpop.f32.mrb[0].mxu0
    %v5596 = vadd.f32 0.0, %v5595
    %v5597 = vpop.f32.mrb[0].mxu0
    %5598 = vdwg.mxu0
    %v5600 = vsel %vm533, %v4700, 0
    %v5603 = vsel %vm533, %v4705, 0
    %v5606 = vsel %vm533, %v4710, 0
    %v5609 = vsel %vm533, %v4715, 0
    %v5612 = vsel %vm533, %v4720, 0
    %v5615 = vsel %vm533, %v4725, 0
    %v5618 = vsel %vm533, %v4730, 0
    %v5621 = vsel %vm533, %v4735, 0
    %v5624 = vsel %vm533, %v4740, 0
    %v5627 = vsel %vm533, %v4745, 0
    %v5630 = vsel %vm533, %v4750, 0
    %v5633 = vsel %vm533, %v4755, 0
    %v5636 = vsel %vm533, %v4760, 0
    %v5639 = vsel %vm533, %v4765, 0
    %v5642 = vsel %vm533, %v4770, 0
    %v5645 = vsel %vm533, %v4775, 0
    %5647 = vmatprep.subr.mxu0 0.0
    %5648 = vmatpush1.msra.mxu0 %v4778
    %5649 = vmatprep.subr.mxu0 0.0
    %5650 = vmatpush1.msra.mxu0 0.0
    %5651 = vmatprep.subr.mxu0 0.0
    %5652 = vmatpush1.msra.mxu0 0.0
    %5653 = vmatprep.subr.mxu0 0.0
    %5654 = vmatpush1.msra.mxu0 0.0
    %5655 = vmatprep.subr.mxu0 0.0
    %5656 = vmatpush1.msra.mxu0 0.0
    %5657 = vmatprep.subr.mxu0 0.0
    %5658 = vmatpush1.msra.mxu0 0.0
    %5659 = vmatprep.subr.mxu0 0.0
    %5660 = vmatpush1.msra.mxu0 0.0
    %5661 = vmatprep.subr.mxu0 0.0
    %5662 = vmatpush1.msra.mxu0 0.0
    %5663 = vmatprep.subr.mxu0 0.0
    %5664 = vmatpush1.msra.mxu0 0.0
    %5665 = vmatprep.subr.mxu0 0.0
    %5666 = vmatpush1.msra.mxu0 0.0
    %5667 = vmatprep.subr.mxu0 0.0
    %5668 = vmatpush1.msra.mxu0 0.0
    %5669 = vmatprep.subr.mxu0 0.0
    %5670 = vmatpush1.msra.mxu0 0.0
    %5671 = vmatprep.subr.mxu0 0.0
    %5672 = vmatpush1.msra.mxu0 0.0
    %5673 = vmatprep.subr.mxu0 0.0
    %5674 = vmatpush1.msra.mxu0 0.0
    %5675 = vmatprep.subr.mxu0 0.0
    %5676 = vmatpush1.msra.mxu0 0.0
    %5677 = vmatprep.subr.mxu0 0.0
    %5678 = vmatpush1.msra.mxu0 0.0
    %5679 = vmatprep.subr.mxu0 0.0
    %5680 = vmatpush1.msra.mxu0 0.0
    %5681 = vmatprep.subr.mxu0 0.0
    %5682 = vmatpush1.msra.mxu0 0.0
    %5683 = vmatprep.subr.mxu0 0.0
    %5684 = vmatpush1.msra.mxu0 0.0
    %5685 = vmatprep.subr.mxu0 0.0
    %5686 = vmatpush1.msra.mxu0 0.0
    %5687 = vmatprep.subr.mxu0 0.0
    %5688 = vmatpush1.msra.mxu0 0.0
    %5689 = vmatprep.subr.mxu0 0.0
    %5690 = vmatpush1.msra.mxu0 0.0
    %5691 = vmatprep.subr.mxu0 0.0
    %5692 = vmatpush1.msra.mxu0 0.0
    %5693 = vmatprep.subr.mxu0 0.0
    %5694 = vmatpush1.msra.mxu0 0.0
    %5695 = vmatprep.subr.mxu0 0.0
    %5696 = vmatpush1.msra.mxu0 0.0
    %5697 = vmatprep.subr.mxu0 0.0
    %5698 = vmatpush1.msra.mxu0 0.0
    %5699 = vmatprep.subr.mxu0 0.0
    %5700 = vmatpush1.msra.mxu0 0.0
    %5701 = vmatprep.subr.mxu0 0.0
    %5702 = vmatpush1.msra.mxu0 0.0
    %5703 = vmatprep.subr.mxu0 0.0
    %5704 = vmatpush1.msra.mxu0 0.0
    %5705 = vmatprep.subr.mxu0 0.0
    %5706 = vmatpush1.msra.mxu0 0.0
    %5707 = vmatprep.subr.mxu0 0.0
    %5708 = vmatpush1.msra.mxu0 0.0
    %5709 = vmatprep.subr.mxu0 0.0
    %5710 = vmatpush1.msra.mxu0 0.0
    %5711 = vmatprep.mubr.f32.mxu0 0.0
    %5712 = vmatmul.mubr.f32.gmra.mrb[0].mxu0 %v5600
    %v5713 = vpop.f32.mrb[0].mxu0
    %v5714 = vadd.f32 %v5521, %v5713
    %v5715 = vpop.f32.mrb[0].mxu0
    %5716 = vmatprep.mubr.f32.mxu0 0.0
    %5717 = vmatmul.mubr.f32.gmra.mrb[0].mxu0 %v5603
    %v5718 = vpop.f32.mrb[0].mxu0
    %v5719 = vadd.f32 %v5526, %v5718
    %v5720 = vpop.f32.mrb[0].mxu0
    %5721 = vmatprep.mubr.f32.mxu0 0.0
    %5722 = vmatmul.mubr.f32.gmra.mrb[0].mxu0 %v5606
    %v5723 = vpop.f32.mrb[0].mxu0
    %v5724 = vadd.f32 %v5531, %v5723
    %v5725 = vpop.f32.mrb[0].mxu0
    %5726 = vmatprep.mubr.f32.mxu0 0.0
    %5727 = vmatmul.mubr.f32.gmra.mrb[0].mxu0 %v5609
    %v5728 = vpop.f32.mrb[0].mxu0
    %v5729 = vadd.f32 %v5536, %v5728
    %v5730 = vpop.f32.mrb[0].mxu0
    %5731 = vmatprep.mubr.f32.mxu0 0.0
    %5732 = vmatmul.mubr.f32.gmra.mrb[0].mxu0 %v5612
    %v5733 = vpop.f32.mrb[0].mxu0
    %v5734 = vadd.f32 %v5541, %v5733
    %v5735 = vpop.f32.mrb[0].mxu0
    %5736 = vmatprep.mubr.f32.mxu0 0.0
    %5737 = vmatmul.mubr.f32.gmra.mrb[0].mxu0 %v5615
    %v5738 = vpop.f32.mrb[0].mxu0
    %v5739 = vadd.f32 %v5546, %v5738
    %v5740 = vpop.f32.mrb[0].mxu0
    %5741 = vmatprep.mubr.f32.mxu0 0.0
    %5742 = vmatmul.mubr.f32.gmra.mrb[0].mxu0 %v5618
    %v5743 = vpop.f32.mrb[0].mxu0
    %v5744 = vadd.f32 %v5551, %v5743
    %v5745 = vpop.f32.mrb[0].mxu0
    %5746 = vmatprep.mubr.f32.mxu0 0.0
    %5747 = vmatmul.mubr.f32.gmra.mrb[0].mxu0 %v5621
    %v5748 = vpop.f32.mrb[0].mxu0
    %v5749 = vadd.f32 %v5556, %v5748
    %v5750 = vpop.f32.mrb[0].mxu0
    %5751 = vmatprep.mubr.f32.mxu0 0.0
    %5752 = vmatmul.mubr.f32.gmra.mrb[0].mxu0 %v5624
    %v5753 = vpop.f32.mrb[0].mxu0
    %v5754 = vadd.f32 %v5561, %v5753
    %v5755 = vpop.f32.mrb[0].mxu0
    %5756 = vmatprep.mubr.f32.mxu0 0.0
    %5757 = vmatmul.mubr.f32.gmra.mrb[0].mxu0 %v5627
    %v5758 = vpop.f32.mrb[0].mxu0
    %v5759 = vadd.f32 %v5566, %v5758
    %v5760 = vpop.f32.mrb[0].mxu0
    %5761 = vmatprep.mubr.f32.mxu0 0.0
    %5762 = vmatmul.mubr.f32.gmra.mrb[0].mxu0 %v5630
    %v5763 = vpop.f32.mrb[0].mxu0
    %v5764 = vadd.f32 %v5571, %v5763
    %v5765 = vpop.f32.mrb[0].mxu0
    %5766 = vmatprep.mubr.f32.mxu0 0.0
    %5767 = vmatmul.mubr.f32.gmra.mrb[0].mxu0 %v5633
    %v5768 = vpop.f32.mrb[0].mxu0
    %v5769 = vadd.f32 %v5576, %v5768
    %v5770 = vpop.f32.mrb[0].mxu0
    %5771 = vmatprep.mubr.f32.mxu0 0.0
    %5772 = vmatmul.mubr.f32.gmra.mrb[0].mxu0 %v5636
    %v5773 = vpop.f32.mrb[0].mxu0
    %v5774 = vadd.f32 %v5581, %v5773
    %v5775 = vpop.f32.mrb[0].mxu0
    %5776 = vmatprep.mubr.f32.mxu0 0.0
    %5777 = vmatmul.mubr.f32.gmra.mrb[0].mxu0 %v5639
    %v5778 = vpop.f32.mrb[0].mxu0
    %v5779 = vadd.f32 %v5586, %v5778
    %v5780 = vpop.f32.mrb[0].mxu0
    %5781 = vmatprep.mubr.f32.mxu0 0.0
    %5782 = vmatmul.mubr.f32.gmra.mrb[0].mxu0 %v5642
    %v5783 = vpop.f32.mrb[0].mxu0
    %v5784 = vadd.f32 %v5591, %v5783
    %v5785 = vpop.f32.mrb[0].mxu0
    %5786 = vmatprep.mubr.f32.mxu0 0.0
    %5787 = vmatmul.mubr.f32.gmra.mrb[0].mxu0 %v5645
    %v5788 = vpop.f32.mrb[0].mxu0
    %v5789 = vadd.f32 %v5596, %v5788
    %v5790 = vpop.f32.mrb[0].mxu0
    %5791 = vdwg.mxu0
    %5792 = vrot.lane.b32.xlu0 %v4232, 112
    %v5793 = vpop.permute.xlu0 %5792
    %5794 = vrot.lane.b32.xlu0 %v4233, 112
    %v5795 = vpop.permute.xlu0 %5794
    %5796 = vrot.lane.b32.xlu0 %v4234, 112
    %v5797 = vpop.permute.xlu0 %5796
    %5798 = vrot.lane.b32.xlu0 %v4235, 112
    %v5799 = vpop.permute.xlu0 %5798
    %5800 = vrot.lane.b32.xlu0 %v4236, 112
    %v5801 = vpop.permute.xlu0 %5800
    %5802 = vrot.lane.b32.xlu0 %v4237, 112
    %v5803 = vpop.permute.xlu0 %5802
    %5804 = vrot.lane.b32.xlu0 %v4238, 112
    %v5805 = vpop.permute.xlu0 %5804
    %5806 = vrot.lane.b32.xlu0 %v4239, 112
    %v5807 = vpop.permute.xlu0 %5806
    %5808 = vrot.lane.b32.xlu0 %v4240, 112
    %v5809 = vpop.permute.xlu0 %5808
    %5810 = vrot.lane.b32.xlu0 %v4241, 112
    %v5811 = vpop.permute.xlu0 %5810
    %5812 = vrot.lane.b32.xlu0 %v4242, 112
    %v5813 = vpop.permute.xlu0 %5812
    %5814 = vrot.lane.b32.xlu0 %v4243, 112
    %v5815 = vpop.permute.xlu0 %5814
    %5816 = vrot.lane.b32.xlu0 %v4244, 112
    %v5817 = vpop.permute.xlu0 %5816
    %5818 = vrot.lane.b32.xlu0 %v4245, 112
    %v5819 = vpop.permute.xlu0 %5818
    %5820 = vrot.lane.b32.xlu0 %v4246, 112
    %v5821 = vpop.permute.xlu0 %5820
    %5822 = vrot.lane.b32.xlu0 %v4247, 112
    %v5823 = vpop.permute.xlu0 %5822
    %5824 = vrot.lane.b32.xlu0 %v4074, 112
    %v5825 = vpop.permute.xlu0 %5824
    %5826 = vrot.lane.b32.xlu0 %v4079, 112
    %v5827 = vpop.permute.xlu0 %5826
    %5828 = vrot.lane.b32.xlu0 %v4084, 112
    %v5829 = vpop.permute.xlu0 %5828
    %5830 = vrot.lane.b32.xlu0 %v4089, 112
    %v5831 = vpop.permute.xlu0 %5830
    %5832 = vrot.lane.b32.xlu0 %v4094, 112
    %v5833 = vpop.permute.xlu0 %5832
    %5834 = vrot.lane.b32.xlu0 %v4099, 112
    %v5835 = vpop.permute.xlu0 %5834
    %5836 = vrot.lane.b32.xlu0 %v4104, 112
    %v5837 = vpop.permute.xlu0 %5836
    %5838 = vrot.lane.b32.xlu0 %v4109, 112
    %v5839 = vpop.permute.xlu0 %5838
    %5840 = vrot.lane.b32.xlu0 %v4114, 112
    %v5841 = vpop.permute.xlu0 %5840
    %5842 = vrot.lane.b32.xlu0 %v4119, 112
    %v5843 = vpop.permute.xlu0 %5842
    %5844 = vrot.lane.b32.xlu0 %v4124, 112
    %v5845 = vpop.permute.xlu0 %5844
    %5846 = vrot.lane.b32.xlu0 %v4129, 112
    %v5847 = vpop.permute.xlu0 %5846
    %5848 = vrot.lane.b32.xlu0 %v4134, 112
    %v5849 = vpop.permute.xlu0 %5848
    %5850 = vrot.lane.b32.xlu0 %v4139, 112
    %v5851 = vpop.permute.xlu0 %5850
    %5852 = vrot.lane.b32.xlu0 %v4144, 112
    %v5853 = vpop.permute.xlu0 %5852
    %5854 = vrot.lane.b32.xlu0 %v4149, 112
    %v5855 = vpop.permute.xlu0 %5854
    %v5856 = vsel %vm533, %v5793, 0
    %v5858 = vsel %vm533, %v5795, 0
    %v5860 = vsel %vm533, %v5797, 0
    %v5862 = vsel %vm533, %v5799, 0
    %v5864 = vsel %vm533, %v5801, 0
    %v5866 = vsel %vm533, %v5803, 0
    %v5868 = vsel %vm533, %v5805, 0
    %v5870 = vsel %vm533, %v5807, 0
    %v5872 = vsel %vm533, %v5809, 0
    %v5874 = vsel %vm533, %v5811, 0
    %v5876 = vsel %vm533, %v5813, 0
    %v5878 = vsel %vm533, %v5815, 0
    %v5880 = vsel %vm533, %v5817, 0
    %v5882 = vsel %vm533, %v5819, 0
    %v5884 = vsel %vm533, %v5821, 0
    %v5886 = vsel %vm533, %v5823, 0
    %v5888 = vsel %vm533, %v5825, 0
    %v5890 = vsel %vm533, %v5827, 0
    %v5892 = vsel %vm533, %v5829, 0
    %v5894 = vsel %vm533, %v5831, 0
    %v5896 = vsel %vm533, %v5833, 0
    %v5898 = vsel %vm533, %v5835, 0
    %v5900 = vsel %vm533, %v5837, 0
    %v5902 = vsel %vm533, %v5839, 0
    %v5904 = vsel %vm533, %v5841, 0
    %v5906 = vsel %vm533, %v5843, 0
    %v5908 = vsel %vm533, %v5845, 0
    %v5910 = vsel %vm533, %v5847, 0
    %v5912 = vsel %vm533, %v5849, 0
    %v5914 = vsel %vm533, %v5851, 0
    %v5916 = vsel %vm533, %v5853, 0
    %v5918 = vsel %vm533, %v5855, 0
    %5920 = vmatprep.subr.mxu0 0.0
    %5921 = vmatpush1.xpose.msra.mxu0 %v5888
    %5922 = vmatprep.subr.mxu0 0.0
    %5923 = vmatpush1.xpose.msra.mxu0 %v5890
    %5924 = vmatprep.subr.mxu0 0.0
    %5925 = vmatpush1.xpose.msra.mxu0 %v5892
    %5926 = vmatprep.subr.mxu0 0.0
    %5927 = vmatpush1.xpose.msra.mxu0 %v5894
    %5928 = vmatprep.subr.mxu0 0.0
    %5929 = vmatpush1.xpose.msra.mxu0 %v5896
    %5930 = vmatprep.subr.mxu0 0.0
    %5931 = vmatpush1.xpose.msra.mxu0 %v5898
    %5932 = vmatprep.subr.mxu0 0.0
    %5933 = vmatpush1.xpose.msra.mxu0 %v5900
    %5934 = vmatprep.subr.mxu0 0.0
    %5935 = vmatpush1.xpose.msra.mxu0 %v5902
    %5936 = vmatprep.subr.mxu0 0.0
    %5937 = vmatpush1.xpose.msra.mxu0 %v5904
    %5938 = vmatprep.subr.mxu0 0.0
    %5939 = vmatpush1.xpose.msra.mxu0 %v5906
    %5940 = vmatprep.subr.mxu0 0.0
    %5941 = vmatpush1.xpose.msra.mxu0 %v5908
    %5942 = vmatprep.subr.mxu0 0.0
    %5943 = vmatpush1.xpose.msra.mxu0 %v5910
    %5944 = vmatprep.subr.mxu0 0.0
    %5945 = vmatpush1.xpose.msra.mxu0 %v5912
    %5946 = vmatprep.subr.mxu0 0.0
    %5947 = vmatpush1.xpose.msra.mxu0 %v5914
    %5948 = vmatprep.subr.mxu0 0.0
    %5949 = vmatpush1.xpose.msra.mxu0 %v5916
    %5950 = vmatprep.subr.mxu0 0.0
    %5951 = vmatpush1.xpose.msra.mxu0 %v5918
    %5952 = vmatprep.subr.mxu0 0.0
    %5953 = vmatpush1.xpose.msra.mxu0 0.0
    %5954 = vmatprep.subr.mxu0 0.0
    %5955 = vmatpush1.xpose.msra.mxu0 0.0
    %5956 = vmatprep.subr.mxu0 0.0
    %5957 = vmatpush1.xpose.msra.mxu0 0.0
    %5958 = vmatprep.subr.mxu0 0.0
    %5959 = vmatpush1.xpose.msra.mxu0 0.0
    %5960 = vmatprep.subr.mxu0 0.0
    %5961 = vmatpush1.xpose.msra.mxu0 0.0
    %5962 = vmatprep.subr.mxu0 0.0
    %5963 = vmatpush1.xpose.msra.mxu0 0.0
    %5964 = vmatprep.subr.mxu0 0.0
    %5965 = vmatpush1.xpose.msra.mxu0 0.0
    %5966 = vmatprep.subr.mxu0 0.0
    %5967 = vmatpush1.xpose.msra.mxu0 0.0
    %5968 = vmatprep.subr.mxu0 0.0
    %5969 = vmatpush1.xpose.msra.mxu0 0.0
    %5970 = vmatprep.subr.mxu0 0.0
    %5971 = vmatpush1.xpose.msra.mxu0 0.0
    %5972 = vmatprep.subr.mxu0 0.0
    %5973 = vmatpush1.xpose.msra.mxu0 0.0
    %5974 = vmatprep.subr.mxu0 0.0
    %5975 = vmatpush1.xpose.msra.mxu0 0.0
    %5976 = vmatprep.subr.mxu0 0.0
    %5977 = vmatpush1.xpose.msra.mxu0 0.0
    %5978 = vmatprep.subr.mxu0 0.0
    %5979 = vmatpush1.xpose.msra.mxu0 0.0
    %5980 = vmatprep.subr.mxu0 0.0
    %5981 = vmatpush1.xpose.msra.mxu0 0.0
    %5982 = vmatprep.subr.mxu0 0.0
    %5983 = vmatpush1.xpose.msra.mxu0 0.0
    %5984 = vmatprep.mubr.f32.mxu0 0.0
    %5985 = vmatmul.mubr.f32.gmra.mrb[0].mxu0 %v5856
    %v5986 = vpop.f32.mrb[0].mxu0
    %v5987 = vadd.f32 0.0, %v5986
    %v5988 = vpop.f32.mrb[0].mxu0
    %5989 = vmatprep.mubr.f32.mxu0 0.0
    %5990 = vmatmul.mubr.f32.gmra.mrb[0].mxu0 %v5858
    %v5991 = vpop.f32.mrb[0].mxu0
    %v5992 = vadd.f32 0.0, %v5991
    %v5993 = vpop.f32.mrb[0].mxu0
    %5994 = vmatprep.mubr.f32.mxu0 0.0
    %5995 = vmatmul.mubr.f32.gmra.mrb[0].mxu0 %v5860
    %v5996 = vpop.f32.mrb[0].mxu0
    %v5997 = vadd.f32 0.0, %v5996
    %v5998 = vpop.f32.mrb[0].mxu0
    %5999 = vmatprep.mubr.f32.mxu0 0.0
    %6000 = vmatmul.mubr.f32.gmra.mrb[0].mxu0 %v5862
    %v6001 = vpop.f32.mrb[0].mxu0
    %v6002 = vadd.f32 0.0, %v6001
    %v6003 = vpop.f32.mrb[0].mxu0
    %6004 = vmatprep.mubr.f32.mxu0 0.0
    %6005 = vmatmul.mubr.f32.gmra.mrb[0].mxu0 %v5864
    %v6006 = vpop.f32.mrb[0].mxu0
    %v6007 = vadd.f32 0.0, %v6006
    %v6008 = vpop.f32.mrb[0].mxu0
    %6009 = vmatprep.mubr.f32.mxu0 0.0
    %6010 = vmatmul.mubr.f32.gmra.mrb[0].mxu0 %v5866
    %v6011 = vpop.f32.mrb[0].mxu0
    %v6012 = vadd.f32 0.0, %v6011
    %v6013 = vpop.f32.mrb[0].mxu0
    %6014 = vmatprep.mubr.f32.mxu0 0.0
    %6015 = vmatmul.mubr.f32.gmra.mrb[0].mxu0 %v5868
    %v6016 = vpop.f32.mrb[0].mxu0
    %v6017 = vadd.f32 0.0, %v6016
    %v6018 = vpop.f32.mrb[0].mxu0
    %6019 = vmatprep.mubr.f32.mxu0 0.0
    %6020 = vmatmul.mubr.f32.gmra.mrb[0].mxu0 %v5870
    %v6021 = vpop.f32.mrb[0].mxu0
    %v6022 = vadd.f32 0.0, %v6021
    %v6023 = vpop.f32.mrb[0].mxu0
    %6024 = vmatprep.mubr.f32.mxu0 0.0
    %6025 = vmatmul.mubr.f32.gmra.mrb[0].mxu0 %v5872
    %v6026 = vpop.f32.mrb[0].mxu0
    %v6027 = vadd.f32 0.0, %v6026
    %v6028 = vpop.f32.mrb[0].mxu0
    %6029 = vmatprep.mubr.f32.mxu0 0.0
    %6030 = vmatmul.mubr.f32.gmra.mrb[0].mxu0 %v5874
    %v6031 = vpop.f32.mrb[0].mxu0
    %v6032 = vadd.f32 0.0, %v6031
    %v6033 = vpop.f32.mrb[0].mxu0
    %6034 = vmatprep.mubr.f32.mxu0 0.0
    %6035 = vmatmul.mubr.f32.gmra.mrb[0].mxu0 %v5876
    %v6036 = vpop.f32.mrb[0].mxu0
    %v6037 = vadd.f32 0.0, %v6036
    %v6038 = vpop.f32.mrb[0].mxu0
    %6039 = vmatprep.mubr.f32.mxu0 0.0
    %6040 = vmatmul.mubr.f32.gmra.mrb[0].mxu0 %v5878
    %v6041 = vpop.f32.mrb[0].mxu0
    %v6042 = vadd.f32 0.0, %v6041
    %v6043 = vpop.f32.mrb[0].mxu0
    %6044 = vmatprep.mubr.f32.mxu0 0.0
    %6045 = vmatmul.mubr.f32.gmra.mrb[0].mxu0 %v5880
    %v6046 = vpop.f32.mrb[0].mxu0
    %v6047 = vadd.f32 0.0, %v6046
    %v6048 = vpop.f32.mrb[0].mxu0
    %6049 = vmatprep.mubr.f32.mxu0 0.0
    %6050 = vmatmul.mubr.f32.gmra.mrb[0].mxu0 %v5882
    %v6051 = vpop.f32.mrb[0].mxu0
    %v6052 = vadd.f32 0.0, %v6051
    %v6053 = vpop.f32.mrb[0].mxu0
    %6054 = vmatprep.mubr.f32.mxu0 0.0
    %6055 = vmatmul.mubr.f32.gmra.mrb[0].mxu0 %v5884
    %v6056 = vpop.f32.mrb[0].mxu0
    %v6057 = vadd.f32 0.0, %v6056
    %v6058 = vpop.f32.mrb[0].mxu0
    %6059 = vmatprep.mubr.f32.mxu0 0.0
    %6060 = vmatmul.mubr.f32.gmra.mrb[0].mxu0 %v5886
    %v6061 = vpop.f32.mrb[0].mxu0
    %v6062 = vadd.f32 0.0, %v6061
    %v6063 = vpop.f32.mrb[0].mxu0
    %6064 = vdwg.mxu0
    %6065 = vmax.xlane.f32.xlu0 %v5987
    %v6066 = vpop.xlane.xlu0 %6065
    %6067 = vmax.xlane.f32.xlu0 %v5992
    %v6068 = vpop.xlane.xlu0 %6067
    %6069 = vmax.xlane.f32.xlu0 %v5997
    %v6070 = vpop.xlane.xlu0 %6069
    %6071 = vmax.xlane.f32.xlu0 %v6002
    %v6072 = vpop.xlane.xlu0 %6071
    %6073 = vmax.xlane.f32.xlu0 %v6007
    %v6074 = vpop.xlane.xlu0 %6073
    %6075 = vmax.xlane.f32.xlu0 %v6012
    %v6076 = vpop.xlane.xlu0 %6075
    %6077 = vmax.xlane.f32.xlu0 %v6017
    %v6078 = vpop.xlane.xlu0 %6077
    %6079 = vmax.xlane.f32.xlu0 %v6022
    %v6080 = vpop.xlane.xlu0 %6079
    %6081 = vmax.xlane.f32.xlu0 %v6027
    %v6082 = vpop.xlane.xlu0 %6081
    %6083 = vmax.xlane.f32.xlu0 %v6032
    %v6084 = vpop.xlane.xlu0 %6083
    %6085 = vmax.xlane.f32.xlu0 %v6037
    %v6086 = vpop.xlane.xlu0 %6085
    %6087 = vmax.xlane.f32.xlu0 %v6042
    %v6088 = vpop.xlane.xlu0 %6087
    %6089 = vmax.xlane.f32.xlu0 %v6047
    %v6090 = vpop.xlane.xlu0 %6089
    %6091 = vmax.xlane.f32.xlu0 %v6052
    %v6092 = vpop.xlane.xlu0 %6091
    %6093 = vmax.xlane.f32.xlu0 %v6057
    %v6094 = vpop.xlane.xlu0 %6093
    %6095 = vmax.xlane.f32.xlu0 %v6062
    %v6096 = vpop.xlane.xlu0 %6095
    %v6097 = vsub.f32 %v5987, %v6066
    %v6098 = vsub.f32 %v5992, %v6068
    %v6099 = vsub.f32 %v5997, %v6070
    %v6100 = vsub.f32 %v6002, %v6072
    %v6101 = vsub.f32 %v6007, %v6074
    %v6102 = vsub.f32 %v6012, %v6076
    %v6103 = vsub.f32 %v6017, %v6078
    %v6104 = vsub.f32 %v6022, %v6080
    %v6105 = vsub.f32 %v6027, %v6082
    %v6106 = vsub.f32 %v6032, %v6084
    %v6107 = vsub.f32 %v6037, %v6086
    %v6108 = vsub.f32 %v6042, %v6088
    %v6109 = vsub.f32 %v6047, %v6090
    %v6110 = vsub.f32 %v6052, %v6092
    %v6111 = vsub.f32 %v6057, %v6094
    %v6112 = vsub.f32 %v6062, %v6096
    %v6113 = vmul.f32 %v6097, 1.442695
    %v6114 = vpow.pop %v6113
    %v6115 = vmul.f32 %v6098, 1.442695
    %v6116 = vpow.pop %v6115
    %v6117 = vmul.f32 %v6099, 1.442695
    %v6118 = vpow.pop %v6117
    %v6119 = vmul.f32 %v6100, 1.442695
    %v6120 = vpow.pop %v6119
    %v6121 = vmul.f32 %v6101, 1.442695
    %v6122 = vpow.pop %v6121
    %v6123 = vmul.f32 %v6102, 1.442695
    %v6124 = vpow.pop %v6123
    %v6125 = vmul.f32 %v6103, 1.442695
    %v6126 = vpow.pop %v6125
    %v6127 = vmul.f32 %v6104, 1.442695
    %v6128 = vpow.pop %v6127
    %v6129 = vmul.f32 %v6105, 1.442695
    %v6130 = vpow.pop %v6129
    %v6131 = vmul.f32 %v6106, 1.442695
    %v6132 = vpow.pop %v6131
    %v6133 = vmul.f32 %v6107, 1.442695
    %v6134 = vpow.pop %v6133
    %v6135 = vmul.f32 %v6108, 1.442695
    %v6136 = vpow.pop %v6135
    %v6137 = vmul.f32 %v6109, 1.442695
    %v6138 = vpow.pop %v6137
    %v6139 = vmul.f32 %v6110, 1.442695
    %v6140 = vpow.pop %v6139
    %v6141 = vmul.f32 %v6111, 1.442695
    %v6142 = vpow.pop %v6141
    %v6143 = vmul.f32 %v6112, 1.442695
    %v6144 = vpow.pop %v6143
    %6145 = vadd.xlane.f32.xlu0 %v6114
    %v6146 = vpop.xlane.xlu0 %6145
    %6147 = vadd.xlane.f32.xlu0 %v6116
    %v6148 = vpop.xlane.xlu0 %6147
    %6149 = vadd.xlane.f32.xlu0 %v6118
    %v6150 = vpop.xlane.xlu0 %6149
    %6151 = vadd.xlane.f32.xlu0 %v6120
    %v6152 = vpop.xlane.xlu0 %6151
    %6153 = vadd.xlane.f32.xlu0 %v6122
    %v6154 = vpop.xlane.xlu0 %6153
    %6155 = vadd.xlane.f32.xlu0 %v6124
    %v6156 = vpop.xlane.xlu0 %6155
    %6157 = vadd.xlane.f32.xlu0 %v6126
    %v6158 = vpop.xlane.xlu0 %6157
    %6159 = vadd.xlane.f32.xlu0 %v6128
    %v6160 = vpop.xlane.xlu0 %6159
    %6161 = vadd.xlane.f32.xlu0 %v6130
    %v6162 = vpop.xlane.xlu0 %6161
    %6163 = vadd.xlane.f32.xlu0 %v6132
    %v6164 = vpop.xlane.xlu0 %6163
    %6165 = vadd.xlane.f32.xlu0 %v6134
    %v6166 = vpop.xlane.xlu0 %6165
    %6167 = vadd.xlane.f32.xlu0 %v6136
    %v6168 = vpop.xlane.xlu0 %6167
    %6169 = vadd.xlane.f32.xlu0 %v6138
    %v6170 = vpop.xlane.xlu0 %6169
    %6171 = vadd.xlane.f32.xlu0 %v6140
    %v6172 = vpop.xlane.xlu0 %6171
    %6173 = vadd.xlane.f32.xlu0 %v6142
    %v6174 = vpop.xlane.xlu0 %6173
    %6175 = vadd.xlane.f32.xlu0 %v6144
    %v6176 = vpop.xlane.xlu0 %6175
    %v6177 = vrcp.pop %v6146
    %v6178 = vrcp.pop %v6148
    %v6179 = vrcp.pop %v6150
    %v6180 = vrcp.pop %v6152
    %v6181 = vrcp.pop %v6154
    %v6182 = vrcp.pop %v6156
    %v6183 = vrcp.pop %v6158
    %v6184 = vrcp.pop %v6160
    %v6185 = vrcp.pop %v6162
    %v6186 = vrcp.pop %v6164
    %v6187 = vrcp.pop %v6166
    %v6188 = vrcp.pop %v6168
    %v6189 = vrcp.pop %v6170
    %v6190 = vrcp.pop %v6172
    %v6191 = vrcp.pop %v6174
    %v6192 = vrcp.pop %v6176
    %v6193 = vmul.f32 %v6114, %v6177
    %v6194 = vmul.f32 %v6116, %v6178
    %v6195 = vmul.f32 %v6118, %v6179
    %v6196 = vmul.f32 %v6120, %v6180
    %v6197 = vmul.f32 %v6122, %v6181
    %v6198 = vmul.f32 %v6124, %v6182
    %v6199 = vmul.f32 %v6126, %v6183
    %v6200 = vmul.f32 %v6128, %v6184
    %v6201 = vmul.f32 %v6130, %v6185
    %v6202 = vmul.f32 %v6132, %v6186
    %v6203 = vmul.f32 %v6134, %v6187
    %v6204 = vmul.f32 %v6136, %v6188
    %v6205 = vmul.f32 %v6138, %v6189
    %v6206 = vmul.f32 %v6140, %v6190
    %v6207 = vmul.f32 %v6142, %v6191
    %v6208 = vmul.f32 %v6144, %v6192
    %6209 = vrot.lane.b32.xlu0 %v4154, 112
    %v6210 = vpop.permute.xlu0 %6209
    %6211 = vrot.lane.b32.xlu0 %v4159, 112
    %v6212 = vpop.permute.xlu0 %6211
    %6213 = vrot.lane.b32.xlu0 %v4164, 112
    %v6214 = vpop.permute.xlu0 %6213
    %6215 = vrot.lane.b32.xlu0 %v4169, 112
    %v6216 = vpop.permute.xlu0 %6215
    %6217 = vrot.lane.b32.xlu0 %v4174, 112
    %v6218 = vpop.permute.xlu0 %6217
    %6219 = vrot.lane.b32.xlu0 %v4179, 112
    %v6220 = vpop.permute.xlu0 %6219
    %6221 = vrot.lane.b32.xlu0 %v4184, 112
    %v6222 = vpop.permute.xlu0 %6221
    %6223 = vrot.lane.b32.xlu0 %v4189, 112
    %v6224 = vpop.permute.xlu0 %6223
    %6225 = vrot.lane.b32.xlu0 %v4194, 112
    %v6226 = vpop.permute.xlu0 %6225
    %6227 = vrot.lane.b32.xlu0 %v4199, 112
    %v6228 = vpop.permute.xlu0 %6227
    %6229 = vrot.lane.b32.xlu0 %v4204, 112
    %v6230 = vpop.permute.xlu0 %6229
    %6231 = vrot.lane.b32.xlu0 %v4209, 112
    %v6232 = vpop.permute.xlu0 %6231
    %6233 = vrot.lane.b32.xlu0 %v4214, 112
    %v6234 = vpop.permute.xlu0 %6233
    %6235 = vrot.lane.b32.xlu0 %v4219, 112
    %v6236 = vpop.permute.xlu0 %6235
    %6237 = vrot.lane.b32.xlu0 %v4224, 112
    %v6238 = vpop.permute.xlu0 %6237
    %6239 = vrot.lane.b32.xlu0 %v4229, 112
    %v6240 = vpop.permute.xlu0 %6239
    %6257 = vmatprep.subr.mxu0 0.0
    %6258 = vmatpush1.msra.mxu0 %v6210
    %6259 = vmatprep.subr.mxu0 0.0
    %6260 = vmatpush1.msra.mxu0 %v6212
    %6261 = vmatprep.subr.mxu0 0.0
    %6262 = vmatpush1.msra.mxu0 %v6214
    %6263 = vmatprep.subr.mxu0 0.0
    %6264 = vmatpush1.msra.mxu0 %v6216
    %6265 = vmatprep.subr.mxu0 0.0
    %6266 = vmatpush1.msra.mxu0 %v6218
    %6267 = vmatprep.subr.mxu0 0.0
    %6268 = vmatpush1.msra.mxu0 %v6220
    %6269 = vmatprep.subr.mxu0 0.0
    %6270 = vmatpush1.msra.mxu0 %v6222
    %6271 = vmatprep.subr.mxu0 0.0
    %6272 = vmatpush1.msra.mxu0 %v6224
    %6273 = vmatprep.subr.mxu0 0.0
    %6274 = vmatpush1.msra.mxu0 %v6226
    %6275 = vmatprep.subr.mxu0 0.0
    %6276 = vmatpush1.msra.mxu0 %v6228
    %6277 = vmatprep.subr.mxu0 0.0
    %6278 = vmatpush1.msra.mxu0 %v6230
    %6279 = vmatprep.subr.mxu0 0.0
    %6280 = vmatpush1.msra.mxu0 %v6232
    %6281 = vmatprep.subr.mxu0 0.0
    %6282 = vmatpush1.msra.mxu0 %v6234
    %6283 = vmatprep.subr.mxu0 0.0
    %6284 = vmatpush1.msra.mxu0 %v6236
    %6285 = vmatprep.subr.mxu0 0.0
    %6286 = vmatpush1.msra.mxu0 %v6238
    %6287 = vmatprep.subr.mxu0 0.0
    %6288 = vmatpush1.msra.mxu0 %v6240
    %6289 = vmatprep.subr.mxu0 0.0
    %6290 = vmatpush1.msra.mxu0 0.0
    %6291 = vmatprep.subr.mxu0 0.0
    %6292 = vmatpush1.msra.mxu0 0.0
    %6293 = vmatprep.subr.mxu0 0.0
    %6294 = vmatpush1.msra.mxu0 0.0
    %6295 = vmatprep.subr.mxu0 0.0
    %6296 = vmatpush1.msra.mxu0 0.0
    %6297 = vmatprep.subr.mxu0 0.0
    %6298 = vmatpush1.msra.mxu0 0.0
    %6299 = vmatprep.subr.mxu0 0.0
    %6300 = vmatpush1.msra.mxu0 0.0
    %6301 = vmatprep.subr.mxu0 0.0
    %6302 = vmatpush1.msra.mxu0 0.0
    %6303 = vmatprep.subr.mxu0 0.0
    %6304 = vmatpush1.msra.mxu0 0.0
    %6305 = vmatprep.subr.mxu0 0.0
    %6306 = vmatpush1.msra.mxu0 0.0
    %6307 = vmatprep.subr.mxu0 0.0
    %6308 = vmatpush1.msra.mxu0 0.0
    %6309 = vmatprep.subr.mxu0 0.0
    %6310 = vmatpush1.msra.mxu0 0.0
    %6311 = vmatprep.subr.mxu0 0.0
    %6312 = vmatpush1.msra.mxu0 0.0
    %6313 = vmatprep.subr.mxu0 0.0
    %6314 = vmatpush1.msra.mxu0 0.0
    %6315 = vmatprep.subr.mxu0 0.0
    %6316 = vmatpush1.msra.mxu0 0.0
    %6317 = vmatprep.subr.mxu0 0.0
    %6318 = vmatpush1.msra.mxu0 0.0
    %6319 = vmatprep.subr.mxu0 0.0
    %6320 = vmatpush1.msra.mxu0 0.0
    %6321 = vmatprep.mubr.f32.mxu0 0.0
    %6322 = vmatmul.mubr.f32.gmra.mrb[0].mxu0 %v6193
    %v6323 = vpop.f32.mrb[0].mxu0
    %v6324 = vadd.f32 0.0, %v6323
    %v6325 = vpop.f32.mrb[0].mxu0
    %6326 = vmatprep.mubr.f32.mxu0 0.0
    %6327 = vmatmul.mubr.f32.gmra.mrb[0].mxu0 %v6194
    %v6328 = vpop.f32.mrb[0].mxu0
    %v6329 = vadd.f32 0.0, %v6328
    %v6330 = vpop.f32.mrb[0].mxu0
    %6331 = vmatprep.mubr.f32.mxu0 0.0
    %6332 = vmatmul.mubr.f32.gmra.mrb[0].mxu0 %v6195
    %v6333 = vpop.f32.mrb[0].mxu0
    %v6334 = vadd.f32 0.0, %v6333
    %v6335 = vpop.f32.mrb[0].mxu0
    %6336 = vmatprep.mubr.f32.mxu0 0.0
    %6337 = vmatmul.mubr.f32.gmra.mrb[0].mxu0 %v6196
    %v6338 = vpop.f32.mrb[0].mxu0
    %v6339 = vadd.f32 0.0, %v6338
    %v6340 = vpop.f32.mrb[0].mxu0
    %6341 = vmatprep.mubr.f32.mxu0 0.0
    %6342 = vmatmul.mubr.f32.gmra.mrb[0].mxu0 %v6197
    %v6343 = vpop.f32.mrb[0].mxu0
    %v6344 = vadd.f32 0.0, %v6343
    %v6345 = vpop.f32.mrb[0].mxu0
    %6346 = vmatprep.mubr.f32.mxu0 0.0
    %6347 = vmatmul.mubr.f32.gmra.mrb[0].mxu0 %v6198
    %v6348 = vpop.f32.mrb[0].mxu0
    %v6349 = vadd.f32 0.0, %v6348
    %v6350 = vpop.f32.mrb[0].mxu0
    %6351 = vmatprep.mubr.f32.mxu0 0.0
    %6352 = vmatmul.mubr.f32.gmra.mrb[0].mxu0 %v6199
    %v6353 = vpop.f32.mrb[0].mxu0
    %v6354 = vadd.f32 0.0, %v6353
    %v6355 = vpop.f32.mrb[0].mxu0
    %6356 = vmatprep.mubr.f32.mxu0 0.0
    %6357 = vmatmul.mubr.f32.gmra.mrb[0].mxu0 %v6200
    %v6358 = vpop.f32.mrb[0].mxu0
    %v6359 = vadd.f32 0.0, %v6358
    %v6360 = vpop.f32.mrb[0].mxu0
    %6361 = vmatprep.mubr.f32.mxu0 0.0
    %6362 = vmatmul.mubr.f32.gmra.mrb[0].mxu0 %v6201
    %v6363 = vpop.f32.mrb[0].mxu0
    %v6364 = vadd.f32 0.0, %v6363
    %v6365 = vpop.f32.mrb[0].mxu0
    %6366 = vmatprep.mubr.f32.mxu0 0.0
    %6367 = vmatmul.mubr.f32.gmra.mrb[0].mxu0 %v6202
    %v6368 = vpop.f32.mrb[0].mxu0
    %v6369 = vadd.f32 0.0, %v6368
    %v6370 = vpop.f32.mrb[0].mxu0
    %6371 = vmatprep.mubr.f32.mxu0 0.0
    %6372 = vmatmul.mubr.f32.gmra.mrb[0].mxu0 %v6203
    %v6373 = vpop.f32.mrb[0].mxu0
    %v6374 = vadd.f32 0.0, %v6373
    %v6375 = vpop.f32.mrb[0].mxu0
    %6376 = vmatprep.mubr.f32.mxu0 0.0
    %6377 = vmatmul.mubr.f32.gmra.mrb[0].mxu0 %v6204
    %v6378 = vpop.f32.mrb[0].mxu0
    %v6379 = vadd.f32 0.0, %v6378
    %v6380 = vpop.f32.mrb[0].mxu0
    %6381 = vmatprep.mubr.f32.mxu0 0.0
    %6382 = vmatmul.mubr.f32.gmra.mrb[0].mxu0 %v6205
    %v6383 = vpop.f32.mrb[0].mxu0
    %v6384 = vadd.f32 0.0, %v6383
    %v6385 = vpop.f32.mrb[0].mxu0
    %6386 = vmatprep.mubr.f32.mxu0 0.0
    %6387 = vmatmul.mubr.f32.gmra.mrb[0].mxu0 %v6206
    %v6388 = vpop.f32.mrb[0].mxu0
    %v6389 = vadd.f32 0.0, %v6388
    %v6390 = vpop.f32.mrb[0].mxu0
    %6391 = vmatprep.mubr.f32.mxu0 0.0
    %6392 = vmatmul.mubr.f32.gmra.mrb[0].mxu0 %v6207
    %v6393 = vpop.f32.mrb[0].mxu0
    %v6394 = vadd.f32 0.0, %v6393
    %v6395 = vpop.f32.mrb[0].mxu0
    %6396 = vmatprep.mubr.f32.mxu0 0.0
    %6397 = vmatmul.mubr.f32.gmra.mrb[0].mxu0 %v6208
    %v6398 = vpop.f32.mrb[0].mxu0
    %v6399 = vadd.f32 0.0, %v6398
    %v6400 = vpop.f32.mrb[0].mxu0
    %6401 = vdwg.mxu0
    %v6402 = vld [vmem:[%s2 + $0x10] sm:$0xff]
    %v6404 = vsel %vm533, %v6324, 0
    %v6407 = vsel %vm533, %v6329, 0
    %v6410 = vsel %vm533, %v6334, 0
    %v6413 = vsel %vm533, %v6339, 0
    %v6416 = vsel %vm533, %v6344, 0
    %v6419 = vsel %vm533, %v6349, 0
    %v6422 = vsel %vm533, %v6354, 0
    %v6425 = vsel %vm533, %v6359, 0
    %v6428 = vsel %vm533, %v6364, 0
    %v6431 = vsel %vm533, %v6369, 0
    %v6434 = vsel %vm533, %v6374, 0
    %v6437 = vsel %vm533, %v6379, 0
    %v6440 = vsel %vm533, %v6384, 0
    %v6443 = vsel %vm533, %v6389, 0
    %v6446 = vsel %vm533, %v6394, 0
    %v6449 = vsel %vm533, %v6399, 0
    %6451 = vmatprep.subr.mxu0 0.0
    %6452 = vmatpush1.msra.mxu0 %v6402
    %6453 = vmatprep.subr.mxu0 0.0
    %6454 = vmatpush1.msra.mxu0 0.0
    %6455 = vmatprep.subr.mxu0 0.0
    %6456 = vmatpush1.msra.mxu0 0.0
    %6457 = vmatprep.subr.mxu0 0.0
    %6458 = vmatpush1.msra.mxu0 0.0
    %6459 = vmatprep.subr.mxu0 0.0
    %6460 = vmatpush1.msra.mxu0 0.0
    %6461 = vmatprep.subr.mxu0 0.0
    %6462 = vmatpush1.msra.mxu0 0.0
    %6463 = vmatprep.subr.mxu0 0.0
    %6464 = vmatpush1.msra.mxu0 0.0
    %6465 = vmatprep.subr.mxu0 0.0
    %6466 = vmatpush1.msra.mxu0 0.0
    %6467 = vmatprep.subr.mxu0 0.0
    %6468 = vmatpush1.msra.mxu0 0.0
    %6469 = vmatprep.subr.mxu0 0.0
    %6470 = vmatpush1.msra.mxu0 0.0
    %6471 = vmatprep.subr.mxu0 0.0
    %6472 = vmatpush1.msra.mxu0 0.0
    %6473 = vmatprep.subr.mxu0 0.0
    %6474 = vmatpush1.msra.mxu0 0.0
    %6475 = vmatprep.subr.mxu0 0.0
    %6476 = vmatpush1.msra.mxu0 0.0
    %6477 = vmatprep.subr.mxu0 0.0
    %6478 = vmatpush1.msra.mxu0 0.0
    %6479 = vmatprep.subr.mxu0 0.0
    %6480 = vmatpush1.msra.mxu0 0.0
    %6481 = vmatprep.subr.mxu0 0.0
    %6482 = vmatpush1.msra.mxu0 0.0
    %6483 = vmatprep.subr.mxu0 0.0
    %6484 = vmatpush1.msra.mxu0 0.0
    %6485 = vmatprep.subr.mxu0 0.0
    %6486 = vmatpush1.msra.mxu0 0.0
    %6487 = vmatprep.subr.mxu0 0.0
    %6488 = vmatpush1.msra.mxu0 0.0
    %6489 = vmatprep.subr.mxu0 0.0
    %6490 = vmatpush1.msra.mxu0 0.0
    %6491 = vmatprep.subr.mxu0 0.0
    %6492 = vmatpush1.msra.mxu0 0.0
    %6493 = vmatprep.subr.mxu0 0.0
    %6494 = vmatpush1.msra.mxu0 0.0
    %6495 = vmatprep.subr.mxu0 0.0
    %6496 = vmatpush1.msra.mxu0 0.0
    %6497 = vmatprep.subr.mxu0 0.0
    %6498 = vmatpush1.msra.mxu0 0.0
    %6499 = vmatprep.subr.mxu0 0.0
    %6500 = vmatpush1.msra.mxu0 0.0
    %6501 = vmatprep.subr.mxu0 0.0
    %6502 = vmatpush1.msra.mxu0 0.0
    %6503 = vmatprep.subr.mxu0 0.0
    %6504 = vmatpush1.msra.mxu0 0.0
    %6505 = vmatprep.subr.mxu0 0.0
    %6506 = vmatpush1.msra.mxu0 0.0
    %6507 = vmatprep.subr.mxu0 0.0
    %6508 = vmatpush1.msra.mxu0 0.0
    %6509 = vmatprep.subr.mxu0 0.0
    %6510 = vmatpush1.msra.mxu0 0.0
    %6511 = vmatprep.subr.mxu0 0.0
    %6512 = vmatpush1.msra.mxu0 0.0
    %6513 = vmatprep.subr.mxu0 0.0
    %6514 = vmatpush1.msra.mxu0 0.0
    %6515 = vmatprep.mubr.f32.mxu0 0.0
    %6516 = vmatmul.mubr.f32.gmra.mrb[0].mxu0 %v6404
    %v6517 = vpop.f32.mrb[0].mxu0
    %v6518 = vadd.f32 0.0, %v6517
    %v6519 = vpop.f32.mrb[0].mxu0
    %6520 = vmatprep.mubr.f32.mxu0 0.0
    %6521 = vmatmul.mubr.f32.gmra.mrb[0].mxu0 %v6407
    %v6522 = vpop.f32.mrb[0].mxu0
    %v6523 = vadd.f32 0.0, %v6522
    %v6524 = vpop.f32.mrb[0].mxu0
    %6525 = vmatprep.mubr.f32.mxu0 0.0
    %6526 = vmatmul.mubr.f32.gmra.mrb[0].mxu0 %v6410
    %v6527 = vpop.f32.mrb[0].mxu0
    %v6528 = vadd.f32 0.0, %v6527
    %v6529 = vpop.f32.mrb[0].mxu0
    %6530 = vmatprep.mubr.f32.mxu0 0.0
    %6531 = vmatmul.mubr.f32.gmra.mrb[0].mxu0 %v6413
    %v6532 = vpop.f32.mrb[0].mxu0
    %v6533 = vadd.f32 0.0, %v6532
    %v6534 = vpop.f32.mrb[0].mxu0
    %6535 = vmatprep.mubr.f32.mxu0 0.0
    %6536 = vmatmul.mubr.f32.gmra.mrb[0].mxu0 %v6416
    %v6537 = vpop.f32.mrb[0].mxu0
    %v6538 = vadd.f32 0.0, %v6537
    %v6539 = vpop.f32.mrb[0].mxu0
    %6540 = vmatprep.mubr.f32.mxu0 0.0
    %6541 = vmatmul.mubr.f32.gmra.mrb[0].mxu0 %v6419
    %v6542 = vpop.f32.mrb[0].mxu0
    %v6543 = vadd.f32 0.0, %v6542
    %v6544 = vpop.f32.mrb[0].mxu0
    %6545 = vmatprep.mubr.f32.mxu0 0.0
    %6546 = vmatmul.mubr.f32.gmra.mrb[0].mxu0 %v6422
    %v6547 = vpop.f32.mrb[0].mxu0
    %v6548 = vadd.f32 0.0, %v6547
    %v6549 = vpop.f32.mrb[0].mxu0
    %6550 = vmatprep.mubr.f32.mxu0 0.0
    %6551 = vmatmul.mubr.f32.gmra.mrb[0].mxu0 %v6425
    %v6552 = vpop.f32.mrb[0].mxu0
    %v6553 = vadd.f32 0.0, %v6552
    %v6554 = vpop.f32.mrb[0].mxu0
    %6555 = vmatprep.mubr.f32.mxu0 0.0
    %6556 = vmatmul.mubr.f32.gmra.mrb[0].mxu0 %v6428
    %v6557 = vpop.f32.mrb[0].mxu0
    %v6558 = vadd.f32 0.0, %v6557
    %v6559 = vpop.f32.mrb[0].mxu0
    %6560 = vmatprep.mubr.f32.mxu0 0.0
    %6561 = vmatmul.mubr.f32.gmra.mrb[0].mxu0 %v6431
    %v6562 = vpop.f32.mrb[0].mxu0
    %v6563 = vadd.f32 0.0, %v6562
    %v6564 = vpop.f32.mrb[0].mxu0
    %6565 = vmatprep.mubr.f32.mxu0 0.0
    %6566 = vmatmul.mubr.f32.gmra.mrb[0].mxu0 %v6434
    %v6567 = vpop.f32.mrb[0].mxu0
    %v6568 = vadd.f32 0.0, %v6567
    %v6569 = vpop.f32.mrb[0].mxu0
    %6570 = vmatprep.mubr.f32.mxu0 0.0
    %6571 = vmatmul.mubr.f32.gmra.mrb[0].mxu0 %v6437
    %v6572 = vpop.f32.mrb[0].mxu0
    %v6573 = vadd.f32 0.0, %v6572
    %v6574 = vpop.f32.mrb[0].mxu0
    %6575 = vmatprep.mubr.f32.mxu0 0.0
    %6576 = vmatmul.mubr.f32.gmra.mrb[0].mxu0 %v6440
    %v6577 = vpop.f32.mrb[0].mxu0
    %v6578 = vadd.f32 0.0, %v6577
    %v6579 = vpop.f32.mrb[0].mxu0
    %6580 = vmatprep.mubr.f32.mxu0 0.0
    %6581 = vmatmul.mubr.f32.gmra.mrb[0].mxu0 %v6443
    %v6582 = vpop.f32.mrb[0].mxu0
    %v6583 = vadd.f32 0.0, %v6582
    %v6584 = vpop.f32.mrb[0].mxu0
    %6585 = vmatprep.mubr.f32.mxu0 0.0
    %6586 = vmatmul.mubr.f32.gmra.mrb[0].mxu0 %v6446
    %v6587 = vpop.f32.mrb[0].mxu0
    %v6588 = vadd.f32 0.0, %v6587
    %v6589 = vpop.f32.mrb[0].mxu0
    %6590 = vmatprep.mubr.f32.mxu0 0.0
    %6591 = vmatmul.mubr.f32.gmra.mrb[0].mxu0 %v6449
    %v6592 = vpop.f32.mrb[0].mxu0
    %v6593 = vadd.f32 0.0, %v6592
    %v6594 = vpop.f32.mrb[0].mxu0
    %6595 = vdwg.mxu0
    %v6596 = vadd.f32 %v5714, %v6518
    %v6597 = vadd.f32 %v5719, %v6523
    %v6598 = vadd.f32 %v5724, %v6528
    %v6599 = vadd.f32 %v5729, %v6533
    %v6600 = vadd.f32 %v5734, %v6538
    %v6601 = vadd.f32 %v5739, %v6543
    %v6602 = vadd.f32 %v5744, %v6548
    %v6603 = vadd.f32 %v5749, %v6553
    %v6604 = vadd.f32 %v5754, %v6558
    %v6605 = vadd.f32 %v5759, %v6563
    %v6606 = vadd.f32 %v5764, %v6568
    %v6607 = vadd.f32 %v5769, %v6573
    %v6608 = vadd.f32 %v5774, %v6578
    %v6609 = vadd.f32 %v5779, %v6583
    %v6610 = vadd.f32 %v5784, %v6588
    %v6611 = vadd.f32 %v5789, %v6593
    %6612 = vrot.lane.b32.xlu0 %v4232, 104
    %v6613 = vpop.permute.xlu0 %6612
    %6614 = vrot.lane.b32.xlu0 %v4233, 104
    %v6615 = vpop.permute.xlu0 %6614
    %6616 = vrot.lane.b32.xlu0 %v4234, 104
    %v6617 = vpop.permute.xlu0 %6616
    %6618 = vrot.lane.b32.xlu0 %v4235, 104
    %v6619 = vpop.permute.xlu0 %6618
    %6620 = vrot.lane.b32.xlu0 %v4236, 104
    %v6621 = vpop.permute.xlu0 %6620
    %6622 = vrot.lane.b32.xlu0 %v4237, 104
    %v6623 = vpop.permute.xlu0 %6622
    %6624 = vrot.lane.b32.xlu0 %v4238, 104
    %v6625 = vpop.permute.xlu0 %6624
    %6626 = vrot.lane.b32.xlu0 %v4239, 104
    %v6627 = vpop.permute.xlu0 %6626
    %6628 = vrot.lane.b32.xlu0 %v4240, 104
    %v6629 = vpop.permute.xlu0 %6628
    %6630 = vrot.lane.b32.xlu0 %v4241, 104
    %v6631 = vpop.permute.xlu0 %6630
    %6632 = vrot.lane.b32.xlu0 %v4242, 104
    %v6633 = vpop.permute.xlu0 %6632
    %6634 = vrot.lane.b32.xlu0 %v4243, 104
    %v6635 = vpop.permute.xlu0 %6634
    %6636 = vrot.lane.b32.xlu0 %v4244, 104
    %v6637 = vpop.permute.xlu0 %6636
    %6638 = vrot.lane.b32.xlu0 %v4245, 104
    %v6639 = vpop.permute.xlu0 %6638
    %6640 = vrot.lane.b32.xlu0 %v4246, 104
    %v6641 = vpop.permute.xlu0 %6640
    %6642 = vrot.lane.b32.xlu0 %v4247, 104
    %v6643 = vpop.permute.xlu0 %6642
    %6644 = vrot.lane.b32.xlu0 %v4074, 104
    %v6645 = vpop.permute.xlu0 %6644
    %6646 = vrot.lane.b32.xlu0 %v4079, 104
    %v6647 = vpop.permute.xlu0 %6646
    %6648 = vrot.lane.b32.xlu0 %v4084, 104
    %v6649 = vpop.permute.xlu0 %6648
    %6650 = vrot.lane.b32.xlu0 %v4089, 104
    %v6651 = vpop.permute.xlu0 %6650
    %6652 = vrot.lane.b32.xlu0 %v4094, 104
    %v6653 = vpop.permute.xlu0 %6652
    %6654 = vrot.lane.b32.xlu0 %v4099, 104
    %v6655 = vpop.permute.xlu0 %6654
    %6656 = vrot.lane.b32.xlu0 %v4104, 104
    %v6657 = vpop.permute.xlu0 %6656
    %6658 = vrot.lane.b32.xlu0 %v4109, 104
    %v6659 = vpop.permute.xlu0 %6658
    %6660 = vrot.lane.b32.xlu0 %v4114, 104
    %v6661 = vpop.permute.xlu0 %6660
    %6662 = vrot.lane.b32.xlu0 %v4119, 104
    %v6663 = vpop.permute.xlu0 %6662
    %6664 = vrot.lane.b32.xlu0 %v4124, 104
    %v6665 = vpop.permute.xlu0 %6664
    %6666 = vrot.lane.b32.xlu0 %v4129, 104
    %v6667 = vpop.permute.xlu0 %6666
    %6668 = vrot.lane.b32.xlu0 %v4134, 104
    %v6669 = vpop.permute.xlu0 %6668
    %6670 = vrot.lane.b32.xlu0 %v4139, 104
    %v6671 = vpop.permute.xlu0 %6670
    %6672 = vrot.lane.b32.xlu0 %v4144, 104
    %v6673 = vpop.permute.xlu0 %6672
    %6674 = vrot.lane.b32.xlu0 %v4149, 104
    %v6675 = vpop.permute.xlu0 %6674
    %v6676 = vsel %vm533, %v6613, 0
    %v6678 = vsel %vm533, %v6615, 0
    %v6680 = vsel %vm533, %v6617, 0
    %v6682 = vsel %vm533, %v6619, 0
    %v6684 = vsel %vm533, %v6621, 0
    %v6686 = vsel %vm533, %v6623, 0
    %v6688 = vsel %vm533, %v6625, 0
    %v6690 = vsel %vm533, %v6627, 0
    %v6692 = vsel %vm533, %v6629, 0
    %v6694 = vsel %vm533, %v6631, 0
    %v6696 = vsel %vm533, %v6633, 0
    %v6698 = vsel %vm533, %v6635, 0
    %v6700 = vsel %vm533, %v6637, 0
    %v6702 = vsel %vm533, %v6639, 0
    %v6704 = vsel %vm533, %v6641, 0
    %v6706 = vsel %vm533, %v6643, 0
    %v6708 = vsel %vm533, %v6645, 0
    %v6710 = vsel %vm533, %v6647, 0
    %v6712 = vsel %vm533, %v6649, 0
    %v6714 = vsel %vm533, %v6651, 0
    %v6716 = vsel %vm533, %v6653, 0
    %v6718 = vsel %vm533, %v6655, 0
    %v6720 = vsel %vm533, %v6657, 0
    %v6722 = vsel %vm533, %v6659, 0
    %v6724 = vsel %vm533, %v6661, 0
    %v6726 = vsel %vm533, %v6663, 0
    %v6728 = vsel %vm533, %v6665, 0
    %v6730 = vsel %vm533, %v6667, 0
    %v6732 = vsel %vm533, %v6669, 0
    %v6734 = vsel %vm533, %v6671, 0
    %v6736 = vsel %vm533, %v6673, 0
    %v6738 = vsel %vm533, %v6675, 0
    %6740 = vmatprep.subr.mxu0 0.0
    %6741 = vmatpush1.xpose.msra.mxu0 %v6708
    %6742 = vmatprep.subr.mxu0 0.0
    %6743 = vmatpush1.xpose.msra.mxu0 %v6710
    %6744 = vmatprep.subr.mxu0 0.0
    %6745 = vmatpush1.xpose.msra.mxu0 %v6712
    %6746 = vmatprep.subr.mxu0 0.0
    %6747 = vmatpush1.xpose.msra.mxu0 %v6714
    %6748 = vmatprep.subr.mxu0 0.0
    %6749 = vmatpush1.xpose.msra.mxu0 %v6716
    %6750 = vmatprep.subr.mxu0 0.0
    %6751 = vmatpush1.xpose.msra.mxu0 %v6718
    %6752 = vmatprep.subr.mxu0 0.0
    %6753 = vmatpush1.xpose.msra.mxu0 %v6720
    %6754 = vmatprep.subr.mxu0 0.0
    %6755 = vmatpush1.xpose.msra.mxu0 %v6722
    %6756 = vmatprep.subr.mxu0 0.0
    %6757 = vmatpush1.xpose.msra.mxu0 %v6724
    %6758 = vmatprep.subr.mxu0 0.0
    %6759 = vmatpush1.xpose.msra.mxu0 %v6726
    %6760 = vmatprep.subr.mxu0 0.0
    %6761 = vmatpush1.xpose.msra.mxu0 %v6728
    %6762 = vmatprep.subr.mxu0 0.0
    %6763 = vmatpush1.xpose.msra.mxu0 %v6730
    %6764 = vmatprep.subr.mxu0 0.0
    %6765 = vmatpush1.xpose.msra.mxu0 %v6732
    %6766 = vmatprep.subr.mxu0 0.0
    %6767 = vmatpush1.xpose.msra.mxu0 %v6734
    %6768 = vmatprep.subr.mxu0 0.0
    %6769 = vmatpush1.xpose.msra.mxu0 %v6736
    %6770 = vmatprep.subr.mxu0 0.0
    %6771 = vmatpush1.xpose.msra.mxu0 %v6738
    %6772 = vmatprep.subr.mxu0 0.0
    %6773 = vmatpush1.xpose.msra.mxu0 0.0
    %6774 = vmatprep.subr.mxu0 0.0
    %6775 = vmatpush1.xpose.msra.mxu0 0.0
    %6776 = vmatprep.subr.mxu0 0.0
    %6777 = vmatpush1.xpose.msra.mxu0 0.0
    %6778 = vmatprep.subr.mxu0 0.0
    %6779 = vmatpush1.xpose.msra.mxu0 0.0
    %6780 = vmatprep.subr.mxu0 0.0
    %6781 = vmatpush1.xpose.msra.mxu0 0.0
    %6782 = vmatprep.subr.mxu0 0.0
    %6783 = vmatpush1.xpose.msra.mxu0 0.0
    %6784 = vmatprep.subr.mxu0 0.0
    %6785 = vmatpush1.xpose.msra.mxu0 0.0
    %6786 = vmatprep.subr.mxu0 0.0
    %6787 = vmatpush1.xpose.msra.mxu0 0.0
    %6788 = vmatprep.subr.mxu0 0.0
    %6789 = vmatpush1.xpose.msra.mxu0 0.0
    %6790 = vmatprep.subr.mxu0 0.0
    %6791 = vmatpush1.xpose.msra.mxu0 0.0
    %6792 = vmatprep.subr.mxu0 0.0
    %6793 = vmatpush1.xpose.msra.mxu0 0.0
    %6794 = vmatprep.subr.mxu0 0.0
    %6795 = vmatpush1.xpose.msra.mxu0 0.0
    %6796 = vmatprep.subr.mxu0 0.0
    %6797 = vmatpush1.xpose.msra.mxu0 0.0
    %6798 = vmatprep.subr.mxu0 0.0
    %6799 = vmatpush1.xpose.msra.mxu0 0.0
    %6800 = vmatprep.subr.mxu0 0.0
    %6801 = vmatpush1.xpose.msra.mxu0 0.0
    %6802 = vmatprep.subr.mxu0 0.0
    %6803 = vmatpush1.xpose.msra.mxu0 0.0
    %6804 = vmatprep.mubr.f32.mxu0 0.0
    %6805 = vmatmul.mubr.f32.gmra.mrb[0].mxu0 %v6676
    %v6806 = vpop.f32.mrb[0].mxu0
    %v6807 = vadd.f32 0.0, %v6806
    %v6808 = vpop.f32.mrb[0].mxu0
    %6809 = vmatprep.mubr.f32.mxu0 0.0
    %6810 = vmatmul.mubr.f32.gmra.mrb[0].mxu0 %v6678
    %v6811 = vpop.f32.mrb[0].mxu0
    %v6812 = vadd.f32 0.0, %v6811
    %v6813 = vpop.f32.mrb[0].mxu0
    %6814 = vmatprep.mubr.f32.mxu0 0.0
    %6815 = vmatmul.mubr.f32.gmra.mrb[0].mxu0 %v6680
    %v6816 = vpop.f32.mrb[0].mxu0
    %v6817 = vadd.f32 0.0, %v6816
    %v6818 = vpop.f32.mrb[0].mxu0
    %6819 = vmatprep.mubr.f32.mxu0 0.0
    %6820 = vmatmul.mubr.f32.gmra.mrb[0].mxu0 %v6682
    %v6821 = vpop.f32.mrb[0].mxu0
    %v6822 = vadd.f32 0.0, %v6821
    %v6823 = vpop.f32.mrb[0].mxu0
    %6824 = vmatprep.mubr.f32.mxu0 0.0
    %6825 = vmatmul.mubr.f32.gmra.mrb[0].mxu0 %v6684
    %v6826 = vpop.f32.mrb[0].mxu0
    %v6827 = vadd.f32 0.0, %v6826
    %v6828 = vpop.f32.mrb[0].mxu0
    %6829 = vmatprep.mubr.f32.mxu0 0.0
    %6830 = vmatmul.mubr.f32.gmra.mrb[0].mxu0 %v6686
    %v6831 = vpop.f32.mrb[0].mxu0
    %v6832 = vadd.f32 0.0, %v6831
    %v6833 = vpop.f32.mrb[0].mxu0
    %6834 = vmatprep.mubr.f32.mxu0 0.0
    %6835 = vmatmul.mubr.f32.gmra.mrb[0].mxu0 %v6688
    %v6836 = vpop.f32.mrb[0].mxu0
    %v6837 = vadd.f32 0.0, %v6836
    %v6838 = vpop.f32.mrb[0].mxu0
    %6839 = vmatprep.mubr.f32.mxu0 0.0
    %6840 = vmatmul.mubr.f32.gmra.mrb[0].mxu0 %v6690
    %v6841 = vpop.f32.mrb[0].mxu0
    %v6842 = vadd.f32 0.0, %v6841
    %v6843 = vpop.f32.mrb[0].mxu0
    %6844 = vmatprep.mubr.f32.mxu0 0.0
    %6845 = vmatmul.mubr.f32.gmra.mrb[0].mxu0 %v6692
    %v6846 = vpop.f32.mrb[0].mxu0
    %v6847 = vadd.f32 0.0, %v6846
    %v6848 = vpop.f32.mrb[0].mxu0
    %6849 = vmatprep.mubr.f32.mxu0 0.0
    %6850 = vmatmul.mubr.f32.gmra.mrb[0].mxu0 %v6694
    %v6851 = vpop.f32.mrb[0].mxu0
    %v6852 = vadd.f32 0.0, %v6851
    %v6853 = vpop.f32.mrb[0].mxu0
    %6854 = vmatprep.mubr.f32.mxu0 0.0
    %6855 = vmatmul.mubr.f32.gmra.mrb[0].mxu0 %v6696
    %v6856 = vpop.f32.mrb[0].mxu0
    %v6857 = vadd.f32 0.0, %v6856
    %v6858 = vpop.f32.mrb[0].mxu0
    %6859 = vmatprep.mubr.f32.mxu0 0.0
    %6860 = vmatmul.mubr.f32.gmra.mrb[0].mxu0 %v6698
    %v6861 = vpop.f32.mrb[0].mxu0
    %v6862 = vadd.f32 0.0, %v6861
    %v6863 = vpop.f32.mrb[0].mxu0
    %6864 = vmatprep.mubr.f32.mxu0 0.0
    %6865 = vmatmul.mubr.f32.gmra.mrb[0].mxu0 %v6700
    %v6866 = vpop.f32.mrb[0].mxu0
    %v6867 = vadd.f32 0.0, %v6866
    %v6868 = vpop.f32.mrb[0].mxu0
    %6869 = vmatprep.mubr.f32.mxu0 0.0
    %6870 = vmatmul.mubr.f32.gmra.mrb[0].mxu0 %v6702
    %v6871 = vpop.f32.mrb[0].mxu0
    %v6872 = vadd.f32 0.0, %v6871
    %v6873 = vpop.f32.mrb[0].mxu0
    %6874 = vmatprep.mubr.f32.mxu0 0.0
    %6875 = vmatmul.mubr.f32.gmra.mrb[0].mxu0 %v6704
    %v6876 = vpop.f32.mrb[0].mxu0
    %v6877 = vadd.f32 0.0, %v6876
    %v6878 = vpop.f32.mrb[0].mxu0
    %6879 = vmatprep.mubr.f32.mxu0 0.0
    %6880 = vmatmul.mubr.f32.gmra.mrb[0].mxu0 %v6706
    %v6881 = vpop.f32.mrb[0].mxu0
    %v6882 = vadd.f32 0.0, %v6881
    %v6883 = vpop.f32.mrb[0].mxu0
    %6884 = vdwg.mxu0
    %6885 = vmax.xlane.f32.xlu0 %v6807
    %v6886 = vpop.xlane.xlu0 %6885
    %6887 = vmax.xlane.f32.xlu0 %v6812
    %v6888 = vpop.xlane.xlu0 %6887
    %6889 = vmax.xlane.f32.xlu0 %v6817
    %v6890 = vpop.xlane.xlu0 %6889
    %6891 = vmax.xlane.f32.xlu0 %v6822
    %v6892 = vpop.xlane.xlu0 %6891
    %6893 = vmax.xlane.f32.xlu0 %v6827
    %v6894 = vpop.xlane.xlu0 %6893
    %6895 = vmax.xlane.f32.xlu0 %v6832
    %v6896 = vpop.xlane.xlu0 %6895
    %6897 = vmax.xlane.f32.xlu0 %v6837
    %v6898 = vpop.xlane.xlu0 %6897
    %6899 = vmax.xlane.f32.xlu0 %v6842
    %v6900 = vpop.xlane.xlu0 %6899
    %6901 = vmax.xlane.f32.xlu0 %v6847
    %v6902 = vpop.xlane.xlu0 %6901
    %6903 = vmax.xlane.f32.xlu0 %v6852
    %v6904 = vpop.xlane.xlu0 %6903
    %6905 = vmax.xlane.f32.xlu0 %v6857
    %v6906 = vpop.xlane.xlu0 %6905
    %6907 = vmax.xlane.f32.xlu0 %v6862
    %v6908 = vpop.xlane.xlu0 %6907
    %6909 = vmax.xlane.f32.xlu0 %v6867
    %v6910 = vpop.xlane.xlu0 %6909
    %6911 = vmax.xlane.f32.xlu0 %v6872
    %v6912 = vpop.xlane.xlu0 %6911
    %6913 = vmax.xlane.f32.xlu0 %v6877
    %v6914 = vpop.xlane.xlu0 %6913
    %6915 = vmax.xlane.f32.xlu0 %v6882
    %v6916 = vpop.xlane.xlu0 %6915
    %v6917 = vsub.f32 %v6807, %v6886
    %v6918 = vsub.f32 %v6812, %v6888
    %v6919 = vsub.f32 %v6817, %v6890
    %v6920 = vsub.f32 %v6822, %v6892
    %v6921 = vsub.f32 %v6827, %v6894
    %v6922 = vsub.f32 %v6832, %v6896
    %v6923 = vsub.f32 %v6837, %v6898
    %v6924 = vsub.f32 %v6842, %v6900
    %v6925 = vsub.f32 %v6847, %v6902
    %v6926 = vsub.f32 %v6852, %v6904
    %v6927 = vsub.f32 %v6857, %v6906
    %v6928 = vsub.f32 %v6862, %v6908
    %v6929 = vsub.f32 %v6867, %v6910
    %v6930 = vsub.f32 %v6872, %v6912
    %v6931 = vsub.f32 %v6877, %v6914
    %v6932 = vsub.f32 %v6882, %v6916
    %v6933 = vmul.f32 %v6917, 1.442695
    %v6934 = vpow.pop %v6933
    %v6935 = vmul.f32 %v6918, 1.442695
    %v6936 = vpow.pop %v6935
    %v6937 = vmul.f32 %v6919, 1.442695
    %v6938 = vpow.pop %v6937
    %v6939 = vmul.f32 %v6920, 1.442695
    %v6940 = vpow.pop %v6939
    %v6941 = vmul.f32 %v6921, 1.442695
    %v6942 = vpow.pop %v6941
    %v6943 = vmul.f32 %v6922, 1.442695
    %v6944 = vpow.pop %v6943
    %v6945 = vmul.f32 %v6923, 1.442695
    %v6946 = vpow.pop %v6945
    %v6947 = vmul.f32 %v6924, 1.442695
    %v6948 = vpow.pop %v6947
    %v6949 = vmul.f32 %v6925, 1.442695
    %v6950 = vpow.pop %v6949
    %v6951 = vmul.f32 %v6926, 1.442695
    %v6952 = vpow.pop %v6951
    %v6953 = vmul.f32 %v6927, 1.442695
    %v6954 = vpow.pop %v6953
    %v6955 = vmul.f32 %v6928, 1.442695
    %v6956 = vpow.pop %v6955
    %v6957 = vmul.f32 %v6929, 1.442695
    %v6958 = vpow.pop %v6957
    %v6959 = vmul.f32 %v6930, 1.442695
    %v6960 = vpow.pop %v6959
    %v6961 = vmul.f32 %v6931, 1.442695
    %v6962 = vpow.pop %v6961
    %v6963 = vmul.f32 %v6932, 1.442695
    %v6964 = vpow.pop %v6963
    %6965 = vadd.xlane.f32.xlu0 %v6934
    %v6966 = vpop.xlane.xlu0 %6965
    %6967 = vadd.xlane.f32.xlu0 %v6936
    %v6968 = vpop.xlane.xlu0 %6967
    %6969 = vadd.xlane.f32.xlu0 %v6938
    %v6970 = vpop.xlane.xlu0 %6969
    %6971 = vadd.xlane.f32.xlu0 %v6940
    %v6972 = vpop.xlane.xlu0 %6971
    %6973 = vadd.xlane.f32.xlu0 %v6942
    %v6974 = vpop.xlane.xlu0 %6973
    %6975 = vadd.xlane.f32.xlu0 %v6944
    %v6976 = vpop.xlane.xlu0 %6975
    %6977 = vadd.xlane.f32.xlu0 %v6946
    %v6978 = vpop.xlane.xlu0 %6977
    %6979 = vadd.xlane.f32.xlu0 %v6948
    %v6980 = vpop.xlane.xlu0 %6979
    %6981 = vadd.xlane.f32.xlu0 %v6950
    %v6982 = vpop.xlane.xlu0 %6981
    %6983 = vadd.xlane.f32.xlu0 %v6952
    %v6984 = vpop.xlane.xlu0 %6983
    %6985 = vadd.xlane.f32.xlu0 %v6954
    %v6986 = vpop.xlane.xlu0 %6985
    %6987 = vadd.xlane.f32.xlu0 %v6956
    %v6988 = vpop.xlane.xlu0 %6987
    %6989 = vadd.xlane.f32.xlu0 %v6958
    %v6990 = vpop.xlane.xlu0 %6989
    %6991 = vadd.xlane.f32.xlu0 %v6960
    %v6992 = vpop.xlane.xlu0 %6991
    %6993 = vadd.xlane.f32.xlu0 %v6962
    %v6994 = vpop.xlane.xlu0 %6993
    %6995 = vadd.xlane.f32.xlu0 %v6964
    %v6996 = vpop.xlane.xlu0 %6995
    %v6997 = vrcp.pop %v6966
    %v6998 = vrcp.pop %v6968
    %v6999 = vrcp.pop %v6970
    %v7000 = vrcp.pop %v6972
    %v7001 = vrcp.pop %v6974
    %v7002 = vrcp.pop %v6976
    %v7003 = vrcp.pop %v6978
    %v7004 = vrcp.pop %v6980
    %v7005 = vrcp.pop %v6982
    %v7006 = vrcp.pop %v6984
    %v7007 = vrcp.pop %v6986
    %v7008 = vrcp.pop %v6988
    %v7009 = vrcp.pop %v6990
    %v7010 = vrcp.pop %v6992
    %v7011 = vrcp.pop %v6994
    %v7012 = vrcp.pop %v6996
    %v7013 = vmul.f32 %v6934, %v6997
    %v7014 = vmul.f32 %v6936, %v6998
    %v7015 = vmul.f32 %v6938, %v6999
    %v7016 = vmul.f32 %v6940, %v7000
    %v7017 = vmul.f32 %v6942, %v7001
    %v7018 = vmul.f32 %v6944, %v7002
    %v7019 = vmul.f32 %v6946, %v7003
    %v7020 = vmul.f32 %v6948, %v7004
    %v7021 = vmul.f32 %v6950, %v7005
    %v7022 = vmul.f32 %v6952, %v7006
    %v7023 = vmul.f32 %v6954, %v7007
    %v7024 = vmul.f32 %v6956, %v7008
    %v7025 = vmul.f32 %v6958, %v7009
    %v7026 = vmul.f32 %v6960, %v7010
    %v7027 = vmul.f32 %v6962, %v7011
    %v7028 = vmul.f32 %v6964, %v7012
    %7029 = vrot.lane.b32.xlu0 %v4154, 104
    %v7030 = vpop.permute.xlu0 %7029
    %7031 = vrot.lane.b32.xlu0 %v4159, 104
    %v7032 = vpop.permute.xlu0 %7031
    %7033 = vrot.lane.b32.xlu0 %v4164, 104
    %v7034 = vpop.permute.xlu0 %7033
    %7035 = vrot.lane.b32.xlu0 %v4169, 104
    %v7036 = vpop.permute.xlu0 %7035
    %7037 = vrot.lane.b32.xlu0 %v4174, 104
    %v7038 = vpop.permute.xlu0 %7037
    %7039 = vrot.lane.b32.xlu0 %v4179, 104
    %v7040 = vpop.permute.xlu0 %7039
    %7041 = vrot.lane.b32.xlu0 %v4184, 104
    %v7042 = vpop.permute.xlu0 %7041
    %7043 = vrot.lane.b32.xlu0 %v4189, 104
    %v7044 = vpop.permute.xlu0 %7043
    %7045 = vrot.lane.b32.xlu0 %v4194, 104
    %v7046 = vpop.permute.xlu0 %7045
    %7047 = vrot.lane.b32.xlu0 %v4199, 104
    %v7048 = vpop.permute.xlu0 %7047
    %7049 = vrot.lane.b32.xlu0 %v4204, 104
    %v7050 = vpop.permute.xlu0 %7049
    %7051 = vrot.lane.b32.xlu0 %v4209, 104
    %v7052 = vpop.permute.xlu0 %7051
    %7053 = vrot.lane.b32.xlu0 %v4214, 104
    %v7054 = vpop.permute.xlu0 %7053
    %7055 = vrot.lane.b32.xlu0 %v4219, 104
    %v7056 = vpop.permute.xlu0 %7055
    %7057 = vrot.lane.b32.xlu0 %v4224, 104
    %v7058 = vpop.permute.xlu0 %7057
    %7059 = vrot.lane.b32.xlu0 %v4229, 104
    %v7060 = vpop.permute.xlu0 %7059
    %7077 = vmatprep.subr.mxu0 0.0
    %7078 = vmatpush1.msra.mxu0 %v7030
    %7079 = vmatprep.subr.mxu0 0.0
    %7080 = vmatpush1.msra.mxu0 %v7032
    %7081 = vmatprep.subr.mxu0 0.0
    %7082 = vmatpush1.msra.mxu0 %v7034
    %7083 = vmatprep.subr.mxu0 0.0
    %7084 = vmatpush1.msra.mxu0 %v7036
    %7085 = vmatprep.subr.mxu0 0.0
    %7086 = vmatpush1.msra.mxu0 %v7038
    %7087 = vmatprep.subr.mxu0 0.0
    %7088 = vmatpush1.msra.mxu0 %v7040
    %7089 = vmatprep.subr.mxu0 0.0
    %7090 = vmatpush1.msra.mxu0 %v7042
    %7091 = vmatprep.subr.mxu0 0.0
    %7092 = vmatpush1.msra.mxu0 %v7044
    %7093 = vmatprep.subr.mxu0 0.0
    %7094 = vmatpush1.msra.mxu0 %v7046
    %7095 = vmatprep.subr.mxu0 0.0
    %7096 = vmatpush1.msra.mxu0 %v7048
    %7097 = vmatprep.subr.mxu0 0.0
    %7098 = vmatpush1.msra.mxu0 %v7050
    %7099 = vmatprep.subr.mxu0 0.0
    %7100 = vmatpush1.msra.mxu0 %v7052
    %7101 = vmatprep.subr.mxu0 0.0
    %7102 = vmatpush1.msra.mxu0 %v7054
    %7103 = vmatprep.subr.mxu0 0.0
    %7104 = vmatpush1.msra.mxu0 %v7056
    %7105 = vmatprep.subr.mxu0 0.0
    %7106 = vmatpush1.msra.mxu0 %v7058
    %7107 = vmatprep.subr.mxu0 0.0
    %7108 = vmatpush1.msra.mxu0 %v7060
    %7109 = vmatprep.subr.mxu0 0.0
    %7110 = vmatpush1.msra.mxu0 0.0
    %7111 = vmatprep.subr.mxu0 0.0
    %7112 = vmatpush1.msra.mxu0 0.0
    %7113 = vmatprep.subr.mxu0 0.0
    %7114 = vmatpush1.msra.mxu0 0.0
    %7115 = vmatprep.subr.mxu0 0.0
    %7116 = vmatpush1.msra.mxu0 0.0
    %7117 = vmatprep.subr.mxu0 0.0
    %7118 = vmatpush1.msra.mxu0 0.0
    %7119 = vmatprep.subr.mxu0 0.0
    %7120 = vmatpush1.msra.mxu0 0.0
    %7121 = vmatprep.subr.mxu0 0.0
    %7122 = vmatpush1.msra.mxu0 0.0
    %7123 = vmatprep.subr.mxu0 0.0
    %7124 = vmatpush1.msra.mxu0 0.0
    %7125 = vmatprep.subr.mxu0 0.0
    %7126 = vmatpush1.msra.mxu0 0.0
    %7127 = vmatprep.subr.mxu0 0.0
    %7128 = vmatpush1.msra.mxu0 0.0
    %7129 = vmatprep.subr.mxu0 0.0
    %7130 = vmatpush1.msra.mxu0 0.0
    %7131 = vmatprep.subr.mxu0 0.0
    %7132 = vmatpush1.msra.mxu0 0.0
    %7133 = vmatprep.subr.mxu0 0.0
    %7134 = vmatpush1.msra.mxu0 0.0
    %7135 = vmatprep.subr.mxu0 0.0
    %7136 = vmatpush1.msra.mxu0 0.0
    %7137 = vmatprep.subr.mxu0 0.0
    %7138 = vmatpush1.msra.mxu0 0.0
    %7139 = vmatprep.subr.mxu0 0.0
    %7140 = vmatpush1.msra.mxu0 0.0
    %7141 = vmatprep.mubr.f32.mxu0 0.0
    %7142 = vmatmul.mubr.f32.gmra.mrb[0].mxu0 %v7013
    %v7143 = vpop.f32.mrb[0].mxu0
    %v7144 = vadd.f32 0.0, %v7143
    %v7145 = vpop.f32.mrb[0].mxu0
    %7146 = vmatprep.mubr.f32.mxu0 0.0
    %7147 = vmatmul.mubr.f32.gmra.mrb[0].mxu0 %v7014
    %v7148 = vpop.f32.mrb[0].mxu0
    %v7149 = vadd.f32 0.0, %v7148
    %v7150 = vpop.f32.mrb[0].mxu0
    %7151 = vmatprep.mubr.f32.mxu0 0.0
    %7152 = vmatmul.mubr.f32.gmra.mrb[0].mxu0 %v7015
    %v7153 = vpop.f32.mrb[0].mxu0
    %v7154 = vadd.f32 0.0, %v7153
    %v7155 = vpop.f32.mrb[0].mxu0
    %7156 = vmatprep.mubr.f32.mxu0 0.0
    %7157 = vmatmul.mubr.f32.gmra.mrb[0].mxu0 %v7016
    %v7158 = vpop.f32.mrb[0].mxu0
    %v7159 = vadd.f32 0.0, %v7158
    %v7160 = vpop.f32.mrb[0].mxu0
    %7161 = vmatprep.mubr.f32.mxu0 0.0
    %7162 = vmatmul.mubr.f32.gmra.mrb[0].mxu0 %v7017
    %v7163 = vpop.f32.mrb[0].mxu0
    %v7164 = vadd.f32 0.0, %v7163
    %v7165 = vpop.f32.mrb[0].mxu0
    %7166 = vmatprep.mubr.f32.mxu0 0.0
    %7167 = vmatmul.mubr.f32.gmra.mrb[0].mxu0 %v7018
    %v7168 = vpop.f32.mrb[0].mxu0
    %v7169 = vadd.f32 0.0, %v7168
    %v7170 = vpop.f32.mrb[0].mxu0
    %7171 = vmatprep.mubr.f32.mxu0 0.0
    %7172 = vmatmul.mubr.f32.gmra.mrb[0].mxu0 %v7019
    %v7173 = vpop.f32.mrb[0].mxu0
    %v7174 = vadd.f32 0.0, %v7173
    %v7175 = vpop.f32.mrb[0].mxu0
    %7176 = vmatprep.mubr.f32.mxu0 0.0
    %7177 = vmatmul.mubr.f32.gmra.mrb[0].mxu0 %v7020
    %v7178 = vpop.f32.mrb[0].mxu0
    %v7179 = vadd.f32 0.0, %v7178
    %v7180 = vpop.f32.mrb[0].mxu0
    %7181 = vmatprep.mubr.f32.mxu0 0.0
    %7182 = vmatmul.mubr.f32.gmra.mrb[0].mxu0 %v7021
    %v7183 = vpop.f32.mrb[0].mxu0
    %v7184 = vadd.f32 0.0, %v7183
    %v7185 = vpop.f32.mrb[0].mxu0
    %7186 = vmatprep.mubr.f32.mxu0 0.0
    %7187 = vmatmul.mubr.f32.gmra.mrb[0].mxu0 %v7022
    %v7188 = vpop.f32.mrb[0].mxu0
    %v7189 = vadd.f32 0.0, %v7188
    %v7190 = vpop.f32.mrb[0].mxu0
    %7191 = vmatprep.mubr.f32.mxu0 0.0
    %7192 = vmatmul.mubr.f32.gmra.mrb[0].mxu0 %v7023
    %v7193 = vpop.f32.mrb[0].mxu0
    %v7194 = vadd.f32 0.0, %v7193
    %v7195 = vpop.f32.mrb[0].mxu0
    %7196 = vmatprep.mubr.f32.mxu0 0.0
    %7197 = vmatmul.mubr.f32.gmra.mrb[0].mxu0 %v7024
    %v7198 = vpop.f32.mrb[0].mxu0
    %v7199 = vadd.f32 0.0, %v7198
    %v7200 = vpop.f32.mrb[0].mxu0
    %7201 = vmatprep.mubr.f32.mxu0 0.0
    %7202 = vmatmul.mubr.f32.gmra.mrb[0].mxu0 %v7025
    %v7203 = vpop.f32.mrb[0].mxu0
    %v7204 = vadd.f32 0.0, %v7203
    %v7205 = vpop.f32.mrb[0].mxu0
    %7206 = vmatprep.mubr.f32.mxu0 0.0
    %7207 = vmatmul.mubr.f32.gmra.mrb[0].mxu0 %v7026
    %v7208 = vpop.f32.mrb[0].mxu0
    %v7209 = vadd.f32 0.0, %v7208
    %v7210 = vpop.f32.mrb[0].mxu0
    %7211 = vmatprep.mubr.f32.mxu0 0.0
    %7212 = vmatmul.mubr.f32.gmra.mrb[0].mxu0 %v7027
    %v7213 = vpop.f32.mrb[0].mxu0
    %v7214 = vadd.f32 0.0, %v7213
    %v7215 = vpop.f32.mrb[0].mxu0
    %7216 = vmatprep.mubr.f32.mxu0 0.0
    %7217 = vmatmul.mubr.f32.gmra.mrb[0].mxu0 %v7028
    %v7218 = vpop.f32.mrb[0].mxu0
    %v7219 = vadd.f32 0.0, %v7218
    %v7220 = vpop.f32.mrb[0].mxu0
    %7221 = vdwg.mxu0
    %v7222 = vld [vmem:[%s2 + $0x18] sm:$0xff]
    %v7224 = vsel %vm533, %v7144, 0
    %v7227 = vsel %vm533, %v7149, 0
    %v7230 = vsel %vm533, %v7154, 0
    %v7233 = vsel %vm533, %v7159, 0
    %v7236 = vsel %vm533, %v7164, 0
    %v7239 = vsel %vm533, %v7169, 0
    %v7242 = vsel %vm533, %v7174, 0
    %v7245 = vsel %vm533, %v7179, 0
    %v7248 = vsel %vm533, %v7184, 0
    %v7251 = vsel %vm533, %v7189, 0
    %v7254 = vsel %vm533, %v7194, 0
    %v7257 = vsel %vm533, %v7199, 0
    %v7260 = vsel %vm533, %v7204, 0
    %v7263 = vsel %vm533, %v7209, 0
    %v7266 = vsel %vm533, %v7214, 0
    %v7269 = vsel %vm533, %v7219, 0
    %7271 = vmatprep.subr.mxu0 0.0
    %7272 = vmatpush1.msra.mxu0 %v7222
    %7273 = vmatprep.subr.mxu0 0.0
    %7274 = vmatpush1.msra.mxu0 0.0
    %7275 = vmatprep.subr.mxu0 0.0
    %7276 = vmatpush1.msra.mxu0 0.0
    %7277 = vmatprep.subr.mxu0 0.0
    %7278 = vmatpush1.msra.mxu0 0.0
    %7279 = vmatprep.subr.mxu0 0.0
    %7280 = vmatpush1.msra.mxu0 0.0
    %7281 = vmatprep.subr.mxu0 0.0
    %7282 = vmatpush1.msra.mxu0 0.0
    %7283 = vmatprep.subr.mxu0 0.0
    %7284 = vmatpush1.msra.mxu0 0.0
    %7285 = vmatprep.subr.mxu0 0.0
    %7286 = vmatpush1.msra.mxu0 0.0
    %7287 = vmatprep.subr.mxu0 0.0
    %7288 = vmatpush1.msra.mxu0 0.0
    %7289 = vmatprep.subr.mxu0 0.0
    %7290 = vmatpush1.msra.mxu0 0.0
    %7291 = vmatprep.subr.mxu0 0.0
    %7292 = vmatpush1.msra.mxu0 0.0
    %7293 = vmatprep.subr.mxu0 0.0
    %7294 = vmatpush1.msra.mxu0 0.0
    %7295 = vmatprep.subr.mxu0 0.0
    %7296 = vmatpush1.msra.mxu0 0.0
    %7297 = vmatprep.subr.mxu0 0.0
    %7298 = vmatpush1.msra.mxu0 0.0
    %7299 = vmatprep.subr.mxu0 0.0
    %7300 = vmatpush1.msra.mxu0 0.0
    %7301 = vmatprep.subr.mxu0 0.0
    %7302 = vmatpush1.msra.mxu0 0.0
    %7303 = vmatprep.subr.mxu0 0.0
    %7304 = vmatpush1.msra.mxu0 0.0
    %7305 = vmatprep.subr.mxu0 0.0
    %7306 = vmatpush1.msra.mxu0 0.0
    %7307 = vmatprep.subr.mxu0 0.0
    %7308 = vmatpush1.msra.mxu0 0.0
    %7309 = vmatprep.subr.mxu0 0.0
    %7310 = vmatpush1.msra.mxu0 0.0
    %7311 = vmatprep.subr.mxu0 0.0
    %7312 = vmatpush1.msra.mxu0 0.0
    %7313 = vmatprep.subr.mxu0 0.0
    %7314 = vmatpush1.msra.mxu0 0.0
    %7315 = vmatprep.subr.mxu0 0.0
    %7316 = vmatpush1.msra.mxu0 0.0
    %7317 = vmatprep.subr.mxu0 0.0
    %7318 = vmatpush1.msra.mxu0 0.0
    %7319 = vmatprep.subr.mxu0 0.0
    %7320 = vmatpush1.msra.mxu0 0.0
    %7321 = vmatprep.subr.mxu0 0.0
    %7322 = vmatpush1.msra.mxu0 0.0
    %7323 = vmatprep.subr.mxu0 0.0
    %7324 = vmatpush1.msra.mxu0 0.0
    %7325 = vmatprep.subr.mxu0 0.0
    %7326 = vmatpush1.msra.mxu0 0.0
    %7327 = vmatprep.subr.mxu0 0.0
    %7328 = vmatpush1.msra.mxu0 0.0
    %7329 = vmatprep.subr.mxu0 0.0
    %7330 = vmatpush1.msra.mxu0 0.0
    %7331 = vmatprep.subr.mxu0 0.0
    %7332 = vmatpush1.msra.mxu0 0.0
    %7333 = vmatprep.subr.mxu0 0.0
    %7334 = vmatpush1.msra.mxu0 0.0
    %7335 = vmatprep.mubr.f32.mxu0 0.0
    %7336 = vmatmul.mubr.f32.gmra.mrb[0].mxu0 %v7224
    %v7337 = vpop.f32.mrb[0].mxu0
    %v7338 = vadd.f32 0.0, %v7337
    %v7339 = vpop.f32.mrb[0].mxu0
    %7340 = vmatprep.mubr.f32.mxu0 0.0
    %7341 = vmatmul.mubr.f32.gmra.mrb[0].mxu0 %v7227
    %v7342 = vpop.f32.mrb[0].mxu0
    %v7343 = vadd.f32 0.0, %v7342
    %v7344 = vpop.f32.mrb[0].mxu0
    %7345 = vmatprep.mubr.f32.mxu0 0.0
    %7346 = vmatmul.mubr.f32.gmra.mrb[0].mxu0 %v7230
    %v7347 = vpop.f32.mrb[0].mxu0
    %v7348 = vadd.f32 0.0, %v7347
    %v7349 = vpop.f32.mrb[0].mxu0
    %7350 = vmatprep.mubr.f32.mxu0 0.0
    %7351 = vmatmul.mubr.f32.gmra.mrb[0].mxu0 %v7233
    %v7352 = vpop.f32.mrb[0].mxu0
    %v7353 = vadd.f32 0.0, %v7352
    %v7354 = vpop.f32.mrb[0].mxu0
    %7355 = vmatprep.mubr.f32.mxu0 0.0
    %7356 = vmatmul.mubr.f32.gmra.mrb[0].mxu0 %v7236
    %v7357 = vpop.f32.mrb[0].mxu0
    %v7358 = vadd.f32 0.0, %v7357
    %v7359 = vpop.f32.mrb[0].mxu0
    %7360 = vmatprep.mubr.f32.mxu0 0.0
    %7361 = vmatmul.mubr.f32.gmra.mrb[0].mxu0 %v7239
    %v7362 = vpop.f32.mrb[0].mxu0
    %v7363 = vadd.f32 0.0, %v7362
    %v7364 = vpop.f32.mrb[0].mxu0
    %7365 = vmatprep.mubr.f32.mxu0 0.0
    %7366 = vmatmul.mubr.f32.gmra.mrb[0].mxu0 %v7242
    %v7367 = vpop.f32.mrb[0].mxu0
    %v7368 = vadd.f32 0.0, %v7367
    %v7369 = vpop.f32.mrb[0].mxu0
    %7370 = vmatprep.mubr.f32.mxu0 0.0
    %7371 = vmatmul.mubr.f32.gmra.mrb[0].mxu0 %v7245
    %v7372 = vpop.f32.mrb[0].mxu0
    %v7373 = vadd.f32 0.0, %v7372
    %v7374 = vpop.f32.mrb[0].mxu0
    %7375 = vmatprep.mubr.f32.mxu0 0.0
    %7376 = vmatmul.mubr.f32.gmra.mrb[0].mxu0 %v7248
    %v7377 = vpop.f32.mrb[0].mxu0
    %v7378 = vadd.f32 0.0, %v7377
    %v7379 = vpop.f32.mrb[0].mxu0
    %7380 = vmatprep.mubr.f32.mxu0 0.0
    %7381 = vmatmul.mubr.f32.gmra.mrb[0].mxu0 %v7251
    %v7382 = vpop.f32.mrb[0].mxu0
    %v7383 = vadd.f32 0.0, %v7382
    %v7384 = vpop.f32.mrb[0].mxu0
    %7385 = vmatprep.mubr.f32.mxu0 0.0
    %7386 = vmatmul.mubr.f32.gmra.mrb[0].mxu0 %v7254
    %v7387 = vpop.f32.mrb[0].mxu0
    %v7388 = vadd.f32 0.0, %v7387
    %v7389 = vpop.f32.mrb[0].mxu0
    %7390 = vmatprep.mubr.f32.mxu0 0.0
    %7391 = vmatmul.mubr.f32.gmra.mrb[0].mxu0 %v7257
    %v7392 = vpop.f32.mrb[0].mxu0
    %v7393 = vadd.f32 0.0, %v7392
    %v7394 = vpop.f32.mrb[0].mxu0
    %7395 = vmatprep.mubr.f32.mxu0 0.0
    %7396 = vmatmul.mubr.f32.gmra.mrb[0].mxu0 %v7260
    %v7397 = vpop.f32.mrb[0].mxu0
    %v7398 = vadd.f32 0.0, %v7397
    %v7399 = vpop.f32.mrb[0].mxu0
    %7400 = vmatprep.mubr.f32.mxu0 0.0
    %7401 = vmatmul.mubr.f32.gmra.mrb[0].mxu0 %v7263
    %v7402 = vpop.f32.mrb[0].mxu0
    %v7403 = vadd.f32 0.0, %v7402
    %v7404 = vpop.f32.mrb[0].mxu0
    %7405 = vmatprep.mubr.f32.mxu0 0.0
    %7406 = vmatmul.mubr.f32.gmra.mrb[0].mxu0 %v7266
    %v7407 = vpop.f32.mrb[0].mxu0
    %v7408 = vadd.f32 0.0, %v7407
    %v7409 = vpop.f32.mrb[0].mxu0
    %7410 = vmatprep.mubr.f32.mxu0 0.0
    %7411 = vmatmul.mubr.f32.gmra.mrb[0].mxu0 %v7269
    %v7412 = vpop.f32.mrb[0].mxu0
    %v7413 = vadd.f32 0.0, %v7412
    %v7414 = vpop.f32.mrb[0].mxu0
    %7415 = vdwg.mxu0
    %v7416 = vadd.f32 %v6596, %v7338
    %v7417 = vadd.f32 %v6597, %v7343
    %v7418 = vadd.f32 %v6598, %v7348
    %v7419 = vadd.f32 %v6599, %v7353
    %v7420 = vadd.f32 %v6600, %v7358
    %v7421 = vadd.f32 %v6601, %v7363
    %v7422 = vadd.f32 %v6602, %v7368
    %v7423 = vadd.f32 %v6603, %v7373
    %v7424 = vadd.f32 %v6604, %v7378
    %v7425 = vadd.f32 %v6605, %v7383
    %v7426 = vadd.f32 %v6606, %v7388
    %v7427 = vadd.f32 %v6607, %v7393
    %v7428 = vadd.f32 %v6608, %v7398
    %v7429 = vadd.f32 %v6609, %v7403
    %v7430 = vadd.f32 %v6610, %v7408
    %v7431 = vadd.f32 %v6611, %v7413
    %7448 = vrot.lane.b32.xlu0 %v7416, 64
    %v7449 = vpop.permute.xlu0 %7448
    %7450 = vrot.lane.b32.xlu0 %v7417, 64
    %v7451 = vpop.permute.xlu0 %7450
    %7452 = vrot.lane.b32.xlu0 %v7418, 64
    %v7453 = vpop.permute.xlu0 %7452
    %7454 = vrot.lane.b32.xlu0 %v7419, 64
    %v7455 = vpop.permute.xlu0 %7454
    %7456 = vrot.lane.b32.xlu0 %v7420, 64
    %v7457 = vpop.permute.xlu0 %7456
    %7458 = vrot.lane.b32.xlu0 %v7421, 64
    %v7459 = vpop.permute.xlu0 %7458
    %7460 = vrot.lane.b32.xlu0 %v7422, 64
    %v7461 = vpop.permute.xlu0 %7460
    %7462 = vrot.lane.b32.xlu0 %v7423, 64
    %v7463 = vpop.permute.xlu0 %7462
    %7464 = vrot.lane.b32.xlu0 %v7424, 64
    %v7465 = vpop.permute.xlu0 %7464
    %7466 = vrot.lane.b32.xlu0 %v7425, 64
    %v7467 = vpop.permute.xlu0 %7466
    %7468 = vrot.lane.b32.xlu0 %v7426, 64
    %v7469 = vpop.permute.xlu0 %7468
    %7470 = vrot.lane.b32.xlu0 %v7427, 64
    %v7471 = vpop.permute.xlu0 %7470
    %7472 = vrot.lane.b32.xlu0 %v7428, 64
    %v7473 = vpop.permute.xlu0 %7472
    %7474 = vrot.lane.b32.xlu0 %v7429, 64
    %v7475 = vpop.permute.xlu0 %7474
    %7476 = vrot.lane.b32.xlu0 %v7430, 64
    %v7477 = vpop.permute.xlu0 %7476
    %7478 = vrot.lane.b32.xlu0 %v7431, 64
    %v7479 = vpop.permute.xlu0 %7478
    %vm7496 = vcmask 1048064
    %7497 = vst.msk [vmem:[#allocation2] sm:$0xff] %vm7496, %v7449
    %7498 = vst.msk [vmem:[#allocation2 + $0x8] sm:$0xff] %vm7496, %v7451
    %7499 = vst.msk [vmem:[#allocation2 + $0x10] sm:$0xff] %vm7496, %v7453
    %7500 = vst.msk [vmem:[#allocation2 + $0x18] sm:$0xff] %vm7496, %v7455
    %7501 = vst.msk [vmem:[#allocation2 + $0x20] sm:$0xff] %vm7496, %v7457
    %7502 = vst.msk [vmem:[#allocation2 + $0x28] sm:$0xff] %vm7496, %v7459
    %7503 = vst.msk [vmem:[#allocation2 + $0x30] sm:$0xff] %vm7496, %v7461
    %7504 = vst.msk [vmem:[#allocation2 + $0x38] sm:$0xff] %vm7496, %v7463
    %7505 = vst.msk [vmem:[#allocation2 + $0x40] sm:$0xff] %vm7496, %v7465
    %7506 = vst.msk [vmem:[#allocation2 + $0x48] sm:$0xff] %vm7496, %v7467
    %7507 = vst.msk [vmem:[#allocation2 + $0x50] sm:$0xff] %vm7496, %v7469
    %7508 = vst.msk [vmem:[#allocation2 + $0x58] sm:$0xff] %vm7496, %v7471
    %7509 = vst.msk [vmem:[#allocation2 + $0x60] sm:$0xff] %vm7496, %v7473
    %7510 = vst.msk [vmem:[#allocation2 + $0x68] sm:$0xff] %vm7496, %v7475
    %7511 = vst.msk [vmem:[#allocation2 + $0x70] sm:$0xff] %vm7496, %v7477
    %7512 = vst.msk [vmem:[#allocation2 + $0x78] sm:$0xff] %vm7496, %v7479
    // Predicated region
    $region14: #{tpu_custom_call.1} parent=1 // pred_check
      _
    $region15: #{tpu_custom_call.1} parent=1 // pred_check_branch
      %7514 = sbr.rel (0) target = $region17
    $region16: #{tpu_custom_call.1} parent=1 // pred_region
      %s7516 = ssub.s32 2048, 2048
      %7517 = vsyncadd [#allocation3], %s7516
      %s7518 = sshll.u32 [#allocation2], 4
      %s7519 = int_to_ptr.vmem [resolvable:$true] %s7518
      %7524 = dma.vmem_to_hbm [thread:$0]  %s7519, 2048, %s3, [#allocation3], 128, 128, 8
    $region17: #{tpu_custom_call.1} parent=1 // pred_fallthru
      _
    // Predicated region
    $region18: #{tpu_custom_call.1} parent=1 // pred_check
      _
    $region19: #{tpu_custom_call.1} parent=1 // pred_check_branch
      %7526 = sbr.rel (0) target = $region21
    $region20: #{tpu_custom_call.1} parent=1 // pred_region
      %7527 = dma.done [#allocation3], 2048
    $region21: #{tpu_custom_call.1} parent=1 // pred_fallthru
      _
    %7528 = vsyncpa [#allocation3], 1

</llo_original>
